<compile_context>
chip_gen: v6e
topology: v6e:2x2x1
jax: 0.10.0
libtpu: 0.0.40
codegen_flags: <defaults>
</compile_context>

<pallas_src>
import jax
import jax.numpy as jnp
from jax import lax
from jax.experimental import pallas as pl
from jax.experimental.pallas import tpu as pltpu


def _make_corr_kernel(C, TG, KS):
    """Kernel over folded tiles.

    first_ref : (1, C, TG, KS + 8)   folded `first`; 8 zero lanes in front, per-row
                                     stride S = W+8, row j data at lanes [8+j*S, 8+j*S+W)
    second_ref: (1, C, 9, TG, KS)    folded, dy-pre-shifted, zero-padded `second`
    out_ref   : (1, 81, TG, KS)      folded output (lanes [KS-8, KS) are never read back)
    """
    inv_c = 1.0 / float(C)
    n_d = 9
    w_out = KS - 8  # valid folded output width

    def _kernel(first_ref, second_ref, out_ref):
        # Sublane chunks: keep the 9 accumulators at (<=8, KS) to avoid spills even
        # when the DMA tile (TG) is large.
        for g0 in range(0, TG, 8):
            cg = min(8, TG - g0)

            # dx outer so the dx lane shift of `first` is hoisted out of the dy loop.
            for dx in range(n_d):

                def c_body(c, accs, _dx=dx, _g0=g0, _cg=cg):
                    # `first` loaded + cast once per (dx, c); reused for all 9 dy.
                    f_row = first_ref[0, c, _g0:_g0 + _cg, :].astype(jnp.float32)
                    # Static lane-offset slice = shift-by-dx frame (zeros wrap in
                    # from the front pad, so out-of-range products vanish).
                    f_dx = f_row[:, 8 - _dx:8 - _dx + KS]              # (cg, KS)
                    new = []
                    for dy in range(n_d):
                        band = second_ref[0, c, dy, _g0:_g0 + _cg, :].astype(
                            jnp.float32
                        )                                              # (cg, KS)
                        new.append(accs[dy] + f_dx * band)
                    return tuple(new)

                accs = tuple(jnp.zeros((cg, KS), jnp.float32) for _ in range(n_d))
                if C <= 8:
                    # Small channel counts: fully static unroll.
                    for c in range(C):
                        accs = c_body(c, accs)
                else:
                    # Large channel counts: rolled loop to bound code size.
                    accs = lax.fori_loop(0, C, c_body, accs)

                for dy in range(n_d):
                    # Undo the dx frame shift with a static lane slice; the last 8
                    # lanes of the out block are pad columns and stay unwritten.
                    vals = accs[dy][:, dx:dx + w_out] * inv_c
                    out_ref[0, dy * n_d + dx, g0:g0 + cg, 0:w_out] = vals.astype(
                        out_ref.dtype
                    )

    return _kernel


def _choose_fold(H, W):
    """Pick the row-fold factor k (rows folded into lanes) minimizing VALU vreg-ops
    per useful output for an (<=8, k*(W+8)) compute chunk."""
    S = W + 8
    best_k, best_cost = 1, None
    for k in range(1, min(H, 16) + 1):
        if H % k:
            continue
        KS = k * S
        if KS > 512:           # keep each accumulator <= 4 vregs wide
            continue
        G = H // k
        cg = min(G, 8)
        vregs = ((cg + 7) // 8) * ((KS + 127) // 128)
        useful = cg * k * W
        cost = vregs / useful
        better = best_cost is None or cost < best_cost - 1e-12 or (
            abs(cost - best_cost) <= 1e-12 and KS > best_k * S
        )
        if better:
            best_k, best_cost = k, cost
    return best_k, S


def _choose_tile(B, C, G, KS, itemsize):
    """Pick the group-tile size TG (BlockSpec dim), n_g and a per-generation VMEM cap."""

    def step_bytes(tg):
        # double-buffered first / second / out tiles
        return 2 * itemsize * tg * (C * (KS + 8) + 9 * C * KS + 81 * KS)

    try:
        cap = int(getattr(pltpu.get_tpu_info(), "vmem_capacity_bytes", 64 << 20))
    except Exception:
        cap = 64 << 20          # conservative default (v7x per-TC VMEM)
    budget = int(0.8 * cap)     # leave headroom for compiler-internal scratch

    # Valid TG: equal to full G, or a multiple-of-8 divisor of G (the (8,128) rule).
    cands = sorted({G} | {d for d in range(8, G + 1, 8) if G % d == 0})
    fitting = [d for d in cands if step_bytes(d) <= budget] or [cands[0]]
    if B == 1:
        multi = [d for d in fitting if G // d >= 2]
        if multi:
            fitting = multi     # keep >=2 grid steps so a v7x megacore has work
    tg = max(fitting)
    vmem_limit = int(min(budget, max(step_bytes(tg) + (4 << 20), 16 << 20)))
    return tg, G // tg, vmem_limit


def correlation(first, second):
    """PWC-Net correlation layer.

    Args:
      first, second: (B, C, H, W) arrays (NCHW, matching the PyTorch module).
    Returns:
      (B, 81, H, W) correlation volume (same dtype as `first`).
    """
    B, C, H, W = first.shape
    assert second.shape == first.shape

    k, S = _choose_fold(H, W)
    KS = k * S
    G = H // k
    itemsize = jnp.dtype(first.dtype).itemsize
    TG, n_g, vmem_limit = _choose_tile(B, C, G, KS, itemsize)

    # ---- wrapper-side layout plumbing (pads / reshapes only, no compute) ----
    # first: per-row zero pad W -> S, fold k rows into lanes, 8 zero lanes in front
    # so all 9 dx shifts are readable as static lane-offset loads.
    first_xpad = jnp.pad(first, ((0, 0), (0, 0), (0, 0), (0, 8)))        # (B,C,H,S)
    first_fold = first_xpad.reshape(B, C, G, KS)                          # (B,C,G,KS)
    first_store = jnp.pad(first_fold, ((0, 0), (0, 0), (0, 0), (8, 0)))   # (B,C,G,KS+8)

    # second: zero pad by 4 on each spatial side, then build the 9 dy-shifted folded
    # views (each is just a shifted reshape of the padded plane).
    second_pad = jnp.pad(second, ((0, 0), (0, 0), (4, 4), (4, 4)))        # (B,C,H+8,S)
    second_sh = jnp.stack(
        [second_pad[:, :, dy:dy + H, :].reshape(B, C, G, KS) for dy in range(9)],
        axis=2,
    )                                                                      # (B,C,9,G,KS)

    kernel = _make_corr_kernel(C, TG, KS)

    cost = pl.CostEstimate(
        flops=2 * B * 81 * H * W * C,
        transcendentals=0,
        bytes_accessed=itemsize
        * (B * C * G * (KS + 8) + B * C * 9 * G * KS + B * 81 * G * KS),
    )

    out_folded = pl.pallas_call(
        kernel,
        out_shape=jax.ShapeDtypeStruct((B, 81, G, KS), first.dtype),
        grid_spec=pltpu.PrefetchScalarGridSpec(
            num_scalar_prefetch=0,
            grid=(B, n_g),
            in_specs=[
                pl.BlockSpec((1, C, TG, KS + 8), lambda b, i: (b, 0, i, 0)),
                pl.BlockSpec((1, C, 9, TG, KS), lambda b, i: (b, 0, 0, i, 0)),
            ],
            out_specs=pl.BlockSpec((1, 81, TG, KS), lambda b, i: (b, 0, i, 0)),
        ),
        compiler_params=pltpu.CompilerParams(
            dimension_semantics=("parallel", "parallel"),
            vmem_limit_bytes=vmem_limit,
        ),
        cost_estimate=cost,
    )(first_store, second_sh)

    # Unfold: (B,81,G,k*S) -> (B,81,H,S) -> drop the per-row pad columns.
    out = out_folded.reshape(B, 81, H, S)[..., :W]
    return out


def _correlation_ref(first, second):
    """Pure-JAX reference (NCHW in, (B, 81, H, W) out)."""
    B, C, H, W = first.shape
    second_pad = jnp.pad(second, ((0, 0), (0, 0), (4, 4), (4, 4)))
    outs = []
    for dy in range(9):
        for dx in range(9):
            s = second_pad[:, :, dy:dy + H, dx:dx + W]
            outs.append(jnp.sum(first * s, axis=1) / C)
    return jnp.stack(outs, axis=1)


if __name__ == "__main__":
    key = jax.random.PRNGKey(0)
    k1, k2 = jax.random.split(key)
    B, C, H, W = 2, 4, 16, 16
    first = jax.random.normal(k1, (B, C, H, W), dtype=jnp.float32)
    second = jax.random.normal(k2, (B, C, H, W), dtype=jnp.float32)

    corr = jax.jit(correlation)
    out = jax.block_until_ready(corr(first, second))

    assert out.shape == (B, 81, H, W), out.shape
    ref = _correlation_ref(first, second)
    if not jnp.allclose(out, ref, atol=1e-5, rtol=1e-5):
        raise AssertionError("Pallas correlation output mismatch vs JAX reference")

    print("KERNEL_OK")
</pallas_src>

<mosaic_0001>
module attributes {stable_mosaic.version = 11 : i64} {
  func.func @_kernel(%arg0: i32, %arg1: i32, %arg2: memref<1x4x4x104xf32, #tpu.memory_space<vmem>>, %arg3: memref<1x4x9x4x96xf32, #tpu.memory_space<vmem>>, %arg4: memref<1x81x4x96xf32, #tpu.memory_space<vmem>>) attributes {dimension_semantics = [#tpu.dimension_semantics<parallel>, #tpu.dimension_semantics<parallel>], iteration_bounds = array<i64: 2, 1>, scalar_prefetch = 0 : i64, scratch_operands = 0 : i64, tpu.core_type = #tpu.core_type<tc>, window_params = [{transform_indices = @transform_0, window_bounds = array<i64: 1, 4, 4, 104>}, {transform_indices = @transform_1, window_bounds = array<i64: 1, 4, 9, 4, 96>}, {transform_indices = @transform_2, window_bounds = array<i64: 1, 81, 4, 96>}]} {
    %cst = arith.constant 0.000000e+00 : f32
    %0 = vector.broadcast %cst : f32 to vector<4x96xf32>
    %cst_0 = arith.constant 0.000000e+00 : f32
    %1 = vector.broadcast %cst_0 : f32 to vector<4x96xf32>
    %cst_1 = arith.constant 0.000000e+00 : f32
    %2 = vector.broadcast %cst_1 : f32 to vector<4x96xf32>
    %cst_2 = arith.constant 0.000000e+00 : f32
    %3 = vector.broadcast %cst_2 : f32 to vector<4x96xf32>
    %cst_3 = arith.constant 0.000000e+00 : f32
    %4 = vector.broadcast %cst_3 : f32 to vector<4x96xf32>
    %cst_4 = arith.constant 0.000000e+00 : f32
    %5 = vector.broadcast %cst_4 : f32 to vector<4x96xf32>
    %cst_5 = arith.constant 0.000000e+00 : f32
    %6 = vector.broadcast %cst_5 : f32 to vector<4x96xf32>
    %cst_6 = arith.constant 0.000000e+00 : f32
    %7 = vector.broadcast %cst_6 : f32 to vector<4x96xf32>
    %cst_7 = arith.constant 0.000000e+00 : f32
    %8 = vector.broadcast %cst_7 : f32 to vector<4x96xf32>
    %c0 = arith.constant 0 : index
    %c0_8 = arith.constant 0 : index
    %c0_9 = arith.constant 0 : index
    %c0_10 = arith.constant 0 : index
    %9 = vector.load %arg2[%c0, %c0_8, %c0_9, %c0_10] : memref<1x4x4x104xf32, #tpu.memory_space<vmem>>, vector<1x1x4x104xf32>
    %10 = vector.shape_cast %9 : vector<1x1x4x104xf32> to vector<4x104xf32>
    %11 = vector.extract_strided_slice %10 {offsets = [0, 8], sizes = [4, 96], strides = [1, 1]} : vector<4x104xf32> to vector<4x96xf32>
    %c0_11 = arith.constant 0 : index
    %c0_12 = arith.constant 0 : index
    %c0_13 = arith.constant 0 : index
    %c0_14 = arith.constant 0 : index
    %c0_15 = arith.constant 0 : index
    %12 = vector.load %arg3[%c0_11, %c0_12, %c0_13, %c0_14, %c0_15] : memref<1x4x9x4x96xf32, #tpu.memory_space<vmem>>, vector<1x1x1x4x96xf32>
    %13 = vector.shape_cast %12 : vector<1x1x1x4x96xf32> to vector<4x96xf32>
    %14 = arith.mulf %11, %13 : vector<4x96xf32>
    %15 = arith.addf %0, %14 : vector<4x96xf32>
    %c0_16 = arith.constant 0 : index
    %c0_17 = arith.constant 0 : index
    %c1 = arith.constant 1 : index
    %c0_18 = arith.constant 0 : index
    %c0_19 = arith.constant 0 : index
    %16 = vector.load %arg3[%c0_16, %c0_17, %c1, %c0_18, %c0_19] : memref<1x4x9x4x96xf32, #tpu.memory_space<vmem>>, vector<1x1x1x4x96xf32>
    %17 = vector.shape_cast %16 : vector<1x1x1x4x96xf32> to vector<4x96xf32>
    %18 = arith.mulf %11, %17 : vector<4x96xf32>
    %19 = arith.addf %1, %18 : vector<4x96xf32>
    %c0_20 = arith.constant 0 : index
    %c0_21 = arith.constant 0 : index
    %c2 = arith.constant 2 : index
    %c0_22 = arith.constant 0 : index
    %c0_23 = arith.constant 0 : index
    %20 = vector.load %arg3[%c0_20, %c0_21, %c2, %c0_22, %c0_23] : memref<1x4x9x4x96xf32, #tpu.memory_space<vmem>>, vector<1x1x1x4x96xf32>
    %21 = vector.shape_cast %20 : vector<1x1x1x4x96xf32> to vector<4x96xf32>
    %22 = arith.mulf %11, %21 : vector<4x96xf32>
    %23 = arith.addf %2, %22 : vector<4x96xf32>
    %c0_24 = arith.constant 0 : index
    %c0_25 = arith.constant 0 : index
    %c3 = arith.constant 3 : index
    %c0_26 = arith.constant 0 : index
    %c0_27 = arith.constant 0 : index
    %24 = vector.load %arg3[%c0_24, %c0_25, %c3, %c0_26, %c0_27] : memref<1x4x9x4x96xf32, #tpu.memory_space<vmem>>, vector<1x1x1x4x96xf32>
    %25 = vector.shape_cast %24 : vector<1x1x1x4x96xf32> to vector<4x96xf32>
    %26 = arith.mulf %11, %25 : vector<4x96xf32>
    %27 = arith.addf %3, %26 : vector<4x96xf32>
    %c0_28 = arith.constant 0 : index
    %c0_29 = arith.constant 0 : index
    %c4 = arith.constant 4 : index
    %c0_30 = arith.constant 0 : index
    %c0_31 = arith.constant 0 : index
    %28 = vector.load %arg3[%c0_28, %c0_29, %c4, %c0_30, %c0_31] : memref<1x4x9x4x96xf32, #tpu.memory_space<vmem>>, vector<1x1x1x4x96xf32>
    %29 = vector.shape_cast %28 : vector<1x1x1x4x96xf32> to vector<4x96xf32>
    %30 = arith.mulf %11, %29 : vector<4x96xf32>
    %31 = arith.addf %4, %30 : vector<4x96xf32>
    %c0_32 = arith.constant 0 : index
    %c0_33 = arith.constant 0 : index
    %c5 = arith.constant 5 : index
    %c0_34 = arith.constant 0 : index
    %c0_35 = arith.constant 0 : index
    %32 = vector.load %arg3[%c0_32, %c0_33, %c5, %c0_34, %c0_35] : memref<1x4x9x4x96xf32, #tpu.memory_space<vmem>>, vector<1x1x1x4x96xf32>
    %33 = vector.shape_cast %32 : vector<1x1x1x4x96xf32> to vector<4x96xf32>
    %34 = arith.mulf %11, %33 : vector<4x96xf32>
    %35 = arith.addf %5, %34 : vector<4x96xf32>
    %c0_36 = arith.constant 0 : index
    %c0_37 = arith.constant 0 : index
    %c6 = arith.constant 6 : index
    %c0_38 = arith.constant 0 : index
    %c0_39 = arith.constant 0 : index
    %36 = vector.load %arg3[%c0_36, %c0_37, %c6, %c0_38, %c0_39] : memref<1x4x9x4x96xf32, #tpu.memory_space<vmem>>, vector<1x1x1x4x96xf32>
    %37 = vector.shape_cast %36 : vector<1x1x1x4x96xf32> to vector<4x96xf32>
    %38 = arith.mulf %11, %37 : vector<4x96xf32>
    %39 = arith.addf %6, %38 : vector<4x96xf32>
    %c0_40 = arith.constant 0 : index
    %c0_41 = arith.constant 0 : index
    %c7 = arith.constant 7 : index
    %c0_42 = arith.constant 0 : index
    %c0_43 = arith.constant 0 : index
    %40 = vector.load %arg3[%c0_40, %c0_41, %c7, %c0_42, %c0_43] : memref<1x4x9x4x96xf32, #tpu.memory_space<vmem>>, vector<1x1x1x4x96xf32>
    %41 = vector.shape_cast %40 : vector<1x1x1x4x96xf32> to vector<4x96xf32>
    %42 = arith.mulf %11, %41 : vector<4x96xf32>
    %43 = arith.addf %7, %42 : vector<4x96xf32>
    %c0_44 = arith.constant 0 : index
    %c0_45 = arith.constant 0 : index
    %c8 = arith.constant 8 : index
    %c0_46 = arith.constant 0 : index
    %c0_47 = arith.constant 0 : index
    %44 = vector.load %arg3[%c0_44, %c0_45, %c8, %c0_46, %c0_47] : memref<1x4x9x4x96xf32, #tpu.memory_space<vmem>>, vector<1x1x1x4x96xf32>
    %45 = vector.shape_cast %44 : vector<1x1x1x4x96xf32> to vector<4x96xf32>
    %46 = arith.mulf %11, %45 : vector<4x96xf32>
    %47 = arith.addf %8, %46 : vector<4x96xf32>
    %c0_48 = arith.constant 0 : index
    %c1_49 = arith.constant 1 : index
    %c0_50 = arith.constant 0 : index
    %c0_51 = arith.constant 0 : index
    %48 = vector.load %arg2[%c0_48, %c1_49, %c0_50, %c0_51] : memref<1x4x4x104xf32, #tpu.memory_space<vmem>>, vector<1x1x4x104xf32>
    %49 = vector.shape_cast %48 : vector<1x1x4x104xf32> to vector<4x104xf32>
    %50 = vector.extract_strided_slice %49 {offsets = [0, 8], sizes = [4, 96], strides = [1, 1]} : vector<4x104xf32> to vector<4x96xf32>
    %c0_52 = arith.constant 0 : index
    %c1_53 = arith.constant 1 : index
    %c0_54 = arith.constant 0 : index
    %c0_55 = arith.constant 0 : index
    %c0_56 = arith.constant 0 : index
    %51 = vector.load %arg3[%c0_52, %c1_53, %c0_54, %c0_55, %c0_56] : memref<1x4x9x4x96xf32, #tpu.memory_space<vmem>>, vector<1x1x1x4x96xf32>
    %52 = vector.shape_cast %51 : vector<1x1x1x4x96xf32> to vector<4x96xf32>
    %53 = arith.mulf %50, %52 : vector<4x96xf32>
    %54 = arith.addf %15, %53 : vector<4x96xf32>
    %c0_57 = arith.constant 0 : index
    %c1_58 = arith.constant 1 : index
    %c1_59 = arith.constant 1 : index
    %c0_60 = arith.constant 0 : index
    %c0_61 = arith.constant 0 : index
    %55 = vector.load %arg3[%c0_57, %c1_58, %c1_59, %c0_60, %c0_61] : memref<1x4x9x4x96xf32, #tpu.memory_space<vmem>>, vector<1x1x1x4x96xf32>
    %56 = vector.shape_cast %55 : vector<1x1x1x4x96xf32> to vector<4x96xf32>
    %57 = arith.mulf %50, %56 : vector<4x96xf32>
    %58 = arith.addf %19, %57 : vector<4x96xf32>
    %c0_62 = arith.constant 0 : index
    %c1_63 = arith.constant 1 : index
    %c2_64 = arith.constant 2 : index
    %c0_65 = arith.constant 0 : index
    %c0_66 = arith.constant 0 : index
    %59 = vector.load %arg3[%c0_62, %c1_63, %c2_64, %c0_65, %c0_66] : memref<1x4x9x4x96xf32, #tpu.memory_space<vmem>>, vector<1x1x1x4x96xf32>
    %60 = vector.shape_cast %59 : vector<1x1x1x4x96xf32> to vector<4x96xf32>
    %61 = arith.mulf %50, %60 : vector<4x96xf32>
    %62 = arith.addf %23, %61 : vector<4x96xf32>
    %c0_67 = arith.constant 0 : index
    %c1_68 = arith.constant 1 : index
    %c3_69 = arith.constant 3 : index
    %c0_70 = arith.constant 0 : index
    %c0_71 = arith.constant 0 : index
    %63 = vector.load %arg3[%c0_67, %c1_68, %c3_69, %c0_70, %c0_71] : memref<1x4x9x4x96xf32, #tpu.memory_space<vmem>>, vector<1x1x1x4x96xf32>
    %64 = vector.shape_cast %63 : vector<1x1x1x4x96xf32> to vector<4x96xf32>
    %65 = arith.mulf %50, %64 : vector<4x96xf32>
    %66 = arith.addf %27, %65 : vector<4x96xf32>
    %c0_72 = arith.constant 0 : index
    %c1_73 = arith.constant 1 : index
    %c4_74 = arith.constant 4 : index
    %c0_75 = arith.constant 0 : index
    %c0_76 = arith.constant 0 : index
    %67 = vector.load %arg3[%c0_72, %c1_73, %c4_74, %c0_75, %c0_76] : memref<1x4x9x4x96xf32, #tpu.memory_space<vmem>>, vector<1x1x1x4x96xf32>
    %68 = vector.shape_cast %67 : vector<1x1x1x4x96xf32> to vector<4x96xf32>
    %69 = arith.mulf %50, %68 : vector<4x96xf32>
    %70 = arith.addf %31, %69 : vector<4x96xf32>
    %c0_77 = arith.constant 0 : index
    %c1_78 = arith.constant 1 : index
    %c5_79 = arith.constant 5 : index
    %c0_80 = arith.constant 0 : index
    %c0_81 = arith.constant 0 : index
    %71 = vector.load %arg3[%c0_77, %c1_78, %c5_79, %c0_80, %c0_81] : memref<1x4x9x4x96xf32, #tpu.memory_space<vmem>>, vector<1x1x1x4x96xf32>
    %72 = vector.shape_cast %71 : vector<1x1x1x4x96xf32> to vector<4x96xf32>
    %73 = arith.mulf %50, %72 : vector<4x96xf32>
    %74 = arith.addf %35, %73 : vector<4x96xf32>
    %c0_82 = arith.constant 0 : index
    %c1_83 = arith.constant 1 : index
    %c6_84 = arith.constant 6 : index
    %c0_85 = arith.constant 0 : index
    %c0_86 = arith.constant 0 : index
    %75 = vector.load %arg3[%c0_82, %c1_83, %c6_84, %c0_85, %c0_86] : memref<1x4x9x4x96xf32, #tpu.memory_space<vmem>>, vector<1x1x1x4x96xf32>
    %76 = vector.shape_cast %75 : vector<1x1x1x4x96xf32> to vector<4x96xf32>
    %77 = arith.mulf %50, %76 : vector<4x96xf32>
    %78 = arith.addf %39, %77 : vector<4x96xf32>
    %c0_87 = arith.constant 0 : index
    %c1_88 = arith.constant 1 : index
    %c7_89 = arith.constant 7 : index
    %c0_90 = arith.constant 0 : index
    %c0_91 = arith.constant 0 : index
    %79 = vector.load %arg3[%c0_87, %c1_88, %c7_89, %c0_90, %c0_91] : memref<1x4x9x4x96xf32, #tpu.memory_space<vmem>>, vector<1x1x1x4x96xf32>
    %80 = vector.shape_cast %79 : vector<1x1x1x4x96xf32> to vector<4x96xf32>
    %81 = arith.mulf %50, %80 : vector<4x96xf32>
    %82 = arith.addf %43, %81 : vector<4x96xf32>
    %c0_92 = arith.constant 0 : index
    %c1_93 = arith.constant 1 : index
    %c8_94 = arith.constant 8 : index
    %c0_95 = arith.constant 0 : index
    %c0_96 = arith.constant 0 : index
    %83 = vector.load %arg3[%c0_92, %c1_93, %c8_94, %c0_95, %c0_96] : memref<1x4x9x4x96xf32, #tpu.memory_space<vmem>>, vector<1x1x1x4x96xf32>
    %84 = vector.shape_cast %83 : vector<1x1x1x4x96xf32> to vector<4x96xf32>
    %85 = arith.mulf %50, %84 : vector<4x96xf32>
    %86 = arith.addf %47, %85 : vector<4x96xf32>
    %c0_97 = arith.constant 0 : index
    %c2_98 = arith.constant 2 : index
    %c0_99 = arith.constant 0 : index
    %c0_100 = arith.constant 0 : index
    %87 = vector.load %arg2[%c0_97, %c2_98, %c0_99, %c0_100] : memref<1x4x4x104xf32, #tpu.memory_space<vmem>>, vector<1x1x4x104xf32>
    %88 = vector.shape_cast %87 : vector<1x1x4x104xf32> to vector<4x104xf32>
    %89 = vector.extract_strided_slice %88 {offsets = [0, 8], sizes = [4, 96], strides = [1, 1]} : vector<4x104xf32> to vector<4x96xf32>
    %c0_101 = arith.constant 0 : index
    %c2_102 = arith.constant 2 : index
    %c0_103 = arith.constant 0 : index
    %c0_104 = arith.constant 0 : index
    %c0_105 = arith.constant 0 : index
    %90 = vector.load %arg3[%c0_101, %c2_102, %c0_103, %c0_104, %c0_105] : memref<1x4x9x4x96xf32, #tpu.memory_space<vmem>>, vector<1x1x1x4x96xf32>
    %91 = vector.shape_cast %90 : vector<1x1x1x4x96xf32> to vector<4x96xf32>
    %92 = arith.mulf %89, %91 : vector<4x96xf32>
    %93 = arith.addf %54, %92 : vector<4x96xf32>
    %c0_106 = arith.constant 0 : index
    %c2_107 = arith.constant 2 : index
    %c1_108 = arith.constant 1 : index
    %c0_109 = arith.constant 0 : index
    %c0_110 = arith.constant 0 : index
    %94 = vector.load %arg3[%c0_106, %c2_107, %c1_108, %c0_109, %c0_110] : memref<1x4x9x4x96xf32, #tpu.memory_space<vmem>>, vector<1x1x1x4x96xf32>
    %95 = vector.shape_cast %94 : vector<1x1x1x4x96xf32> to vector<4x96xf32>
    %96 = arith.mulf %89, %95 : vector<4x96xf32>
    %97 = arith.addf %58, %96 : vector<4x96xf32>
    %c0_111 = arith.constant 0 : index
    %c2_112 = arith.constant 2 : index
    %c2_113 = arith.constant 2 : index
    %c0_114 = arith.constant 0 : index
    %c0_115 = arith.constant 0 : index
    %98 = vector.load %arg3[%c0_111, %c2_112, %c2_113, %c0_114, %c0_115] : memref<1x4x9x4x96xf32, #tpu.memory_space<vmem>>, vector<1x1x1x4x96xf32>
    %99 = vector.shape_cast %98 : vector<1x1x1x4x96xf32> to vector<4x96xf32>
    %100 = arith.mulf %89, %99 : vector<4x96xf32>
    %101 = arith.addf %62, %100 : vector<4x96xf32>
    %c0_116 = arith.constant 0 : index
    %c2_117 = arith.constant 2 : index
    %c3_118 = arith.constant 3 : index
    %c0_119 = arith.constant 0 : index
    %c0_120 = arith.constant 0 : index
    %102 = vector.load %arg3[%c0_116, %c2_117, %c3_118, %c0_119, %c0_120] : memref<1x4x9x4x96xf32, #tpu.memory_space<vmem>>, vector<1x1x1x4x96xf32>
    %103 = vector.shape_cast %102 : vector<1x1x1x4x96xf32> to vector<4x96xf32>
    %104 = arith.mulf %89, %103 : vector<4x96xf32>
    %105 = arith.addf %66, %104 : vector<4x96xf32>
    %c0_121 = arith.constant 0 : index
    %c2_122 = arith.constant 2 : index
    %c4_123 = arith.constant 4 : index
    %c0_124 = arith.constant 0 : index
    %c0_125 = arith.constant 0 : index
    %106 = vector.load %arg3[%c0_121, %c2_122, %c4_123, %c0_124, %c0_125] : memref<1x4x9x4x96xf32, #tpu.memory_space<vmem>>, vector<1x1x1x4x96xf32>
    %107 = vector.shape_cast %106 : vector<1x1x1x4x96xf32> to vector<4x96xf32>
    %108 = arith.mulf %89, %107 : vector<4x96xf32>
    %109 = arith.addf %70, %108 : vector<4x96xf32>
    %c0_126 = arith.constant 0 : index
    %c2_127 = arith.constant 2 : index
    %c5_128 = arith.constant 5 : index
    %c0_129 = arith.constant 0 : index
    %c0_130 = arith.constant 0 : index
    %110 = vector.load %arg3[%c0_126, %c2_127, %c5_128, %c0_129, %c0_130] : memref<1x4x9x4x96xf32, #tpu.memory_space<vmem>>, vector<1x1x1x4x96xf32>
    %111 = vector.shape_cast %110 : vector<1x1x1x4x96xf32> to vector<4x96xf32>
    %112 = arith.mulf %89, %111 : vector<4x96xf32>
    %113 = arith.addf %74, %112 : vector<4x96xf32>
    %c0_131 = arith.constant 0 : index
    %c2_132 = arith.constant 2 : index
    %c6_133 = arith.constant 6 : index
    %c0_134 = arith.constant 0 : index
    %c0_135 = arith.constant 0 : index
    %114 = vector.load %arg3[%c0_131, %c2_132, %c6_133, %c0_134, %c0_135] : memref<1x4x9x4x96xf32, #tpu.memory_space<vmem>>, vector<1x1x1x4x96xf32>
    %115 = vector.shape_cast %114 : vector<1x1x1x4x96xf32> to vector<4x96xf32>
    %116 = arith.mulf %89, %115 : vector<4x96xf32>
    %117 = arith.addf %78, %116 : vector<4x96xf32>
    %c0_136 = arith.constant 0 : index
    %c2_137 = arith.constant 2 : index
    %c7_138 = arith.constant 7 : index
    %c0_139 = arith.constant 0 : index
    %c0_140 = arith.constant 0 : index
    %118 = vector.load %arg3[%c0_136, %c2_137, %c7_138, %c0_139, %c0_140] : memref<1x4x9x4x96xf32, #tpu.memory_space<vmem>>, vector<1x1x1x4x96xf32>
    %119 = vector.shape_cast %118 : vector<1x1x1x4x96xf32> to vector<4x96xf32>
    %120 = arith.mulf %89, %119 : vector<4x96xf32>
    %121 = arith.addf %82, %120 : vector<4x96xf32>
    %c0_141 = arith.constant 0 : index
    %c2_142 = arith.constant 2 : index
    %c8_143 = arith.constant 8 : index
    %c0_144 = arith.constant 0 : index
    %c0_145 = arith.constant 0 : index
    %122 = vector.load %arg3[%c0_141, %c2_142, %c8_143, %c0_144, %c0_145] : memref<1x4x9x4x96xf32, #tpu.memory_space<vmem>>, vector<1x1x1x4x96xf32>
    %123 = vector.shape_cast %122 : vector<1x1x1x4x96xf32> to vector<4x96xf32>
    %124 = arith.mulf %89, %123 : vector<4x96xf32>
    %125 = arith.addf %86, %124 : vector<4x96xf32>
    %c0_146 = arith.constant 0 : index
    %c3_147 = arith.constant 3 : index
    %c0_148 = arith.constant 0 : index
    %c0_149 = arith.constant 0 : index
    %126 = vector.load %arg2[%c0_146, %c3_147, %c0_148, %c0_149] : memref<1x4x4x104xf32, #tpu.memory_space<vmem>>, vector<1x1x4x104xf32>
    %127 = vector.shape_cast %126 : vector<1x1x4x104xf32> to vector<4x104xf32>
    %128 = vector.extract_strided_slice %127 {offsets = [0, 8], sizes = [4, 96], strides = [1, 1]} : vector<4x104xf32> to vector<4x96xf32>
    %c0_150 = arith.constant 0 : index
    %c3_151 = arith.constant 3 : index
    %c0_152 = arith.constant 0 : index
    %c0_153 = arith.constant 0 : index
    %c0_154 = arith.constant 0 : index
    %129 = vector.load %arg3[%c0_150, %c3_151, %c0_152, %c0_153, %c0_154] : memref<1x4x9x4x96xf32, #tpu.memory_space<vmem>>, vector<1x1x1x4x96xf32>
    %130 = vector.shape_cast %129 : vector<1x1x1x4x96xf32> to vector<4x96xf32>
    %131 = arith.mulf %128, %130 : vector<4x96xf32>
    %132 = arith.addf %93, %131 : vector<4x96xf32>
    %c0_155 = arith.constant 0 : index
    %c3_156 = arith.constant 3 : index
    %c1_157 = arith.constant 1 : index
    %c0_158 = arith.constant 0 : index
    %c0_159 = arith.constant 0 : index
    %133 = vector.load %arg3[%c0_155, %c3_156, %c1_157, %c0_158, %c0_159] : memref<1x4x9x4x96xf32, #tpu.memory_space<vmem>>, vector<1x1x1x4x96xf32>
    %134 = vector.shape_cast %133 : vector<1x1x1x4x96xf32> to vector<4x96xf32>
    %135 = arith.mulf %128, %134 : vector<4x96xf32>
    %136 = arith.addf %97, %135 : vector<4x96xf32>
    %c0_160 = arith.constant 0 : index
    %c3_161 = arith.constant 3 : index
    %c2_162 = arith.constant 2 : index
    %c0_163 = arith.constant 0 : index
    %c0_164 = arith.constant 0 : index
    %137 = vector.load %arg3[%c0_160, %c3_161, %c2_162, %c0_163, %c0_164] : memref<1x4x9x4x96xf32, #tpu.memory_space<vmem>>, vector<1x1x1x4x96xf32>
    %138 = vector.shape_cast %137 : vector<1x1x1x4x96xf32> to vector<4x96xf32>
    %139 = arith.mulf %128, %138 : vector<4x96xf32>
    %140 = arith.addf %101, %139 : vector<4x96xf32>
    %c0_165 = arith.constant 0 : index
    %c3_166 = arith.constant 3 : index
    %c3_167 = arith.constant 3 : index
    %c0_168 = arith.constant 0 : index
    %c0_169 = arith.constant 0 : index
    %141 = vector.load %arg3[%c0_165, %c3_166, %c3_167, %c0_168, %c0_169] : memref<1x4x9x4x96xf32, #tpu.memory_space<vmem>>, vector<1x1x1x4x96xf32>
    %142 = vector.shape_cast %141 : vector<1x1x1x4x96xf32> to vector<4x96xf32>
    %143 = arith.mulf %128, %142 : vector<4x96xf32>
    %144 = arith.addf %105, %143 : vector<4x96xf32>
    %c0_170 = arith.constant 0 : index
    %c3_171 = arith.constant 3 : index
    %c4_172 = arith.constant 4 : index
    %c0_173 = arith.constant 0 : index
    %c0_174 = arith.constant 0 : index
    %145 = vector.load %arg3[%c0_170, %c3_171, %c4_172, %c0_173, %c0_174] : memref<1x4x9x4x96xf32, #tpu.memory_space<vmem>>, vector<1x1x1x4x96xf32>
    %146 = vector.shape_cast %145 : vector<1x1x1x4x96xf32> to vector<4x96xf32>
    %147 = arith.mulf %128, %146 : vector<4x96xf32>
    %148 = arith.addf %109, %147 : vector<4x96xf32>
    %c0_175 = arith.constant 0 : index
    %c3_176 = arith.constant 3 : index
    %c5_177 = arith.constant 5 : index
    %c0_178 = arith.constant 0 : index
    %c0_179 = arith.constant 0 : index
    %149 = vector.load %arg3[%c0_175, %c3_176, %c5_177, %c0_178, %c0_179] : memref<1x4x9x4x96xf32, #tpu.memory_space<vmem>>, vector<1x1x1x4x96xf32>
    %150 = vector.shape_cast %149 : vector<1x1x1x4x96xf32> to vector<4x96xf32>
    %151 = arith.mulf %128, %150 : vector<4x96xf32>
    %152 = arith.addf %113, %151 : vector<4x96xf32>
    %c0_180 = arith.constant 0 : index
    %c3_181 = arith.constant 3 : index
    %c6_182 = arith.constant 6 : index
    %c0_183 = arith.constant 0 : index
    %c0_184 = arith.constant 0 : index
    %153 = vector.load %arg3[%c0_180, %c3_181, %c6_182, %c0_183, %c0_184] : memref<1x4x9x4x96xf32, #tpu.memory_space<vmem>>, vector<1x1x1x4x96xf32>
    %154 = vector.shape_cast %153 : vector<1x1x1x4x96xf32> to vector<4x96xf32>
    %155 = arith.mulf %128, %154 : vector<4x96xf32>
    %156 = arith.addf %117, %155 : vector<4x96xf32>
    %c0_185 = arith.constant 0 : index
    %c3_186 = arith.constant 3 : index
    %c7_187 = arith.constant 7 : index
    %c0_188 = arith.constant 0 : index
    %c0_189 = arith.constant 0 : index
    %157 = vector.load %arg3[%c0_185, %c3_186, %c7_187, %c0_188, %c0_189] : memref<1x4x9x4x96xf32, #tpu.memory_space<vmem>>, vector<1x1x1x4x96xf32>
    %158 = vector.shape_cast %157 : vector<1x1x1x4x96xf32> to vector<4x96xf32>
    %159 = arith.mulf %128, %158 : vector<4x96xf32>
    %160 = arith.addf %121, %159 : vector<4x96xf32>
    %c0_190 = arith.constant 0 : index
    %c3_191 = arith.constant 3 : index
    %c8_192 = arith.constant 8 : index
    %c0_193 = arith.constant 0 : index
    %c0_194 = arith.constant 0 : index
    %161 = vector.load %arg3[%c0_190, %c3_191, %c8_192, %c0_193, %c0_194] : memref<1x4x9x4x96xf32, #tpu.memory_space<vmem>>, vector<1x1x1x4x96xf32>
    %162 = vector.shape_cast %161 : vector<1x1x1x4x96xf32> to vector<4x96xf32>
    %163 = arith.mulf %128, %162 : vector<4x96xf32>
    %164 = arith.addf %125, %163 : vector<4x96xf32>
    %165 = vector.extract_strided_slice %132 {offsets = [0, 0], sizes = [4, 88], strides = [1, 1]} : vector<4x96xf32> to vector<4x88xf32>
    %cst_195 = arith.constant 2.500000e-01 : f32
    %166 = vector.broadcast %cst_195 : f32 to vector<4x88xf32>
    %167 = arith.mulf %165, %166 : vector<4x88xf32>
    %c0_196 = arith.constant 0 : index
    %c0_197 = arith.constant 0 : index
    %c0_198 = arith.constant 0 : index
    %c0_199 = arith.constant 0 : index
    %168 = vector.load %arg4[%c0_196, %c0_197, %c0_198, %c0_199] : memref<1x81x4x96xf32, #tpu.memory_space<vmem>>, vector<1x1x4x88xf32>
    %169 = vector.shape_cast %168 : vector<1x1x4x88xf32> to vector<4x88xf32>
    %170 = vector.shape_cast %167 : vector<4x88xf32> to vector<1x1x4x88xf32>
    tpu.vector_store %arg4[%c0_196, %c0_197, %c0_198, %c0_199], %170 {strides = array<i32>} : memref<1x81x4x96xf32, #tpu.memory_space<vmem>>, vector<1x1x4x88xf32>,
    %171 = vector.extract_strided_slice %136 {offsets = [0, 0], sizes = [4, 88], strides = [1, 1]} : vector<4x96xf32> to vector<4x88xf32>
    %cst_200 = arith.constant 2.500000e-01 : f32
    %172 = vector.broadcast %cst_200 : f32 to vector<4x88xf32>
    %173 = arith.mulf %171, %172 : vector<4x88xf32>
    %c0_201 = arith.constant 0 : index
    %c9 = arith.constant 9 : index
    %c0_202 = arith.constant 0 : index
    %c0_203 = arith.constant 0 : index
    %174 = vector.load %arg4[%c0_201, %c9, %c0_202, %c0_203] : memref<1x81x4x96xf32, #tpu.memory_space<vmem>>, vector<1x1x4x88xf32>
    %175 = vector.shape_cast %174 : vector<1x1x4x88xf32> to vector<4x88xf32>
    %176 = vector.shape_cast %173 : vector<4x88xf32> to vector<1x1x4x88xf32>
    tpu.vector_store %arg4[%c0_201, %c9, %c0_202, %c0_203], %176 {strides = array<i32>} : memref<1x81x4x96xf32, #tpu.memory_space<vmem>>, vector<1x1x4x88xf32>,
    %177 = vector.extract_strided_slice %140 {offsets = [0, 0], sizes = [4, 88], strides = [1, 1]} : vector<4x96xf32> to vector<4x88xf32>
    %cst_204 = arith.constant 2.500000e-01 : f32
    %178 = vector.broadcast %cst_204 : f32 to vector<4x88xf32>
    %179 = arith.mulf %177, %178 : vector<4x88xf32>
    %c0_205 = arith.constant 0 : index
    %c18 = arith.constant 18 : index
    %c0_206 = arith.constant 0 : index
    %c0_207 = arith.constant 0 : index
    %180 = vector.load %arg4[%c0_205, %c18, %c0_206, %c0_207] : memref<1x81x4x96xf32, #tpu.memory_space<vmem>>, vector<1x1x4x88xf32>
    %181 = vector.shape_cast %180 : vector<1x1x4x88xf32> to vector<4x88xf32>
    %182 = vector.shape_cast %179 : vector<4x88xf32> to vector<1x1x4x88xf32>
    tpu.vector_store %arg4[%c0_205, %c18, %c0_206, %c0_207], %182 {strides = array<i32>} : memref<1x81x4x96xf32, #tpu.memory_space<vmem>>, vector<1x1x4x88xf32>,
    %183 = vector.extract_strided_slice %144 {offsets = [0, 0], sizes = [4, 88], strides = [1, 1]} : vector<4x96xf32> to vector<4x88xf32>
    %cst_208 = arith.constant 2.500000e-01 : f32
    %184 = vector.broadcast %cst_208 : f32 to vector<4x88xf32>
    %185 = arith.mulf %183, %184 : vector<4x88xf32>
    %c0_209 = arith.constant 0 : index
    %c27 = arith.constant 27 : index
    %c0_210 = arith.constant 0 : index
    %c0_211 = arith.constant 0 : index
    %186 = vector.load %arg4[%c0_209, %c27, %c0_210, %c0_211] : memref<1x81x4x96xf32, #tpu.memory_space<vmem>>, vector<1x1x4x88xf32>
    %187 = vector.shape_cast %186 : vector<1x1x4x88xf32> to vector<4x88xf32>
    %188 = vector.shape_cast %185 : vector<4x88xf32> to vector<1x1x4x88xf32>
    tpu.vector_store %arg4[%c0_209, %c27, %c0_210, %c0_211], %188 {strides = array<i32>} : memref<1x81x4x96xf32, #tpu.memory_space<vmem>>, vector<1x1x4x88xf32>,
    %189 = vector.extract_strided_slice %148 {offsets = [0, 0], sizes = [4, 88], strides = [1, 1]} : vector<4x96xf32> to vector<4x88xf32>
    %cst_212 = arith.constant 2.500000e-01 : f32
    %190 = vector.broadcast %cst_212 : f32 to vector<4x88xf32>
    %191 = arith.mulf %189, %190 : vector<4x88xf32>
    %c0_213 = arith.constant 0 : index
    %c36 = arith.constant 36 : index
    %c0_214 = arith.constant 0 : index
    %c0_215 = arith.constant 0 : index
    %192 = vector.load %arg4[%c0_213, %c36, %c0_214, %c0_215] : memref<1x81x4x96xf32, #tpu.memory_space<vmem>>, vector<1x1x4x88xf32>
    %193 = vector.shape_cast %192 : vector<1x1x4x88xf32> to vector<4x88xf32>
    %194 = vector.shape_cast %191 : vector<4x88xf32> to vector<1x1x4x88xf32>
    tpu.vector_store %arg4[%c0_213, %c36, %c0_214, %c0_215], %194 {strides = array<i32>} : memref<1x81x4x96xf32, #tpu.memory_space<vmem>>, vector<1x1x4x88xf32>,
    %195 = vector.extract_strided_slice %152 {offsets = [0, 0], sizes = [4, 88], strides = [1, 1]} : vector<4x96xf32> to vector<4x88xf32>
    %cst_216 = arith.constant 2.500000e-01 : f32
    %196 = vector.broadcast %cst_216 : f32 to vector<4x88xf32>
    %197 = arith.mulf %195, %196 : vector<4x88xf32>
    %c0_217 = arith.constant 0 : index
    %c45 = arith.constant 45 : index
    %c0_218 = arith.constant 0 : index
    %c0_219 = arith.constant 0 : index
    %198 = vector.load %arg4[%c0_217, %c45, %c0_218, %c0_219] : memref<1x81x4x96xf32, #tpu.memory_space<vmem>>, vector<1x1x4x88xf32>
    %199 = vector.shape_cast %198 : vector<1x1x4x88xf32> to vector<4x88xf32>
    %200 = vector.shape_cast %197 : vector<4x88xf32> to vector<1x1x4x88xf32>
    tpu.vector_store %arg4[%c0_217, %c45, %c0_218, %c0_219], %200 {strides = array<i32>} : memref<1x81x4x96xf32, #tpu.memory_space<vmem>>, vector<1x1x4x88xf32>,
    %201 = vector.extract_strided_slice %156 {offsets = [0, 0], sizes = [4, 88], strides = [1, 1]} : vector<4x96xf32> to vector<4x88xf32>
    %cst_220 = arith.constant 2.500000e-01 : f32
    %202 = vector.broadcast %cst_220 : f32 to vector<4x88xf32>
    %203 = arith.mulf %201, %202 : vector<4x88xf32>
    %c0_221 = arith.constant 0 : index
    %c54 = arith.constant 54 : index
    %c0_222 = arith.constant 0 : index
    %c0_223 = arith.constant 0 : index
    %204 = vector.load %arg4[%c0_221, %c54, %c0_222, %c0_223] : memref<1x81x4x96xf32, #tpu.memory_space<vmem>>, vector<1x1x4x88xf32>
    %205 = vector.shape_cast %204 : vector<1x1x4x88xf32> to vector<4x88xf32>
    %206 = vector.shape_cast %203 : vector<4x88xf32> to vector<1x1x4x88xf32>
    tpu.vector_store %arg4[%c0_221, %c54, %c0_222, %c0_223], %206 {strides = array<i32>} : memref<1x81x4x96xf32, #tpu.memory_space<vmem>>, vector<1x1x4x88xf32>,
    %207 = vector.extract_strided_slice %160 {offsets = [0, 0], sizes = [4, 88], strides = [1, 1]} : vector<4x96xf32> to vector<4x88xf32>
    %cst_224 = arith.constant 2.500000e-01 : f32
    %208 = vector.broadcast %cst_224 : f32 to vector<4x88xf32>
    %209 = arith.mulf %207, %208 : vector<4x88xf32>
    %c0_225 = arith.constant 0 : index
    %c63 = arith.constant 63 : index
    %c0_226 = arith.constant 0 : index
    %c0_227 = arith.constant 0 : index
    %210 = vector.load %arg4[%c0_225, %c63, %c0_226, %c0_227] : memref<1x81x4x96xf32, #tpu.memory_space<vmem>>, vector<1x1x4x88xf32>
    %211 = vector.shape_cast %210 : vector<1x1x4x88xf32> to vector<4x88xf32>
    %212 = vector.shape_cast %209 : vector<4x88xf32> to vector<1x1x4x88xf32>
    tpu.vector_store %arg4[%c0_225, %c63, %c0_226, %c0_227], %212 {strides = array<i32>} : memref<1x81x4x96xf32, #tpu.memory_space<vmem>>, vector<1x1x4x88xf32>,
    %213 = vector.extract_strided_slice %164 {offsets = [0, 0], sizes = [4, 88], strides = [1, 1]} : vector<4x96xf32> to vector<4x88xf32>
    %cst_228 = arith.constant 2.500000e-01 : f32
    %214 = vector.broadcast %cst_228 : f32 to vector<4x88xf32>
    %215 = arith.mulf %213, %214 : vector<4x88xf32>
    %c0_229 = arith.constant 0 : index
    %c72 = arith.constant 72 : index
    %c0_230 = arith.constant 0 : index
    %c0_231 = arith.constant 0 : index
    %216 = vector.load %arg4[%c0_229, %c72, %c0_230, %c0_231] : memref<1x81x4x96xf32, #tpu.memory_space<vmem>>, vector<1x1x4x88xf32>
    %217 = vector.shape_cast %216 : vector<1x1x4x88xf32> to vector<4x88xf32>
    %218 = vector.shape_cast %215 : vector<4x88xf32> to vector<1x1x4x88xf32>
    tpu.vector_store %arg4[%c0_229, %c72, %c0_230, %c0_231], %218 {strides = array<i32>} : memref<1x81x4x96xf32, #tpu.memory_space<vmem>>, vector<1x1x4x88xf32>,
    %cst_232 = arith.constant 0.000000e+00 : f32
    %219 = vector.broadcast %cst_232 : f32 to vector<4x96xf32>
    %cst_233 = arith.constant 0.000000e+00 : f32
    %220 = vector.broadcast %cst_233 : f32 to vector<4x96xf32>
    %cst_234 = arith.constant 0.000000e+00 : f32
    %221 = vector.broadcast %cst_234 : f32 to vector<4x96xf32>
    %cst_235 = arith.constant 0.000000e+00 : f32
    %222 = vector.broadcast %cst_235 : f32 to vector<4x96xf32>
    %cst_236 = arith.constant 0.000000e+00 : f32
    %223 = vector.broadcast %cst_236 : f32 to vector<4x96xf32>
    %cst_237 = arith.constant 0.000000e+00 : f32
    %224 = vector.broadcast %cst_237 : f32 to vector<4x96xf32>
    %cst_238 = arith.constant 0.000000e+00 : f32
    %225 = vector.broadcast %cst_238 : f32 to vector<4x96xf32>
    %cst_239 = arith.constant 0.000000e+00 : f32
    %226 = vector.broadcast %cst_239 : f32 to vector<4x96xf32>
    %cst_240 = arith.constant 0.000000e+00 : f32
    %227 = vector.broadcast %cst_240 : f32 to vector<4x96xf32>
    %c0_241 = arith.constant 0 : index
    %c0_242 = arith.constant 0 : index
    %c0_243 = arith.constant 0 : index
    %c0_244 = arith.constant 0 : index
    %228 = vector.load %arg2[%c0_241, %c0_242, %c0_243, %c0_244] : memref<1x4x4x104xf32, #tpu.memory_space<vmem>>, vector<1x1x4x104xf32>
    %229 = vector.shape_cast %228 : vector<1x1x4x104xf32> to vector<4x104xf32>
    %230 = vector.extract_strided_slice %229 {offsets = [0, 7], sizes = [4, 96], strides = [1, 1]} : vector<4x104xf32> to vector<4x96xf32>
    %c0_245 = arith.constant 0 : index
    %c0_246 = arith.constant 0 : index
    %c0_247 = arith.constant 0 : index
    %c0_248 = arith.constant 0 : index
    %c0_249 = arith.constant 0 : index
    %231 = vector.load %arg3[%c0_245, %c0_246, %c0_247, %c0_248, %c0_249] : memref<1x4x9x4x96xf32, #tpu.memory_space<vmem>>, vector<1x1x1x4x96xf32>
    %232 = vector.shape_cast %231 : vector<1x1x1x4x96xf32> to vector<4x96xf32>
    %233 = arith.mulf %230, %232 : vector<4x96xf32>
    %234 = arith.addf %219, %233 : vector<4x96xf32>
    %c0_250 = arith.constant 0 : index
    %c0_251 = arith.constant 0 : index
    %c1_252 = arith.constant 1 : index
    %c0_253 = arith.constant 0 : index
    %c0_254 = arith.constant 0 : index
    %235 = vector.load %arg3[%c0_250, %c0_251, %c1_252, %c0_253, %c0_254] : memref<1x4x9x4x96xf32, #tpu.memory_space<vmem>>, vector<1x1x1x4x96xf32>
    %236 = vector.shape_cast %235 : vector<1x1x1x4x96xf32> to vector<4x96xf32>
    %237 = arith.mulf %230, %236 : vector<4x96xf32>
    %238 = arith.addf %220, %237 : vector<4x96xf32>
    %c0_255 = arith.constant 0 : index
    %c0_256 = arith.constant 0 : index
    %c2_257 = arith.constant 2 : index
    %c0_258 = arith.constant 0 : index
    %c0_259 = arith.constant 0 : index
    %239 = vector.load %arg3[%c0_255, %c0_256, %c2_257, %c0_258, %c0_259] : memref<1x4x9x4x96xf32, #tpu.memory_space<vmem>>, vector<1x1x1x4x96xf32>
    %240 = vector.shape_cast %239 : vector<1x1x1x4x96xf32> to vector<4x96xf32>
    %241 = arith.mulf %230, %240 : vector<4x96xf32>
    %242 = arith.addf %221, %241 : vector<4x96xf32>
    %c0_260 = arith.constant 0 : index
    %c0_261 = arith.constant 0 : index
    %c3_262 = arith.constant 3 : index
    %c0_263 = arith.constant 0 : index
    %c0_264 = arith.constant 0 : index
    %243 = vector.load %arg3[%c0_260, %c0_261, %c3_262, %c0_263, %c0_264] : memref<1x4x9x4x96xf32, #tpu.memory_space<vmem>>, vector<1x1x1x4x96xf32>
    %244 = vector.shape_cast %243 : vector<1x1x1x4x96xf32> to vector<4x96xf32>
    %245 = arith.mulf %230, %244 : vector<4x96xf32>
    %246 = arith.addf %222, %245 : vector<4x96xf32>
    %c0_265 = arith.constant 0 : index
    %c0_266 = arith.constant 0 : index
    %c4_267 = arith.constant 4 : index
    %c0_268 = arith.constant 0 : index
    %c0_269 = arith.constant 0 : index
    %247 = vector.load %arg3[%c0_265, %c0_266, %c4_267, %c0_268, %c0_269] : memref<1x4x9x4x96xf32, #tpu.memory_space<vmem>>, vector<1x1x1x4x96xf32>
    %248 = vector.shape_cast %247 : vector<1x1x1x4x96xf32> to vector<4x96xf32>
    %249 = arith.mulf %230, %248 : vector<4x96xf32>
    %250 = arith.addf %223, %249 : vector<4x96xf32>
    %c0_270 = arith.constant 0 : index
    %c0_271 = arith.constant 0 : index
    %c5_272 = arith.constant 5 : index
    %c0_273 = arith.constant 0 : index
    %c0_274 = arith.constant 0 : index
    %251 = vector.load %arg3[%c0_270, %c0_271, %c5_272, %c0_273, %c0_274] : memref<1x4x9x4x96xf32, #tpu.memory_space<vmem>>, vector<1x1x1x4x96xf32>
    %252 = vector.shape_cast %251 : vector<1x1x1x4x96xf32> to vector<4x96xf32>
    %253 = arith.mulf %230, %252 : vector<4x96xf32>
    %254 = arith.addf %224, %253 : vector<4x96xf32>
    %c0_275 = arith.constant 0 : index
    %c0_276 = arith.constant 0 : index
    %c6_277 = arith.constant 6 : index
    %c0_278 = arith.constant 0 : index
    %c0_279 = arith.constant 0 : index
    %255 = vector.load %arg3[%c0_275, %c0_276, %c6_277, %c0_278, %c0_279] : memref<1x4x9x4x96xf32, #tpu.memory_space<vmem>>, vector<1x1x1x4x96xf32>
    %256 = vector.shape_cast %255 : vector<1x1x1x4x96xf32> to vector<4x96xf32>
    %257 = arith.mulf %230, %256 : vector<4x96xf32>
    %258 = arith.addf %225, %257 : vector<4x96xf32>
    %c0_280 = arith.constant 0 : index
    %c0_281 = arith.constant 0 : index
    %c7_282 = arith.constant 7 : index
    %c0_283 = arith.constant 0 : index
    %c0_284 = arith.constant 0 : index
    %259 = vector.load %arg3[%c0_280, %c0_281, %c7_282, %c0_283, %c0_284] : memref<1x4x9x4x96xf32, #tpu.memory_space<vmem>>, vector<1x1x1x4x96xf32>
    %260 = vector.shape_cast %259 : vector<1x1x1x4x96xf32> to vector<4x96xf32>
    %261 = arith.mulf %230, %260 : vector<4x96xf32>
    %262 = arith.addf %226, %261 : vector<4x96xf32>
    %c0_285 = arith.constant 0 : index
    %c0_286 = arith.constant 0 : index
    %c8_287 = arith.constant 8 : index
    %c0_288 = arith.constant 0 : index
    %c0_289 = arith.constant 0 : index
    %263 = vector.load %arg3[%c0_285, %c0_286, %c8_287, %c0_288, %c0_289] : memref<1x4x9x4x96xf32, #tpu.memory_space<vmem>>, vector<1x1x1x4x96xf32>
    %264 = vector.shape_cast %263 : vector<1x1x1x4x96xf32> to vector<4x96xf32>
    %265 = arith.mulf %230, %264 : vector<4x96xf32>
    %266 = arith.addf %227, %265 : vector<4x96xf32>
    %c0_290 = arith.constant 0 : index
    %c1_291 = arith.constant 1 : index
    %c0_292 = arith.constant 0 : index
    %c0_293 = arith.constant 0 : index
    %267 = vector.load %arg2[%c0_290, %c1_291, %c0_292, %c0_293] : memref<1x4x4x104xf32, #tpu.memory_space<vmem>>, vector<1x1x4x104xf32>
    %268 = vector.shape_cast %267 : vector<1x1x4x104xf32> to vector<4x104xf32>
    %269 = vector.extract_strided_slice %268 {offsets = [0, 7], sizes = [4, 96], strides = [1, 1]} : vector<4x104xf32> to vector<4x96xf32>
    %c0_294 = arith.constant 0 : index
    %c1_295 = arith.constant 1 : index
    %c0_296 = arith.constant 0 : index
    %c0_297 = arith.constant 0 : index
    %c0_298 = arith.constant 0 : index
    %270 = vector.load %arg3[%c0_294, %c1_295, %c0_296, %c0_297, %c0_298] : memref<1x4x9x4x96xf32, #tpu.memory_space<vmem>>, vector<1x1x1x4x96xf32>
    %271 = vector.shape_cast %270 : vector<1x1x1x4x96xf32> to vector<4x96xf32>
    %272 = arith.mulf %269, %271 : vector<4x96xf32>
    %273 = arith.addf %234, %272 : vector<4x96xf32>
    %c0_299 = arith.constant 0 : index
    %c1_300 = arith.constant 1 : index
    %c1_301 = arith.constant 1 : index
    %c0_302 = arith.constant 0 : index
    %c0_303 = arith.constant 0 : index
    %274 = vector.load %arg3[%c0_299, %c1_300, %c1_301, %c0_302, %c0_303] : memref<1x4x9x4x96xf32, #tpu.memory_space<vmem>>, vector<1x1x1x4x96xf32>
    %275 = vector.shape_cast %274 : vector<1x1x1x4x96xf32> to vector<4x96xf32>
    %276 = arith.mulf %269, %275 : vector<4x96xf32>
    %277 = arith.addf %238, %276 : vector<4x96xf32>
    %c0_304 = arith.constant 0 : index
    %c1_305 = arith.constant 1 : index
    %c2_306 = arith.constant 2 : index
    %c0_307 = arith.constant 0 : index
    %c0_308 = arith.constant 0 : index
    %278 = vector.load %arg3[%c0_304, %c1_305, %c2_306, %c0_307, %c0_308] : memref<1x4x9x4x96xf32, #tpu.memory_space<vmem>>, vector<1x1x1x4x96xf32>
    %279 = vector.shape_cast %278 : vector<1x1x1x4x96xf32> to vector<4x96xf32>
    %280 = arith.mulf %269, %279 : vector<4x96xf32>
    %281 = arith.addf %242, %280 : vector<4x96xf32>
    %c0_309 = arith.constant 0 : index
    %c1_310 = arith.constant 1 : index
    %c3_311 = arith.constant 3 : index
    %c0_312 = arith.constant 0 : index
    %c0_313 = arith.constant 0 : index
    %282 = vector.load %arg3[%c0_309, %c1_310, %c3_311, %c0_312, %c0_313] : memref<1x4x9x4x96xf32, #tpu.memory_space<vmem>>, vector<1x1x1x4x96xf32>
    %283 = vector.shape_cast %282 : vector<1x1x1x4x96xf32> to vector<4x96xf32>
    %284 = arith.mulf %269, %283 : vector<4x96xf32>
    %285 = arith.addf %246, %284 : vector<4x96xf32>
    %c0_314 = arith.constant 0 : index
    %c1_315 = arith.constant 1 : index
    %c4_316 = arith.constant 4 : index
    %c0_317 = arith.constant 0 : index
    %c0_318 = arith.constant 0 : index
    %286 = vector.load %arg3[%c0_314, %c1_315, %c4_316, %c0_317, %c0_318] : memref<1x4x9x4x96xf32, #tpu.memory_space<vmem>>, vector<1x1x1x4x96xf32>
    %287 = vector.shape_cast %286 : vector<1x1x1x4x96xf32> to vector<4x96xf32>
    %288 = arith.mulf %269, %287 : vector<4x96xf32>
    %289 = arith.addf %250, %288 : vector<4x96xf32>
    %c0_319 = arith.constant 0 : index
    %c1_320 = arith.constant 1 : index
    %c5_321 = arith.constant 5 : index
    %c0_322 = arith.constant 0 : index
    %c0_323 = arith.constant 0 : index
    %290 = vector.load %arg3[%c0_319, %c1_320, %c5_321, %c0_322, %c0_323] : memref<1x4x9x4x96xf32, #tpu.memory_space<vmem>>, vector<1x1x1x4x96xf32>
    %291 = vector.shape_cast %290 : vector<1x1x1x4x96xf32> to vector<4x96xf32>
    %292 = arith.mulf %269, %291 : vector<4x96xf32>
    %293 = arith.addf %254, %292 : vector<4x96xf32>
    %c0_324 = arith.constant 0 : index
    %c1_325 = arith.constant 1 : index
    %c6_326 = arith.constant 6 : index
    %c0_327 = arith.constant 0 : index
    %c0_328 = arith.constant 0 : index
    %294 = vector.load %arg3[%c0_324, %c1_325, %c6_326, %c0_327, %c0_328] : memref<1x4x9x4x96xf32, #tpu.memory_space<vmem>>, vector<1x1x1x4x96xf32>
    %295 = vector.shape_cast %294 : vector<1x1x1x4x96xf32> to vector<4x96xf32>
    %296 = arith.mulf %269, %295 : vector<4x96xf32>
    %297 = arith.addf %258, %296 : vector<4x96xf32>
    %c0_329 = arith.constant 0 : index
    %c1_330 = arith.constant 1 : index
    %c7_331 = arith.constant 7 : index
    %c0_332 = arith.constant 0 : index
    %c0_333 = arith.constant 0 : index
    %298 = vector.load %arg3[%c0_329, %c1_330, %c7_331, %c0_332, %c0_333] : memref<1x4x9x4x96xf32, #tpu.memory_space<vmem>>, vector<1x1x1x4x96xf32>
    %299 = vector.shape_cast %298 : vector<1x1x1x4x96xf32> to vector<4x96xf32>
    %300 = arith.mulf %269, %299 : vector<4x96xf32>
    %301 = arith.addf %262, %300 : vector<4x96xf32>
    %c0_334 = arith.constant 0 : index
    %c1_335 = arith.constant 1 : index
    %c8_336 = arith.constant 8 : index
    %c0_337 = arith.constant 0 : index
    %c0_338 = arith.constant 0 : index
    %302 = vector.load %arg3[%c0_334, %c1_335, %c8_336, %c0_337, %c0_338] : memref<1x4x9x4x96xf32, #tpu.memory_space<vmem>>, vector<1x1x1x4x96xf32>
    %303 = vector.shape_cast %302 : vector<1x1x1x4x96xf32> to vector<4x96xf32>
    %304 = arith.mulf %269, %303 : vector<4x96xf32>
    %305 = arith.addf %266, %304 : vector<4x96xf32>
    %c0_339 = arith.constant 0 : index
    %c2_340 = arith.constant 2 : index
    %c0_341 = arith.constant 0 : index
    %c0_342 = arith.constant 0 : index
    %306 = vector.load %arg2[%c0_339, %c2_340, %c0_341, %c0_342] : memref<1x4x4x104xf32, #tpu.memory_space<vmem>>, vector<1x1x4x104xf32>
    %307 = vector.shape_cast %306 : vector<1x1x4x104xf32> to vector<4x104xf32>
    %308 = vector.extract_strided_slice %307 {offsets = [0, 7], sizes = [4, 96], strides = [1, 1]} : vector<4x104xf32> to vector<4x96xf32>
    %c0_343 = arith.constant 0 : index
    %c2_344 = arith.constant 2 : index
    %c0_345 = arith.constant 0 : index
    %c0_346 = arith.constant 0 : index
    %c0_347 = arith.constant 0 : index
    %309 = vector.load %arg3[%c0_343, %c2_344, %c0_345, %c0_346, %c0_347] : memref<1x4x9x4x96xf32, #tpu.memory_space<vmem>>, vector<1x1x1x4x96xf32>
    %310 = vector.shape_cast %309 : vector<1x1x1x4x96xf32> to vector<4x96xf32>
    %311 = arith.mulf %308, %310 : vector<4x96xf32>
    %312 = arith.addf %273, %311 : vector<4x96xf32>
    %c0_348 = arith.constant 0 : index
    %c2_349 = arith.constant 2 : index
    %c1_350 = arith.constant 1 : index
    %c0_351 = arith.constant 0 : index
    %c0_352 = arith.constant 0 : index
    %313 = vector.load %arg3[%c0_348, %c2_349, %c1_350, %c0_351, %c0_352] : memref<1x4x9x4x96xf32, #tpu.memory_space<vmem>>, vector<1x1x1x4x96xf32>
    %314 = vector.shape_cast %313 : vector<1x1x1x4x96xf32> to vector<4x96xf32>
    %315 = arith.mulf %308, %314 : vector<4x96xf32>
    %316 = arith.addf %277, %315 : vector<4x96xf32>
    %c0_353 = arith.constant 0 : index
    %c2_354 = arith.constant 2 : index
    %c2_355 = arith.constant 2 : index
    %c0_356 = arith.constant 0 : index
    %c0_357 = arith.constant 0 : index
    %317 = vector.load %arg3[%c0_353, %c2_354, %c2_355, %c0_356, %c0_357] : memref<1x4x9x4x96xf32, #tpu.memory_space<vmem>>, vector<1x1x1x4x96xf32>
    %318 = vector.shape_cast %317 : vector<1x1x1x4x96xf32> to vector<4x96xf32>
    %319 = arith.mulf %308, %318 : vector<4x96xf32>
    %320 = arith.addf %281, %319 : vector<4x96xf32>
    %c0_358 = arith.constant 0 : index
    %c2_359 = arith.constant 2 : index
    %c3_360 = arith.constant 3 : index
    %c0_361 = arith.constant 0 : index
    %c0_362 = arith.constant 0 : index
    %321 = vector.load %arg3[%c0_358, %c2_359, %c3_360, %c0_361, %c0_362] : memref<1x4x9x4x96xf32, #tpu.memory_space<vmem>>, vector<1x1x1x4x96xf32>
    %322 = vector.shape_cast %321 : vector<1x1x1x4x96xf32> to vector<4x96xf32>
    %323 = arith.mulf %308, %322 : vector<4x96xf32>
    %324 = arith.addf %285, %323 : vector<4x96xf32>
    %c0_363 = arith.constant 0 : index
    %c2_364 = arith.constant 2 : index
    %c4_365 = arith.constant 4 : index
    %c0_366 = arith.constant 0 : index
    %c0_367 = arith.constant 0 : index
    %325 = vector.load %arg3[%c0_363, %c2_364, %c4_365, %c0_366, %c0_367] : memref<1x4x9x4x96xf32, #tpu.memory_space<vmem>>, vector<1x1x1x4x96xf32>
    %326 = vector.shape_cast %325 : vector<1x1x1x4x96xf32> to vector<4x96xf32>
    %327 = arith.mulf %308, %326 : vector<4x96xf32>
    %328 = arith.addf %289, %327 : vector<4x96xf32>
    %c0_368 = arith.constant 0 : index
    %c2_369 = arith.constant 2 : index
    %c5_370 = arith.constant 5 : index
    %c0_371 = arith.constant 0 : index
    %c0_372 = arith.constant 0 : index
    %329 = vector.load %arg3[%c0_368, %c2_369, %c5_370, %c0_371, %c0_372] : memref<1x4x9x4x96xf32, #tpu.memory_space<vmem>>, vector<1x1x1x4x96xf32>
    %330 = vector.shape_cast %329 : vector<1x1x1x4x96xf32> to vector<4x96xf32>
    %331 = arith.mulf %308, %330 : vector<4x96xf32>
    %332 = arith.addf %293, %331 : vector<4x96xf32>
    %c0_373 = arith.constant 0 : index
    %c2_374 = arith.constant 2 : index
    %c6_375 = arith.constant 6 : index
    %c0_376 = arith.constant 0 : index
    %c0_377 = arith.constant 0 : index
    %333 = vector.load %arg3[%c0_373, %c2_374, %c6_375, %c0_376, %c0_377] : memref<1x4x9x4x96xf32, #tpu.memory_space<vmem>>, vector<1x1x1x4x96xf32>
    %334 = vector.shape_cast %333 : vector<1x1x1x4x96xf32> to vector<4x96xf32>
    %335 = arith.mulf %308, %334 : vector<4x96xf32>
    %336 = arith.addf %297, %335 : vector<4x96xf32>
    %c0_378 = arith.constant 0 : index
    %c2_379 = arith.constant 2 : index
    %c7_380 = arith.constant 7 : index
    %c0_381 = arith.constant 0 : index
    %c0_382 = arith.constant 0 : index
    %337 = vector.load %arg3[%c0_378, %c2_379, %c7_380, %c0_381, %c0_382] : memref<1x4x9x4x96xf32, #tpu.memory_space<vmem>>, vector<1x1x1x4x96xf32>
    %338 = vector.shape_cast %337 : vector<1x1x1x4x96xf32> to vector<4x96xf32>
    %339 = arith.mulf %308, %338 : vector<4x96xf32>
    %340 = arith.addf %301, %339 : vector<4x96xf32>
    %c0_383 = arith.constant 0 : index
    %c2_384 = arith.constant 2 : index
    %c8_385 = arith.constant 8 : index
    %c0_386 = arith.constant 0 : index
    %c0_387 = arith.constant 0 : index
    %341 = vector.load %arg3[%c0_383, %c2_384, %c8_385, %c0_386, %c0_387] : memref<1x4x9x4x96xf32, #tpu.memory_space<vmem>>, vector<1x1x1x4x96xf32>
    %342 = vector.shape_cast %341 : vector<1x1x1x4x96xf32> to vector<4x96xf32>
    %343 = arith.mulf %308, %342 : vector<4x96xf32>
    %344 = arith.addf %305, %343 : vector<4x96xf32>
    %c0_388 = arith.constant 0 : index
    %c3_389 = arith.constant 3 : index
    %c0_390 = arith.constant 0 : index
    %c0_391 = arith.constant 0 : index
    %345 = vector.load %arg2[%c0_388, %c3_389, %c0_390, %c0_391] : memref<1x4x4x104xf32, #tpu.memory_space<vmem>>, vector<1x1x4x104xf32>
    %346 = vector.shape_cast %345 : vector<1x1x4x104xf32> to vector<4x104xf32>
    %347 = vector.extract_strided_slice %346 {offsets = [0, 7], sizes = [4, 96], strides = [1, 1]} : vector<4x104xf32> to vector<4x96xf32>
    %c0_392 = arith.constant 0 : index
    %c3_393 = arith.constant 3 : index
    %c0_394 = arith.constant 0 : index
    %c0_395 = arith.constant 0 : index
    %c0_396 = arith.constant 0 : index
    %348 = vector.load %arg3[%c0_392, %c3_393, %c0_394, %c0_395, %c0_396] : memref<1x4x9x4x96xf32, #tpu.memory_space<vmem>>, vector<1x1x1x4x96xf32>
    %349 = vector.shape_cast %348 : vector<1x1x1x4x96xf32> to vector<4x96xf32>
    %350 = arith.mulf %347, %349 : vector<4x96xf32>
    %351 = arith.addf %312, %350 : vector<4x96xf32>
    %c0_397 = arith.constant 0 : index
    %c3_398 = arith.constant 3 : index
    %c1_399 = arith.constant 1 : index
    %c0_400 = arith.constant 0 : index
    %c0_401 = arith.constant 0 : index
    %352 = vector.load %arg3[%c0_397, %c3_398, %c1_399, %c0_400, %c0_401] : memref<1x4x9x4x96xf32, #tpu.memory_space<vmem>>, vector<1x1x1x4x96xf32>
    %353 = vector.shape_cast %352 : vector<1x1x1x4x96xf32> to vector<4x96xf32>
    %354 = arith.mulf %347, %353 : vector<4x96xf32>
    %355 = arith.addf %316, %354 : vector<4x96xf32>
    %c0_402 = arith.constant 0 : index
    %c3_403 = arith.constant 3 : index
    %c2_404 = arith.constant 2 : index
    %c0_405 = arith.constant 0 : index
    %c0_406 = arith.constant 0 : index
    %356 = vector.load %arg3[%c0_402, %c3_403, %c2_404, %c0_405, %c0_406] : memref<1x4x9x4x96xf32, #tpu.memory_space<vmem>>, vector<1x1x1x4x96xf32>
    %357 = vector.shape_cast %356 : vector<1x1x1x4x96xf32> to vector<4x96xf32>
    %358 = arith.mulf %347, %357 : vector<4x96xf32>
    %359 = arith.addf %320, %358 : vector<4x96xf32>
    %c0_407 = arith.constant 0 : index
    %c3_408 = arith.constant 3 : index
    %c3_409 = arith.constant 3 : index
    %c0_410 = arith.constant 0 : index
    %c0_411 = arith.constant 0 : index
    %360 = vector.load %arg3[%c0_407, %c3_408, %c3_409, %c0_410, %c0_411] : memref<1x4x9x4x96xf32, #tpu.memory_space<vmem>>, vector<1x1x1x4x96xf32>
    %361 = vector.shape_cast %360 : vector<1x1x1x4x96xf32> to vector<4x96xf32>
    %362 = arith.mulf %347, %361 : vector<4x96xf32>
    %363 = arith.addf %324, %362 : vector<4x96xf32>
    %c0_412 = arith.constant 0 : index
    %c3_413 = arith.constant 3 : index
    %c4_414 = arith.constant 4 : index
    %c0_415 = arith.constant 0 : index
    %c0_416 = arith.constant 0 : index
    %364 = vector.load %arg3[%c0_412, %c3_413, %c4_414, %c0_415, %c0_416] : memref<1x4x9x4x96xf32, #tpu.memory_space<vmem>>, vector<1x1x1x4x96xf32>
    %365 = vector.shape_cast %364 : vector<1x1x1x4x96xf32> to vector<4x96xf32>
    %366 = arith.mulf %347, %365 : vector<4x96xf32>
    %367 = arith.addf %328, %366 : vector<4x96xf32>
    %c0_417 = arith.constant 0 : index
    %c3_418 = arith.constant 3 : index
    %c5_419 = arith.constant 5 : index
    %c0_420 = arith.constant 0 : index
    %c0_421 = arith.constant 0 : index
    %368 = vector.load %arg3[%c0_417, %c3_418, %c5_419, %c0_420, %c0_421] : memref<1x4x9x4x96xf32, #tpu.memory_space<vmem>>, vector<1x1x1x4x96xf32>
    %369 = vector.shape_cast %368 : vector<1x1x1x4x96xf32> to vector<4x96xf32>
    %370 = arith.mulf %347, %369 : vector<4x96xf32>
    %371 = arith.addf %332, %370 : vector<4x96xf32>
    %c0_422 = arith.constant 0 : index
    %c3_423 = arith.constant 3 : index
    %c6_424 = arith.constant 6 : index
    %c0_425 = arith.constant 0 : index
    %c0_426 = arith.constant 0 : index
    %372 = vector.load %arg3[%c0_422, %c3_423, %c6_424, %c0_425, %c0_426] : memref<1x4x9x4x96xf32, #tpu.memory_space<vmem>>, vector<1x1x1x4x96xf32>
    %373 = vector.shape_cast %372 : vector<1x1x1x4x96xf32> to vector<4x96xf32>
    %374 = arith.mulf %347, %373 : vector<4x96xf32>
    %375 = arith.addf %336, %374 : vector<4x96xf32>
    %c0_427 = arith.constant 0 : index
    %c3_428 = arith.constant 3 : index
    %c7_429 = arith.constant 7 : index
    %c0_430 = arith.constant 0 : index
    %c0_431 = arith.constant 0 : index
    %376 = vector.load %arg3[%c0_427, %c3_428, %c7_429, %c0_430, %c0_431] : memref<1x4x9x4x96xf32, #tpu.memory_space<vmem>>, vector<1x1x1x4x96xf32>
    %377 = vector.shape_cast %376 : vector<1x1x1x4x96xf32> to vector<4x96xf32>
    %378 = arith.mulf %347, %377 : vector<4x96xf32>
    %379 = arith.addf %340, %378 : vector<4x96xf32>
    %c0_432 = arith.constant 0 : index
    %c3_433 = arith.constant 3 : index
    %c8_434 = arith.constant 8 : index
    %c0_435 = arith.constant 0 : index
    %c0_436 = arith.constant 0 : index
    %380 = vector.load %arg3[%c0_432, %c3_433, %c8_434, %c0_435, %c0_436] : memref<1x4x9x4x96xf32, #tpu.memory_space<vmem>>, vector<1x1x1x4x96xf32>
    %381 = vector.shape_cast %380 : vector<1x1x1x4x96xf32> to vector<4x96xf32>
    %382 = arith.mulf %347, %381 : vector<4x96xf32>
    %383 = arith.addf %344, %382 : vector<4x96xf32>
    %384 = vector.extract_strided_slice %351 {offsets = [0, 1], sizes = [4, 88], strides = [1, 1]} : vector<4x96xf32> to vector<4x88xf32>
    %cst_437 = arith.constant 2.500000e-01 : f32
    %385 = vector.broadcast %cst_437 : f32 to vector<4x88xf32>
    %386 = arith.mulf %384, %385 : vector<4x88xf32>
    %c0_438 = arith.constant 0 : index
    %c1_439 = arith.constant 1 : index
    %c0_440 = arith.constant 0 : index
    %c0_441 = arith.constant 0 : index
    %387 = vector.load %arg4[%c0_438, %c1_439, %c0_440, %c0_441] : memref<1x81x4x96xf32, #tpu.memory_space<vmem>>, vector<1x1x4x88xf32>
    %388 = vector.shape_cast %387 : vector<1x1x4x88xf32> to vector<4x88xf32>
    %389 = vector.shape_cast %386 : vector<4x88xf32> to vector<1x1x4x88xf32>
    tpu.vector_store %arg4[%c0_438, %c1_439, %c0_440, %c0_441], %389 {strides = array<i32>} : memref<1x81x4x96xf32, #tpu.memory_space<vmem>>, vector<1x1x4x88xf32>,
    %390 = vector.extract_strided_slice %355 {offsets = [0, 1], sizes = [4, 88], strides = [1, 1]} : vector<4x96xf32> to vector<4x88xf32>
    %cst_442 = arith.constant 2.500000e-01 : f32
    %391 = vector.broadcast %cst_442 : f32 to vector<4x88xf32>
    %392 = arith.mulf %390, %391 : vector<4x88xf32>
    %c0_443 = arith.constant 0 : index
    %c10 = arith.constant 10 : index
    %c0_444 = arith.constant 0 : index
    %c0_445 = arith.constant 0 : index
    %393 = vector.load %arg4[%c0_443, %c10, %c0_444, %c0_445] : memref<1x81x4x96xf32, #tpu.memory_space<vmem>>, vector<1x1x4x88xf32>
    %394 = vector.shape_cast %393 : vector<1x1x4x88xf32> to vector<4x88xf32>
    %395 = vector.shape_cast %392 : vector<4x88xf32> to vector<1x1x4x88xf32>
    tpu.vector_store %arg4[%c0_443, %c10, %c0_444, %c0_445], %395 {strides = array<i32>} : memref<1x81x4x96xf32, #tpu.memory_space<vmem>>, vector<1x1x4x88xf32>,
    %396 = vector.extract_strided_slice %359 {offsets = [0, 1], sizes = [4, 88], strides = [1, 1]} : vector<4x96xf32> to vector<4x88xf32>
    %cst_446 = arith.constant 2.500000e-01 : f32
    %397 = vector.broadcast %cst_446 : f32 to vector<4x88xf32>
    %398 = arith.mulf %396, %397 : vector<4x88xf32>
    %c0_447 = arith.constant 0 : index
    %c19 = arith.constant 19 : index
    %c0_448 = arith.constant 0 : index
    %c0_449 = arith.constant 0 : index
    %399 = vector.load %arg4[%c0_447, %c19, %c0_448, %c0_449] : memref<1x81x4x96xf32, #tpu.memory_space<vmem>>, vector<1x1x4x88xf32>
    %400 = vector.shape_cast %399 : vector<1x1x4x88xf32> to vector<4x88xf32>
    %401 = vector.shape_cast %398 : vector<4x88xf32> to vector<1x1x4x88xf32>
    tpu.vector_store %arg4[%c0_447, %c19, %c0_448, %c0_449], %401 {strides = array<i32>} : memref<1x81x4x96xf32, #tpu.memory_space<vmem>>, vector<1x1x4x88xf32>,
    %402 = vector.extract_strided_slice %363 {offsets = [0, 1], sizes = [4, 88], strides = [1, 1]} : vector<4x96xf32> to vector<4x88xf32>
    %cst_450 = arith.constant 2.500000e-01 : f32
    %403 = vector.broadcast %cst_450 : f32 to vector<4x88xf32>
    %404 = arith.mulf %402, %403 : vector<4x88xf32>
    %c0_451 = arith.constant 0 : index
    %c28 = arith.constant 28 : index
    %c0_452 = arith.constant 0 : index
    %c0_453 = arith.constant 0 : index
    %405 = vector.load %arg4[%c0_451, %c28, %c0_452, %c0_453] : memref<1x81x4x96xf32, #tpu.memory_space<vmem>>, vector<1x1x4x88xf32>
    %406 = vector.shape_cast %405 : vector<1x1x4x88xf32> to vector<4x88xf32>
    %407 = vector.shape_cast %404 : vector<4x88xf32> to vector<1x1x4x88xf32>
    tpu.vector_store %arg4[%c0_451, %c28, %c0_452, %c0_453], %407 {strides = array<i32>} : memref<1x81x4x96xf32, #tpu.memory_space<vmem>>, vector<1x1x4x88xf32>,
    %408 = vector.extract_strided_slice %367 {offsets = [0, 1], sizes = [4, 88], strides = [1, 1]} : vector<4x96xf32> to vector<4x88xf32>
    %cst_454 = arith.constant 2.500000e-01 : f32
    %409 = vector.broadcast %cst_454 : f32 to vector<4x88xf32>
    %410 = arith.mulf %408, %409 : vector<4x88xf32>
    %c0_455 = arith.constant 0 : index
    %c37 = arith.constant 37 : index
    %c0_456 = arith.constant 0 : index
    %c0_457 = arith.constant 0 : index
    %411 = vector.load %arg4[%c0_455, %c37, %c0_456, %c0_457] : memref<1x81x4x96xf32, #tpu.memory_space<vmem>>, vector<1x1x4x88xf32>
    %412 = vector.shape_cast %411 : vector<1x1x4x88xf32> to vector<4x88xf32>
    %413 = vector.shape_cast %410 : vector<4x88xf32> to vector<1x1x4x88xf32>
    tpu.vector_store %arg4[%c0_455, %c37, %c0_456, %c0_457], %413 {strides = array<i32>} : memref<1x81x4x96xf32, #tpu.memory_space<vmem>>, vector<1x1x4x88xf32>,
    %414 = vector.extract_strided_slice %371 {offsets = [0, 1], sizes = [4, 88], strides = [1, 1]} : vector<4x96xf32> to vector<4x88xf32>
    %cst_458 = arith.constant 2.500000e-01 : f32
    %415 = vector.broadcast %cst_458 : f32 to vector<4x88xf32>
    %416 = arith.mulf %414, %415 : vector<4x88xf32>
    %c0_459 = arith.constant 0 : index
    %c46 = arith.constant 46 : index
    %c0_460 = arith.constant 0 : index
    %c0_461 = arith.constant 0 : index
    %417 = vector.load %arg4[%c0_459, %c46, %c0_460, %c0_461] : memref<1x81x4x96xf32, #tpu.memory_space<vmem>>, vector<1x1x4x88xf32>
    %418 = vector.shape_cast %417 : vector<1x1x4x88xf32> to vector<4x88xf32>
    %419 = vector.shape_cast %416 : vector<4x88xf32> to vector<1x1x4x88xf32>
    tpu.vector_store %arg4[%c0_459, %c46, %c0_460, %c0_461], %419 {strides = array<i32>} : memref<1x81x4x96xf32, #tpu.memory_space<vmem>>, vector<1x1x4x88xf32>,
    %420 = vector.extract_strided_slice %375 {offsets = [0, 1], sizes = [4, 88], strides = [1, 1]} : vector<4x96xf32> to vector<4x88xf32>
    %cst_462 = arith.constant 2.500000e-01 : f32
    %421 = vector.broadcast %cst_462 : f32 to vector<4x88xf32>
    %422 = arith.mulf %420, %421 : vector<4x88xf32>
    %c0_463 = arith.constant 0 : index
    %c55 = arith.constant 55 : index
    %c0_464 = arith.constant 0 : index
    %c0_465 = arith.constant 0 : index
    %423 = vector.load %arg4[%c0_463, %c55, %c0_464, %c0_465] : memref<1x81x4x96xf32, #tpu.memory_space<vmem>>, vector<1x1x4x88xf32>
    %424 = vector.shape_cast %423 : vector<1x1x4x88xf32> to vector<4x88xf32>
    %425 = vector.shape_cast %422 : vector<4x88xf32> to vector<1x1x4x88xf32>
    tpu.vector_store %arg4[%c0_463, %c55, %c0_464, %c0_465], %425 {strides = array<i32>} : memref<1x81x4x96xf32, #tpu.memory_space<vmem>>, vector<1x1x4x88xf32>,
    %426 = vector.extract_strided_slice %379 {offsets = [0, 1], sizes = [4, 88], strides = [1, 1]} : vector<4x96xf32> to vector<4x88xf32>
    %cst_466 = arith.constant 2.500000e-01 : f32
    %427 = vector.broadcast %cst_466 : f32 to vector<4x88xf32>
    %428 = arith.mulf %426, %427 : vector<4x88xf32>
    %c0_467 = arith.constant 0 : index
    %c64 = arith.constant 64 : index
    %c0_468 = arith.constant 0 : index
    %c0_469 = arith.constant 0 : index
    %429 = vector.load %arg4[%c0_467, %c64, %c0_468, %c0_469] : memref<1x81x4x96xf32, #tpu.memory_space<vmem>>, vector<1x1x4x88xf32>
    %430 = vector.shape_cast %429 : vector<1x1x4x88xf32> to vector<4x88xf32>
    %431 = vector.shape_cast %428 : vector<4x88xf32> to vector<1x1x4x88xf32>
    tpu.vector_store %arg4[%c0_467, %c64, %c0_468, %c0_469], %431 {strides = array<i32>} : memref<1x81x4x96xf32, #tpu.memory_space<vmem>>, vector<1x1x4x88xf32>,
    %432 = vector.extract_strided_slice %383 {offsets = [0, 1], sizes = [4, 88], strides = [1, 1]} : vector<4x96xf32> to vector<4x88xf32>
    %cst_470 = arith.constant 2.500000e-01 : f32
    %433 = vector.broadcast %cst_470 : f32 to vector<4x88xf32>
    %434 = arith.mulf %432, %433 : vector<4x88xf32>
    %c0_471 = arith.constant 0 : index
    %c73 = arith.constant 73 : index
    %c0_472 = arith.constant 0 : index
    %c0_473 = arith.constant 0 : index
    %435 = vector.load %arg4[%c0_471, %c73, %c0_472, %c0_473] : memref<1x81x4x96xf32, #tpu.memory_space<vmem>>, vector<1x1x4x88xf32>
    %436 = vector.shape_cast %435 : vector<1x1x4x88xf32> to vector<4x88xf32>
    %437 = vector.shape_cast %434 : vector<4x88xf32> to vector<1x1x4x88xf32>
    tpu.vector_store %arg4[%c0_471, %c73, %c0_472, %c0_473], %437 {strides = array<i32>} : memref<1x81x4x96xf32, #tpu.memory_space<vmem>>, vector<1x1x4x88xf32>,
    %cst_474 = arith.constant 0.000000e+00 : f32
    %438 = vector.broadcast %cst_474 : f32 to vector<4x96xf32>
    %cst_475 = arith.constant 0.000000e+00 : f32
    %439 = vector.broadcast %cst_475 : f32 to vector<4x96xf32>
    %cst_476 = arith.constant 0.000000e+00 : f32
    %440 = vector.broadcast %cst_476 : f32 to vector<4x96xf32>
    %cst_477 = arith.constant 0.000000e+00 : f32
    %441 = vector.broadcast %cst_477 : f32 to vector<4x96xf32>
    %cst_478 = arith.constant 0.000000e+00 : f32
    %442 = vector.broadcast %cst_478 : f32 to vector<4x96xf32>
    %cst_479 = arith.constant 0.000000e+00 : f32
    %443 = vector.broadcast %cst_479 : f32 to vector<4x96xf32>
    %cst_480 = arith.constant 0.000000e+00 : f32
    %444 = vector.broadcast %cst_480 : f32 to vector<4x96xf32>
    %cst_481 = arith.constant 0.000000e+00 : f32
    %445 = vector.broadcast %cst_481 : f32 to vector<4x96xf32>
    %cst_482 = arith.constant 0.000000e+00 : f32
    %446 = vector.broadcast %cst_482 : f32 to vector<4x96xf32>
    %c0_483 = arith.constant 0 : index
    %c0_484 = arith.constant 0 : index
    %c0_485 = arith.constant 0 : index
    %c0_486 = arith.constant 0 : index
    %447 = vector.load %arg2[%c0_483, %c0_484, %c0_485, %c0_486] : memref<1x4x4x104xf32, #tpu.memory_space<vmem>>, vector<1x1x4x104xf32>
    %448 = vector.shape_cast %447 : vector<1x1x4x104xf32> to vector<4x104xf32>
    %449 = vector.extract_strided_slice %448 {offsets = [0, 6], sizes = [4, 96], strides = [1, 1]} : vector<4x104xf32> to vector<4x96xf32>
    %c0_487 = arith.constant 0 : index
    %c0_488 = arith.constant 0 : index
    %c0_489 = arith.constant 0 : index
    %c0_490 = arith.constant 0 : index
    %c0_491 = arith.constant 0 : index
    %450 = vector.load %arg3[%c0_487, %c0_488, %c0_489, %c0_490, %c0_491] : memref<1x4x9x4x96xf32, #tpu.memory_space<vmem>>, vector<1x1x1x4x96xf32>
    %451 = vector.shape_cast %450 : vector<1x1x1x4x96xf32> to vector<4x96xf32>
    %452 = arith.mulf %449, %451 : vector<4x96xf32>
    %453 = arith.addf %438, %452 : vector<4x96xf32>
    %c0_492 = arith.constant 0 : index
    %c0_493 = arith.constant 0 : index
    %c1_494 = arith.constant 1 : index
    %c0_495 = arith.constant 0 : index
    %c0_496 = arith.constant 0 : index
    %454 = vector.load %arg3[%c0_492, %c0_493, %c1_494, %c0_495, %c0_496] : memref<1x4x9x4x96xf32, #tpu.memory_space<vmem>>, vector<1x1x1x4x96xf32>
    %455 = vector.shape_cast %454 : vector<1x1x1x4x96xf32> to vector<4x96xf32>
    %456 = arith.mulf %449, %455 : vector<4x96xf32>
    %457 = arith.addf %439, %456 : vector<4x96xf32>
    %c0_497 = arith.constant 0 : index
    %c0_498 = arith.constant 0 : index
    %c2_499 = arith.constant 2 : index
    %c0_500 = arith.constant 0 : index
    %c0_501 = arith.constant 0 : index
    %458 = vector.load %arg3[%c0_497, %c0_498, %c2_499, %c0_500, %c0_501] : memref<1x4x9x4x96xf32, #tpu.memory_space<vmem>>, vector<1x1x1x4x96xf32>
    %459 = vector.shape_cast %458 : vector<1x1x1x4x96xf32> to vector<4x96xf32>
    %460 = arith.mulf %449, %459 : vector<4x96xf32>
    %461 = arith.addf %440, %460 : vector<4x96xf32>
    %c0_502 = arith.constant 0 : index
    %c0_503 = arith.constant 0 : index
    %c3_504 = arith.constant 3 : index
    %c0_505 = arith.constant 0 : index
    %c0_506 = arith.constant 0 : index
    %462 = vector.load %arg3[%c0_502, %c0_503, %c3_504, %c0_505, %c0_506] : memref<1x4x9x4x96xf32, #tpu.memory_space<vmem>>, vector<1x1x1x4x96xf32>
    %463 = vector.shape_cast %462 : vector<1x1x1x4x96xf32> to vector<4x96xf32>
    %464 = arith.mulf %449, %463 : vector<4x96xf32>
    %465 = arith.addf %441, %464 : vector<4x96xf32>
    %c0_507 = arith.constant 0 : index
    %c0_508 = arith.constant 0 : index
    %c4_509 = arith.constant 4 : index
    %c0_510 = arith.constant 0 : index
    %c0_511 = arith.constant 0 : index
    %466 = vector.load %arg3[%c0_507, %c0_508, %c4_509, %c0_510, %c0_511] : memref<1x4x9x4x96xf32, #tpu.memory_space<vmem>>, vector<1x1x1x4x96xf32>
    %467 = vector.shape_cast %466 : vector<1x1x1x4x96xf32> to vector<4x96xf32>
    %468 = arith.mulf %449, %467 : vector<4x96xf32>
    %469 = arith.addf %442, %468 : vector<4x96xf32>
    %c0_512 = arith.constant 0 : index
    %c0_513 = arith.constant 0 : index
    %c5_514 = arith.constant 5 : index
    %c0_515 = arith.constant 0 : index
    %c0_516 = arith.constant 0 : index
    %470 = vector.load %arg3[%c0_512, %c0_513, %c5_514, %c0_515, %c0_516] : memref<1x4x9x4x96xf32, #tpu.memory_space<vmem>>, vector<1x1x1x4x96xf32>
    %471 = vector.shape_cast %470 : vector<1x1x1x4x96xf32> to vector<4x96xf32>
    %472 = arith.mulf %449, %471 : vector<4x96xf32>
    %473 = arith.addf %443, %472 : vector<4x96xf32>
    %c0_517 = arith.constant 0 : index
    %c0_518 = arith.constant 0 : index
    %c6_519 = arith.constant 6 : index
    %c0_520 = arith.constant 0 : index
    %c0_521 = arith.constant 0 : index
    %474 = vector.load %arg3[%c0_517, %c0_518, %c6_519, %c0_520, %c0_521] : memref<1x4x9x4x96xf32, #tpu.memory_space<vmem>>, vector<1x1x1x4x96xf32>
    %475 = vector.shape_cast %474 : vector<1x1x1x4x96xf32> to vector<4x96xf32>
    %476 = arith.mulf %449, %475 : vector<4x96xf32>
    %477 = arith.addf %444, %476 : vector<4x96xf32>
    %c0_522 = arith.constant 0 : index
    %c0_523 = arith.constant 0 : index
    %c7_524 = arith.constant 7 : index
    %c0_525 = arith.constant 0 : index
    %c0_526 = arith.constant 0 : index
    %478 = vector.load %arg3[%c0_522, %c0_523, %c7_524, %c0_525, %c0_526] : memref<1x4x9x4x96xf32, #tpu.memory_space<vmem>>, vector<1x1x1x4x96xf32>
    %479 = vector.shape_cast %478 : vector<1x1x1x4x96xf32> to vector<4x96xf32>
    %480 = arith.mulf %449, %479 : vector<4x96xf32>
    %481 = arith.addf %445, %480 : vector<4x96xf32>
    %c0_527 = arith.constant 0 : index
    %c0_528 = arith.constant 0 : index
    %c8_529 = arith.constant 8 : index
    %c0_530 = arith.constant 0 : index
    %c0_531 = arith.constant 0 : index
    %482 = vector.load %arg3[%c0_527, %c0_528, %c8_529, %c0_530, %c0_531] : memref<1x4x9x4x96xf32, #tpu.memory_space<vmem>>, vector<1x1x1x4x96xf32>
    %483 = vector.shape_cast %482 : vector<1x1x1x4x96xf32> to vector<4x96xf32>
    %484 = arith.mulf %449, %483 : vector<4x96xf32>
    %485 = arith.addf %446, %484 : vector<4x96xf32>
    %c0_532 = arith.constant 0 : index
    %c1_533 = arith.constant 1 : index
    %c0_534 = arith.constant 0 : index
    %c0_535 = arith.constant 0 : index
    %486 = vector.load %arg2[%c0_532, %c1_533, %c0_534, %c0_535] : memref<1x4x4x104xf32, #tpu.memory_space<vmem>>, vector<1x1x4x104xf32>
    %487 = vector.shape_cast %486 : vector<1x1x4x104xf32> to vector<4x104xf32>
    %488 = vector.extract_strided_slice %487 {offsets = [0, 6], sizes = [4, 96], strides = [1, 1]} : vector<4x104xf32> to vector<4x96xf32>
    %c0_536 = arith.constant 0 : index
    %c1_537 = arith.constant 1 : index
    %c0_538 = arith.constant 0 : index
    %c0_539 = arith.constant 0 : index
    %c0_540 = arith.constant 0 : index
    %489 = vector.load %arg3[%c0_536, %c1_537, %c0_538, %c0_539, %c0_540] : memref<1x4x9x4x96xf32, #tpu.memory_space<vmem>>, vector<1x1x1x4x96xf32>
    %490 = vector.shape_cast %489 : vector<1x1x1x4x96xf32> to vector<4x96xf32>
    %491 = arith.mulf %488, %490 : vector<4x96xf32>
    %492 = arith.addf %453, %491 : vector<4x96xf32>
    %c0_541 = arith.constant 0 : index
    %c1_542 = arith.constant 1 : index
    %c1_543 = arith.constant 1 : index
    %c0_544 = arith.constant 0 : index
    %c0_545 = arith.constant 0 : index
    %493 = vector.load %arg3[%c0_541, %c1_542, %c1_543, %c0_544, %c0_545] : memref<1x4x9x4x96xf32, #tpu.memory_space<vmem>>, vector<1x1x1x4x96xf32>
    %494 = vector.shape_cast %493 : vector<1x1x1x4x96xf32> to vector<4x96xf32>
    %495 = arith.mulf %488, %494 : vector<4x96xf32>
    %496 = arith.addf %457, %495 : vector<4x96xf32>
    %c0_546 = arith.constant 0 : index
    %c1_547 = arith.constant 1 : index
    %c2_548 = arith.constant 2 : index
    %c0_549 = arith.constant 0 : index
    %c0_550 = arith.constant 0 : index
    %497 = vector.load %arg3[%c0_546, %c1_547, %c2_548, %c0_549, %c0_550] : memref<1x4x9x4x96xf32, #tpu.memory_space<vmem>>, vector<1x1x1x4x96xf32>
    %498 = vector.shape_cast %497 : vector<1x1x1x4x96xf32> to vector<4x96xf32>
    %499 = arith.mulf %488, %498 : vector<4x96xf32>
    %500 = arith.addf %461, %499 : vector<4x96xf32>
    %c0_551 = arith.constant 0 : index
    %c1_552 = arith.constant 1 : index
    %c3_553 = arith.constant 3 : index
    %c0_554 = arith.constant 0 : index
    %c0_555 = arith.constant 0 : index
    %501 = vector.load %arg3[%c0_551, %c1_552, %c3_553, %c0_554, %c0_555] : memref<1x4x9x4x96xf32, #tpu.memory_space<vmem>>, vector<1x1x1x4x96xf32>
    %502 = vector.shape_cast %501 : vector<1x1x1x4x96xf32> to vector<4x96xf32>
    %503 = arith.mulf %488, %502 : vector<4x96xf32>
    %504 = arith.addf %465, %503 : vector<4x96xf32>
    %c0_556 = arith.constant 0 : index
    %c1_557 = arith.constant 1 : index
    %c4_558 = arith.constant 4 : index
    %c0_559 = arith.constant 0 : index
    %c0_560 = arith.constant 0 : index
    %505 = vector.load %arg3[%c0_556, %c1_557, %c4_558, %c0_559, %c0_560] : memref<1x4x9x4x96xf32, #tpu.memory_space<vmem>>, vector<1x1x1x4x96xf32>
    %506 = vector.shape_cast %505 : vector<1x1x1x4x96xf32> to vector<4x96xf32>
    %507 = arith.mulf %488, %506 : vector<4x96xf32>
    %508 = arith.addf %469, %507 : vector<4x96xf32>
    %c0_561 = arith.constant 0 : index
    %c1_562 = arith.constant 1 : index
    %c5_563 = arith.constant 5 : index
    %c0_564 = arith.constant 0 : index
    %c0_565 = arith.constant 0 : index
    %509 = vector.load %arg3[%c0_561, %c1_562, %c5_563, %c0_564, %c0_565] : memref<1x4x9x4x96xf32, #tpu.memory_space<vmem>>, vector<1x1x1x4x96xf32>
    %510 = vector.shape_cast %509 : vector<1x1x1x4x96xf32> to vector<4x96xf32>
    %511 = arith.mulf %488, %510 : vector<4x96xf32>
    %512 = arith.addf %473, %511 : vector<4x96xf32>
    %c0_566 = arith.constant 0 : index
    %c1_567 = arith.constant 1 : index
    %c6_568 = arith.constant 6 : index
    %c0_569 = arith.constant 0 : index
    %c0_570 = arith.constant 0 : index
    %513 = vector.load %arg3[%c0_566, %c1_567, %c6_568, %c0_569, %c0_570] : memref<1x4x9x4x96xf32, #tpu.memory_space<vmem>>, vector<1x1x1x4x96xf32>
    %514 = vector.shape_cast %513 : vector<1x1x1x4x96xf32> to vector<4x96xf32>
    %515 = arith.mulf %488, %514 : vector<4x96xf32>
    %516 = arith.addf %477, %515 : vector<4x96xf32>
    %c0_571 = arith.constant 0 : index
    %c1_572 = arith.constant 1 : index
    %c7_573 = arith.constant 7 : index
    %c0_574 = arith.constant 0 : index
    %c0_575 = arith.constant 0 : index
    %517 = vector.load %arg3[%c0_571, %c1_572, %c7_573, %c0_574, %c0_575] : memref<1x4x9x4x96xf32, #tpu.memory_space<vmem>>, vector<1x1x1x4x96xf32>
    %518 = vector.shape_cast %517 : vector<1x1x1x4x96xf32> to vector<4x96xf32>
    %519 = arith.mulf %488, %518 : vector<4x96xf32>
    %520 = arith.addf %481, %519 : vector<4x96xf32>
    %c0_576 = arith.constant 0 : index
    %c1_577 = arith.constant 1 : index
    %c8_578 = arith.constant 8 : index
    %c0_579 = arith.constant 0 : index
    %c0_580 = arith.constant 0 : index
    %521 = vector.load %arg3[%c0_576, %c1_577, %c8_578, %c0_579, %c0_580] : memref<1x4x9x4x96xf32, #tpu.memory_space<vmem>>, vector<1x1x1x4x96xf32>
    %522 = vector.shape_cast %521 : vector<1x1x1x4x96xf32> to vector<4x96xf32>
    %523 = arith.mulf %488, %522 : vector<4x96xf32>
    %524 = arith.addf %485, %523 : vector<4x96xf32>
    %c0_581 = arith.constant 0 : index
    %c2_582 = arith.constant 2 : index
    %c0_583 = arith.constant 0 : index
    %c0_584 = arith.constant 0 : index
    %525 = vector.load %arg2[%c0_581, %c2_582, %c0_583, %c0_584] : memref<1x4x4x104xf32, #tpu.memory_space<vmem>>, vector<1x1x4x104xf32>
    %526 = vector.shape_cast %525 : vector<1x1x4x104xf32> to vector<4x104xf32>
    %527 = vector.extract_strided_slice %526 {offsets = [0, 6], sizes = [4, 96], strides = [1, 1]} : vector<4x104xf32> to vector<4x96xf32>
    %c0_585 = arith.constant 0 : index
    %c2_586 = arith.constant 2 : index
    %c0_587 = arith.constant 0 : index
    %c0_588 = arith.constant 0 : index
    %c0_589 = arith.constant 0 : index
    %528 = vector.load %arg3[%c0_585, %c2_586, %c0_587, %c0_588, %c0_589] : memref<1x4x9x4x96xf32, #tpu.memory_space<vmem>>, vector<1x1x1x4x96xf32>
    %529 = vector.shape_cast %528 : vector<1x1x1x4x96xf32> to vector<4x96xf32>
    %530 = arith.mulf %527, %529 : vector<4x96xf32>
    %531 = arith.addf %492, %530 : vector<4x96xf32>
    %c0_590 = arith.constant 0 : index
    %c2_591 = arith.constant 2 : index
    %c1_592 = arith.constant 1 : index
    %c0_593 = arith.constant 0 : index
    %c0_594 = arith.constant 0 : index
    %532 = vector.load %arg3[%c0_590, %c2_591, %c1_592, %c0_593, %c0_594] : memref<1x4x9x4x96xf32, #tpu.memory_space<vmem>>, vector<1x1x1x4x96xf32>
    %533 = vector.shape_cast %532 : vector<1x1x1x4x96xf32> to vector<4x96xf32>
    %534 = arith.mulf %527, %533 : vector<4x96xf32>
    %535 = arith.addf %496, %534 : vector<4x96xf32>
    %c0_595 = arith.constant 0 : index
    %c2_596 = arith.constant 2 : index
    %c2_597 = arith.constant 2 : index
    %c0_598 = arith.constant 0 : index
    %c0_599 = arith.constant 0 : index
    %536 = vector.load %arg3[%c0_595, %c2_596, %c2_597, %c0_598, %c0_599] : memref<1x4x9x4x96xf32, #tpu.memory_space<vmem>>, vector<1x1x1x4x96xf32>
    %537 = vector.shape_cast %536 : vector<1x1x1x4x96xf32> to vector<4x96xf32>
    %538 = arith.mulf %527, %537 : vector<4x96xf32>
    %539 = arith.addf %500, %538 : vector<4x96xf32>
    %c0_600 = arith.constant 0 : index
    %c2_601 = arith.constant 2 : index
    %c3_602 = arith.constant 3 : index
    %c0_603 = arith.constant 0 : index
    %c0_604 = arith.constant 0 : index
    %540 = vector.load %arg3[%c0_600, %c2_601, %c3_602, %c0_603, %c0_604] : memref<1x4x9x4x96xf32, #tpu.memory_space<vmem>>, vector<1x1x1x4x96xf32>
    %541 = vector.shape_cast %540 : vector<1x1x1x4x96xf32> to vector<4x96xf32>
    %542 = arith.mulf %527, %541 : vector<4x96xf32>
    %543 = arith.addf %504, %542 : vector<4x96xf32>
    %c0_605 = arith.constant 0 : index
    %c2_606 = arith.constant 2 : index
    %c4_607 = arith.constant 4 : index
    %c0_608 = arith.constant 0 : index
    %c0_609 = arith.constant 0 : index
    %544 = vector.load %arg3[%c0_605, %c2_606, %c4_607, %c0_608, %c0_609] : memref<1x4x9x4x96xf32, #tpu.memory_space<vmem>>, vector<1x1x1x4x96xf32>
    %545 = vector.shape_cast %544 : vector<1x1x1x4x96xf32> to vector<4x96xf32>
    %546 = arith.mulf %527, %545 : vector<4x96xf32>
    %547 = arith.addf %508, %546 : vector<4x96xf32>
    %c0_610 = arith.constant 0 : index
    %c2_611 = arith.constant 2 : index
    %c5_612 = arith.constant 5 : index
    %c0_613 = arith.constant 0 : index
    %c0_614 = arith.constant 0 : index
    %548 = vector.load %arg3[%c0_610, %c2_611, %c5_612, %c0_613, %c0_614] : memref<1x4x9x4x96xf32, #tpu.memory_space<vmem>>, vector<1x1x1x4x96xf32>
    %549 = vector.shape_cast %548 : vector<1x1x1x4x96xf32> to vector<4x96xf32>
    %550 = arith.mulf %527, %549 : vector<4x96xf32>
    %551 = arith.addf %512, %550 : vector<4x96xf32>
    %c0_615 = arith.constant 0 : index
    %c2_616 = arith.constant 2 : index
    %c6_617 = arith.constant 6 : index
    %c0_618 = arith.constant 0 : index
    %c0_619 = arith.constant 0 : index
    %552 = vector.load %arg3[%c0_615, %c2_616, %c6_617, %c0_618, %c0_619] : memref<1x4x9x4x96xf32, #tpu.memory_space<vmem>>, vector<1x1x1x4x96xf32>
    %553 = vector.shape_cast %552 : vector<1x1x1x4x96xf32> to vector<4x96xf32>
    %554 = arith.mulf %527, %553 : vector<4x96xf32>
    %555 = arith.addf %516, %554 : vector<4x96xf32>
    %c0_620 = arith.constant 0 : index
    %c2_621 = arith.constant 2 : index
    %c7_622 = arith.constant 7 : index
    %c0_623 = arith.constant 0 : index
    %c0_624 = arith.constant 0 : index
    %556 = vector.load %arg3[%c0_620, %c2_621, %c7_622, %c0_623, %c0_624] : memref<1x4x9x4x96xf32, #tpu.memory_space<vmem>>, vector<1x1x1x4x96xf32>
    %557 = vector.shape_cast %556 : vector<1x1x1x4x96xf32> to vector<4x96xf32>
    %558 = arith.mulf %527, %557 : vector<4x96xf32>
    %559 = arith.addf %520, %558 : vector<4x96xf32>
    %c0_625 = arith.constant 0 : index
    %c2_626 = arith.constant 2 : index
    %c8_627 = arith.constant 8 : index
    %c0_628 = arith.constant 0 : index
    %c0_629 = arith.constant 0 : index
    %560 = vector.load %arg3[%c0_625, %c2_626, %c8_627, %c0_628, %c0_629] : memref<1x4x9x4x96xf32, #tpu.memory_space<vmem>>, vector<1x1x1x4x96xf32>
    %561 = vector.shape_cast %560 : vector<1x1x1x4x96xf32> to vector<4x96xf32>
    %562 = arith.mulf %527, %561 : vector<4x96xf32>
    %563 = arith.addf %524, %562 : vector<4x96xf32>
    %c0_630 = arith.constant 0 : index
    %c3_631 = arith.constant 3 : index
    %c0_632 = arith.constant 0 : index
    %c0_633 = arith.constant 0 : index
    %564 = vector.load %arg2[%c0_630, %c3_631, %c0_632, %c0_633] : memref<1x4x4x104xf32, #tpu.memory_space<vmem>>, vector<1x1x4x104xf32>
    %565 = vector.shape_cast %564 : vector<1x1x4x104xf32> to vector<4x104xf32>
    %566 = vector.extract_strided_slice %565 {offsets = [0, 6], sizes = [4, 96], strides = [1, 1]} : vector<4x104xf32> to vector<4x96xf32>
    %c0_634 = arith.constant 0 : index
    %c3_635 = arith.constant 3 : index
    %c0_636 = arith.constant 0 : index
    %c0_637 = arith.constant 0 : index
    %c0_638 = arith.constant 0 : index
    %567 = vector.load %arg3[%c0_634, %c3_635, %c0_636, %c0_637, %c0_638] : memref<1x4x9x4x96xf32, #tpu.memory_space<vmem>>, vector<1x1x1x4x96xf32>
    %568 = vector.shape_cast %567 : vector<1x1x1x4x96xf32> to vector<4x96xf32>
    %569 = arith.mulf %566, %568 : vector<4x96xf32>
    %570 = arith.addf %531, %569 : vector<4x96xf32>
    %c0_639 = arith.constant 0 : index
    %c3_640 = arith.constant 3 : index
    %c1_641 = arith.constant 1 : index
    %c0_642 = arith.constant 0 : index
    %c0_643 = arith.constant 0 : index
    %571 = vector.load %arg3[%c0_639, %c3_640, %c1_641, %c0_642, %c0_643] : memref<1x4x9x4x96xf32, #tpu.memory_space<vmem>>, vector<1x1x1x4x96xf32>
    %572 = vector.shape_cast %571 : vector<1x1x1x4x96xf32> to vector<4x96xf32>
    %573 = arith.mulf %566, %572 : vector<4x96xf32>
    %574 = arith.addf %535, %573 : vector<4x96xf32>
    %c0_644 = arith.constant 0 : index
    %c3_645 = arith.constant 3 : index
    %c2_646 = arith.constant 2 : index
    %c0_647 = arith.constant 0 : index
    %c0_648 = arith.constant 0 : index
    %575 = vector.load %arg3[%c0_644, %c3_645, %c2_646, %c0_647, %c0_648] : memref<1x4x9x4x96xf32, #tpu.memory_space<vmem>>, vector<1x1x1x4x96xf32>
    %576 = vector.shape_cast %575 : vector<1x1x1x4x96xf32> to vector<4x96xf32>
    %577 = arith.mulf %566, %576 : vector<4x96xf32>
    %578 = arith.addf %539, %577 : vector<4x96xf32>
    %c0_649 = arith.constant 0 : index
    %c3_650 = arith.constant 3 : index
    %c3_651 = arith.constant 3 : index
    %c0_652 = arith.constant 0 : index
    %c0_653 = arith.constant 0 : index
    %579 = vector.load %arg3[%c0_649, %c3_650, %c3_651, %c0_652, %c0_653] : memref<1x4x9x4x96xf32, #tpu.memory_space<vmem>>, vector<1x1x1x4x96xf32>
    %580 = vector.shape_cast %579 : vector<1x1x1x4x96xf32> to vector<4x96xf32>
    %581 = arith.mulf %566, %580 : vector<4x96xf32>
    %582 = arith.addf %543, %581 : vector<4x96xf32>
    %c0_654 = arith.constant 0 : index
    %c3_655 = arith.constant 3 : index
    %c4_656 = arith.constant 4 : index
    %c0_657 = arith.constant 0 : index
    %c0_658 = arith.constant 0 : index
    %583 = vector.load %arg3[%c0_654, %c3_655, %c4_656, %c0_657, %c0_658] : memref<1x4x9x4x96xf32, #tpu.memory_space<vmem>>, vector<1x1x1x4x96xf32>
    %584 = vector.shape_cast %583 : vector<1x1x1x4x96xf32> to vector<4x96xf32>
    %585 = arith.mulf %566, %584 : vector<4x96xf32>
    %586 = arith.addf %547, %585 : vector<4x96xf32>
    %c0_659 = arith.constant 0 : index
    %c3_660 = arith.constant 3 : index
    %c5_661 = arith.constant 5 : index
    %c0_662 = arith.constant 0 : index
    %c0_663 = arith.constant 0 : index
    %587 = vector.load %arg3[%c0_659, %c3_660, %c5_661, %c0_662, %c0_663] : memref<1x4x9x4x96xf32, #tpu.memory_space<vmem>>, vector<1x1x1x4x96xf32>
    %588 = vector.shape_cast %587 : vector<1x1x1x4x96xf32> to vector<4x96xf32>
    %589 = arith.mulf %566, %588 : vector<4x96xf32>
    %590 = arith.addf %551, %589 : vector<4x96xf32>
    %c0_664 = arith.constant 0 : index
    %c3_665 = arith.constant 3 : index
    %c6_666 = arith.constant 6 : index
    %c0_667 = arith.constant 0 : index
    %c0_668 = arith.constant 0 : index
    %591 = vector.load %arg3[%c0_664, %c3_665, %c6_666, %c0_667, %c0_668] : memref<1x4x9x4x96xf32, #tpu.memory_space<vmem>>, vector<1x1x1x4x96xf32>
    %592 = vector.shape_cast %591 : vector<1x1x1x4x96xf32> to vector<4x96xf32>
    %593 = arith.mulf %566, %592 : vector<4x96xf32>
    %594 = arith.addf %555, %593 : vector<4x96xf32>
    %c0_669 = arith.constant 0 : index
    %c3_670 = arith.constant 3 : index
    %c7_671 = arith.constant 7 : index
    %c0_672 = arith.constant 0 : index
    %c0_673 = arith.constant 0 : index
    %595 = vector.load %arg3[%c0_669, %c3_670, %c7_671, %c0_672, %c0_673] : memref<1x4x9x4x96xf32, #tpu.memory_space<vmem>>, vector<1x1x1x4x96xf32>
    %596 = vector.shape_cast %595 : vector<1x1x1x4x96xf32> to vector<4x96xf32>
    %597 = arith.mulf %566, %596 : vector<4x96xf32>
    %598 = arith.addf %559, %597 : vector<4x96xf32>
    %c0_674 = arith.constant 0 : index
    %c3_675 = arith.constant 3 : index
    %c8_676 = arith.constant 8 : index
    %c0_677 = arith.constant 0 : index
    %c0_678 = arith.constant 0 : index
    %599 = vector.load %arg3[%c0_674, %c3_675, %c8_676, %c0_677, %c0_678] : memref<1x4x9x4x96xf32, #tpu.memory_space<vmem>>, vector<1x1x1x4x96xf32>
    %600 = vector.shape_cast %599 : vector<1x1x1x4x96xf32> to vector<4x96xf32>
    %601 = arith.mulf %566, %600 : vector<4x96xf32>
    %602 = arith.addf %563, %601 : vector<4x96xf32>
    %603 = vector.extract_strided_slice %570 {offsets = [0, 2], sizes = [4, 88], strides = [1, 1]} : vector<4x96xf32> to vector<4x88xf32>
    %cst_679 = arith.constant 2.500000e-01 : f32
    %604 = vector.broadcast %cst_679 : f32 to vector<4x88xf32>
    %605 = arith.mulf %603, %604 : vector<4x88xf32>
    %c0_680 = arith.constant 0 : index
    %c2_681 = arith.constant 2 : index
    %c0_682 = arith.constant 0 : index
    %c0_683 = arith.constant 0 : index
    %606 = vector.load %arg4[%c0_680, %c2_681, %c0_682, %c0_683] : memref<1x81x4x96xf32, #tpu.memory_space<vmem>>, vector<1x1x4x88xf32>
    %607 = vector.shape_cast %606 : vector<1x1x4x88xf32> to vector<4x88xf32>
    %608 = vector.shape_cast %605 : vector<4x88xf32> to vector<1x1x4x88xf32>
    tpu.vector_store %arg4[%c0_680, %c2_681, %c0_682, %c0_683], %608 {strides = array<i32>} : memref<1x81x4x96xf32, #tpu.memory_space<vmem>>, vector<1x1x4x88xf32>,
    %609 = vector.extract_strided_slice %574 {offsets = [0, 2], sizes = [4, 88], strides = [1, 1]} : vector<4x96xf32> to vector<4x88xf32>
    %cst_684 = arith.constant 2.500000e-01 : f32
    %610 = vector.broadcast %cst_684 : f32 to vector<4x88xf32>
    %611 = arith.mulf %609, %610 : vector<4x88xf32>
    %c0_685 = arith.constant 0 : index
    %c11 = arith.constant 11 : index
    %c0_686 = arith.constant 0 : index
    %c0_687 = arith.constant 0 : index
    %612 = vector.load %arg4[%c0_685, %c11, %c0_686, %c0_687] : memref<1x81x4x96xf32, #tpu.memory_space<vmem>>, vector<1x1x4x88xf32>
    %613 = vector.shape_cast %612 : vector<1x1x4x88xf32> to vector<4x88xf32>
    %614 = vector.shape_cast %611 : vector<4x88xf32> to vector<1x1x4x88xf32>
    tpu.vector_store %arg4[%c0_685, %c11, %c0_686, %c0_687], %614 {strides = array<i32>} : memref<1x81x4x96xf32, #tpu.memory_space<vmem>>, vector<1x1x4x88xf32>,
    %615 = vector.extract_strided_slice %578 {offsets = [0, 2], sizes = [4, 88], strides = [1, 1]} : vector<4x96xf32> to vector<4x88xf32>
    %cst_688 = arith.constant 2.500000e-01 : f32
    %616 = vector.broadcast %cst_688 : f32 to vector<4x88xf32>
    %617 = arith.mulf %615, %616 : vector<4x88xf32>
    %c0_689 = arith.constant 0 : index
    %c20 = arith.constant 20 : index
    %c0_690 = arith.constant 0 : index
    %c0_691 = arith.constant 0 : index
    %618 = vector.load %arg4[%c0_689, %c20, %c0_690, %c0_691] : memref<1x81x4x96xf32, #tpu.memory_space<vmem>>, vector<1x1x4x88xf32>
    %619 = vector.shape_cast %618 : vector<1x1x4x88xf32> to vector<4x88xf32>
    %620 = vector.shape_cast %617 : vector<4x88xf32> to vector<1x1x4x88xf32>
    tpu.vector_store %arg4[%c0_689, %c20, %c0_690, %c0_691], %620 {strides = array<i32>} : memref<1x81x4x96xf32, #tpu.memory_space<vmem>>, vector<1x1x4x88xf32>,
    %621 = vector.extract_strided_slice %582 {offsets = [0, 2], sizes = [4, 88], strides = [1, 1]} : vector<4x96xf32> to vector<4x88xf32>
    %cst_692 = arith.constant 2.500000e-01 : f32
    %622 = vector.broadcast %cst_692 : f32 to vector<4x88xf32>
    %623 = arith.mulf %621, %622 : vector<4x88xf32>
    %c0_693 = arith.constant 0 : index
    %c29 = arith.constant 29 : index
    %c0_694 = arith.constant 0 : index
    %c0_695 = arith.constant 0 : index
    %624 = vector.load %arg4[%c0_693, %c29, %c0_694, %c0_695] : memref<1x81x4x96xf32, #tpu.memory_space<vmem>>, vector<1x1x4x88xf32>
    %625 = vector.shape_cast %624 : vector<1x1x4x88xf32> to vector<4x88xf32>
    %626 = vector.shape_cast %623 : vector<4x88xf32> to vector<1x1x4x88xf32>
    tpu.vector_store %arg4[%c0_693, %c29, %c0_694, %c0_695], %626 {strides = array<i32>} : memref<1x81x4x96xf32, #tpu.memory_space<vmem>>, vector<1x1x4x88xf32>,
    %627 = vector.extract_strided_slice %586 {offsets = [0, 2], sizes = [4, 88], strides = [1, 1]} : vector<4x96xf32> to vector<4x88xf32>
    %cst_696 = arith.constant 2.500000e-01 : f32
    %628 = vector.broadcast %cst_696 : f32 to vector<4x88xf32>
    %629 = arith.mulf %627, %628 : vector<4x88xf32>
    %c0_697 = arith.constant 0 : index
    %c38 = arith.constant 38 : index
    %c0_698 = arith.constant 0 : index
    %c0_699 = arith.constant 0 : index
    %630 = vector.load %arg4[%c0_697, %c38, %c0_698, %c0_699] : memref<1x81x4x96xf32, #tpu.memory_space<vmem>>, vector<1x1x4x88xf32>
    %631 = vector.shape_cast %630 : vector<1x1x4x88xf32> to vector<4x88xf32>
    %632 = vector.shape_cast %629 : vector<4x88xf32> to vector<1x1x4x88xf32>
    tpu.vector_store %arg4[%c0_697, %c38, %c0_698, %c0_699], %632 {strides = array<i32>} : memref<1x81x4x96xf32, #tpu.memory_space<vmem>>, vector<1x1x4x88xf32>,
    %633 = vector.extract_strided_slice %590 {offsets = [0, 2], sizes = [4, 88], strides = [1, 1]} : vector<4x96xf32> to vector<4x88xf32>
    %cst_700 = arith.constant 2.500000e-01 : f32
    %634 = vector.broadcast %cst_700 : f32 to vector<4x88xf32>
    %635 = arith.mulf %633, %634 : vector<4x88xf32>
    %c0_701 = arith.constant 0 : index
    %c47 = arith.constant 47 : index
    %c0_702 = arith.constant 0 : index
    %c0_703 = arith.constant 0 : index
    %636 = vector.load %arg4[%c0_701, %c47, %c0_702, %c0_703] : memref<1x81x4x96xf32, #tpu.memory_space<vmem>>, vector<1x1x4x88xf32>
    %637 = vector.shape_cast %636 : vector<1x1x4x88xf32> to vector<4x88xf32>
    %638 = vector.shape_cast %635 : vector<4x88xf32> to vector<1x1x4x88xf32>
    tpu.vector_store %arg4[%c0_701, %c47, %c0_702, %c0_703], %638 {strides = array<i32>} : memref<1x81x4x96xf32, #tpu.memory_space<vmem>>, vector<1x1x4x88xf32>,
    %639 = vector.extract_strided_slice %594 {offsets = [0, 2], sizes = [4, 88], strides = [1, 1]} : vector<4x96xf32> to vector<4x88xf32>
    %cst_704 = arith.constant 2.500000e-01 : f32
    %640 = vector.broadcast %cst_704 : f32 to vector<4x88xf32>
    %641 = arith.mulf %639, %640 : vector<4x88xf32>
    %c0_705 = arith.constant 0 : index
    %c56 = arith.constant 56 : index
    %c0_706 = arith.constant 0 : index
    %c0_707 = arith.constant 0 : index
    %642 = vector.load %arg4[%c0_705, %c56, %c0_706, %c0_707] : memref<1x81x4x96xf32, #tpu.memory_space<vmem>>, vector<1x1x4x88xf32>
    %643 = vector.shape_cast %642 : vector<1x1x4x88xf32> to vector<4x88xf32>
    %644 = vector.shape_cast %641 : vector<4x88xf32> to vector<1x1x4x88xf32>
    tpu.vector_store %arg4[%c0_705, %c56, %c0_706, %c0_707], %644 {strides = array<i32>} : memref<1x81x4x96xf32, #tpu.memory_space<vmem>>, vector<1x1x4x88xf32>,
    %645 = vector.extract_strided_slice %598 {offsets = [0, 2], sizes = [4, 88], strides = [1, 1]} : vector<4x96xf32> to vector<4x88xf32>
    %cst_708 = arith.constant 2.500000e-01 : f32
    %646 = vector.broadcast %cst_708 : f32 to vector<4x88xf32>
    %647 = arith.mulf %645, %646 : vector<4x88xf32>
    %c0_709 = arith.constant 0 : index
    %c65 = arith.constant 65 : index
    %c0_710 = arith.constant 0 : index
    %c0_711 = arith.constant 0 : index
    %648 = vector.load %arg4[%c0_709, %c65, %c0_710, %c0_711] : memref<1x81x4x96xf32, #tpu.memory_space<vmem>>, vector<1x1x4x88xf32>
    %649 = vector.shape_cast %648 : vector<1x1x4x88xf32> to vector<4x88xf32>
    %650 = vector.shape_cast %647 : vector<4x88xf32> to vector<1x1x4x88xf32>
    tpu.vector_store %arg4[%c0_709, %c65, %c0_710, %c0_711], %650 {strides = array<i32>} : memref<1x81x4x96xf32, #tpu.memory_space<vmem>>, vector<1x1x4x88xf32>,
    %651 = vector.extract_strided_slice %602 {offsets = [0, 2], sizes = [4, 88], strides = [1, 1]} : vector<4x96xf32> to vector<4x88xf32>
    %cst_712 = arith.constant 2.500000e-01 : f32
    %652 = vector.broadcast %cst_712 : f32 to vector<4x88xf32>
    %653 = arith.mulf %651, %652 : vector<4x88xf32>
    %c0_713 = arith.constant 0 : index
    %c74 = arith.constant 74 : index
    %c0_714 = arith.constant 0 : index
    %c0_715 = arith.constant 0 : index
    %654 = vector.load %arg4[%c0_713, %c74, %c0_714, %c0_715] : memref<1x81x4x96xf32, #tpu.memory_space<vmem>>, vector<1x1x4x88xf32>
    %655 = vector.shape_cast %654 : vector<1x1x4x88xf32> to vector<4x88xf32>
    %656 = vector.shape_cast %653 : vector<4x88xf32> to vector<1x1x4x88xf32>
    tpu.vector_store %arg4[%c0_713, %c74, %c0_714, %c0_715], %656 {strides = array<i32>} : memref<1x81x4x96xf32, #tpu.memory_space<vmem>>, vector<1x1x4x88xf32>,
    %cst_716 = arith.constant 0.000000e+00 : f32
    %657 = vector.broadcast %cst_716 : f32 to vector<4x96xf32>
    %cst_717 = arith.constant 0.000000e+00 : f32
    %658 = vector.broadcast %cst_717 : f32 to vector<4x96xf32>
    %cst_718 = arith.constant 0.000000e+00 : f32
    %659 = vector.broadcast %cst_718 : f32 to vector<4x96xf32>
    %cst_719 = arith.constant 0.000000e+00 : f32
    %660 = vector.broadcast %cst_719 : f32 to vector<4x96xf32>
    %cst_720 = arith.constant 0.000000e+00 : f32
    %661 = vector.broadcast %cst_720 : f32 to vector<4x96xf32>
    %cst_721 = arith.constant 0.000000e+00 : f32
    %662 = vector.broadcast %cst_721 : f32 to vector<4x96xf32>
    %cst_722 = arith.constant 0.000000e+00 : f32
    %663 = vector.broadcast %cst_722 : f32 to vector<4x96xf32>
    %cst_723 = arith.constant 0.000000e+00 : f32
    %664 = vector.broadcast %cst_723 : f32 to vector<4x96xf32>
    %cst_724 = arith.constant 0.000000e+00 : f32
    %665 = vector.broadcast %cst_724 : f32 to vector<4x96xf32>
    %c0_725 = arith.constant 0 : index
    %c0_726 = arith.constant 0 : index
    %c0_727 = arith.constant 0 : index
    %c0_728 = arith.constant 0 : index
    %666 = vector.load %arg2[%c0_725, %c0_726, %c0_727, %c0_728] : memref<1x4x4x104xf32, #tpu.memory_space<vmem>>, vector<1x1x4x104xf32>
    %667 = vector.shape_cast %666 : vector<1x1x4x104xf32> to vector<4x104xf32>
    %668 = vector.extract_strided_slice %667 {offsets = [0, 5], sizes = [4, 96], strides = [1, 1]} : vector<4x104xf32> to vector<4x96xf32>
    %c0_729 = arith.constant 0 : index
    %c0_730 = arith.constant 0 : index
    %c0_731 = arith.constant 0 : index
    %c0_732 = arith.constant 0 : index
    %c0_733 = arith.constant 0 : index
    %669 = vector.load %arg3[%c0_729, %c0_730, %c0_731, %c0_732, %c0_733] : memref<1x4x9x4x96xf32, #tpu.memory_space<vmem>>, vector<1x1x1x4x96xf32>
    %670 = vector.shape_cast %669 : vector<1x1x1x4x96xf32> to vector<4x96xf32>
    %671 = arith.mulf %668, %670 : vector<4x96xf32>
    %672 = arith.addf %657, %671 : vector<4x96xf32>
    %c0_734 = arith.constant 0 : index
    %c0_735 = arith.constant 0 : index
    %c1_736 = arith.constant 1 : index
    %c0_737 = arith.constant 0 : index
    %c0_738 = arith.constant 0 : index
    %673 = vector.load %arg3[%c0_734, %c0_735, %c1_736, %c0_737, %c0_738] : memref<1x4x9x4x96xf32, #tpu.memory_space<vmem>>, vector<1x1x1x4x96xf32>
    %674 = vector.shape_cast %673 : vector<1x1x1x4x96xf32> to vector<4x96xf32>
    %675 = arith.mulf %668, %674 : vector<4x96xf32>
    %676 = arith.addf %658, %675 : vector<4x96xf32>
    %c0_739 = arith.constant 0 : index
    %c0_740 = arith.constant 0 : index
    %c2_741 = arith.constant 2 : index
    %c0_742 = arith.constant 0 : index
    %c0_743 = arith.constant 0 : index
    %677 = vector.load %arg3[%c0_739, %c0_740, %c2_741, %c0_742, %c0_743] : memref<1x4x9x4x96xf32, #tpu.memory_space<vmem>>, vector<1x1x1x4x96xf32>
    %678 = vector.shape_cast %677 : vector<1x1x1x4x96xf32> to vector<4x96xf32>
    %679 = arith.mulf %668, %678 : vector<4x96xf32>
    %680 = arith.addf %659, %679 : vector<4x96xf32>
    %c0_744 = arith.constant 0 : index
    %c0_745 = arith.constant 0 : index
    %c3_746 = arith.constant 3 : index
    %c0_747 = arith.constant 0 : index
    %c0_748 = arith.constant 0 : index
    %681 = vector.load %arg3[%c0_744, %c0_745, %c3_746, %c0_747, %c0_748] : memref<1x4x9x4x96xf32, #tpu.memory_space<vmem>>, vector<1x1x1x4x96xf32>
    %682 = vector.shape_cast %681 : vector<1x1x1x4x96xf32> to vector<4x96xf32>
    %683 = arith.mulf %668, %682 : vector<4x96xf32>
    %684 = arith.addf %660, %683 : vector<4x96xf32>
    %c0_749 = arith.constant 0 : index
    %c0_750 = arith.constant 0 : index
    %c4_751 = arith.constant 4 : index
    %c0_752 = arith.constant 0 : index
    %c0_753 = arith.constant 0 : index
    %685 = vector.load %arg3[%c0_749, %c0_750, %c4_751, %c0_752, %c0_753] : memref<1x4x9x4x96xf32, #tpu.memory_space<vmem>>, vector<1x1x1x4x96xf32>
    %686 = vector.shape_cast %685 : vector<1x1x1x4x96xf32> to vector<4x96xf32>
    %687 = arith.mulf %668, %686 : vector<4x96xf32>
    %688 = arith.addf %661, %687 : vector<4x96xf32>
    %c0_754 = arith.constant 0 : index
    %c0_755 = arith.constant 0 : index
    %c5_756 = arith.constant 5 : index
    %c0_757 = arith.constant 0 : index
    %c0_758 = arith.constant 0 : index
    %689 = vector.load %arg3[%c0_754, %c0_755, %c5_756, %c0_757, %c0_758] : memref<1x4x9x4x96xf32, #tpu.memory_space<vmem>>, vector<1x1x1x4x96xf32>
    %690 = vector.shape_cast %689 : vector<1x1x1x4x96xf32> to vector<4x96xf32>
    %691 = arith.mulf %668, %690 : vector<4x96xf32>
    %692 = arith.addf %662, %691 : vector<4x96xf32>
    %c0_759 = arith.constant 0 : index
    %c0_760 = arith.constant 0 : index
    %c6_761 = arith.constant 6 : index
    %c0_762 = arith.constant 0 : index
    %c0_763 = arith.constant 0 : index
    %693 = vector.load %arg3[%c0_759, %c0_760, %c6_761, %c0_762, %c0_763] : memref<1x4x9x4x96xf32, #tpu.memory_space<vmem>>, vector<1x1x1x4x96xf32>
    %694 = vector.shape_cast %693 : vector<1x1x1x4x96xf32> to vector<4x96xf32>
    %695 = arith.mulf %668, %694 : vector<4x96xf32>
    %696 = arith.addf %663, %695 : vector<4x96xf32>
    %c0_764 = arith.constant 0 : index
    %c0_765 = arith.constant 0 : index
    %c7_766 = arith.constant 7 : index
    %c0_767 = arith.constant 0 : index
    %c0_768 = arith.constant 0 : index
    %697 = vector.load %arg3[%c0_764, %c0_765, %c7_766, %c0_767, %c0_768] : memref<1x4x9x4x96xf32, #tpu.memory_space<vmem>>, vector<1x1x1x4x96xf32>
    %698 = vector.shape_cast %697 : vector<1x1x1x4x96xf32> to vector<4x96xf32>
    %699 = arith.mulf %668, %698 : vector<4x96xf32>
    %700 = arith.addf %664, %699 : vector<4x96xf32>
    %c0_769 = arith.constant 0 : index
    %c0_770 = arith.constant 0 : index
    %c8_771 = arith.constant 8 : index
    %c0_772 = arith.constant 0 : index
    %c0_773 = arith.constant 0 : index
    %701 = vector.load %arg3[%c0_769, %c0_770, %c8_771, %c0_772, %c0_773] : memref<1x4x9x4x96xf32, #tpu.memory_space<vmem>>, vector<1x1x1x4x96xf32>
    %702 = vector.shape_cast %701 : vector<1x1x1x4x96xf32> to vector<4x96xf32>
    %703 = arith.mulf %668, %702 : vector<4x96xf32>
    %704 = arith.addf %665, %703 : vector<4x96xf32>
    %c0_774 = arith.constant 0 : index
    %c1_775 = arith.constant 1 : index
    %c0_776 = arith.constant 0 : index
    %c0_777 = arith.constant 0 : index
    %705 = vector.load %arg2[%c0_774, %c1_775, %c0_776, %c0_777] : memref<1x4x4x104xf32, #tpu.memory_space<vmem>>, vector<1x1x4x104xf32>
    %706 = vector.shape_cast %705 : vector<1x1x4x104xf32> to vector<4x104xf32>
    %707 = vector.extract_strided_slice %706 {offsets = [0, 5], sizes = [4, 96], strides = [1, 1]} : vector<4x104xf32> to vector<4x96xf32>
    %c0_778 = arith.constant 0 : index
    %c1_779 = arith.constant 1 : index
    %c0_780 = arith.constant 0 : index
    %c0_781 = arith.constant 0 : index
    %c0_782 = arith.constant 0 : index
    %708 = vector.load %arg3[%c0_778, %c1_779, %c0_780, %c0_781, %c0_782] : memref<1x4x9x4x96xf32, #tpu.memory_space<vmem>>, vector<1x1x1x4x96xf32>
    %709 = vector.shape_cast %708 : vector<1x1x1x4x96xf32> to vector<4x96xf32>
    %710 = arith.mulf %707, %709 : vector<4x96xf32>
    %711 = arith.addf %672, %710 : vector<4x96xf32>
    %c0_783 = arith.constant 0 : index
    %c1_784 = arith.constant 1 : index
    %c1_785 = arith.constant 1 : index
    %c0_786 = arith.constant 0 : index
    %c0_787 = arith.constant 0 : index
    %712 = vector.load %arg3[%c0_783, %c1_784, %c1_785, %c0_786, %c0_787] : memref<1x4x9x4x96xf32, #tpu.memory_space<vmem>>, vector<1x1x1x4x96xf32>
    %713 = vector.shape_cast %712 : vector<1x1x1x4x96xf32> to vector<4x96xf32>
    %714 = arith.mulf %707, %713 : vector<4x96xf32>
    %715 = arith.addf %676, %714 : vector<4x96xf32>
    %c0_788 = arith.constant 0 : index
    %c1_789 = arith.constant 1 : index
    %c2_790 = arith.constant 2 : index
    %c0_791 = arith.constant 0 : index
    %c0_792 = arith.constant 0 : index
    %716 = vector.load %arg3[%c0_788, %c1_789, %c2_790, %c0_791, %c0_792] : memref<1x4x9x4x96xf32, #tpu.memory_space<vmem>>, vector<1x1x1x4x96xf32>
    %717 = vector.shape_cast %716 : vector<1x1x1x4x96xf32> to vector<4x96xf32>
    %718 = arith.mulf %707, %717 : vector<4x96xf32>
    %719 = arith.addf %680, %718 : vector<4x96xf32>
    %c0_793 = arith.constant 0 : index
    %c1_794 = arith.constant 1 : index
    %c3_795 = arith.constant 3 : index
    %c0_796 = arith.constant 0 : index
    %c0_797 = arith.constant 0 : index
    %720 = vector.load %arg3[%c0_793, %c1_794, %c3_795, %c0_796, %c0_797] : memref<1x4x9x4x96xf32, #tpu.memory_space<vmem>>, vector<1x1x1x4x96xf32>
    %721 = vector.shape_cast %720 : vector<1x1x1x4x96xf32> to vector<4x96xf32>
    %722 = arith.mulf %707, %721 : vector<4x96xf32>
    %723 = arith.addf %684, %722 : vector<4x96xf32>
    %c0_798 = arith.constant 0 : index
    %c1_799 = arith.constant 1 : index
    %c4_800 = arith.constant 4 : index
    %c0_801 = arith.constant 0 : index
    %c0_802 = arith.constant 0 : index
    %724 = vector.load %arg3[%c0_798, %c1_799, %c4_800, %c0_801, %c0_802] : memref<1x4x9x4x96xf32, #tpu.memory_space<vmem>>, vector<1x1x1x4x96xf32>
    %725 = vector.shape_cast %724 : vector<1x1x1x4x96xf32> to vector<4x96xf32>
    %726 = arith.mulf %707, %725 : vector<4x96xf32>
    %727 = arith.addf %688, %726 : vector<4x96xf32>
    %c0_803 = arith.constant 0 : index
    %c1_804 = arith.constant 1 : index
    %c5_805 = arith.constant 5 : index
    %c0_806 = arith.constant 0 : index
    %c0_807 = arith.constant 0 : index
    %728 = vector.load %arg3[%c0_803, %c1_804, %c5_805, %c0_806, %c0_807] : memref<1x4x9x4x96xf32, #tpu.memory_space<vmem>>, vector<1x1x1x4x96xf32>
    %729 = vector.shape_cast %728 : vector<1x1x1x4x96xf32> to vector<4x96xf32>
    %730 = arith.mulf %707, %729 : vector<4x96xf32>
    %731 = arith.addf %692, %730 : vector<4x96xf32>
    %c0_808 = arith.constant 0 : index
    %c1_809 = arith.constant 1 : index
    %c6_810 = arith.constant 6 : index
    %c0_811 = arith.constant 0 : index
    %c0_812 = arith.constant 0 : index
    %732 = vector.load %arg3[%c0_808, %c1_809, %c6_810, %c0_811, %c0_812] : memref<1x4x9x4x96xf32, #tpu.memory_space<vmem>>, vector<1x1x1x4x96xf32>
    %733 = vector.shape_cast %732 : vector<1x1x1x4x96xf32> to vector<4x96xf32>
    %734 = arith.mulf %707, %733 : vector<4x96xf32>
    %735 = arith.addf %696, %734 : vector<4x96xf32>
    %c0_813 = arith.constant 0 : index
    %c1_814 = arith.constant 1 : index
    %c7_815 = arith.constant 7 : index
    %c0_816 = arith.constant 0 : index
    %c0_817 = arith.constant 0 : index
    %736 = vector.load %arg3[%c0_813, %c1_814, %c7_815, %c0_816, %c0_817] : memref<1x4x9x4x96xf32, #tpu.memory_space<vmem>>, vector<1x1x1x4x96xf32>
    %737 = vector.shape_cast %736 : vector<1x1x1x4x96xf32> to vector<4x96xf32>
    %738 = arith.mulf %707, %737 : vector<4x96xf32>
    %739 = arith.addf %700, %738 : vector<4x96xf32>
    %c0_818 = arith.constant 0 : index
    %c1_819 = arith.constant 1 : index
    %c8_820 = arith.constant 8 : index
    %c0_821 = arith.constant 0 : index
    %c0_822 = arith.constant 0 : index
    %740 = vector.load %arg3[%c0_818, %c1_819, %c8_820, %c0_821, %c0_822] : memref<1x4x9x4x96xf32, #tpu.memory_space<vmem>>, vector<1x1x1x4x96xf32>
    %741 = vector.shape_cast %740 : vector<1x1x1x4x96xf32> to vector<4x96xf32>
    %742 = arith.mulf %707, %741 : vector<4x96xf32>
    %743 = arith.addf %704, %742 : vector<4x96xf32>
    %c0_823 = arith.constant 0 : index
    %c2_824 = arith.constant 2 : index
    %c0_825 = arith.constant 0 : index
    %c0_826 = arith.constant 0 : index
    %744 = vector.load %arg2[%c0_823, %c2_824, %c0_825, %c0_826] : memref<1x4x4x104xf32, #tpu.memory_space<vmem>>, vector<1x1x4x104xf32>
    %745 = vector.shape_cast %744 : vector<1x1x4x104xf32> to vector<4x104xf32>
    %746 = vector.extract_strided_slice %745 {offsets = [0, 5], sizes = [4, 96], strides = [1, 1]} : vector<4x104xf32> to vector<4x96xf32>
    %c0_827 = arith.constant 0 : index
    %c2_828 = arith.constant 2 : index
    %c0_829 = arith.constant 0 : index
    %c0_830 = arith.constant 0 : index
    %c0_831 = arith.constant 0 : index
    %747 = vector.load %arg3[%c0_827, %c2_828, %c0_829, %c0_830, %c0_831] : memref<1x4x9x4x96xf32, #tpu.memory_space<vmem>>, vector<1x1x1x4x96xf32>
    %748 = vector.shape_cast %747 : vector<1x1x1x4x96xf32> to vector<4x96xf32>
    %749 = arith.mulf %746, %748 : vector<4x96xf32>
    %750 = arith.addf %711, %749 : vector<4x96xf32>
    %c0_832 = arith.constant 0 : index
    %c2_833 = arith.constant 2 : index
    %c1_834 = arith.constant 1 : index
    %c0_835 = arith.constant 0 : index
    %c0_836 = arith.constant 0 : index
    %751 = vector.load %arg3[%c0_832, %c2_833, %c1_834, %c0_835, %c0_836] : memref<1x4x9x4x96xf32, #tpu.memory_space<vmem>>, vector<1x1x1x4x96xf32>
    %752 = vector.shape_cast %751 : vector<1x1x1x4x96xf32> to vector<4x96xf32>
    %753 = arith.mulf %746, %752 : vector<4x96xf32>
    %754 = arith.addf %715, %753 : vector<4x96xf32>
    %c0_837 = arith.constant 0 : index
    %c2_838 = arith.constant 2 : index
    %c2_839 = arith.constant 2 : index
    %c0_840 = arith.constant 0 : index
    %c0_841 = arith.constant 0 : index
    %755 = vector.load %arg3[%c0_837, %c2_838, %c2_839, %c0_840, %c0_841] : memref<1x4x9x4x96xf32, #tpu.memory_space<vmem>>, vector<1x1x1x4x96xf32>
    %756 = vector.shape_cast %755 : vector<1x1x1x4x96xf32> to vector<4x96xf32>
    %757 = arith.mulf %746, %756 : vector<4x96xf32>
    %758 = arith.addf %719, %757 : vector<4x96xf32>
    %c0_842 = arith.constant 0 : index
    %c2_843 = arith.constant 2 : index
    %c3_844 = arith.constant 3 : index
    %c0_845 = arith.constant 0 : index
    %c0_846 = arith.constant 0 : index
    %759 = vector.load %arg3[%c0_842, %c2_843, %c3_844, %c0_845, %c0_846] : memref<1x4x9x4x96xf32, #tpu.memory_space<vmem>>, vector<1x1x1x4x96xf32>
    %760 = vector.shape_cast %759 : vector<1x1x1x4x96xf32> to vector<4x96xf32>
    %761 = arith.mulf %746, %760 : vector<4x96xf32>
    %762 = arith.addf %723, %761 : vector<4x96xf32>
    %c0_847 = arith.constant 0 : index
    %c2_848 = arith.constant 2 : index
    %c4_849 = arith.constant 4 : index
    %c0_850 = arith.constant 0 : index
    %c0_851 = arith.constant 0 : index
    %763 = vector.load %arg3[%c0_847, %c2_848, %c4_849, %c0_850, %c0_851] : memref<1x4x9x4x96xf32, #tpu.memory_space<vmem>>, vector<1x1x1x4x96xf32>
    %764 = vector.shape_cast %763 : vector<1x1x1x4x96xf32> to vector<4x96xf32>
    %765 = arith.mulf %746, %764 : vector<4x96xf32>
    %766 = arith.addf %727, %765 : vector<4x96xf32>
    %c0_852 = arith.constant 0 : index
    %c2_853 = arith.constant 2 : index
    %c5_854 = arith.constant 5 : index
    %c0_855 = arith.constant 0 : index
    %c0_856 = arith.constant 0 : index
    %767 = vector.load %arg3[%c0_852, %c2_853, %c5_854, %c0_855, %c0_856] : memref<1x4x9x4x96xf32, #tpu.memory_space<vmem>>, vector<1x1x1x4x96xf32>
    %768 = vector.shape_cast %767 : vector<1x1x1x4x96xf32> to vector<4x96xf32>
    %769 = arith.mulf %746, %768 : vector<4x96xf32>
    %770 = arith.addf %731, %769 : vector<4x96xf32>
    %c0_857 = arith.constant 0 : index
    %c2_858 = arith.constant 2 : index
    %c6_859 = arith.constant 6 : index
    %c0_860 = arith.constant 0 : index
    %c0_861 = arith.constant 0 : index
    %771 = vector.load %arg3[%c0_857, %c2_858, %c6_859, %c0_860, %c0_861] : memref<1x4x9x4x96xf32, #tpu.memory_space<vmem>>, vector<1x1x1x4x96xf32>
    %772 = vector.shape_cast %771 : vector<1x1x1x4x96xf32> to vector<4x96xf32>
    %773 = arith.mulf %746, %772 : vector<4x96xf32>
    %774 = arith.addf %735, %773 : vector<4x96xf32>
    %c0_862 = arith.constant 0 : index
    %c2_863 = arith.constant 2 : index
    %c7_864 = arith.constant 7 : index
    %c0_865 = arith.constant 0 : index
    %c0_866 = arith.constant 0 : index
    %775 = vector.load %arg3[%c0_862, %c2_863, %c7_864, %c0_865, %c0_866] : memref<1x4x9x4x96xf32, #tpu.memory_space<vmem>>, vector<1x1x1x4x96xf32>
    %776 = vector.shape_cast %775 : vector<1x1x1x4x96xf32> to vector<4x96xf32>
    %777 = arith.mulf %746, %776 : vector<4x96xf32>
    %778 = arith.addf %739, %777 : vector<4x96xf32>
    %c0_867 = arith.constant 0 : index
    %c2_868 = arith.constant 2 : index
    %c8_869 = arith.constant 8 : index
    %c0_870 = arith.constant 0 : index
    %c0_871 = arith.constant 0 : index
    %779 = vector.load %arg3[%c0_867, %c2_868, %c8_869, %c0_870, %c0_871] : memref<1x4x9x4x96xf32, #tpu.memory_space<vmem>>, vector<1x1x1x4x96xf32>
    %780 = vector.shape_cast %779 : vector<1x1x1x4x96xf32> to vector<4x96xf32>
    %781 = arith.mulf %746, %780 : vector<4x96xf32>
    %782 = arith.addf %743, %781 : vector<4x96xf32>
    %c0_872 = arith.constant 0 : index
    %c3_873 = arith.constant 3 : index
    %c0_874 = arith.constant 0 : index
    %c0_875 = arith.constant 0 : index
    %783 = vector.load %arg2[%c0_872, %c3_873, %c0_874, %c0_875] : memref<1x4x4x104xf32, #tpu.memory_space<vmem>>, vector<1x1x4x104xf32>
    %784 = vector.shape_cast %783 : vector<1x1x4x104xf32> to vector<4x104xf32>
    %785 = vector.extract_strided_slice %784 {offsets = [0, 5], sizes = [4, 96], strides = [1, 1]} : vector<4x104xf32> to vector<4x96xf32>
    %c0_876 = arith.constant 0 : index
    %c3_877 = arith.constant 3 : index
    %c0_878 = arith.constant 0 : index
    %c0_879 = arith.constant 0 : index
    %c0_880 = arith.constant 0 : index
    %786 = vector.load %arg3[%c0_876, %c3_877, %c0_878, %c0_879, %c0_880] : memref<1x4x9x4x96xf32, #tpu.memory_space<vmem>>, vector<1x1x1x4x96xf32>
    %787 = vector.shape_cast %786 : vector<1x1x1x4x96xf32> to vector<4x96xf32>
    %788 = arith.mulf %785, %787 : vector<4x96xf32>
    %789 = arith.addf %750, %788 : vector<4x96xf32>
    %c0_881 = arith.constant 0 : index
    %c3_882 = arith.constant 3 : index
    %c1_883 = arith.constant 1 : index
    %c0_884 = arith.constant 0 : index
    %c0_885 = arith.constant 0 : index
    %790 = vector.load %arg3[%c0_881, %c3_882, %c1_883, %c0_884, %c0_885] : memref<1x4x9x4x96xf32, #tpu.memory_space<vmem>>, vector<1x1x1x4x96xf32>
    %791 = vector.shape_cast %790 : vector<1x1x1x4x96xf32> to vector<4x96xf32>
    %792 = arith.mulf %785, %791 : vector<4x96xf32>
    %793 = arith.addf %754, %792 : vector<4x96xf32>
    %c0_886 = arith.constant 0 : index
    %c3_887 = arith.constant 3 : index
    %c2_888 = arith.constant 2 : index
    %c0_889 = arith.constant 0 : index
    %c0_890 = arith.constant 0 : index
    %794 = vector.load %arg3[%c0_886, %c3_887, %c2_888, %c0_889, %c0_890] : memref<1x4x9x4x96xf32, #tpu.memory_space<vmem>>, vector<1x1x1x4x96xf32>
    %795 = vector.shape_cast %794 : vector<1x1x1x4x96xf32> to vector<4x96xf32>
    %796 = arith.mulf %785, %795 : vector<4x96xf32>
    %797 = arith.addf %758, %796 : vector<4x96xf32>
    %c0_891 = arith.constant 0 : index
    %c3_892 = arith.constant 3 : index
    %c3_893 = arith.constant 3 : index
    %c0_894 = arith.constant 0 : index
    %c0_895 = arith.constant 0 : index
    %798 = vector.load %arg3[%c0_891, %c3_892, %c3_893, %c0_894, %c0_895] : memref<1x4x9x4x96xf32, #tpu.memory_space<vmem>>, vector<1x1x1x4x96xf32>
    %799 = vector.shape_cast %798 : vector<1x1x1x4x96xf32> to vector<4x96xf32>
    %800 = arith.mulf %785, %799 : vector<4x96xf32>
    %801 = arith.addf %762, %800 : vector<4x96xf32>
    %c0_896 = arith.constant 0 : index
    %c3_897 = arith.constant 3 : index
    %c4_898 = arith.constant 4 : index
    %c0_899 = arith.constant 0 : index
    %c0_900 = arith.constant 0 : index
    %802 = vector.load %arg3[%c0_896, %c3_897, %c4_898, %c0_899, %c0_900] : memref<1x4x9x4x96xf32, #tpu.memory_space<vmem>>, vector<1x1x1x4x96xf32>
    %803 = vector.shape_cast %802 : vector<1x1x1x4x96xf32> to vector<4x96xf32>
    %804 = arith.mulf %785, %803 : vector<4x96xf32>
    %805 = arith.addf %766, %804 : vector<4x96xf32>
    %c0_901 = arith.constant 0 : index
    %c3_902 = arith.constant 3 : index
    %c5_903 = arith.constant 5 : index
    %c0_904 = arith.constant 0 : index
    %c0_905 = arith.constant 0 : index
    %806 = vector.load %arg3[%c0_901, %c3_902, %c5_903, %c0_904, %c0_905] : memref<1x4x9x4x96xf32, #tpu.memory_space<vmem>>, vector<1x1x1x4x96xf32>
    %807 = vector.shape_cast %806 : vector<1x1x1x4x96xf32> to vector<4x96xf32>
    %808 = arith.mulf %785, %807 : vector<4x96xf32>
    %809 = arith.addf %770, %808 : vector<4x96xf32>
    %c0_906 = arith.constant 0 : index
    %c3_907 = arith.constant 3 : index
    %c6_908 = arith.constant 6 : index
    %c0_909 = arith.constant 0 : index
    %c0_910 = arith.constant 0 : index
    %810 = vector.load %arg3[%c0_906, %c3_907, %c6_908, %c0_909, %c0_910] : memref<1x4x9x4x96xf32, #tpu.memory_space<vmem>>, vector<1x1x1x4x96xf32>
    %811 = vector.shape_cast %810 : vector<1x1x1x4x96xf32> to vector<4x96xf32>
    %812 = arith.mulf %785, %811 : vector<4x96xf32>
    %813 = arith.addf %774, %812 : vector<4x96xf32>
    %c0_911 = arith.constant 0 : index
    %c3_912 = arith.constant 3 : index
    %c7_913 = arith.constant 7 : index
    %c0_914 = arith.constant 0 : index
    %c0_915 = arith.constant 0 : index
    %814 = vector.load %arg3[%c0_911, %c3_912, %c7_913, %c0_914, %c0_915] : memref<1x4x9x4x96xf32, #tpu.memory_space<vmem>>, vector<1x1x1x4x96xf32>
    %815 = vector.shape_cast %814 : vector<1x1x1x4x96xf32> to vector<4x96xf32>
    %816 = arith.mulf %785, %815 : vector<4x96xf32>
    %817 = arith.addf %778, %816 : vector<4x96xf32>
    %c0_916 = arith.constant 0 : index
    %c3_917 = arith.constant 3 : index
    %c8_918 = arith.constant 8 : index
    %c0_919 = arith.constant 0 : index
    %c0_920 = arith.constant 0 : index
    %818 = vector.load %arg3[%c0_916, %c3_917, %c8_918, %c0_919, %c0_920] : memref<1x4x9x4x96xf32, #tpu.memory_space<vmem>>, vector<1x1x1x4x96xf32>
    %819 = vector.shape_cast %818 : vector<1x1x1x4x96xf32> to vector<4x96xf32>
    %820 = arith.mulf %785, %819 : vector<4x96xf32>
    %821 = arith.addf %782, %820 : vector<4x96xf32>
    %822 = vector.extract_strided_slice %789 {offsets = [0, 3], sizes = [4, 88], strides = [1, 1]} : vector<4x96xf32> to vector<4x88xf32>
    %cst_921 = arith.constant 2.500000e-01 : f32
    %823 = vector.broadcast %cst_921 : f32 to vector<4x88xf32>
    %824 = arith.mulf %822, %823 : vector<4x88xf32>
    %c0_922 = arith.constant 0 : index
    %c3_923 = arith.constant 3 : index
    %c0_924 = arith.constant 0 : index
    %c0_925 = arith.constant 0 : index
    %825 = vector.load %arg4[%c0_922, %c3_923, %c0_924, %c0_925] : memref<1x81x4x96xf32, #tpu.memory_space<vmem>>, vector<1x1x4x88xf32>
    %826 = vector.shape_cast %825 : vector<1x1x4x88xf32> to vector<4x88xf32>
    %827 = vector.shape_cast %824 : vector<4x88xf32> to vector<1x1x4x88xf32>
    tpu.vector_store %arg4[%c0_922, %c3_923, %c0_924, %c0_925], %827 {strides = array<i32>} : memref<1x81x4x96xf32, #tpu.memory_space<vmem>>, vector<1x1x4x88xf32>,
    %828 = vector.extract_strided_slice %793 {offsets = [0, 3], sizes = [4, 88], strides = [1, 1]} : vector<4x96xf32> to vector<4x88xf32>
    %cst_926 = arith.constant 2.500000e-01 : f32
    %829 = vector.broadcast %cst_926 : f32 to vector<4x88xf32>
    %830 = arith.mulf %828, %829 : vector<4x88xf32>
    %c0_927 = arith.constant 0 : index
    %c12 = arith.constant 12 : index
    %c0_928 = arith.constant 0 : index
    %c0_929 = arith.constant 0 : index
    %831 = vector.load %arg4[%c0_927, %c12, %c0_928, %c0_929] : memref<1x81x4x96xf32, #tpu.memory_space<vmem>>, vector<1x1x4x88xf32>
    %832 = vector.shape_cast %831 : vector<1x1x4x88xf32> to vector<4x88xf32>
    %833 = vector.shape_cast %830 : vector<4x88xf32> to vector<1x1x4x88xf32>
    tpu.vector_store %arg4[%c0_927, %c12, %c0_928, %c0_929], %833 {strides = array<i32>} : memref<1x81x4x96xf32, #tpu.memory_space<vmem>>, vector<1x1x4x88xf32>,
    %834 = vector.extract_strided_slice %797 {offsets = [0, 3], sizes = [4, 88], strides = [1, 1]} : vector<4x96xf32> to vector<4x88xf32>
    %cst_930 = arith.constant 2.500000e-01 : f32
    %835 = vector.broadcast %cst_930 : f32 to vector<4x88xf32>
    %836 = arith.mulf %834, %835 : vector<4x88xf32>
    %c0_931 = arith.constant 0 : index
    %c21 = arith.constant 21 : index
    %c0_932 = arith.constant 0 : index
    %c0_933 = arith.constant 0 : index
    %837 = vector.load %arg4[%c0_931, %c21, %c0_932, %c0_933] : memref<1x81x4x96xf32, #tpu.memory_space<vmem>>, vector<1x1x4x88xf32>
    %838 = vector.shape_cast %837 : vector<1x1x4x88xf32> to vector<4x88xf32>
    %839 = vector.shape_cast %836 : vector<4x88xf32> to vector<1x1x4x88xf32>
    tpu.vector_store %arg4[%c0_931, %c21, %c0_932, %c0_933], %839 {strides = array<i32>} : memref<1x81x4x96xf32, #tpu.memory_space<vmem>>, vector<1x1x4x88xf32>,
    %840 = vector.extract_strided_slice %801 {offsets = [0, 3], sizes = [4, 88], strides = [1, 1]} : vector<4x96xf32> to vector<4x88xf32>
    %cst_934 = arith.constant 2.500000e-01 : f32
    %841 = vector.broadcast %cst_934 : f32 to vector<4x88xf32>
    %842 = arith.mulf %840, %841 : vector<4x88xf32>
    %c0_935 = arith.constant 0 : index
    %c30 = arith.constant 30 : index
    %c0_936 = arith.constant 0 : index
    %c0_937 = arith.constant 0 : index
    %843 = vector.load %arg4[%c0_935, %c30, %c0_936, %c0_937] : memref<1x81x4x96xf32, #tpu.memory_space<vmem>>, vector<1x1x4x88xf32>
    %844 = vector.shape_cast %843 : vector<1x1x4x88xf32> to vector<4x88xf32>
    %845 = vector.shape_cast %842 : vector<4x88xf32> to vector<1x1x4x88xf32>
    tpu.vector_store %arg4[%c0_935, %c30, %c0_936, %c0_937], %845 {strides = array<i32>} : memref<1x81x4x96xf32, #tpu.memory_space<vmem>>, vector<1x1x4x88xf32>,
    %846 = vector.extract_strided_slice %805 {offsets = [0, 3], sizes = [4, 88], strides = [1, 1]} : vector<4x96xf32> to vector<4x88xf32>
    %cst_938 = arith.constant 2.500000e-01 : f32
    %847 = vector.broadcast %cst_938 : f32 to vector<4x88xf32>
    %848 = arith.mulf %846, %847 : vector<4x88xf32>
    %c0_939 = arith.constant 0 : index
    %c39 = arith.constant 39 : index
    %c0_940 = arith.constant 0 : index
    %c0_941 = arith.constant 0 : index
    %849 = vector.load %arg4[%c0_939, %c39, %c0_940, %c0_941] : memref<1x81x4x96xf32, #tpu.memory_space<vmem>>, vector<1x1x4x88xf32>
    %850 = vector.shape_cast %849 : vector<1x1x4x88xf32> to vector<4x88xf32>
    %851 = vector.shape_cast %848 : vector<4x88xf32> to vector<1x1x4x88xf32>
    tpu.vector_store %arg4[%c0_939, %c39, %c0_940, %c0_941], %851 {strides = array<i32>} : memref<1x81x4x96xf32, #tpu.memory_space<vmem>>, vector<1x1x4x88xf32>,
    %852 = vector.extract_strided_slice %809 {offsets = [0, 3], sizes = [4, 88], strides = [1, 1]} : vector<4x96xf32> to vector<4x88xf32>
    %cst_942 = arith.constant 2.500000e-01 : f32
    %853 = vector.broadcast %cst_942 : f32 to vector<4x88xf32>
    %854 = arith.mulf %852, %853 : vector<4x88xf32>
    %c0_943 = arith.constant 0 : index
    %c48 = arith.constant 48 : index
    %c0_944 = arith.constant 0 : index
    %c0_945 = arith.constant 0 : index
    %855 = vector.load %arg4[%c0_943, %c48, %c0_944, %c0_945] : memref<1x81x4x96xf32, #tpu.memory_space<vmem>>, vector<1x1x4x88xf32>
    %856 = vector.shape_cast %855 : vector<1x1x4x88xf32> to vector<4x88xf32>
    %857 = vector.shape_cast %854 : vector<4x88xf32> to vector<1x1x4x88xf32>
    tpu.vector_store %arg4[%c0_943, %c48, %c0_944, %c0_945], %857 {strides = array<i32>} : memref<1x81x4x96xf32, #tpu.memory_space<vmem>>, vector<1x1x4x88xf32>,
    %858 = vector.extract_strided_slice %813 {offsets = [0, 3], sizes = [4, 88], strides = [1, 1]} : vector<4x96xf32> to vector<4x88xf32>
    %cst_946 = arith.constant 2.500000e-01 : f32
    %859 = vector.broadcast %cst_946 : f32 to vector<4x88xf32>
    %860 = arith.mulf %858, %859 : vector<4x88xf32>
    %c0_947 = arith.constant 0 : index
    %c57 = arith.constant 57 : index
    %c0_948 = arith.constant 0 : index
    %c0_949 = arith.constant 0 : index
    %861 = vector.load %arg4[%c0_947, %c57, %c0_948, %c0_949] : memref<1x81x4x96xf32, #tpu.memory_space<vmem>>, vector<1x1x4x88xf32>
    %862 = vector.shape_cast %861 : vector<1x1x4x88xf32> to vector<4x88xf32>
    %863 = vector.shape_cast %860 : vector<4x88xf32> to vector<1x1x4x88xf32>
    tpu.vector_store %arg4[%c0_947, %c57, %c0_948, %c0_949], %863 {strides = array<i32>} : memref<1x81x4x96xf32, #tpu.memory_space<vmem>>, vector<1x1x4x88xf32>,
    %864 = vector.extract_strided_slice %817 {offsets = [0, 3], sizes = [4, 88], strides = [1, 1]} : vector<4x96xf32> to vector<4x88xf32>
    %cst_950 = arith.constant 2.500000e-01 : f32
    %865 = vector.broadcast %cst_950 : f32 to vector<4x88xf32>
    %866 = arith.mulf %864, %865 : vector<4x88xf32>
    %c0_951 = arith.constant 0 : index
    %c66 = arith.constant 66 : index
    %c0_952 = arith.constant 0 : index
    %c0_953 = arith.constant 0 : index
    %867 = vector.load %arg4[%c0_951, %c66, %c0_952, %c0_953] : memref<1x81x4x96xf32, #tpu.memory_space<vmem>>, vector<1x1x4x88xf32>
    %868 = vector.shape_cast %867 : vector<1x1x4x88xf32> to vector<4x88xf32>
    %869 = vector.shape_cast %866 : vector<4x88xf32> to vector<1x1x4x88xf32>
    tpu.vector_store %arg4[%c0_951, %c66, %c0_952, %c0_953], %869 {strides = array<i32>} : memref<1x81x4x96xf32, #tpu.memory_space<vmem>>, vector<1x1x4x88xf32>,
    %870 = vector.extract_strided_slice %821 {offsets = [0, 3], sizes = [4, 88], strides = [1, 1]} : vector<4x96xf32> to vector<4x88xf32>
    %cst_954 = arith.constant 2.500000e-01 : f32
    %871 = vector.broadcast %cst_954 : f32 to vector<4x88xf32>
    %872 = arith.mulf %870, %871 : vector<4x88xf32>
    %c0_955 = arith.constant 0 : index
    %c75 = arith.constant 75 : index
    %c0_956 = arith.constant 0 : index
    %c0_957 = arith.constant 0 : index
    %873 = vector.load %arg4[%c0_955, %c75, %c0_956, %c0_957] : memref<1x81x4x96xf32, #tpu.memory_space<vmem>>, vector<1x1x4x88xf32>
    %874 = vector.shape_cast %873 : vector<1x1x4x88xf32> to vector<4x88xf32>
    %875 = vector.shape_cast %872 : vector<4x88xf32> to vector<1x1x4x88xf32>
    tpu.vector_store %arg4[%c0_955, %c75, %c0_956, %c0_957], %875 {strides = array<i32>} : memref<1x81x4x96xf32, #tpu.memory_space<vmem>>, vector<1x1x4x88xf32>,
    %cst_958 = arith.constant 0.000000e+00 : f32
    %876 = vector.broadcast %cst_958 : f32 to vector<4x96xf32>
    %cst_959 = arith.constant 0.000000e+00 : f32
    %877 = vector.broadcast %cst_959 : f32 to vector<4x96xf32>
    %cst_960 = arith.constant 0.000000e+00 : f32
    %878 = vector.broadcast %cst_960 : f32 to vector<4x96xf32>
    %cst_961 = arith.constant 0.000000e+00 : f32
    %879 = vector.broadcast %cst_961 : f32 to vector<4x96xf32>
    %cst_962 = arith.constant 0.000000e+00 : f32
    %880 = vector.broadcast %cst_962 : f32 to vector<4x96xf32>
    %cst_963 = arith.constant 0.000000e+00 : f32
    %881 = vector.broadcast %cst_963 : f32 to vector<4x96xf32>
    %cst_964 = arith.constant 0.000000e+00 : f32
    %882 = vector.broadcast %cst_964 : f32 to vector<4x96xf32>
    %cst_965 = arith.constant 0.000000e+00 : f32
    %883 = vector.broadcast %cst_965 : f32 to vector<4x96xf32>
    %cst_966 = arith.constant 0.000000e+00 : f32
    %884 = vector.broadcast %cst_966 : f32 to vector<4x96xf32>
    %c0_967 = arith.constant 0 : index
    %c0_968 = arith.constant 0 : index
    %c0_969 = arith.constant 0 : index
    %c0_970 = arith.constant 0 : index
    %885 = vector.load %arg2[%c0_967, %c0_968, %c0_969, %c0_970] : memref<1x4x4x104xf32, #tpu.memory_space<vmem>>, vector<1x1x4x104xf32>
    %886 = vector.shape_cast %885 : vector<1x1x4x104xf32> to vector<4x104xf32>
    %887 = vector.extract_strided_slice %886 {offsets = [0, 4], sizes = [4, 96], strides = [1, 1]} : vector<4x104xf32> to vector<4x96xf32>
    %c0_971 = arith.constant 0 : index
    %c0_972 = arith.constant 0 : index
    %c0_973 = arith.constant 0 : index
    %c0_974 = arith.constant 0 : index
    %c0_975 = arith.constant 0 : index
    %888 = vector.load %arg3[%c0_971, %c0_972, %c0_973, %c0_974, %c0_975] : memref<1x4x9x4x96xf32, #tpu.memory_space<vmem>>, vector<1x1x1x4x96xf32>
    %889 = vector.shape_cast %888 : vector<1x1x1x4x96xf32> to vector<4x96xf32>
    %890 = arith.mulf %887, %889 : vector<4x96xf32>
    %891 = arith.addf %876, %890 : vector<4x96xf32>
    %c0_976 = arith.constant 0 : index
    %c0_977 = arith.constant 0 : index
    %c1_978 = arith.constant 1 : index
    %c0_979 = arith.constant 0 : index
    %c0_980 = arith.constant 0 : index
    %892 = vector.load %arg3[%c0_976, %c0_977, %c1_978, %c0_979, %c0_980] : memref<1x4x9x4x96xf32, #tpu.memory_space<vmem>>, vector<1x1x1x4x96xf32>
    %893 = vector.shape_cast %892 : vector<1x1x1x4x96xf32> to vector<4x96xf32>
    %894 = arith.mulf %887, %893 : vector<4x96xf32>
    %895 = arith.addf %877, %894 : vector<4x96xf32>
    %c0_981 = arith.constant 0 : index
    %c0_982 = arith.constant 0 : index
    %c2_983 = arith.constant 2 : index
    %c0_984 = arith.constant 0 : index
    %c0_985 = arith.constant 0 : index
    %896 = vector.load %arg3[%c0_981, %c0_982, %c2_983, %c0_984, %c0_985] : memref<1x4x9x4x96xf32, #tpu.memory_space<vmem>>, vector<1x1x1x4x96xf32>
    %897 = vector.shape_cast %896 : vector<1x1x1x4x96xf32> to vector<4x96xf32>
    %898 = arith.mulf %887, %897 : vector<4x96xf32>
    %899 = arith.addf %878, %898 : vector<4x96xf32>
    %c0_986 = arith.constant 0 : index
    %c0_987 = arith.constant 0 : index
    %c3_988 = arith.constant 3 : index
    %c0_989 = arith.constant 0 : index
    %c0_990 = arith.constant 0 : index
    %900 = vector.load %arg3[%c0_986, %c0_987, %c3_988, %c0_989, %c0_990] : memref<1x4x9x4x96xf32, #tpu.memory_space<vmem>>, vector<1x1x1x4x96xf32>
    %901 = vector.shape_cast %900 : vector<1x1x1x4x96xf32> to vector<4x96xf32>
    %902 = arith.mulf %887, %901 : vector<4x96xf32>
    %903 = arith.addf %879, %902 : vector<4x96xf32>
    %c0_991 = arith.constant 0 : index
    %c0_992 = arith.constant 0 : index
    %c4_993 = arith.constant 4 : index
    %c0_994 = arith.constant 0 : index
    %c0_995 = arith.constant 0 : index
    %904 = vector.load %arg3[%c0_991, %c0_992, %c4_993, %c0_994, %c0_995] : memref<1x4x9x4x96xf32, #tpu.memory_space<vmem>>, vector<1x1x1x4x96xf32>
    %905 = vector.shape_cast %904 : vector<1x1x1x4x96xf32> to vector<4x96xf32>
    %906 = arith.mulf %887, %905 : vector<4x96xf32>
    %907 = arith.addf %880, %906 : vector<4x96xf32>
    %c0_996 = arith.constant 0 : index
    %c0_997 = arith.constant 0 : index
    %c5_998 = arith.constant 5 : index
    %c0_999 = arith.constant 0 : index
    %c0_1000 = arith.constant 0 : index
    %908 = vector.load %arg3[%c0_996, %c0_997, %c5_998, %c0_999, %c0_1000] : memref<1x4x9x4x96xf32, #tpu.memory_space<vmem>>, vector<1x1x1x4x96xf32>
    %909 = vector.shape_cast %908 : vector<1x1x1x4x96xf32> to vector<4x96xf32>
    %910 = arith.mulf %887, %909 : vector<4x96xf32>
    %911 = arith.addf %881, %910 : vector<4x96xf32>
    %c0_1001 = arith.constant 0 : index
    %c0_1002 = arith.constant 0 : index
    %c6_1003 = arith.constant 6 : index
    %c0_1004 = arith.constant 0 : index
    %c0_1005 = arith.constant 0 : index
    %912 = vector.load %arg3[%c0_1001, %c0_1002, %c6_1003, %c0_1004, %c0_1005] : memref<1x4x9x4x96xf32, #tpu.memory_space<vmem>>, vector<1x1x1x4x96xf32>
    %913 = vector.shape_cast %912 : vector<1x1x1x4x96xf32> to vector<4x96xf32>
    %914 = arith.mulf %887, %913 : vector<4x96xf32>
    %915 = arith.addf %882, %914 : vector<4x96xf32>
    %c0_1006 = arith.constant 0 : index
    %c0_1007 = arith.constant 0 : index
    %c7_1008 = arith.constant 7 : index
    %c0_1009 = arith.constant 0 : index
    %c0_1010 = arith.constant 0 : index
    %916 = vector.load %arg3[%c0_1006, %c0_1007, %c7_1008, %c0_1009, %c0_1010] : memref<1x4x9x4x96xf32, #tpu.memory_space<vmem>>, vector<1x1x1x4x96xf32>
    %917 = vector.shape_cast %916 : vector<1x1x1x4x96xf32> to vector<4x96xf32>
    %918 = arith.mulf %887, %917 : vector<4x96xf32>
    %919 = arith.addf %883, %918 : vector<4x96xf32>
    %c0_1011 = arith.constant 0 : index
    %c0_1012 = arith.constant 0 : index
    %c8_1013 = arith.constant 8 : index
    %c0_1014 = arith.constant 0 : index
    %c0_1015 = arith.constant 0 : index
    %920 = vector.load %arg3[%c0_1011, %c0_1012, %c8_1013, %c0_1014, %c0_1015] : memref<1x4x9x4x96xf32, #tpu.memory_space<vmem>>, vector<1x1x1x4x96xf32>
    %921 = vector.shape_cast %920 : vector<1x1x1x4x96xf32> to vector<4x96xf32>
    %922 = arith.mulf %887, %921 : vector<4x96xf32>
    %923 = arith.addf %884, %922 : vector<4x96xf32>
    %c0_1016 = arith.constant 0 : index
    %c1_1017 = arith.constant 1 : index
    %c0_1018 = arith.constant 0 : index
    %c0_1019 = arith.constant 0 : index
    %924 = vector.load %arg2[%c0_1016, %c1_1017, %c0_1018, %c0_1019] : memref<1x4x4x104xf32, #tpu.memory_space<vmem>>, vector<1x1x4x104xf32>
    %925 = vector.shape_cast %924 : vector<1x1x4x104xf32> to vector<4x104xf32>
    %926 = vector.extract_strided_slice %925 {offsets = [0, 4], sizes = [4, 96], strides = [1, 1]} : vector<4x104xf32> to vector<4x96xf32>
    %c0_1020 = arith.constant 0 : index
    %c1_1021 = arith.constant 1 : index
    %c0_1022 = arith.constant 0 : index
    %c0_1023 = arith.constant 0 : index
    %c0_1024 = arith.constant 0 : index
    %927 = vector.load %arg3[%c0_1020, %c1_1021, %c0_1022, %c0_1023, %c0_1024] : memref<1x4x9x4x96xf32, #tpu.memory_space<vmem>>, vector<1x1x1x4x96xf32>
    %928 = vector.shape_cast %927 : vector<1x1x1x4x96xf32> to vector<4x96xf32>
    %929 = arith.mulf %926, %928 : vector<4x96xf32>
    %930 = arith.addf %891, %929 : vector<4x96xf32>
    %c0_1025 = arith.constant 0 : index
    %c1_1026 = arith.constant 1 : index
    %c1_1027 = arith.constant 1 : index
    %c0_1028 = arith.constant 0 : index
    %c0_1029 = arith.constant 0 : index
    %931 = vector.load %arg3[%c0_1025, %c1_1026, %c1_1027, %c0_1028, %c0_1029] : memref<1x4x9x4x96xf32, #tpu.memory_space<vmem>>, vector<1x1x1x4x96xf32>
    %932 = vector.shape_cast %931 : vector<1x1x1x4x96xf32> to vector<4x96xf32>
    %933 = arith.mulf %926, %932 : vector<4x96xf32>
    %934 = arith.addf %895, %933 : vector<4x96xf32>
    %c0_1030 = arith.constant 0 : index
    %c1_1031 = arith.constant 1 : index
    %c2_1032 = arith.constant 2 : index
    %c0_1033 = arith.constant 0 : index
    %c0_1034 = arith.constant 0 : index
    %935 = vector.load %arg3[%c0_1030, %c1_1031, %c2_1032, %c0_1033, %c0_1034] : memref<1x4x9x4x96xf32, #tpu.memory_space<vmem>>, vector<1x1x1x4x96xf32>
    %936 = vector.shape_cast %935 : vector<1x1x1x4x96xf32> to vector<4x96xf32>
    %937 = arith.mulf %926, %936 : vector<4x96xf32>
    %938 = arith.addf %899, %937 : vector<4x96xf32>
    %c0_1035 = arith.constant 0 : index
    %c1_1036 = arith.constant 1 : index
    %c3_1037 = arith.constant 3 : index
    %c0_1038 = arith.constant 0 : index
    %c0_1039 = arith.constant 0 : index
    %939 = vector.load %arg3[%c0_1035, %c1_1036, %c3_1037, %c0_1038, %c0_1039] : memref<1x4x9x4x96xf32, #tpu.memory_space<vmem>>, vector<1x1x1x4x96xf32>
    %940 = vector.shape_cast %939 : vector<1x1x1x4x96xf32> to vector<4x96xf32>
    %941 = arith.mulf %926, %940 : vector<4x96xf32>
    %942 = arith.addf %903, %941 : vector<4x96xf32>
    %c0_1040 = arith.constant 0 : index
    %c1_1041 = arith.constant 1 : index
    %c4_1042 = arith.constant 4 : index
    %c0_1043 = arith.constant 0 : index
    %c0_1044 = arith.constant 0 : index
    %943 = vector.load %arg3[%c0_1040, %c1_1041, %c4_1042, %c0_1043, %c0_1044] : memref<1x4x9x4x96xf32, #tpu.memory_space<vmem>>, vector<1x1x1x4x96xf32>
    %944 = vector.shape_cast %943 : vector<1x1x1x4x96xf32> to vector<4x96xf32>
    %945 = arith.mulf %926, %944 : vector<4x96xf32>
    %946 = arith.addf %907, %945 : vector<4x96xf32>
    %c0_1045 = arith.constant 0 : index
    %c1_1046 = arith.constant 1 : index
    %c5_1047 = arith.constant 5 : index
    %c0_1048 = arith.constant 0 : index
    %c0_1049 = arith.constant 0 : index
    %947 = vector.load %arg3[%c0_1045, %c1_1046, %c5_1047, %c0_1048, %c0_1049] : memref<1x4x9x4x96xf32, #tpu.memory_space<vmem>>, vector<1x1x1x4x96xf32>
    %948 = vector.shape_cast %947 : vector<1x1x1x4x96xf32> to vector<4x96xf32>
    %949 = arith.mulf %926, %948 : vector<4x96xf32>
    %950 = arith.addf %911, %949 : vector<4x96xf32>
    %c0_1050 = arith.constant 0 : index
    %c1_1051 = arith.constant 1 : index
    %c6_1052 = arith.constant 6 : index
    %c0_1053 = arith.constant 0 : index
    %c0_1054 = arith.constant 0 : index
    %951 = vector.load %arg3[%c0_1050, %c1_1051, %c6_1052, %c0_1053, %c0_1054] : memref<1x4x9x4x96xf32, #tpu.memory_space<vmem>>, vector<1x1x1x4x96xf32>
    %952 = vector.shape_cast %951 : vector<1x1x1x4x96xf32> to vector<4x96xf32>
    %953 = arith.mulf %926, %952 : vector<4x96xf32>
    %954 = arith.addf %915, %953 : vector<4x96xf32>
    %c0_1055 = arith.constant 0 : index
    %c1_1056 = arith.constant 1 : index
    %c7_1057 = arith.constant 7 : index
    %c0_1058 = arith.constant 0 : index
    %c0_1059 = arith.constant 0 : index
    %955 = vector.load %arg3[%c0_1055, %c1_1056, %c7_1057, %c0_1058, %c0_1059] : memref<1x4x9x4x96xf32, #tpu.memory_space<vmem>>, vector<1x1x1x4x96xf32>
    %956 = vector.shape_cast %955 : vector<1x1x1x4x96xf32> to vector<4x96xf32>
    %957 = arith.mulf %926, %956 : vector<4x96xf32>
    %958 = arith.addf %919, %957 : vector<4x96xf32>
    %c0_1060 = arith.constant 0 : index
    %c1_1061 = arith.constant 1 : index
    %c8_1062 = arith.constant 8 : index
    %c0_1063 = arith.constant 0 : index
    %c0_1064 = arith.constant 0 : index
    %959 = vector.load %arg3[%c0_1060, %c1_1061, %c8_1062, %c0_1063, %c0_1064] : memref<1x4x9x4x96xf32, #tpu.memory_space<vmem>>, vector<1x1x1x4x96xf32>
    %960 = vector.shape_cast %959 : vector<1x1x1x4x96xf32> to vector<4x96xf32>
    %961 = arith.mulf %926, %960 : vector<4x96xf32>
    %962 = arith.addf %923, %961 : vector<4x96xf32>
    %c0_1065 = arith.constant 0 : index
    %c2_1066 = arith.constant 2 : index
    %c0_1067 = arith.constant 0 : index
    %c0_1068 = arith.constant 0 : index
    %963 = vector.load %arg2[%c0_1065, %c2_1066, %c0_1067, %c0_1068] : memref<1x4x4x104xf32, #tpu.memory_space<vmem>>, vector<1x1x4x104xf32>
    %964 = vector.shape_cast %963 : vector<1x1x4x104xf32> to vector<4x104xf32>
    %965 = vector.extract_strided_slice %964 {offsets = [0, 4], sizes = [4, 96], strides = [1, 1]} : vector<4x104xf32> to vector<4x96xf32>
    %c0_1069 = arith.constant 0 : index
    %c2_1070 = arith.constant 2 : index
    %c0_1071 = arith.constant 0 : index
    %c0_1072 = arith.constant 0 : index
    %c0_1073 = arith.constant 0 : index
    %966 = vector.load %arg3[%c0_1069, %c2_1070, %c0_1071, %c0_1072, %c0_1073] : memref<1x4x9x4x96xf32, #tpu.memory_space<vmem>>, vector<1x1x1x4x96xf32>
    %967 = vector.shape_cast %966 : vector<1x1x1x4x96xf32> to vector<4x96xf32>
    %968 = arith.mulf %965, %967 : vector<4x96xf32>
    %969 = arith.addf %930, %968 : vector<4x96xf32>
    %c0_1074 = arith.constant 0 : index
    %c2_1075 = arith.constant 2 : index
    %c1_1076 = arith.constant 1 : index
    %c0_1077 = arith.constant 0 : index
    %c0_1078 = arith.constant 0 : index
    %970 = vector.load %arg3[%c0_1074, %c2_1075, %c1_1076, %c0_1077, %c0_1078] : memref<1x4x9x4x96xf32, #tpu.memory_space<vmem>>, vector<1x1x1x4x96xf32>
    %971 = vector.shape_cast %970 : vector<1x1x1x4x96xf32> to vector<4x96xf32>
    %972 = arith.mulf %965, %971 : vector<4x96xf32>
    %973 = arith.addf %934, %972 : vector<4x96xf32>
    %c0_1079 = arith.constant 0 : index
    %c2_1080 = arith.constant 2 : index
    %c2_1081 = arith.constant 2 : index
    %c0_1082 = arith.constant 0 : index
    %c0_1083 = arith.constant 0 : index
    %974 = vector.load %arg3[%c0_1079, %c2_1080, %c2_1081, %c0_1082, %c0_1083] : memref<1x4x9x4x96xf32, #tpu.memory_space<vmem>>, vector<1x1x1x4x96xf32>
    %975 = vector.shape_cast %974 : vector<1x1x1x4x96xf32> to vector<4x96xf32>
    %976 = arith.mulf %965, %975 : vector<4x96xf32>
    %977 = arith.addf %938, %976 : vector<4x96xf32>
    %c0_1084 = arith.constant 0 : index
    %c2_1085 = arith.constant 2 : index
    %c3_1086 = arith.constant 3 : index
    %c0_1087 = arith.constant 0 : index
    %c0_1088 = arith.constant 0 : index
    %978 = vector.load %arg3[%c0_1084, %c2_1085, %c3_1086, %c0_1087, %c0_1088] : memref<1x4x9x4x96xf32, #tpu.memory_space<vmem>>, vector<1x1x1x4x96xf32>
    %979 = vector.shape_cast %978 : vector<1x1x1x4x96xf32> to vector<4x96xf32>
    %980 = arith.mulf %965, %979 : vector<4x96xf32>
    %981 = arith.addf %942, %980 : vector<4x96xf32>
    %c0_1089 = arith.constant 0 : index
    %c2_1090 = arith.constant 2 : index
    %c4_1091 = arith.constant 4 : index
    %c0_1092 = arith.constant 0 : index
    %c0_1093 = arith.constant 0 : index
    %982 = vector.load %arg3[%c0_1089, %c2_1090, %c4_1091, %c0_1092, %c0_1093] : memref<1x4x9x4x96xf32, #tpu.memory_space<vmem>>, vector<1x1x1x4x96xf32>
    %983 = vector.shape_cast %982 : vector<1x1x1x4x96xf32> to vector<4x96xf32>
    %984 = arith.mulf %965, %983 : vector<4x96xf32>
    %985 = arith.addf %946, %984 : vector<4x96xf32>
    %c0_1094 = arith.constant 0 : index
    %c2_1095 = arith.constant 2 : index
    %c5_1096 = arith.constant 5 : index
    %c0_1097 = arith.constant 0 : index
    %c0_1098 = arith.constant 0 : index
    %986 = vector.load %arg3[%c0_1094, %c2_1095, %c5_1096, %c0_1097, %c0_1098] : memref<1x4x9x4x96xf32, #tpu.memory_space<vmem>>, vector<1x1x1x4x96xf32>
    %987 = vector.shape_cast %986 : vector<1x1x1x4x96xf32> to vector<4x96xf32>
    %988 = arith.mulf %965, %987 : vector<4x96xf32>
    %989 = arith.addf %950, %988 : vector<4x96xf32>
    %c0_1099 = arith.constant 0 : index
    %c2_1100 = arith.constant 2 : index
    %c6_1101 = arith.constant 6 : index
    %c0_1102 = arith.constant 0 : index
    %c0_1103 = arith.constant 0 : index
    %990 = vector.load %arg3[%c0_1099, %c2_1100, %c6_1101, %c0_1102, %c0_1103] : memref<1x4x9x4x96xf32, #tpu.memory_space<vmem>>, vector<1x1x1x4x96xf32>
    %991 = vector.shape_cast %990 : vector<1x1x1x4x96xf32> to vector<4x96xf32>
    %992 = arith.mulf %965, %991 : vector<4x96xf32>
    %993 = arith.addf %954, %992 : vector<4x96xf32>
    %c0_1104 = arith.constant 0 : index
    %c2_1105 = arith.constant 2 : index
    %c7_1106 = arith.constant 7 : index
    %c0_1107 = arith.constant 0 : index
    %c0_1108 = arith.constant 0 : index
    %994 = vector.load %arg3[%c0_1104, %c2_1105, %c7_1106, %c0_1107, %c0_1108] : memref<1x4x9x4x96xf32, #tpu.memory_space<vmem>>, vector<1x1x1x4x96xf32>
    %995 = vector.shape_cast %994 : vector<1x1x1x4x96xf32> to vector<4x96xf32>
    %996 = arith.mulf %965, %995 : vector<4x96xf32>
    %997 = arith.addf %958, %996 : vector<4x96xf32>
    %c0_1109 = arith.constant 0 : index
    %c2_1110 = arith.constant 2 : index
    %c8_1111 = arith.constant 8 : index
    %c0_1112 = arith.constant 0 : index
    %c0_1113 = arith.constant 0 : index
    %998 = vector.load %arg3[%c0_1109, %c2_1110, %c8_1111, %c0_1112, %c0_1113] : memref<1x4x9x4x96xf32, #tpu.memory_space<vmem>>, vector<1x1x1x4x96xf32>
    %999 = vector.shape_cast %998 : vector<1x1x1x4x96xf32> to vector<4x96xf32>
    %1000 = arith.mulf %965, %999 : vector<4x96xf32>
    %1001 = arith.addf %962, %1000 : vector<4x96xf32>
    %c0_1114 = arith.constant 0 : index
    %c3_1115 = arith.constant 3 : index
    %c0_1116 = arith.constant 0 : index
    %c0_1117 = arith.constant 0 : index
    %1002 = vector.load %arg2[%c0_1114, %c3_1115, %c0_1116, %c0_1117] : memref<1x4x4x104xf32, #tpu.memory_space<vmem>>, vector<1x1x4x104xf32>
    %1003 = vector.shape_cast %1002 : vector<1x1x4x104xf32> to vector<4x104xf32>
    %1004 = vector.extract_strided_slice %1003 {offsets = [0, 4], sizes = [4, 96], strides = [1, 1]} : vector<4x104xf32> to vector<4x96xf32>
    %c0_1118 = arith.constant 0 : index
    %c3_1119 = arith.constant 3 : index
    %c0_1120 = arith.constant 0 : index
    %c0_1121 = arith.constant 0 : index
    %c0_1122 = arith.constant 0 : index
    %1005 = vector.load %arg3[%c0_1118, %c3_1119, %c0_1120, %c0_1121, %c0_1122] : memref<1x4x9x4x96xf32, #tpu.memory_space<vmem>>, vector<1x1x1x4x96xf32>
    %1006 = vector.shape_cast %1005 : vector<1x1x1x4x96xf32> to vector<4x96xf32>
    %1007 = arith.mulf %1004, %1006 : vector<4x96xf32>
    %1008 = arith.addf %969, %1007 : vector<4x96xf32>
    %c0_1123 = arith.constant 0 : index
    %c3_1124 = arith.constant 3 : index
    %c1_1125 = arith.constant 1 : index
    %c0_1126 = arith.constant 0 : index
    %c0_1127 = arith.constant 0 : index
    %1009 = vector.load %arg3[%c0_1123, %c3_1124, %c1_1125, %c0_1126, %c0_1127] : memref<1x4x9x4x96xf32, #tpu.memory_space<vmem>>, vector<1x1x1x4x96xf32>
    %1010 = vector.shape_cast %1009 : vector<1x1x1x4x96xf32> to vector<4x96xf32>
    %1011 = arith.mulf %1004, %1010 : vector<4x96xf32>
    %1012 = arith.addf %973, %1011 : vector<4x96xf32>
    %c0_1128 = arith.constant 0 : index
    %c3_1129 = arith.constant 3 : index
    %c2_1130 = arith.constant 2 : index
    %c0_1131 = arith.constant 0 : index
    %c0_1132 = arith.constant 0 : index
    %1013 = vector.load %arg3[%c0_1128, %c3_1129, %c2_1130, %c0_1131, %c0_1132] : memref<1x4x9x4x96xf32, #tpu.memory_space<vmem>>, vector<1x1x1x4x96xf32>
    %1014 = vector.shape_cast %1013 : vector<1x1x1x4x96xf32> to vector<4x96xf32>
    %1015 = arith.mulf %1004, %1014 : vector<4x96xf32>
    %1016 = arith.addf %977, %1015 : vector<4x96xf32>
    %c0_1133 = arith.constant 0 : index
    %c3_1134 = arith.constant 3 : index
    %c3_1135 = arith.constant 3 : index
    %c0_1136 = arith.constant 0 : index
    %c0_1137 = arith.constant 0 : index
    %1017 = vector.load %arg3[%c0_1133, %c3_1134, %c3_1135, %c0_1136, %c0_1137] : memref<1x4x9x4x96xf32, #tpu.memory_space<vmem>>, vector<1x1x1x4x96xf32>
    %1018 = vector.shape_cast %1017 : vector<1x1x1x4x96xf32> to vector<4x96xf32>
    %1019 = arith.mulf %1004, %1018 : vector<4x96xf32>
    %1020 = arith.addf %981, %1019 : vector<4x96xf32>
    %c0_1138 = arith.constant 0 : index
    %c3_1139 = arith.constant 3 : index
    %c4_1140 = arith.constant 4 : index
    %c0_1141 = arith.constant 0 : index
    %c0_1142 = arith.constant 0 : index
    %1021 = vector.load %arg3[%c0_1138, %c3_1139, %c4_1140, %c0_1141, %c0_1142] : memref<1x4x9x4x96xf32, #tpu.memory_space<vmem>>, vector<1x1x1x4x96xf32>
    %1022 = vector.shape_cast %1021 : vector<1x1x1x4x96xf32> to vector<4x96xf32>
    %1023 = arith.mulf %1004, %1022 : vector<4x96xf32>
    %1024 = arith.addf %985, %1023 : vector<4x96xf32>
    %c0_1143 = arith.constant 0 : index
    %c3_1144 = arith.constant 3 : index
    %c5_1145 = arith.constant 5 : index
    %c0_1146 = arith.constant 0 : index
    %c0_1147 = arith.constant 0 : index
    %1025 = vector.load %arg3[%c0_1143, %c3_1144, %c5_1145, %c0_1146, %c0_1147] : memref<1x4x9x4x96xf32, #tpu.memory_space<vmem>>, vector<1x1x1x4x96xf32>
    %1026 = vector.shape_cast %1025 : vector<1x1x1x4x96xf32> to vector<4x96xf32>
    %1027 = arith.mulf %1004, %1026 : vector<4x96xf32>
    %1028 = arith.addf %989, %1027 : vector<4x96xf32>
    %c0_1148 = arith.constant 0 : index
    %c3_1149 = arith.constant 3 : index
    %c6_1150 = arith.constant 6 : index
    %c0_1151 = arith.constant 0 : index
    %c0_1152 = arith.constant 0 : index
    %1029 = vector.load %arg3[%c0_1148, %c3_1149, %c6_1150, %c0_1151, %c0_1152] : memref<1x4x9x4x96xf32, #tpu.memory_space<vmem>>, vector<1x1x1x4x96xf32>
    %1030 = vector.shape_cast %1029 : vector<1x1x1x4x96xf32> to vector<4x96xf32>
    %1031 = arith.mulf %1004, %1030 : vector<4x96xf32>
    %1032 = arith.addf %993, %1031 : vector<4x96xf32>
    %c0_1153 = arith.constant 0 : index
    %c3_1154 = arith.constant 3 : index
    %c7_1155 = arith.constant 7 : index
    %c0_1156 = arith.constant 0 : index
    %c0_1157 = arith.constant 0 : index
    %1033 = vector.load %arg3[%c0_1153, %c3_1154, %c7_1155, %c0_1156, %c0_1157] : memref<1x4x9x4x96xf32, #tpu.memory_space<vmem>>, vector<1x1x1x4x96xf32>
    %1034 = vector.shape_cast %1033 : vector<1x1x1x4x96xf32> to vector<4x96xf32>
    %1035 = arith.mulf %1004, %1034 : vector<4x96xf32>
    %1036 = arith.addf %997, %1035 : vector<4x96xf32>
    %c0_1158 = arith.constant 0 : index
    %c3_1159 = arith.constant 3 : index
    %c8_1160 = arith.constant 8 : index
    %c0_1161 = arith.constant 0 : index
    %c0_1162 = arith.constant 0 : index
    %1037 = vector.load %arg3[%c0_1158, %c3_1159, %c8_1160, %c0_1161, %c0_1162] : memref<1x4x9x4x96xf32, #tpu.memory_space<vmem>>, vector<1x1x1x4x96xf32>
    %1038 = vector.shape_cast %1037 : vector<1x1x1x4x96xf32> to vector<4x96xf32>
    %1039 = arith.mulf %1004, %1038 : vector<4x96xf32>
    %1040 = arith.addf %1001, %1039 : vector<4x96xf32>
    %1041 = vector.extract_strided_slice %1008 {offsets = [0, 4], sizes = [4, 88], strides = [1, 1]} : vector<4x96xf32> to vector<4x88xf32>
    %cst_1163 = arith.constant 2.500000e-01 : f32
    %1042 = vector.broadcast %cst_1163 : f32 to vector<4x88xf32>
    %1043 = arith.mulf %1041, %1042 : vector<4x88xf32>
    %c0_1164 = arith.constant 0 : index
    %c4_1165 = arith.constant 4 : index
    %c0_1166 = arith.constant 0 : index
    %c0_1167 = arith.constant 0 : index
    %1044 = vector.load %arg4[%c0_1164, %c4_1165, %c0_1166, %c0_1167] : memref<1x81x4x96xf32, #tpu.memory_space<vmem>>, vector<1x1x4x88xf32>
    %1045 = vector.shape_cast %1044 : vector<1x1x4x88xf32> to vector<4x88xf32>
    %1046 = vector.shape_cast %1043 : vector<4x88xf32> to vector<1x1x4x88xf32>
    tpu.vector_store %arg4[%c0_1164, %c4_1165, %c0_1166, %c0_1167], %1046 {strides = array<i32>} : memref<1x81x4x96xf32, #tpu.memory_space<vmem>>, vector<1x1x4x88xf32>,
    %1047 = vector.extract_strided_slice %1012 {offsets = [0, 4], sizes = [4, 88], strides = [1, 1]} : vector<4x96xf32> to vector<4x88xf32>
    %cst_1168 = arith.constant 2.500000e-01 : f32
    %1048 = vector.broadcast %cst_1168 : f32 to vector<4x88xf32>
    %1049 = arith.mulf %1047, %1048 : vector<4x88xf32>
    %c0_1169 = arith.constant 0 : index
    %c13 = arith.constant 13 : index
    %c0_1170 = arith.constant 0 : index
    %c0_1171 = arith.constant 0 : index
    %1050 = vector.load %arg4[%c0_1169, %c13, %c0_1170, %c0_1171] : memref<1x81x4x96xf32, #tpu.memory_space<vmem>>, vector<1x1x4x88xf32>
    %1051 = vector.shape_cast %1050 : vector<1x1x4x88xf32> to vector<4x88xf32>
    %1052 = vector.shape_cast %1049 : vector<4x88xf32> to vector<1x1x4x88xf32>
    tpu.vector_store %arg4[%c0_1169, %c13, %c0_1170, %c0_1171], %1052 {strides = array<i32>} : memref<1x81x4x96xf32, #tpu.memory_space<vmem>>, vector<1x1x4x88xf32>,
    %1053 = vector.extract_strided_slice %1016 {offsets = [0, 4], sizes = [4, 88], strides = [1, 1]} : vector<4x96xf32> to vector<4x88xf32>
    %cst_1172 = arith.constant 2.500000e-01 : f32
    %1054 = vector.broadcast %cst_1172 : f32 to vector<4x88xf32>
    %1055 = arith.mulf %1053, %1054 : vector<4x88xf32>
    %c0_1173 = arith.constant 0 : index
    %c22 = arith.constant 22 : index
    %c0_1174 = arith.constant 0 : index
    %c0_1175 = arith.constant 0 : index
    %1056 = vector.load %arg4[%c0_1173, %c22, %c0_1174, %c0_1175] : memref<1x81x4x96xf32, #tpu.memory_space<vmem>>, vector<1x1x4x88xf32>
    %1057 = vector.shape_cast %1056 : vector<1x1x4x88xf32> to vector<4x88xf32>
    %1058 = vector.shape_cast %1055 : vector<4x88xf32> to vector<1x1x4x88xf32>
    tpu.vector_store %arg4[%c0_1173, %c22, %c0_1174, %c0_1175], %1058 {strides = array<i32>} : memref<1x81x4x96xf32, #tpu.memory_space<vmem>>, vector<1x1x4x88xf32>,
    %1059 = vector.extract_strided_slice %1020 {offsets = [0, 4], sizes = [4, 88], strides = [1, 1]} : vector<4x96xf32> to vector<4x88xf32>
    %cst_1176 = arith.constant 2.500000e-01 : f32
    %1060 = vector.broadcast %cst_1176 : f32 to vector<4x88xf32>
    %1061 = arith.mulf %1059, %1060 : vector<4x88xf32>
    %c0_1177 = arith.constant 0 : index
    %c31 = arith.constant 31 : index
    %c0_1178 = arith.constant 0 : index
    %c0_1179 = arith.constant 0 : index
    %1062 = vector.load %arg4[%c0_1177, %c31, %c0_1178, %c0_1179] : memref<1x81x4x96xf32, #tpu.memory_space<vmem>>, vector<1x1x4x88xf32>
    %1063 = vector.shape_cast %1062 : vector<1x1x4x88xf32> to vector<4x88xf32>
    %1064 = vector.shape_cast %1061 : vector<4x88xf32> to vector<1x1x4x88xf32>
    tpu.vector_store %arg4[%c0_1177, %c31, %c0_1178, %c0_1179], %1064 {strides = array<i32>} : memref<1x81x4x96xf32, #tpu.memory_space<vmem>>, vector<1x1x4x88xf32>,
    %1065 = vector.extract_strided_slice %1024 {offsets = [0, 4], sizes = [4, 88], strides = [1, 1]} : vector<4x96xf32> to vector<4x88xf32>
    %cst_1180 = arith.constant 2.500000e-01 : f32
    %1066 = vector.broadcast %cst_1180 : f32 to vector<4x88xf32>
    %1067 = arith.mulf %1065, %1066 : vector<4x88xf32>
    %c0_1181 = arith.constant 0 : index
    %c40 = arith.constant 40 : index
    %c0_1182 = arith.constant 0 : index
    %c0_1183 = arith.constant 0 : index
    %1068 = vector.load %arg4[%c0_1181, %c40, %c0_1182, %c0_1183] : memref<1x81x4x96xf32, #tpu.memory_space<vmem>>, vector<1x1x4x88xf32>
    %1069 = vector.shape_cast %1068 : vector<1x1x4x88xf32> to vector<4x88xf32>
    %1070 = vector.shape_cast %1067 : vector<4x88xf32> to vector<1x1x4x88xf32>
    tpu.vector_store %arg4[%c0_1181, %c40, %c0_1182, %c0_1183], %1070 {strides = array<i32>} : memref<1x81x4x96xf32, #tpu.memory_space<vmem>>, vector<1x1x4x88xf32>,
    %1071 = vector.extract_strided_slice %1028 {offsets = [0, 4], sizes = [4, 88], strides = [1, 1]} : vector<4x96xf32> to vector<4x88xf32>
    %cst_1184 = arith.constant 2.500000e-01 : f32
    %1072 = vector.broadcast %cst_1184 : f32 to vector<4x88xf32>
    %1073 = arith.mulf %1071, %1072 : vector<4x88xf32>
    %c0_1185 = arith.constant 0 : index
    %c49 = arith.constant 49 : index
    %c0_1186 = arith.constant 0 : index
    %c0_1187 = arith.constant 0 : index
    %1074 = vector.load %arg4[%c0_1185, %c49, %c0_1186, %c0_1187] : memref<1x81x4x96xf32, #tpu.memory_space<vmem>>, vector<1x1x4x88xf32>
    %1075 = vector.shape_cast %1074 : vector<1x1x4x88xf32> to vector<4x88xf32>
    %1076 = vector.shape_cast %1073 : vector<4x88xf32> to vector<1x1x4x88xf32>
    tpu.vector_store %arg4[%c0_1185, %c49, %c0_1186, %c0_1187], %1076 {strides = array<i32>} : memref<1x81x4x96xf32, #tpu.memory_space<vmem>>, vector<1x1x4x88xf32>,
    %1077 = vector.extract_strided_slice %1032 {offsets = [0, 4], sizes = [4, 88], strides = [1, 1]} : vector<4x96xf32> to vector<4x88xf32>
    %cst_1188 = arith.constant 2.500000e-01 : f32
    %1078 = vector.broadcast %cst_1188 : f32 to vector<4x88xf32>
    %1079 = arith.mulf %1077, %1078 : vector<4x88xf32>
    %c0_1189 = arith.constant 0 : index
    %c58 = arith.constant 58 : index
    %c0_1190 = arith.constant 0 : index
    %c0_1191 = arith.constant 0 : index
    %1080 = vector.load %arg4[%c0_1189, %c58, %c0_1190, %c0_1191] : memref<1x81x4x96xf32, #tpu.memory_space<vmem>>, vector<1x1x4x88xf32>
    %1081 = vector.shape_cast %1080 : vector<1x1x4x88xf32> to vector<4x88xf32>
    %1082 = vector.shape_cast %1079 : vector<4x88xf32> to vector<1x1x4x88xf32>
    tpu.vector_store %arg4[%c0_1189, %c58, %c0_1190, %c0_1191], %1082 {strides = array<i32>} : memref<1x81x4x96xf32, #tpu.memory_space<vmem>>, vector<1x1x4x88xf32>,
    %1083 = vector.extract_strided_slice %1036 {offsets = [0, 4], sizes = [4, 88], strides = [1, 1]} : vector<4x96xf32> to vector<4x88xf32>
    %cst_1192 = arith.constant 2.500000e-01 : f32
    %1084 = vector.broadcast %cst_1192 : f32 to vector<4x88xf32>
    %1085 = arith.mulf %1083, %1084 : vector<4x88xf32>
    %c0_1193 = arith.constant 0 : index
    %c67 = arith.constant 67 : index
    %c0_1194 = arith.constant 0 : index
    %c0_1195 = arith.constant 0 : index
    %1086 = vector.load %arg4[%c0_1193, %c67, %c0_1194, %c0_1195] : memref<1x81x4x96xf32, #tpu.memory_space<vmem>>, vector<1x1x4x88xf32>
    %1087 = vector.shape_cast %1086 : vector<1x1x4x88xf32> to vector<4x88xf32>
    %1088 = vector.shape_cast %1085 : vector<4x88xf32> to vector<1x1x4x88xf32>
    tpu.vector_store %arg4[%c0_1193, %c67, %c0_1194, %c0_1195], %1088 {strides = array<i32>} : memref<1x81x4x96xf32, #tpu.memory_space<vmem>>, vector<1x1x4x88xf32>,
    %1089 = vector.extract_strided_slice %1040 {offsets = [0, 4], sizes = [4, 88], strides = [1, 1]} : vector<4x96xf32> to vector<4x88xf32>
    %cst_1196 = arith.constant 2.500000e-01 : f32
    %1090 = vector.broadcast %cst_1196 : f32 to vector<4x88xf32>
    %1091 = arith.mulf %1089, %1090 : vector<4x88xf32>
    %c0_1197 = arith.constant 0 : index
    %c76 = arith.constant 76 : index
    %c0_1198 = arith.constant 0 : index
    %c0_1199 = arith.constant 0 : index
    %1092 = vector.load %arg4[%c0_1197, %c76, %c0_1198, %c0_1199] : memref<1x81x4x96xf32, #tpu.memory_space<vmem>>, vector<1x1x4x88xf32>
    %1093 = vector.shape_cast %1092 : vector<1x1x4x88xf32> to vector<4x88xf32>
    %1094 = vector.shape_cast %1091 : vector<4x88xf32> to vector<1x1x4x88xf32>
    tpu.vector_store %arg4[%c0_1197, %c76, %c0_1198, %c0_1199], %1094 {strides = array<i32>} : memref<1x81x4x96xf32, #tpu.memory_space<vmem>>, vector<1x1x4x88xf32>,
    %cst_1200 = arith.constant 0.000000e+00 : f32
    %1095 = vector.broadcast %cst_1200 : f32 to vector<4x96xf32>
    %cst_1201 = arith.constant 0.000000e+00 : f32
    %1096 = vector.broadcast %cst_1201 : f32 to vector<4x96xf32>
    %cst_1202 = arith.constant 0.000000e+00 : f32
    %1097 = vector.broadcast %cst_1202 : f32 to vector<4x96xf32>
    %cst_1203 = arith.constant 0.000000e+00 : f32
    %1098 = vector.broadcast %cst_1203 : f32 to vector<4x96xf32>
    %cst_1204 = arith.constant 0.000000e+00 : f32
    %1099 = vector.broadcast %cst_1204 : f32 to vector<4x96xf32>
    %cst_1205 = arith.constant 0.000000e+00 : f32
    %1100 = vector.broadcast %cst_1205 : f32 to vector<4x96xf32>
    %cst_1206 = arith.constant 0.000000e+00 : f32
    %1101 = vector.broadcast %cst_1206 : f32 to vector<4x96xf32>
    %cst_1207 = arith.constant 0.000000e+00 : f32
    %1102 = vector.broadcast %cst_1207 : f32 to vector<4x96xf32>
    %cst_1208 = arith.constant 0.000000e+00 : f32
    %1103 = vector.broadcast %cst_1208 : f32 to vector<4x96xf32>
    %c0_1209 = arith.constant 0 : index
    %c0_1210 = arith.constant 0 : index
    %c0_1211 = arith.constant 0 : index
    %c0_1212 = arith.constant 0 : index
    %1104 = vector.load %arg2[%c0_1209, %c0_1210, %c0_1211, %c0_1212] : memref<1x4x4x104xf32, #tpu.memory_space<vmem>>, vector<1x1x4x104xf32>
    %1105 = vector.shape_cast %1104 : vector<1x1x4x104xf32> to vector<4x104xf32>
    %1106 = vector.extract_strided_slice %1105 {offsets = [0, 3], sizes = [4, 96], strides = [1, 1]} : vector<4x104xf32> to vector<4x96xf32>
    %c0_1213 = arith.constant 0 : index
    %c0_1214 = arith.constant 0 : index
    %c0_1215 = arith.constant 0 : index
    %c0_1216 = arith.constant 0 : index
    %c0_1217 = arith.constant 0 : index
    %1107 = vector.load %arg3[%c0_1213, %c0_1214, %c0_1215, %c0_1216, %c0_1217] : memref<1x4x9x4x96xf32, #tpu.memory_space<vmem>>, vector<1x1x1x4x96xf32>
    %1108 = vector.shape_cast %1107 : vector<1x1x1x4x96xf32> to vector<4x96xf32>
    %1109 = arith.mulf %1106, %1108 : vector<4x96xf32>
    %1110 = arith.addf %1095, %1109 : vector<4x96xf32>
    %c0_1218 = arith.constant 0 : index
    %c0_1219 = arith.constant 0 : index
    %c1_1220 = arith.constant 1 : index
    %c0_1221 = arith.constant 0 : index
    %c0_1222 = arith.constant 0 : index
    %1111 = vector.load %arg3[%c0_1218, %c0_1219, %c1_1220, %c0_1221, %c0_1222] : memref<1x4x9x4x96xf32, #tpu.memory_space<vmem>>, vector<1x1x1x4x96xf32>
    %1112 = vector.shape_cast %1111 : vector<1x1x1x4x96xf32> to vector<4x96xf32>
    %1113 = arith.mulf %1106, %1112 : vector<4x96xf32>
    %1114 = arith.addf %1096, %1113 : vector<4x96xf32>
    %c0_1223 = arith.constant 0 : index
    %c0_1224 = arith.constant 0 : index
    %c2_1225 = arith.constant 2 : index
    %c0_1226 = arith.constant 0 : index
    %c0_1227 = arith.constant 0 : index
    %1115 = vector.load %arg3[%c0_1223, %c0_1224, %c2_1225, %c0_1226, %c0_1227] : memref<1x4x9x4x96xf32, #tpu.memory_space<vmem>>, vector<1x1x1x4x96xf32>
    %1116 = vector.shape_cast %1115 : vector<1x1x1x4x96xf32> to vector<4x96xf32>
    %1117 = arith.mulf %1106, %1116 : vector<4x96xf32>
    %1118 = arith.addf %1097, %1117 : vector<4x96xf32>
    %c0_1228 = arith.constant 0 : index
    %c0_1229 = arith.constant 0 : index
    %c3_1230 = arith.constant 3 : index
    %c0_1231 = arith.constant 0 : index
    %c0_1232 = arith.constant 0 : index
    %1119 = vector.load %arg3[%c0_1228, %c0_1229, %c3_1230, %c0_1231, %c0_1232] : memref<1x4x9x4x96xf32, #tpu.memory_space<vmem>>, vector<1x1x1x4x96xf32>
    %1120 = vector.shape_cast %1119 : vector<1x1x1x4x96xf32> to vector<4x96xf32>
    %1121 = arith.mulf %1106, %1120 : vector<4x96xf32>
    %1122 = arith.addf %1098, %1121 : vector<4x96xf32>
    %c0_1233 = arith.constant 0 : index
    %c0_1234 = arith.constant 0 : index
    %c4_1235 = arith.constant 4 : index
    %c0_1236 = arith.constant 0 : index
    %c0_1237 = arith.constant 0 : index
    %1123 = vector.load %arg3[%c0_1233, %c0_1234, %c4_1235, %c0_1236, %c0_1237] : memref<1x4x9x4x96xf32, #tpu.memory_space<vmem>>, vector<1x1x1x4x96xf32>
    %1124 = vector.shape_cast %1123 : vector<1x1x1x4x96xf32> to vector<4x96xf32>
    %1125 = arith.mulf %1106, %1124 : vector<4x96xf32>
    %1126 = arith.addf %1099, %1125 : vector<4x96xf32>
    %c0_1238 = arith.constant 0 : index
    %c0_1239 = arith.constant 0 : index
    %c5_1240 = arith.constant 5 : index
    %c0_1241 = arith.constant 0 : index
    %c0_1242 = arith.constant 0 : index
    %1127 = vector.load %arg3[%c0_1238, %c0_1239, %c5_1240, %c0_1241, %c0_1242] : memref<1x4x9x4x96xf32, #tpu.memory_space<vmem>>, vector<1x1x1x4x96xf32>
    %1128 = vector.shape_cast %1127 : vector<1x1x1x4x96xf32> to vector<4x96xf32>
    %1129 = arith.mulf %1106, %1128 : vector<4x96xf32>
    %1130 = arith.addf %1100, %1129 : vector<4x96xf32>
    %c0_1243 = arith.constant 0 : index
    %c0_1244 = arith.constant 0 : index
    %c6_1245 = arith.constant 6 : index
    %c0_1246 = arith.constant 0 : index
    %c0_1247 = arith.constant 0 : index
    %1131 = vector.load %arg3[%c0_1243, %c0_1244, %c6_1245, %c0_1246, %c0_1247] : memref<1x4x9x4x96xf32, #tpu.memory_space<vmem>>, vector<1x1x1x4x96xf32>
    %1132 = vector.shape_cast %1131 : vector<1x1x1x4x96xf32> to vector<4x96xf32>
    %1133 = arith.mulf %1106, %1132 : vector<4x96xf32>
    %1134 = arith.addf %1101, %1133 : vector<4x96xf32>
    %c0_1248 = arith.constant 0 : index
    %c0_1249 = arith.constant 0 : index
    %c7_1250 = arith.constant 7 : index
    %c0_1251 = arith.constant 0 : index
    %c0_1252 = arith.constant 0 : index
    %1135 = vector.load %arg3[%c0_1248, %c0_1249, %c7_1250, %c0_1251, %c0_1252] : memref<1x4x9x4x96xf32, #tpu.memory_space<vmem>>, vector<1x1x1x4x96xf32>
    %1136 = vector.shape_cast %1135 : vector<1x1x1x4x96xf32> to vector<4x96xf32>
    %1137 = arith.mulf %1106, %1136 : vector<4x96xf32>
    %1138 = arith.addf %1102, %1137 : vector<4x96xf32>
    %c0_1253 = arith.constant 0 : index
    %c0_1254 = arith.constant 0 : index
    %c8_1255 = arith.constant 8 : index
    %c0_1256 = arith.constant 0 : index
    %c0_1257 = arith.constant 0 : index
    %1139 = vector.load %arg3[%c0_1253, %c0_1254, %c8_1255, %c0_1256, %c0_1257] : memref<1x4x9x4x96xf32, #tpu.memory_space<vmem>>, vector<1x1x1x4x96xf32>
    %1140 = vector.shape_cast %1139 : vector<1x1x1x4x96xf32> to vector<4x96xf32>
    %1141 = arith.mulf %1106, %1140 : vector<4x96xf32>
    %1142 = arith.addf %1103, %1141 : vector<4x96xf32>
    %c0_1258 = arith.constant 0 : index
    %c1_1259 = arith.constant 1 : index
    %c0_1260 = arith.constant 0 : index
    %c0_1261 = arith.constant 0 : index
    %1143 = vector.load %arg2[%c0_1258, %c1_1259, %c0_1260, %c0_1261] : memref<1x4x4x104xf32, #tpu.memory_space<vmem>>, vector<1x1x4x104xf32>
    %1144 = vector.shape_cast %1143 : vector<1x1x4x104xf32> to vector<4x104xf32>
    %1145 = vector.extract_strided_slice %1144 {offsets = [0, 3], sizes = [4, 96], strides = [1, 1]} : vector<4x104xf32> to vector<4x96xf32>
    %c0_1262 = arith.constant 0 : index
    %c1_1263 = arith.constant 1 : index
    %c0_1264 = arith.constant 0 : index
    %c0_1265 = arith.constant 0 : index
    %c0_1266 = arith.constant 0 : index
    %1146 = vector.load %arg3[%c0_1262, %c1_1263, %c0_1264, %c0_1265, %c0_1266] : memref<1x4x9x4x96xf32, #tpu.memory_space<vmem>>, vector<1x1x1x4x96xf32>
    %1147 = vector.shape_cast %1146 : vector<1x1x1x4x96xf32> to vector<4x96xf32>
    %1148 = arith.mulf %1145, %1147 : vector<4x96xf32>
    %1149 = arith.addf %1110, %1148 : vector<4x96xf32>
    %c0_1267 = arith.constant 0 : index
    %c1_1268 = arith.constant 1 : index
    %c1_1269 = arith.constant 1 : index
    %c0_1270 = arith.constant 0 : index
    %c0_1271 = arith.constant 0 : index
    %1150 = vector.load %arg3[%c0_1267, %c1_1268, %c1_1269, %c0_1270, %c0_1271] : memref<1x4x9x4x96xf32, #tpu.memory_space<vmem>>, vector<1x1x1x4x96xf32>
    %1151 = vector.shape_cast %1150 : vector<1x1x1x4x96xf32> to vector<4x96xf32>
    %1152 = arith.mulf %1145, %1151 : vector<4x96xf32>
    %1153 = arith.addf %1114, %1152 : vector<4x96xf32>
    %c0_1272 = arith.constant 0 : index
    %c1_1273 = arith.constant 1 : index
    %c2_1274 = arith.constant 2 : index
    %c0_1275 = arith.constant 0 : index
    %c0_1276 = arith.constant 0 : index
    %1154 = vector.load %arg3[%c0_1272, %c1_1273, %c2_1274, %c0_1275, %c0_1276] : memref<1x4x9x4x96xf32, #tpu.memory_space<vmem>>, vector<1x1x1x4x96xf32>
    %1155 = vector.shape_cast %1154 : vector<1x1x1x4x96xf32> to vector<4x96xf32>
    %1156 = arith.mulf %1145, %1155 : vector<4x96xf32>
    %1157 = arith.addf %1118, %1156 : vector<4x96xf32>
    %c0_1277 = arith.constant 0 : index
    %c1_1278 = arith.constant 1 : index
    %c3_1279 = arith.constant 3 : index
    %c0_1280 = arith.constant 0 : index
    %c0_1281 = arith.constant 0 : index
    %1158 = vector.load %arg3[%c0_1277, %c1_1278, %c3_1279, %c0_1280, %c0_1281] : memref<1x4x9x4x96xf32, #tpu.memory_space<vmem>>, vector<1x1x1x4x96xf32>
    %1159 = vector.shape_cast %1158 : vector<1x1x1x4x96xf32> to vector<4x96xf32>
    %1160 = arith.mulf %1145, %1159 : vector<4x96xf32>
    %1161 = arith.addf %1122, %1160 : vector<4x96xf32>
    %c0_1282 = arith.constant 0 : index
    %c1_1283 = arith.constant 1 : index
    %c4_1284 = arith.constant 4 : index
    %c0_1285 = arith.constant 0 : index
    %c0_1286 = arith.constant 0 : index
    %1162 = vector.load %arg3[%c0_1282, %c1_1283, %c4_1284, %c0_1285, %c0_1286] : memref<1x4x9x4x96xf32, #tpu.memory_space<vmem>>, vector<1x1x1x4x96xf32>
    %1163 = vector.shape_cast %1162 : vector<1x1x1x4x96xf32> to vector<4x96xf32>
    %1164 = arith.mulf %1145, %1163 : vector<4x96xf32>
    %1165 = arith.addf %1126, %1164 : vector<4x96xf32>
    %c0_1287 = arith.constant 0 : index
    %c1_1288 = arith.constant 1 : index
    %c5_1289 = arith.constant 5 : index
    %c0_1290 = arith.constant 0 : index
    %c0_1291 = arith.constant 0 : index
    %1166 = vector.load %arg3[%c0_1287, %c1_1288, %c5_1289, %c0_1290, %c0_1291] : memref<1x4x9x4x96xf32, #tpu.memory_space<vmem>>, vector<1x1x1x4x96xf32>
    %1167 = vector.shape_cast %1166 : vector<1x1x1x4x96xf32> to vector<4x96xf32>
    %1168 = arith.mulf %1145, %1167 : vector<4x96xf32>
    %1169 = arith.addf %1130, %1168 : vector<4x96xf32>
    %c0_1292 = arith.constant 0 : index
    %c1_1293 = arith.constant 1 : index
    %c6_1294 = arith.constant 6 : index
    %c0_1295 = arith.constant 0 : index
    %c0_1296 = arith.constant 0 : index
    %1170 = vector.load %arg3[%c0_1292, %c1_1293, %c6_1294, %c0_1295, %c0_1296] : memref<1x4x9x4x96xf32, #tpu.memory_space<vmem>>, vector<1x1x1x4x96xf32>
    %1171 = vector.shape_cast %1170 : vector<1x1x1x4x96xf32> to vector<4x96xf32>
    %1172 = arith.mulf %1145, %1171 : vector<4x96xf32>
    %1173 = arith.addf %1134, %1172 : vector<4x96xf32>
    %c0_1297 = arith.constant 0 : index
    %c1_1298 = arith.constant 1 : index
    %c7_1299 = arith.constant 7 : index
    %c0_1300 = arith.constant 0 : index
    %c0_1301 = arith.constant 0 : index
    %1174 = vector.load %arg3[%c0_1297, %c1_1298, %c7_1299, %c0_1300, %c0_1301] : memref<1x4x9x4x96xf32, #tpu.memory_space<vmem>>, vector<1x1x1x4x96xf32>
    %1175 = vector.shape_cast %1174 : vector<1x1x1x4x96xf32> to vector<4x96xf32>
    %1176 = arith.mulf %1145, %1175 : vector<4x96xf32>
    %1177 = arith.addf %1138, %1176 : vector<4x96xf32>
    %c0_1302 = arith.constant 0 : index
    %c1_1303 = arith.constant 1 : index
    %c8_1304 = arith.constant 8 : index
    %c0_1305 = arith.constant 0 : index
    %c0_1306 = arith.constant 0 : index
    %1178 = vector.load %arg3[%c0_1302, %c1_1303, %c8_1304, %c0_1305, %c0_1306] : memref<1x4x9x4x96xf32, #tpu.memory_space<vmem>>, vector<1x1x1x4x96xf32>
    %1179 = vector.shape_cast %1178 : vector<1x1x1x4x96xf32> to vector<4x96xf32>
    %1180 = arith.mulf %1145, %1179 : vector<4x96xf32>
    %1181 = arith.addf %1142, %1180 : vector<4x96xf32>
    %c0_1307 = arith.constant 0 : index
    %c2_1308 = arith.constant 2 : index
    %c0_1309 = arith.constant 0 : index
    %c0_1310 = arith.constant 0 : index
    %1182 = vector.load %arg2[%c0_1307, %c2_1308, %c0_1309, %c0_1310] : memref<1x4x4x104xf32, #tpu.memory_space<vmem>>, vector<1x1x4x104xf32>
    %1183 = vector.shape_cast %1182 : vector<1x1x4x104xf32> to vector<4x104xf32>
    %1184 = vector.extract_strided_slice %1183 {offsets = [0, 3], sizes = [4, 96], strides = [1, 1]} : vector<4x104xf32> to vector<4x96xf32>
    %c0_1311 = arith.constant 0 : index
    %c2_1312 = arith.constant 2 : index
    %c0_1313 = arith.constant 0 : index
    %c0_1314 = arith.constant 0 : index
    %c0_1315 = arith.constant 0 : index
    %1185 = vector.load %arg3[%c0_1311, %c2_1312, %c0_1313, %c0_1314, %c0_1315] : memref<1x4x9x4x96xf32, #tpu.memory_space<vmem>>, vector<1x1x1x4x96xf32>
    %1186 = vector.shape_cast %1185 : vector<1x1x1x4x96xf32> to vector<4x96xf32>
    %1187 = arith.mulf %1184, %1186 : vector<4x96xf32>
    %1188 = arith.addf %1149, %1187 : vector<4x96xf32>
    %c0_1316 = arith.constant 0 : index
    %c2_1317 = arith.constant 2 : index
    %c1_1318 = arith.constant 1 : index
    %c0_1319 = arith.constant 0 : index
    %c0_1320 = arith.constant 0 : index
    %1189 = vector.load %arg3[%c0_1316, %c2_1317, %c1_1318, %c0_1319, %c0_1320] : memref<1x4x9x4x96xf32, #tpu.memory_space<vmem>>, vector<1x1x1x4x96xf32>
    %1190 = vector.shape_cast %1189 : vector<1x1x1x4x96xf32> to vector<4x96xf32>
    %1191 = arith.mulf %1184, %1190 : vector<4x96xf32>
    %1192 = arith.addf %1153, %1191 : vector<4x96xf32>
    %c0_1321 = arith.constant 0 : index
    %c2_1322 = arith.constant 2 : index
    %c2_1323 = arith.constant 2 : index
    %c0_1324 = arith.constant 0 : index
    %c0_1325 = arith.constant 0 : index
    %1193 = vector.load %arg3[%c0_1321, %c2_1322, %c2_1323, %c0_1324, %c0_1325] : memref<1x4x9x4x96xf32, #tpu.memory_space<vmem>>, vector<1x1x1x4x96xf32>
    %1194 = vector.shape_cast %1193 : vector<1x1x1x4x96xf32> to vector<4x96xf32>
    %1195 = arith.mulf %1184, %1194 : vector<4x96xf32>
    %1196 = arith.addf %1157, %1195 : vector<4x96xf32>
    %c0_1326 = arith.constant 0 : index
    %c2_1327 = arith.constant 2 : index
    %c3_1328 = arith.constant 3 : index
    %c0_1329 = arith.constant 0 : index
    %c0_1330 = arith.constant 0 : index
    %1197 = vector.load %arg3[%c0_1326, %c2_1327, %c3_1328, %c0_1329, %c0_1330] : memref<1x4x9x4x96xf32, #tpu.memory_space<vmem>>, vector<1x1x1x4x96xf32>
    %1198 = vector.shape_cast %1197 : vector<1x1x1x4x96xf32> to vector<4x96xf32>
    %1199 = arith.mulf %1184, %1198 : vector<4x96xf32>
    %1200 = arith.addf %1161, %1199 : vector<4x96xf32>
    %c0_1331 = arith.constant 0 : index
    %c2_1332 = arith.constant 2 : index
    %c4_1333 = arith.constant 4 : index
    %c0_1334 = arith.constant 0 : index
    %c0_1335 = arith.constant 0 : index
    %1201 = vector.load %arg3[%c0_1331, %c2_1332, %c4_1333, %c0_1334, %c0_1335] : memref<1x4x9x4x96xf32, #tpu.memory_space<vmem>>, vector<1x1x1x4x96xf32>
    %1202 = vector.shape_cast %1201 : vector<1x1x1x4x96xf32> to vector<4x96xf32>
    %1203 = arith.mulf %1184, %1202 : vector<4x96xf32>
    %1204 = arith.addf %1165, %1203 : vector<4x96xf32>
    %c0_1336 = arith.constant 0 : index
    %c2_1337 = arith.constant 2 : index
    %c5_1338 = arith.constant 5 : index
    %c0_1339 = arith.constant 0 : index
    %c0_1340 = arith.constant 0 : index
    %1205 = vector.load %arg3[%c0_1336, %c2_1337, %c5_1338, %c0_1339, %c0_1340] : memref<1x4x9x4x96xf32, #tpu.memory_space<vmem>>, vector<1x1x1x4x96xf32>
    %1206 = vector.shape_cast %1205 : vector<1x1x1x4x96xf32> to vector<4x96xf32>
    %1207 = arith.mulf %1184, %1206 : vector<4x96xf32>
    %1208 = arith.addf %1169, %1207 : vector<4x96xf32>
    %c0_1341 = arith.constant 0 : index
    %c2_1342 = arith.constant 2 : index
    %c6_1343 = arith.constant 6 : index
    %c0_1344 = arith.constant 0 : index
    %c0_1345 = arith.constant 0 : index
    %1209 = vector.load %arg3[%c0_1341, %c2_1342, %c6_1343, %c0_1344, %c0_1345] : memref<1x4x9x4x96xf32, #tpu.memory_space<vmem>>, vector<1x1x1x4x96xf32>
    %1210 = vector.shape_cast %1209 : vector<1x1x1x4x96xf32> to vector<4x96xf32>
    %1211 = arith.mulf %1184, %1210 : vector<4x96xf32>
    %1212 = arith.addf %1173, %1211 : vector<4x96xf32>
    %c0_1346 = arith.constant 0 : index
    %c2_1347 = arith.constant 2 : index
    %c7_1348 = arith.constant 7 : index
    %c0_1349 = arith.constant 0 : index
    %c0_1350 = arith.constant 0 : index
    %1213 = vector.load %arg3[%c0_1346, %c2_1347, %c7_1348, %c0_1349, %c0_1350] : memref<1x4x9x4x96xf32, #tpu.memory_space<vmem>>, vector<1x1x1x4x96xf32>
    %1214 = vector.shape_cast %1213 : vector<1x1x1x4x96xf32> to vector<4x96xf32>
    %1215 = arith.mulf %1184, %1214 : vector<4x96xf32>
    %1216 = arith.addf %1177, %1215 : vector<4x96xf32>
    %c0_1351 = arith.constant 0 : index
    %c2_1352 = arith.constant 2 : index
    %c8_1353 = arith.constant 8 : index
    %c0_1354 = arith.constant 0 : index
    %c0_1355 = arith.constant 0 : index
    %1217 = vector.load %arg3[%c0_1351, %c2_1352, %c8_1353, %c0_1354, %c0_1355] : memref<1x4x9x4x96xf32, #tpu.memory_space<vmem>>, vector<1x1x1x4x96xf32>
    %1218 = vector.shape_cast %1217 : vector<1x1x1x4x96xf32> to vector<4x96xf32>
    %1219 = arith.mulf %1184, %1218 : vector<4x96xf32>
    %1220 = arith.addf %1181, %1219 : vector<4x96xf32>
    %c0_1356 = arith.constant 0 : index
    %c3_1357 = arith.constant 3 : index
    %c0_1358 = arith.constant 0 : index
    %c0_1359 = arith.constant 0 : index
    %1221 = vector.load %arg2[%c0_1356, %c3_1357, %c0_1358, %c0_1359] : memref<1x4x4x104xf32, #tpu.memory_space<vmem>>, vector<1x1x4x104xf32>
    %1222 = vector.shape_cast %1221 : vector<1x1x4x104xf32> to vector<4x104xf32>
    %1223 = vector.extract_strided_slice %1222 {offsets = [0, 3], sizes = [4, 96], strides = [1, 1]} : vector<4x104xf32> to vector<4x96xf32>
    %c0_1360 = arith.constant 0 : index
    %c3_1361 = arith.constant 3 : index
    %c0_1362 = arith.constant 0 : index
    %c0_1363 = arith.constant 0 : index
    %c0_1364 = arith.constant 0 : index
    %1224 = vector.load %arg3[%c0_1360, %c3_1361, %c0_1362, %c0_1363, %c0_1364] : memref<1x4x9x4x96xf32, #tpu.memory_space<vmem>>, vector<1x1x1x4x96xf32>
    %1225 = vector.shape_cast %1224 : vector<1x1x1x4x96xf32> to vector<4x96xf32>
    %1226 = arith.mulf %1223, %1225 : vector<4x96xf32>
    %1227 = arith.addf %1188, %1226 : vector<4x96xf32>
    %c0_1365 = arith.constant 0 : index
    %c3_1366 = arith.constant 3 : index
    %c1_1367 = arith.constant 1 : index
    %c0_1368 = arith.constant 0 : index
    %c0_1369 = arith.constant 0 : index
    %1228 = vector.load %arg3[%c0_1365, %c3_1366, %c1_1367, %c0_1368, %c0_1369] : memref<1x4x9x4x96xf32, #tpu.memory_space<vmem>>, vector<1x1x1x4x96xf32>
    %1229 = vector.shape_cast %1228 : vector<1x1x1x4x96xf32> to vector<4x96xf32>
    %1230 = arith.mulf %1223, %1229 : vector<4x96xf32>
    %1231 = arith.addf %1192, %1230 : vector<4x96xf32>
    %c0_1370 = arith.constant 0 : index
    %c3_1371 = arith.constant 3 : index
    %c2_1372 = arith.constant 2 : index
    %c0_1373 = arith.constant 0 : index
    %c0_1374 = arith.constant 0 : index
    %1232 = vector.load %arg3[%c0_1370, %c3_1371, %c2_1372, %c0_1373, %c0_1374] : memref<1x4x9x4x96xf32, #tpu.memory_space<vmem>>, vector<1x1x1x4x96xf32>
    %1233 = vector.shape_cast %1232 : vector<1x1x1x4x96xf32> to vector<4x96xf32>
    %1234 = arith.mulf %1223, %1233 : vector<4x96xf32>
    %1235 = arith.addf %1196, %1234 : vector<4x96xf32>
    %c0_1375 = arith.constant 0 : index
    %c3_1376 = arith.constant 3 : index
    %c3_1377 = arith.constant 3 : index
    %c0_1378 = arith.constant 0 : index
    %c0_1379 = arith.constant 0 : index
    %1236 = vector.load %arg3[%c0_1375, %c3_1376, %c3_1377, %c0_1378, %c0_1379] : memref<1x4x9x4x96xf32, #tpu.memory_space<vmem>>, vector<1x1x1x4x96xf32>
    %1237 = vector.shape_cast %1236 : vector<1x1x1x4x96xf32> to vector<4x96xf32>
    %1238 = arith.mulf %1223, %1237 : vector<4x96xf32>
    %1239 = arith.addf %1200, %1238 : vector<4x96xf32>
    %c0_1380 = arith.constant 0 : index
    %c3_1381 = arith.constant 3 : index
    %c4_1382 = arith.constant 4 : index
    %c0_1383 = arith.constant 0 : index
    %c0_1384 = arith.constant 0 : index
    %1240 = vector.load %arg3[%c0_1380, %c3_1381, %c4_1382, %c0_1383, %c0_1384] : memref<1x4x9x4x96xf32, #tpu.memory_space<vmem>>, vector<1x1x1x4x96xf32>
    %1241 = vector.shape_cast %1240 : vector<1x1x1x4x96xf32> to vector<4x96xf32>
    %1242 = arith.mulf %1223, %1241 : vector<4x96xf32>
    %1243 = arith.addf %1204, %1242 : vector<4x96xf32>
    %c0_1385 = arith.constant 0 : index
    %c3_1386 = arith.constant 3 : index
    %c5_1387 = arith.constant 5 : index
    %c0_1388 = arith.constant 0 : index
    %c0_1389 = arith.constant 0 : index
    %1244 = vector.load %arg3[%c0_1385, %c3_1386, %c5_1387, %c0_1388, %c0_1389] : memref<1x4x9x4x96xf32, #tpu.memory_space<vmem>>, vector<1x1x1x4x96xf32>
    %1245 = vector.shape_cast %1244 : vector<1x1x1x4x96xf32> to vector<4x96xf32>
    %1246 = arith.mulf %1223, %1245 : vector<4x96xf32>
    %1247 = arith.addf %1208, %1246 : vector<4x96xf32>
    %c0_1390 = arith.constant 0 : index
    %c3_1391 = arith.constant 3 : index
    %c6_1392 = arith.constant 6 : index
    %c0_1393 = arith.constant 0 : index
    %c0_1394 = arith.constant 0 : index
    %1248 = vector.load %arg3[%c0_1390, %c3_1391, %c6_1392, %c0_1393, %c0_1394] : memref<1x4x9x4x96xf32, #tpu.memory_space<vmem>>, vector<1x1x1x4x96xf32>
    %1249 = vector.shape_cast %1248 : vector<1x1x1x4x96xf32> to vector<4x96xf32>
    %1250 = arith.mulf %1223, %1249 : vector<4x96xf32>
    %1251 = arith.addf %1212, %1250 : vector<4x96xf32>
    %c0_1395 = arith.constant 0 : index
    %c3_1396 = arith.constant 3 : index
    %c7_1397 = arith.constant 7 : index
    %c0_1398 = arith.constant 0 : index
    %c0_1399 = arith.constant 0 : index
    %1252 = vector.load %arg3[%c0_1395, %c3_1396, %c7_1397, %c0_1398, %c0_1399] : memref<1x4x9x4x96xf32, #tpu.memory_space<vmem>>, vector<1x1x1x4x96xf32>
    %1253 = vector.shape_cast %1252 : vector<1x1x1x4x96xf32> to vector<4x96xf32>
    %1254 = arith.mulf %1223, %1253 : vector<4x96xf32>
    %1255 = arith.addf %1216, %1254 : vector<4x96xf32>
    %c0_1400 = arith.constant 0 : index
    %c3_1401 = arith.constant 3 : index
    %c8_1402 = arith.constant 8 : index
    %c0_1403 = arith.constant 0 : index
    %c0_1404 = arith.constant 0 : index
    %1256 = vector.load %arg3[%c0_1400, %c3_1401, %c8_1402, %c0_1403, %c0_1404] : memref<1x4x9x4x96xf32, #tpu.memory_space<vmem>>, vector<1x1x1x4x96xf32>
    %1257 = vector.shape_cast %1256 : vector<1x1x1x4x96xf32> to vector<4x96xf32>
    %1258 = arith.mulf %1223, %1257 : vector<4x96xf32>
    %1259 = arith.addf %1220, %1258 : vector<4x96xf32>
    %1260 = vector.extract_strided_slice %1227 {offsets = [0, 5], sizes = [4, 88], strides = [1, 1]} : vector<4x96xf32> to vector<4x88xf32>
    %cst_1405 = arith.constant 2.500000e-01 : f32
    %1261 = vector.broadcast %cst_1405 : f32 to vector<4x88xf32>
    %1262 = arith.mulf %1260, %1261 : vector<4x88xf32>
    %c0_1406 = arith.constant 0 : index
    %c5_1407 = arith.constant 5 : index
    %c0_1408 = arith.constant 0 : index
    %c0_1409 = arith.constant 0 : index
    %1263 = vector.load %arg4[%c0_1406, %c5_1407, %c0_1408, %c0_1409] : memref<1x81x4x96xf32, #tpu.memory_space<vmem>>, vector<1x1x4x88xf32>
    %1264 = vector.shape_cast %1263 : vector<1x1x4x88xf32> to vector<4x88xf32>
    %1265 = vector.shape_cast %1262 : vector<4x88xf32> to vector<1x1x4x88xf32>
    tpu.vector_store %arg4[%c0_1406, %c5_1407, %c0_1408, %c0_1409], %1265 {strides = array<i32>} : memref<1x81x4x96xf32, #tpu.memory_space<vmem>>, vector<1x1x4x88xf32>,
    %1266 = vector.extract_strided_slice %1231 {offsets = [0, 5], sizes = [4, 88], strides = [1, 1]} : vector<4x96xf32> to vector<4x88xf32>
    %cst_1410 = arith.constant 2.500000e-01 : f32
    %1267 = vector.broadcast %cst_1410 : f32 to vector<4x88xf32>
    %1268 = arith.mulf %1266, %1267 : vector<4x88xf32>
    %c0_1411 = arith.constant 0 : index
    %c14 = arith.constant 14 : index
    %c0_1412 = arith.constant 0 : index
    %c0_1413 = arith.constant 0 : index
    %1269 = vector.load %arg4[%c0_1411, %c14, %c0_1412, %c0_1413] : memref<1x81x4x96xf32, #tpu.memory_space<vmem>>, vector<1x1x4x88xf32>
    %1270 = vector.shape_cast %1269 : vector<1x1x4x88xf32> to vector<4x88xf32>
    %1271 = vector.shape_cast %1268 : vector<4x88xf32> to vector<1x1x4x88xf32>
    tpu.vector_store %arg4[%c0_1411, %c14, %c0_1412, %c0_1413], %1271 {strides = array<i32>} : memref<1x81x4x96xf32, #tpu.memory_space<vmem>>, vector<1x1x4x88xf32>,
    %1272 = vector.extract_strided_slice %1235 {offsets = [0, 5], sizes = [4, 88], strides = [1, 1]} : vector<4x96xf32> to vector<4x88xf32>
    %cst_1414 = arith.constant 2.500000e-01 : f32
    %1273 = vector.broadcast %cst_1414 : f32 to vector<4x88xf32>
    %1274 = arith.mulf %1272, %1273 : vector<4x88xf32>
    %c0_1415 = arith.constant 0 : index
    %c23 = arith.constant 23 : index
    %c0_1416 = arith.constant 0 : index
    %c0_1417 = arith.constant 0 : index
    %1275 = vector.load %arg4[%c0_1415, %c23, %c0_1416, %c0_1417] : memref<1x81x4x96xf32, #tpu.memory_space<vmem>>, vector<1x1x4x88xf32>
    %1276 = vector.shape_cast %1275 : vector<1x1x4x88xf32> to vector<4x88xf32>
    %1277 = vector.shape_cast %1274 : vector<4x88xf32> to vector<1x1x4x88xf32>
    tpu.vector_store %arg4[%c0_1415, %c23, %c0_1416, %c0_1417], %1277 {strides = array<i32>} : memref<1x81x4x96xf32, #tpu.memory_space<vmem>>, vector<1x1x4x88xf32>,
    %1278 = vector.extract_strided_slice %1239 {offsets = [0, 5], sizes = [4, 88], strides = [1, 1]} : vector<4x96xf32> to vector<4x88xf32>
    %cst_1418 = arith.constant 2.500000e-01 : f32
    %1279 = vector.broadcast %cst_1418 : f32 to vector<4x88xf32>
    %1280 = arith.mulf %1278, %1279 : vector<4x88xf32>
    %c0_1419 = arith.constant 0 : index
    %c32 = arith.constant 32 : index
    %c0_1420 = arith.constant 0 : index
    %c0_1421 = arith.constant 0 : index
    %1281 = vector.load %arg4[%c0_1419, %c32, %c0_1420, %c0_1421] : memref<1x81x4x96xf32, #tpu.memory_space<vmem>>, vector<1x1x4x88xf32>
    %1282 = vector.shape_cast %1281 : vector<1x1x4x88xf32> to vector<4x88xf32>
    %1283 = vector.shape_cast %1280 : vector<4x88xf32> to vector<1x1x4x88xf32>
    tpu.vector_store %arg4[%c0_1419, %c32, %c0_1420, %c0_1421], %1283 {strides = array<i32>} : memref<1x81x4x96xf32, #tpu.memory_space<vmem>>, vector<1x1x4x88xf32>,
    %1284 = vector.extract_strided_slice %1243 {offsets = [0, 5], sizes = [4, 88], strides = [1, 1]} : vector<4x96xf32> to vector<4x88xf32>
    %cst_1422 = arith.constant 2.500000e-01 : f32
    %1285 = vector.broadcast %cst_1422 : f32 to vector<4x88xf32>
    %1286 = arith.mulf %1284, %1285 : vector<4x88xf32>
    %c0_1423 = arith.constant 0 : index
    %c41 = arith.constant 41 : index
    %c0_1424 = arith.constant 0 : index
    %c0_1425 = arith.constant 0 : index
    %1287 = vector.load %arg4[%c0_1423, %c41, %c0_1424, %c0_1425] : memref<1x81x4x96xf32, #tpu.memory_space<vmem>>, vector<1x1x4x88xf32>
    %1288 = vector.shape_cast %1287 : vector<1x1x4x88xf32> to vector<4x88xf32>
    %1289 = vector.shape_cast %1286 : vector<4x88xf32> to vector<1x1x4x88xf32>
    tpu.vector_store %arg4[%c0_1423, %c41, %c0_1424, %c0_1425], %1289 {strides = array<i32>} : memref<1x81x4x96xf32, #tpu.memory_space<vmem>>, vector<1x1x4x88xf32>,
    %1290 = vector.extract_strided_slice %1247 {offsets = [0, 5], sizes = [4, 88], strides = [1, 1]} : vector<4x96xf32> to vector<4x88xf32>
    %cst_1426 = arith.constant 2.500000e-01 : f32
    %1291 = vector.broadcast %cst_1426 : f32 to vector<4x88xf32>
    %1292 = arith.mulf %1290, %1291 : vector<4x88xf32>
    %c0_1427 = arith.constant 0 : index
    %c50 = arith.constant 50 : index
    %c0_1428 = arith.constant 0 : index
    %c0_1429 = arith.constant 0 : index
    %1293 = vector.load %arg4[%c0_1427, %c50, %c0_1428, %c0_1429] : memref<1x81x4x96xf32, #tpu.memory_space<vmem>>, vector<1x1x4x88xf32>
    %1294 = vector.shape_cast %1293 : vector<1x1x4x88xf32> to vector<4x88xf32>
    %1295 = vector.shape_cast %1292 : vector<4x88xf32> to vector<1x1x4x88xf32>
    tpu.vector_store %arg4[%c0_1427, %c50, %c0_1428, %c0_1429], %1295 {strides = array<i32>} : memref<1x81x4x96xf32, #tpu.memory_space<vmem>>, vector<1x1x4x88xf32>,
    %1296 = vector.extract_strided_slice %1251 {offsets = [0, 5], sizes = [4, 88], strides = [1, 1]} : vector<4x96xf32> to vector<4x88xf32>
    %cst_1430 = arith.constant 2.500000e-01 : f32
    %1297 = vector.broadcast %cst_1430 : f32 to vector<4x88xf32>
    %1298 = arith.mulf %1296, %1297 : vector<4x88xf32>
    %c0_1431 = arith.constant 0 : index
    %c59 = arith.constant 59 : index
    %c0_1432 = arith.constant 0 : index
    %c0_1433 = arith.constant 0 : index
    %1299 = vector.load %arg4[%c0_1431, %c59, %c0_1432, %c0_1433] : memref<1x81x4x96xf32, #tpu.memory_space<vmem>>, vector<1x1x4x88xf32>
    %1300 = vector.shape_cast %1299 : vector<1x1x4x88xf32> to vector<4x88xf32>
    %1301 = vector.shape_cast %1298 : vector<4x88xf32> to vector<1x1x4x88xf32>
    tpu.vector_store %arg4[%c0_1431, %c59, %c0_1432, %c0_1433], %1301 {strides = array<i32>} : memref<1x81x4x96xf32, #tpu.memory_space<vmem>>, vector<1x1x4x88xf32>,
    %1302 = vector.extract_strided_slice %1255 {offsets = [0, 5], sizes = [4, 88], strides = [1, 1]} : vector<4x96xf32> to vector<4x88xf32>
    %cst_1434 = arith.constant 2.500000e-01 : f32
    %1303 = vector.broadcast %cst_1434 : f32 to vector<4x88xf32>
    %1304 = arith.mulf %1302, %1303 : vector<4x88xf32>
    %c0_1435 = arith.constant 0 : index
    %c68 = arith.constant 68 : index
    %c0_1436 = arith.constant 0 : index
    %c0_1437 = arith.constant 0 : index
    %1305 = vector.load %arg4[%c0_1435, %c68, %c0_1436, %c0_1437] : memref<1x81x4x96xf32, #tpu.memory_space<vmem>>, vector<1x1x4x88xf32>
    %1306 = vector.shape_cast %1305 : vector<1x1x4x88xf32> to vector<4x88xf32>
    %1307 = vector.shape_cast %1304 : vector<4x88xf32> to vector<1x1x4x88xf32>
    tpu.vector_store %arg4[%c0_1435, %c68, %c0_1436, %c0_1437], %1307 {strides = array<i32>} : memref<1x81x4x96xf32, #tpu.memory_space<vmem>>, vector<1x1x4x88xf32>,
    %1308 = vector.extract_strided_slice %1259 {offsets = [0, 5], sizes = [4, 88], strides = [1, 1]} : vector<4x96xf32> to vector<4x88xf32>
    %cst_1438 = arith.constant 2.500000e-01 : f32
    %1309 = vector.broadcast %cst_1438 : f32 to vector<4x88xf32>
    %1310 = arith.mulf %1308, %1309 : vector<4x88xf32>
    %c0_1439 = arith.constant 0 : index
    %c77 = arith.constant 77 : index
    %c0_1440 = arith.constant 0 : index
    %c0_1441 = arith.constant 0 : index
    %1311 = vector.load %arg4[%c0_1439, %c77, %c0_1440, %c0_1441] : memref<1x81x4x96xf32, #tpu.memory_space<vmem>>, vector<1x1x4x88xf32>
    %1312 = vector.shape_cast %1311 : vector<1x1x4x88xf32> to vector<4x88xf32>
    %1313 = vector.shape_cast %1310 : vector<4x88xf32> to vector<1x1x4x88xf32>
    tpu.vector_store %arg4[%c0_1439, %c77, %c0_1440, %c0_1441], %1313 {strides = array<i32>} : memref<1x81x4x96xf32, #tpu.memory_space<vmem>>, vector<1x1x4x88xf32>,
    %cst_1442 = arith.constant 0.000000e+00 : f32
    %1314 = vector.broadcast %cst_1442 : f32 to vector<4x96xf32>
    %cst_1443 = arith.constant 0.000000e+00 : f32
    %1315 = vector.broadcast %cst_1443 : f32 to vector<4x96xf32>
    %cst_1444 = arith.constant 0.000000e+00 : f32
    %1316 = vector.broadcast %cst_1444 : f32 to vector<4x96xf32>
    %cst_1445 = arith.constant 0.000000e+00 : f32
    %1317 = vector.broadcast %cst_1445 : f32 to vector<4x96xf32>
    %cst_1446 = arith.constant 0.000000e+00 : f32
    %1318 = vector.broadcast %cst_1446 : f32 to vector<4x96xf32>
    %cst_1447 = arith.constant 0.000000e+00 : f32
    %1319 = vector.broadcast %cst_1447 : f32 to vector<4x96xf32>
    %cst_1448 = arith.constant 0.000000e+00 : f32
    %1320 = vector.broadcast %cst_1448 : f32 to vector<4x96xf32>
    %cst_1449 = arith.constant 0.000000e+00 : f32
    %1321 = vector.broadcast %cst_1449 : f32 to vector<4x96xf32>
    %cst_1450 = arith.constant 0.000000e+00 : f32
    %1322 = vector.broadcast %cst_1450 : f32 to vector<4x96xf32>
    %c0_1451 = arith.constant 0 : index
    %c0_1452 = arith.constant 0 : index
    %c0_1453 = arith.constant 0 : index
    %c0_1454 = arith.constant 0 : index
    %1323 = vector.load %arg2[%c0_1451, %c0_1452, %c0_1453, %c0_1454] : memref<1x4x4x104xf32, #tpu.memory_space<vmem>>, vector<1x1x4x104xf32>
    %1324 = vector.shape_cast %1323 : vector<1x1x4x104xf32> to vector<4x104xf32>
    %1325 = vector.extract_strided_slice %1324 {offsets = [0, 2], sizes = [4, 96], strides = [1, 1]} : vector<4x104xf32> to vector<4x96xf32>
    %c0_1455 = arith.constant 0 : index
    %c0_1456 = arith.constant 0 : index
    %c0_1457 = arith.constant 0 : index
    %c0_1458 = arith.constant 0 : index
    %c0_1459 = arith.constant 0 : index
    %1326 = vector.load %arg3[%c0_1455, %c0_1456, %c0_1457, %c0_1458, %c0_1459] : memref<1x4x9x4x96xf32, #tpu.memory_space<vmem>>, vector<1x1x1x4x96xf32>
    %1327 = vector.shape_cast %1326 : vector<1x1x1x4x96xf32> to vector<4x96xf32>
    %1328 = arith.mulf %1325, %1327 : vector<4x96xf32>
    %1329 = arith.addf %1314, %1328 : vector<4x96xf32>
    %c0_1460 = arith.constant 0 : index
    %c0_1461 = arith.constant 0 : index
    %c1_1462 = arith.constant 1 : index
    %c0_1463 = arith.constant 0 : index
    %c0_1464 = arith.constant 0 : index
    %1330 = vector.load %arg3[%c0_1460, %c0_1461, %c1_1462, %c0_1463, %c0_1464] : memref<1x4x9x4x96xf32, #tpu.memory_space<vmem>>, vector<1x1x1x4x96xf32>
    %1331 = vector.shape_cast %1330 : vector<1x1x1x4x96xf32> to vector<4x96xf32>
    %1332 = arith.mulf %1325, %1331 : vector<4x96xf32>
    %1333 = arith.addf %1315, %1332 : vector<4x96xf32>
    %c0_1465 = arith.constant 0 : index
    %c0_1466 = arith.constant 0 : index
    %c2_1467 = arith.constant 2 : index
    %c0_1468 = arith.constant 0 : index
    %c0_1469 = arith.constant 0 : index
    %1334 = vector.load %arg3[%c0_1465, %c0_1466, %c2_1467, %c0_1468, %c0_1469] : memref<1x4x9x4x96xf32, #tpu.memory_space<vmem>>, vector<1x1x1x4x96xf32>
    %1335 = vector.shape_cast %1334 : vector<1x1x1x4x96xf32> to vector<4x96xf32>
    %1336 = arith.mulf %1325, %1335 : vector<4x96xf32>
    %1337 = arith.addf %1316, %1336 : vector<4x96xf32>
    %c0_1470 = arith.constant 0 : index
    %c0_1471 = arith.constant 0 : index
    %c3_1472 = arith.constant 3 : index
    %c0_1473 = arith.constant 0 : index
    %c0_1474 = arith.constant 0 : index
    %1338 = vector.load %arg3[%c0_1470, %c0_1471, %c3_1472, %c0_1473, %c0_1474] : memref<1x4x9x4x96xf32, #tpu.memory_space<vmem>>, vector<1x1x1x4x96xf32>
    %1339 = vector.shape_cast %1338 : vector<1x1x1x4x96xf32> to vector<4x96xf32>
    %1340 = arith.mulf %1325, %1339 : vector<4x96xf32>
    %1341 = arith.addf %1317, %1340 : vector<4x96xf32>
    %c0_1475 = arith.constant 0 : index
    %c0_1476 = arith.constant 0 : index
    %c4_1477 = arith.constant 4 : index
    %c0_1478 = arith.constant 0 : index
    %c0_1479 = arith.constant 0 : index
    %1342 = vector.load %arg3[%c0_1475, %c0_1476, %c4_1477, %c0_1478, %c0_1479] : memref<1x4x9x4x96xf32, #tpu.memory_space<vmem>>, vector<1x1x1x4x96xf32>
    %1343 = vector.shape_cast %1342 : vector<1x1x1x4x96xf32> to vector<4x96xf32>
    %1344 = arith.mulf %1325, %1343 : vector<4x96xf32>
    %1345 = arith.addf %1318, %1344 : vector<4x96xf32>
    %c0_1480 = arith.constant 0 : index
    %c0_1481 = arith.constant 0 : index
    %c5_1482 = arith.constant 5 : index
    %c0_1483 = arith.constant 0 : index
    %c0_1484 = arith.constant 0 : index
    %1346 = vector.load %arg3[%c0_1480, %c0_1481, %c5_1482, %c0_1483, %c0_1484] : memref<1x4x9x4x96xf32, #tpu.memory_space<vmem>>, vector<1x1x1x4x96xf32>
    %1347 = vector.shape_cast %1346 : vector<1x1x1x4x96xf32> to vector<4x96xf32>
    %1348 = arith.mulf %1325, %1347 : vector<4x96xf32>
    %1349 = arith.addf %1319, %1348 : vector<4x96xf32>
    %c0_1485 = arith.constant 0 : index
    %c0_1486 = arith.constant 0 : index
    %c6_1487 = arith.constant 6 : index
    %c0_1488 = arith.constant 0 : index
    %c0_1489 = arith.constant 0 : index
    %1350 = vector.load %arg3[%c0_1485, %c0_1486, %c6_1487, %c0_1488, %c0_1489] : memref<1x4x9x4x96xf32, #tpu.memory_space<vmem>>, vector<1x1x1x4x96xf32>
    %1351 = vector.shape_cast %1350 : vector<1x1x1x4x96xf32> to vector<4x96xf32>
    %1352 = arith.mulf %1325, %1351 : vector<4x96xf32>
    %1353 = arith.addf %1320, %1352 : vector<4x96xf32>
    %c0_1490 = arith.constant 0 : index
    %c0_1491 = arith.constant 0 : index
    %c7_1492 = arith.constant 7 : index
    %c0_1493 = arith.constant 0 : index
    %c0_1494 = arith.constant 0 : index
    %1354 = vector.load %arg3[%c0_1490, %c0_1491, %c7_1492, %c0_1493, %c0_1494] : memref<1x4x9x4x96xf32, #tpu.memory_space<vmem>>, vector<1x1x1x4x96xf32>
    %1355 = vector.shape_cast %1354 : vector<1x1x1x4x96xf32> to vector<4x96xf32>
    %1356 = arith.mulf %1325, %1355 : vector<4x96xf32>
    %1357 = arith.addf %1321, %1356 : vector<4x96xf32>
    %c0_1495 = arith.constant 0 : index
    %c0_1496 = arith.constant 0 : index
    %c8_1497 = arith.constant 8 : index
    %c0_1498 = arith.constant 0 : index
    %c0_1499 = arith.constant 0 : index
    %1358 = vector.load %arg3[%c0_1495, %c0_1496, %c8_1497, %c0_1498, %c0_1499] : memref<1x4x9x4x96xf32, #tpu.memory_space<vmem>>, vector<1x1x1x4x96xf32>
    %1359 = vector.shape_cast %1358 : vector<1x1x1x4x96xf32> to vector<4x96xf32>
    %1360 = arith.mulf %1325, %1359 : vector<4x96xf32>
    %1361 = arith.addf %1322, %1360 : vector<4x96xf32>
    %c0_1500 = arith.constant 0 : index
    %c1_1501 = arith.constant 1 : index
    %c0_1502 = arith.constant 0 : index
    %c0_1503 = arith.constant 0 : index
    %1362 = vector.load %arg2[%c0_1500, %c1_1501, %c0_1502, %c0_1503] : memref<1x4x4x104xf32, #tpu.memory_space<vmem>>, vector<1x1x4x104xf32>
    %1363 = vector.shape_cast %1362 : vector<1x1x4x104xf32> to vector<4x104xf32>
    %1364 = vector.extract_strided_slice %1363 {offsets = [0, 2], sizes = [4, 96], strides = [1, 1]} : vector<4x104xf32> to vector<4x96xf32>
    %c0_1504 = arith.constant 0 : index
    %c1_1505 = arith.constant 1 : index
    %c0_1506 = arith.constant 0 : index
    %c0_1507 = arith.constant 0 : index
    %c0_1508 = arith.constant 0 : index
    %1365 = vector.load %arg3[%c0_1504, %c1_1505, %c0_1506, %c0_1507, %c0_1508] : memref<1x4x9x4x96xf32, #tpu.memory_space<vmem>>, vector<1x1x1x4x96xf32>
    %1366 = vector.shape_cast %1365 : vector<1x1x1x4x96xf32> to vector<4x96xf32>
    %1367 = arith.mulf %1364, %1366 : vector<4x96xf32>
    %1368 = arith.addf %1329, %1367 : vector<4x96xf32>
    %c0_1509 = arith.constant 0 : index
    %c1_1510 = arith.constant 1 : index
    %c1_1511 = arith.constant 1 : index
    %c0_1512 = arith.constant 0 : index
    %c0_1513 = arith.constant 0 : index
    %1369 = vector.load %arg3[%c0_1509, %c1_1510, %c1_1511, %c0_1512, %c0_1513] : memref<1x4x9x4x96xf32, #tpu.memory_space<vmem>>, vector<1x1x1x4x96xf32>
    %1370 = vector.shape_cast %1369 : vector<1x1x1x4x96xf32> to vector<4x96xf32>
    %1371 = arith.mulf %1364, %1370 : vector<4x96xf32>
    %1372 = arith.addf %1333, %1371 : vector<4x96xf32>
    %c0_1514 = arith.constant 0 : index
    %c1_1515 = arith.constant 1 : index
    %c2_1516 = arith.constant 2 : index
    %c0_1517 = arith.constant 0 : index
    %c0_1518 = arith.constant 0 : index
    %1373 = vector.load %arg3[%c0_1514, %c1_1515, %c2_1516, %c0_1517, %c0_1518] : memref<1x4x9x4x96xf32, #tpu.memory_space<vmem>>, vector<1x1x1x4x96xf32>
    %1374 = vector.shape_cast %1373 : vector<1x1x1x4x96xf32> to vector<4x96xf32>
    %1375 = arith.mulf %1364, %1374 : vector<4x96xf32>
    %1376 = arith.addf %1337, %1375 : vector<4x96xf32>
    %c0_1519 = arith.constant 0 : index
    %c1_1520 = arith.constant 1 : index
    %c3_1521 = arith.constant 3 : index
    %c0_1522 = arith.constant 0 : index
    %c0_1523 = arith.constant 0 : index
    %1377 = vector.load %arg3[%c0_1519, %c1_1520, %c3_1521, %c0_1522, %c0_1523] : memref<1x4x9x4x96xf32, #tpu.memory_space<vmem>>, vector<1x1x1x4x96xf32>
    %1378 = vector.shape_cast %1377 : vector<1x1x1x4x96xf32> to vector<4x96xf32>
    %1379 = arith.mulf %1364, %1378 : vector<4x96xf32>
    %1380 = arith.addf %1341, %1379 : vector<4x96xf32>
    %c0_1524 = arith.constant 0 : index
    %c1_1525 = arith.constant 1 : index
    %c4_1526 = arith.constant 4 : index
    %c0_1527 = arith.constant 0 : index
    %c0_1528 = arith.constant 0 : index
    %1381 = vector.load %arg3[%c0_1524, %c1_1525, %c4_1526, %c0_1527, %c0_1528] : memref<1x4x9x4x96xf32, #tpu.memory_space<vmem>>, vector<1x1x1x4x96xf32>
    %1382 = vector.shape_cast %1381 : vector<1x1x1x4x96xf32> to vector<4x96xf32>
    %1383 = arith.mulf %1364, %1382 : vector<4x96xf32>
    %1384 = arith.addf %1345, %1383 : vector<4x96xf32>
    %c0_1529 = arith.constant 0 : index
    %c1_1530 = arith.constant 1 : index
    %c5_1531 = arith.constant 5 : index
    %c0_1532 = arith.constant 0 : index
    %c0_1533 = arith.constant 0 : index
    %1385 = vector.load %arg3[%c0_1529, %c1_1530, %c5_1531, %c0_1532, %c0_1533] : memref<1x4x9x4x96xf32, #tpu.memory_space<vmem>>, vector<1x1x1x4x96xf32>
    %1386 = vector.shape_cast %1385 : vector<1x1x1x4x96xf32> to vector<4x96xf32>
    %1387 = arith.mulf %1364, %1386 : vector<4x96xf32>
    %1388 = arith.addf %1349, %1387 : vector<4x96xf32>
    %c0_1534 = arith.constant 0 : index
    %c1_1535 = arith.constant 1 : index
    %c6_1536 = arith.constant 6 : index
    %c0_1537 = arith.constant 0 : index
    %c0_1538 = arith.constant 0 : index
    %1389 = vector.load %arg3[%c0_1534, %c1_1535, %c6_1536, %c0_1537, %c0_1538] : memref<1x4x9x4x96xf32, #tpu.memory_space<vmem>>, vector<1x1x1x4x96xf32>
    %1390 = vector.shape_cast %1389 : vector<1x1x1x4x96xf32> to vector<4x96xf32>
    %1391 = arith.mulf %1364, %1390 : vector<4x96xf32>
    %1392 = arith.addf %1353, %1391 : vector<4x96xf32>
    %c0_1539 = arith.constant 0 : index
    %c1_1540 = arith.constant 1 : index
    %c7_1541 = arith.constant 7 : index
    %c0_1542 = arith.constant 0 : index
    %c0_1543 = arith.constant 0 : index
    %1393 = vector.load %arg3[%c0_1539, %c1_1540, %c7_1541, %c0_1542, %c0_1543] : memref<1x4x9x4x96xf32, #tpu.memory_space<vmem>>, vector<1x1x1x4x96xf32>
    %1394 = vector.shape_cast %1393 : vector<1x1x1x4x96xf32> to vector<4x96xf32>
    %1395 = arith.mulf %1364, %1394 : vector<4x96xf32>
    %1396 = arith.addf %1357, %1395 : vector<4x96xf32>
    %c0_1544 = arith.constant 0 : index
    %c1_1545 = arith.constant 1 : index
    %c8_1546 = arith.constant 8 : index
    %c0_1547 = arith.constant 0 : index
    %c0_1548 = arith.constant 0 : index
    %1397 = vector.load %arg3[%c0_1544, %c1_1545, %c8_1546, %c0_1547, %c0_1548] : memref<1x4x9x4x96xf32, #tpu.memory_space<vmem>>, vector<1x1x1x4x96xf32>
    %1398 = vector.shape_cast %1397 : vector<1x1x1x4x96xf32> to vector<4x96xf32>
    %1399 = arith.mulf %1364, %1398 : vector<4x96xf32>
    %1400 = arith.addf %1361, %1399 : vector<4x96xf32>
    %c0_1549 = arith.constant 0 : index
    %c2_1550 = arith.constant 2 : index
    %c0_1551 = arith.constant 0 : index
    %c0_1552 = arith.constant 0 : index
    %1401 = vector.load %arg2[%c0_1549, %c2_1550, %c0_1551, %c0_1552] : memref<1x4x4x104xf32, #tpu.memory_space<vmem>>, vector<1x1x4x104xf32>
    %1402 = vector.shape_cast %1401 : vector<1x1x4x104xf32> to vector<4x104xf32>
    %1403 = vector.extract_strided_slice %1402 {offsets = [0, 2], sizes = [4, 96], strides = [1, 1]} : vector<4x104xf32> to vector<4x96xf32>
    %c0_1553 = arith.constant 0 : index
    %c2_1554 = arith.constant 2 : index
    %c0_1555 = arith.constant 0 : index
    %c0_1556 = arith.constant 0 : index
    %c0_1557 = arith.constant 0 : index
    %1404 = vector.load %arg3[%c0_1553, %c2_1554, %c0_1555, %c0_1556, %c0_1557] : memref<1x4x9x4x96xf32, #tpu.memory_space<vmem>>, vector<1x1x1x4x96xf32>
    %1405 = vector.shape_cast %1404 : vector<1x1x1x4x96xf32> to vector<4x96xf32>
    %1406 = arith.mulf %1403, %1405 : vector<4x96xf32>
    %1407 = arith.addf %1368, %1406 : vector<4x96xf32>
    %c0_1558 = arith.constant 0 : index
    %c2_1559 = arith.constant 2 : index
    %c1_1560 = arith.constant 1 : index
    %c0_1561 = arith.constant 0 : index
    %c0_1562 = arith.constant 0 : index
    %1408 = vector.load %arg3[%c0_1558, %c2_1559, %c1_1560, %c0_1561, %c0_1562] : memref<1x4x9x4x96xf32, #tpu.memory_space<vmem>>, vector<1x1x1x4x96xf32>
    %1409 = vector.shape_cast %1408 : vector<1x1x1x4x96xf32> to vector<4x96xf32>
    %1410 = arith.mulf %1403, %1409 : vector<4x96xf32>
    %1411 = arith.addf %1372, %1410 : vector<4x96xf32>
    %c0_1563 = arith.constant 0 : index
    %c2_1564 = arith.constant 2 : index
    %c2_1565 = arith.constant 2 : index
    %c0_1566 = arith.constant 0 : index
    %c0_1567 = arith.constant 0 : index
    %1412 = vector.load %arg3[%c0_1563, %c2_1564, %c2_1565, %c0_1566, %c0_1567] : memref<1x4x9x4x96xf32, #tpu.memory_space<vmem>>, vector<1x1x1x4x96xf32>
    %1413 = vector.shape_cast %1412 : vector<1x1x1x4x96xf32> to vector<4x96xf32>
    %1414 = arith.mulf %1403, %1413 : vector<4x96xf32>
    %1415 = arith.addf %1376, %1414 : vector<4x96xf32>
    %c0_1568 = arith.constant 0 : index
    %c2_1569 = arith.constant 2 : index
    %c3_1570 = arith.constant 3 : index
    %c0_1571 = arith.constant 0 : index
    %c0_1572 = arith.constant 0 : index
    %1416 = vector.load %arg3[%c0_1568, %c2_1569, %c3_1570, %c0_1571, %c0_1572] : memref<1x4x9x4x96xf32, #tpu.memory_space<vmem>>, vector<1x1x1x4x96xf32>
    %1417 = vector.shape_cast %1416 : vector<1x1x1x4x96xf32> to vector<4x96xf32>
    %1418 = arith.mulf %1403, %1417 : vector<4x96xf32>
    %1419 = arith.addf %1380, %1418 : vector<4x96xf32>
    %c0_1573 = arith.constant 0 : index
    %c2_1574 = arith.constant 2 : index
    %c4_1575 = arith.constant 4 : index
    %c0_1576 = arith.constant 0 : index
    %c0_1577 = arith.constant 0 : index
    %1420 = vector.load %arg3[%c0_1573, %c2_1574, %c4_1575, %c0_1576, %c0_1577] : memref<1x4x9x4x96xf32, #tpu.memory_space<vmem>>, vector<1x1x1x4x96xf32>
    %1421 = vector.shape_cast %1420 : vector<1x1x1x4x96xf32> to vector<4x96xf32>
    %1422 = arith.mulf %1403, %1421 : vector<4x96xf32>
    %1423 = arith.addf %1384, %1422 : vector<4x96xf32>
    %c0_1578 = arith.constant 0 : index
    %c2_1579 = arith.constant 2 : index
    %c5_1580 = arith.constant 5 : index
    %c0_1581 = arith.constant 0 : index
    %c0_1582 = arith.constant 0 : index
    %1424 = vector.load %arg3[%c0_1578, %c2_1579, %c5_1580, %c0_1581, %c0_1582] : memref<1x4x9x4x96xf32, #tpu.memory_space<vmem>>, vector<1x1x1x4x96xf32>
    %1425 = vector.shape_cast %1424 : vector<1x1x1x4x96xf32> to vector<4x96xf32>
    %1426 = arith.mulf %1403, %1425 : vector<4x96xf32>
    %1427 = arith.addf %1388, %1426 : vector<4x96xf32>
    %c0_1583 = arith.constant 0 : index
    %c2_1584 = arith.constant 2 : index
    %c6_1585 = arith.constant 6 : index
    %c0_1586 = arith.constant 0 : index
    %c0_1587 = arith.constant 0 : index
    %1428 = vector.load %arg3[%c0_1583, %c2_1584, %c6_1585, %c0_1586, %c0_1587] : memref<1x4x9x4x96xf32, #tpu.memory_space<vmem>>, vector<1x1x1x4x96xf32>
    %1429 = vector.shape_cast %1428 : vector<1x1x1x4x96xf32> to vector<4x96xf32>
    %1430 = arith.mulf %1403, %1429 : vector<4x96xf32>
    %1431 = arith.addf %1392, %1430 : vector<4x96xf32>
    %c0_1588 = arith.constant 0 : index
    %c2_1589 = arith.constant 2 : index
    %c7_1590 = arith.constant 7 : index
    %c0_1591 = arith.constant 0 : index
    %c0_1592 = arith.constant 0 : index
    %1432 = vector.load %arg3[%c0_1588, %c2_1589, %c7_1590, %c0_1591, %c0_1592] : memref<1x4x9x4x96xf32, #tpu.memory_space<vmem>>, vector<1x1x1x4x96xf32>
    %1433 = vector.shape_cast %1432 : vector<1x1x1x4x96xf32> to vector<4x96xf32>
    %1434 = arith.mulf %1403, %1433 : vector<4x96xf32>
    %1435 = arith.addf %1396, %1434 : vector<4x96xf32>
    %c0_1593 = arith.constant 0 : index
    %c2_1594 = arith.constant 2 : index
    %c8_1595 = arith.constant 8 : index
    %c0_1596 = arith.constant 0 : index
    %c0_1597 = arith.constant 0 : index
    %1436 = vector.load %arg3[%c0_1593, %c2_1594, %c8_1595, %c0_1596, %c0_1597] : memref<1x4x9x4x96xf32, #tpu.memory_space<vmem>>, vector<1x1x1x4x96xf32>
    %1437 = vector.shape_cast %1436 : vector<1x1x1x4x96xf32> to vector<4x96xf32>
    %1438 = arith.mulf %1403, %1437 : vector<4x96xf32>
    %1439 = arith.addf %1400, %1438 : vector<4x96xf32>
    %c0_1598 = arith.constant 0 : index
    %c3_1599 = arith.constant 3 : index
    %c0_1600 = arith.constant 0 : index
    %c0_1601 = arith.constant 0 : index
    %1440 = vector.load %arg2[%c0_1598, %c3_1599, %c0_1600, %c0_1601] : memref<1x4x4x104xf32, #tpu.memory_space<vmem>>, vector<1x1x4x104xf32>
    %1441 = vector.shape_cast %1440 : vector<1x1x4x104xf32> to vector<4x104xf32>
    %1442 = vector.extract_strided_slice %1441 {offsets = [0, 2], sizes = [4, 96], strides = [1, 1]} : vector<4x104xf32> to vector<4x96xf32>
    %c0_1602 = arith.constant 0 : index
    %c3_1603 = arith.constant 3 : index
    %c0_1604 = arith.constant 0 : index
    %c0_1605 = arith.constant 0 : index
    %c0_1606 = arith.constant 0 : index
    %1443 = vector.load %arg3[%c0_1602, %c3_1603, %c0_1604, %c0_1605, %c0_1606] : memref<1x4x9x4x96xf32, #tpu.memory_space<vmem>>, vector<1x1x1x4x96xf32>
    %1444 = vector.shape_cast %1443 : vector<1x1x1x4x96xf32> to vector<4x96xf32>
    %1445 = arith.mulf %1442, %1444 : vector<4x96xf32>
    %1446 = arith.addf %1407, %1445 : vector<4x96xf32>
    %c0_1607 = arith.constant 0 : index
    %c3_1608 = arith.constant 3 : index
    %c1_1609 = arith.constant 1 : index
    %c0_1610 = arith.constant 0 : index
    %c0_1611 = arith.constant 0 : index
    %1447 = vector.load %arg3[%c0_1607, %c3_1608, %c1_1609, %c0_1610, %c0_1611] : memref<1x4x9x4x96xf32, #tpu.memory_space<vmem>>, vector<1x1x1x4x96xf32>
    %1448 = vector.shape_cast %1447 : vector<1x1x1x4x96xf32> to vector<4x96xf32>
    %1449 = arith.mulf %1442, %1448 : vector<4x96xf32>
    %1450 = arith.addf %1411, %1449 : vector<4x96xf32>
    %c0_1612 = arith.constant 0 : index
    %c3_1613 = arith.constant 3 : index
    %c2_1614 = arith.constant 2 : index
    %c0_1615 = arith.constant 0 : index
    %c0_1616 = arith.constant 0 : index
    %1451 = vector.load %arg3[%c0_1612, %c3_1613, %c2_1614, %c0_1615, %c0_1616] : memref<1x4x9x4x96xf32, #tpu.memory_space<vmem>>, vector<1x1x1x4x96xf32>
    %1452 = vector.shape_cast %1451 : vector<1x1x1x4x96xf32> to vector<4x96xf32>
    %1453 = arith.mulf %1442, %1452 : vector<4x96xf32>
    %1454 = arith.addf %1415, %1453 : vector<4x96xf32>
    %c0_1617 = arith.constant 0 : index
    %c3_1618 = arith.constant 3 : index
    %c3_1619 = arith.constant 3 : index
    %c0_1620 = arith.constant 0 : index
    %c0_1621 = arith.constant 0 : index
    %1455 = vector.load %arg3[%c0_1617, %c3_1618, %c3_1619, %c0_1620, %c0_1621] : memref<1x4x9x4x96xf32, #tpu.memory_space<vmem>>, vector<1x1x1x4x96xf32>
    %1456 = vector.shape_cast %1455 : vector<1x1x1x4x96xf32> to vector<4x96xf32>
    %1457 = arith.mulf %1442, %1456 : vector<4x96xf32>
    %1458 = arith.addf %1419, %1457 : vector<4x96xf32>
    %c0_1622 = arith.constant 0 : index
    %c3_1623 = arith.constant 3 : index
    %c4_1624 = arith.constant 4 : index
    %c0_1625 = arith.constant 0 : index
    %c0_1626 = arith.constant 0 : index
    %1459 = vector.load %arg3[%c0_1622, %c3_1623, %c4_1624, %c0_1625, %c0_1626] : memref<1x4x9x4x96xf32, #tpu.memory_space<vmem>>, vector<1x1x1x4x96xf32>
    %1460 = vector.shape_cast %1459 : vector<1x1x1x4x96xf32> to vector<4x96xf32>
    %1461 = arith.mulf %1442, %1460 : vector<4x96xf32>
    %1462 = arith.addf %1423, %1461 : vector<4x96xf32>
    %c0_1627 = arith.constant 0 : index
    %c3_1628 = arith.constant 3 : index
    %c5_1629 = arith.constant 5 : index
    %c0_1630 = arith.constant 0 : index
    %c0_1631 = arith.constant 0 : index
    %1463 = vector.load %arg3[%c0_1627, %c3_1628, %c5_1629, %c0_1630, %c0_1631] : memref<1x4x9x4x96xf32, #tpu.memory_space<vmem>>, vector<1x1x1x4x96xf32>
    %1464 = vector.shape_cast %1463 : vector<1x1x1x4x96xf32> to vector<4x96xf32>
    %1465 = arith.mulf %1442, %1464 : vector<4x96xf32>
    %1466 = arith.addf %1427, %1465 : vector<4x96xf32>
    %c0_1632 = arith.constant 0 : index
    %c3_1633 = arith.constant 3 : index
    %c6_1634 = arith.constant 6 : index
    %c0_1635 = arith.constant 0 : index
    %c0_1636 = arith.constant 0 : index
    %1467 = vector.load %arg3[%c0_1632, %c3_1633, %c6_1634, %c0_1635, %c0_1636] : memref<1x4x9x4x96xf32, #tpu.memory_space<vmem>>, vector<1x1x1x4x96xf32>
    %1468 = vector.shape_cast %1467 : vector<1x1x1x4x96xf32> to vector<4x96xf32>
    %1469 = arith.mulf %1442, %1468 : vector<4x96xf32>
    %1470 = arith.addf %1431, %1469 : vector<4x96xf32>
    %c0_1637 = arith.constant 0 : index
    %c3_1638 = arith.constant 3 : index
    %c7_1639 = arith.constant 7 : index
    %c0_1640 = arith.constant 0 : index
    %c0_1641 = arith.constant 0 : index
    %1471 = vector.load %arg3[%c0_1637, %c3_1638, %c7_1639, %c0_1640, %c0_1641] : memref<1x4x9x4x96xf32, #tpu.memory_space<vmem>>, vector<1x1x1x4x96xf32>
    %1472 = vector.shape_cast %1471 : vector<1x1x1x4x96xf32> to vector<4x96xf32>
    %1473 = arith.mulf %1442, %1472 : vector<4x96xf32>
    %1474 = arith.addf %1435, %1473 : vector<4x96xf32>
    %c0_1642 = arith.constant 0 : index
    %c3_1643 = arith.constant 3 : index
    %c8_1644 = arith.constant 8 : index
    %c0_1645 = arith.constant 0 : index
    %c0_1646 = arith.constant 0 : index
    %1475 = vector.load %arg3[%c0_1642, %c3_1643, %c8_1644, %c0_1645, %c0_1646] : memref<1x4x9x4x96xf32, #tpu.memory_space<vmem>>, vector<1x1x1x4x96xf32>
    %1476 = vector.shape_cast %1475 : vector<1x1x1x4x96xf32> to vector<4x96xf32>
    %1477 = arith.mulf %1442, %1476 : vector<4x96xf32>
    %1478 = arith.addf %1439, %1477 : vector<4x96xf32>
    %1479 = vector.extract_strided_slice %1446 {offsets = [0, 6], sizes = [4, 88], strides = [1, 1]} : vector<4x96xf32> to vector<4x88xf32>
    %cst_1647 = arith.constant 2.500000e-01 : f32
    %1480 = vector.broadcast %cst_1647 : f32 to vector<4x88xf32>
    %1481 = arith.mulf %1479, %1480 : vector<4x88xf32>
    %c0_1648 = arith.constant 0 : index
    %c6_1649 = arith.constant 6 : index
    %c0_1650 = arith.constant 0 : index
    %c0_1651 = arith.constant 0 : index
    %1482 = vector.load %arg4[%c0_1648, %c6_1649, %c0_1650, %c0_1651] : memref<1x81x4x96xf32, #tpu.memory_space<vmem>>, vector<1x1x4x88xf32>
    %1483 = vector.shape_cast %1482 : vector<1x1x4x88xf32> to vector<4x88xf32>
    %1484 = vector.shape_cast %1481 : vector<4x88xf32> to vector<1x1x4x88xf32>
    tpu.vector_store %arg4[%c0_1648, %c6_1649, %c0_1650, %c0_1651], %1484 {strides = array<i32>} : memref<1x81x4x96xf32, #tpu.memory_space<vmem>>, vector<1x1x4x88xf32>,
    %1485 = vector.extract_strided_slice %1450 {offsets = [0, 6], sizes = [4, 88], strides = [1, 1]} : vector<4x96xf32> to vector<4x88xf32>
    %cst_1652 = arith.constant 2.500000e-01 : f32
    %1486 = vector.broadcast %cst_1652 : f32 to vector<4x88xf32>
    %1487 = arith.mulf %1485, %1486 : vector<4x88xf32>
    %c0_1653 = arith.constant 0 : index
    %c15 = arith.constant 15 : index
    %c0_1654 = arith.constant 0 : index
    %c0_1655 = arith.constant 0 : index
    %1488 = vector.load %arg4[%c0_1653, %c15, %c0_1654, %c0_1655] : memref<1x81x4x96xf32, #tpu.memory_space<vmem>>, vector<1x1x4x88xf32>
    %1489 = vector.shape_cast %1488 : vector<1x1x4x88xf32> to vector<4x88xf32>
    %1490 = vector.shape_cast %1487 : vector<4x88xf32> to vector<1x1x4x88xf32>
    tpu.vector_store %arg4[%c0_1653, %c15, %c0_1654, %c0_1655], %1490 {strides = array<i32>} : memref<1x81x4x96xf32, #tpu.memory_space<vmem>>, vector<1x1x4x88xf32>,
    %1491 = vector.extract_strided_slice %1454 {offsets = [0, 6], sizes = [4, 88], strides = [1, 1]} : vector<4x96xf32> to vector<4x88xf32>
    %cst_1656 = arith.constant 2.500000e-01 : f32
    %1492 = vector.broadcast %cst_1656 : f32 to vector<4x88xf32>
    %1493 = arith.mulf %1491, %1492 : vector<4x88xf32>
    %c0_1657 = arith.constant 0 : index
    %c24 = arith.constant 24 : index
    %c0_1658 = arith.constant 0 : index
    %c0_1659 = arith.constant 0 : index
    %1494 = vector.load %arg4[%c0_1657, %c24, %c0_1658, %c0_1659] : memref<1x81x4x96xf32, #tpu.memory_space<vmem>>, vector<1x1x4x88xf32>
    %1495 = vector.shape_cast %1494 : vector<1x1x4x88xf32> to vector<4x88xf32>
    %1496 = vector.shape_cast %1493 : vector<4x88xf32> to vector<1x1x4x88xf32>
    tpu.vector_store %arg4[%c0_1657, %c24, %c0_1658, %c0_1659], %1496 {strides = array<i32>} : memref<1x81x4x96xf32, #tpu.memory_space<vmem>>, vector<1x1x4x88xf32>,
    %1497 = vector.extract_strided_slice %1458 {offsets = [0, 6], sizes = [4, 88], strides = [1, 1]} : vector<4x96xf32> to vector<4x88xf32>
    %cst_1660 = arith.constant 2.500000e-01 : f32
    %1498 = vector.broadcast %cst_1660 : f32 to vector<4x88xf32>
    %1499 = arith.mulf %1497, %1498 : vector<4x88xf32>
    %c0_1661 = arith.constant 0 : index
    %c33 = arith.constant 33 : index
    %c0_1662 = arith.constant 0 : index
    %c0_1663 = arith.constant 0 : index
    %1500 = vector.load %arg4[%c0_1661, %c33, %c0_1662, %c0_1663] : memref<1x81x4x96xf32, #tpu.memory_space<vmem>>, vector<1x1x4x88xf32>
    %1501 = vector.shape_cast %1500 : vector<1x1x4x88xf32> to vector<4x88xf32>
    %1502 = vector.shape_cast %1499 : vector<4x88xf32> to vector<1x1x4x88xf32>
    tpu.vector_store %arg4[%c0_1661, %c33, %c0_1662, %c0_1663], %1502 {strides = array<i32>} : memref<1x81x4x96xf32, #tpu.memory_space<vmem>>, vector<1x1x4x88xf32>,
    %1503 = vector.extract_strided_slice %1462 {offsets = [0, 6], sizes = [4, 88], strides = [1, 1]} : vector<4x96xf32> to vector<4x88xf32>
    %cst_1664 = arith.constant 2.500000e-01 : f32
    %1504 = vector.broadcast %cst_1664 : f32 to vector<4x88xf32>
    %1505 = arith.mulf %1503, %1504 : vector<4x88xf32>
    %c0_1665 = arith.constant 0 : index
    %c42 = arith.constant 42 : index
    %c0_1666 = arith.constant 0 : index
    %c0_1667 = arith.constant 0 : index
    %1506 = vector.load %arg4[%c0_1665, %c42, %c0_1666, %c0_1667] : memref<1x81x4x96xf32, #tpu.memory_space<vmem>>, vector<1x1x4x88xf32>
    %1507 = vector.shape_cast %1506 : vector<1x1x4x88xf32> to vector<4x88xf32>
    %1508 = vector.shape_cast %1505 : vector<4x88xf32> to vector<1x1x4x88xf32>
    tpu.vector_store %arg4[%c0_1665, %c42, %c0_1666, %c0_1667], %1508 {strides = array<i32>} : memref<1x81x4x96xf32, #tpu.memory_space<vmem>>, vector<1x1x4x88xf32>,
    %1509 = vector.extract_strided_slice %1466 {offsets = [0, 6], sizes = [4, 88], strides = [1, 1]} : vector<4x96xf32> to vector<4x88xf32>
    %cst_1668 = arith.constant 2.500000e-01 : f32
    %1510 = vector.broadcast %cst_1668 : f32 to vector<4x88xf32>
    %1511 = arith.mulf %1509, %1510 : vector<4x88xf32>
    %c0_1669 = arith.constant 0 : index
    %c51 = arith.constant 51 : index
    %c0_1670 = arith.constant 0 : index
    %c0_1671 = arith.constant 0 : index
    %1512 = vector.load %arg4[%c0_1669, %c51, %c0_1670, %c0_1671] : memref<1x81x4x96xf32, #tpu.memory_space<vmem>>, vector<1x1x4x88xf32>
    %1513 = vector.shape_cast %1512 : vector<1x1x4x88xf32> to vector<4x88xf32>
    %1514 = vector.shape_cast %1511 : vector<4x88xf32> to vector<1x1x4x88xf32>
    tpu.vector_store %arg4[%c0_1669, %c51, %c0_1670, %c0_1671], %1514 {strides = array<i32>} : memref<1x81x4x96xf32, #tpu.memory_space<vmem>>, vector<1x1x4x88xf32>,
    %1515 = vector.extract_strided_slice %1470 {offsets = [0, 6], sizes = [4, 88], strides = [1, 1]} : vector<4x96xf32> to vector<4x88xf32>
    %cst_1672 = arith.constant 2.500000e-01 : f32
    %1516 = vector.broadcast %cst_1672 : f32 to vector<4x88xf32>
    %1517 = arith.mulf %1515, %1516 : vector<4x88xf32>
    %c0_1673 = arith.constant 0 : index
    %c60 = arith.constant 60 : index
    %c0_1674 = arith.constant 0 : index
    %c0_1675 = arith.constant 0 : index
    %1518 = vector.load %arg4[%c0_1673, %c60, %c0_1674, %c0_1675] : memref<1x81x4x96xf32, #tpu.memory_space<vmem>>, vector<1x1x4x88xf32>
    %1519 = vector.shape_cast %1518 : vector<1x1x4x88xf32> to vector<4x88xf32>
    %1520 = vector.shape_cast %1517 : vector<4x88xf32> to vector<1x1x4x88xf32>
    tpu.vector_store %arg4[%c0_1673, %c60, %c0_1674, %c0_1675], %1520 {strides = array<i32>} : memref<1x81x4x96xf32, #tpu.memory_space<vmem>>, vector<1x1x4x88xf32>,
    %1521 = vector.extract_strided_slice %1474 {offsets = [0, 6], sizes = [4, 88], strides = [1, 1]} : vector<4x96xf32> to vector<4x88xf32>
    %cst_1676 = arith.constant 2.500000e-01 : f32
    %1522 = vector.broadcast %cst_1676 : f32 to vector<4x88xf32>
    %1523 = arith.mulf %1521, %1522 : vector<4x88xf32>
    %c0_1677 = arith.constant 0 : index
    %c69 = arith.constant 69 : index
    %c0_1678 = arith.constant 0 : index
    %c0_1679 = arith.constant 0 : index
    %1524 = vector.load %arg4[%c0_1677, %c69, %c0_1678, %c0_1679] : memref<1x81x4x96xf32, #tpu.memory_space<vmem>>, vector<1x1x4x88xf32>
    %1525 = vector.shape_cast %1524 : vector<1x1x4x88xf32> to vector<4x88xf32>
    %1526 = vector.shape_cast %1523 : vector<4x88xf32> to vector<1x1x4x88xf32>
    tpu.vector_store %arg4[%c0_1677, %c69, %c0_1678, %c0_1679], %1526 {strides = array<i32>} : memref<1x81x4x96xf32, #tpu.memory_space<vmem>>, vector<1x1x4x88xf32>,
    %1527 = vector.extract_strided_slice %1478 {offsets = [0, 6], sizes = [4, 88], strides = [1, 1]} : vector<4x96xf32> to vector<4x88xf32>
    %cst_1680 = arith.constant 2.500000e-01 : f32
    %1528 = vector.broadcast %cst_1680 : f32 to vector<4x88xf32>
    %1529 = arith.mulf %1527, %1528 : vector<4x88xf32>
    %c0_1681 = arith.constant 0 : index
    %c78 = arith.constant 78 : index
    %c0_1682 = arith.constant 0 : index
    %c0_1683 = arith.constant 0 : index
    %1530 = vector.load %arg4[%c0_1681, %c78, %c0_1682, %c0_1683] : memref<1x81x4x96xf32, #tpu.memory_space<vmem>>, vector<1x1x4x88xf32>
    %1531 = vector.shape_cast %1530 : vector<1x1x4x88xf32> to vector<4x88xf32>
    %1532 = vector.shape_cast %1529 : vector<4x88xf32> to vector<1x1x4x88xf32>
    tpu.vector_store %arg4[%c0_1681, %c78, %c0_1682, %c0_1683], %1532 {strides = array<i32>} : memref<1x81x4x96xf32, #tpu.memory_space<vmem>>, vector<1x1x4x88xf32>,
    %cst_1684 = arith.constant 0.000000e+00 : f32
    %1533 = vector.broadcast %cst_1684 : f32 to vector<4x96xf32>
    %cst_1685 = arith.constant 0.000000e+00 : f32
    %1534 = vector.broadcast %cst_1685 : f32 to vector<4x96xf32>
    %cst_1686 = arith.constant 0.000000e+00 : f32
    %1535 = vector.broadcast %cst_1686 : f32 to vector<4x96xf32>
    %cst_1687 = arith.constant 0.000000e+00 : f32
    %1536 = vector.broadcast %cst_1687 : f32 to vector<4x96xf32>
    %cst_1688 = arith.constant 0.000000e+00 : f32
    %1537 = vector.broadcast %cst_1688 : f32 to vector<4x96xf32>
    %cst_1689 = arith.constant 0.000000e+00 : f32
    %1538 = vector.broadcast %cst_1689 : f32 to vector<4x96xf32>
    %cst_1690 = arith.constant 0.000000e+00 : f32
    %1539 = vector.broadcast %cst_1690 : f32 to vector<4x96xf32>
    %cst_1691 = arith.constant 0.000000e+00 : f32
    %1540 = vector.broadcast %cst_1691 : f32 to vector<4x96xf32>
    %cst_1692 = arith.constant 0.000000e+00 : f32
    %1541 = vector.broadcast %cst_1692 : f32 to vector<4x96xf32>
    %c0_1693 = arith.constant 0 : index
    %c0_1694 = arith.constant 0 : index
    %c0_1695 = arith.constant 0 : index
    %c0_1696 = arith.constant 0 : index
    %1542 = vector.load %arg2[%c0_1693, %c0_1694, %c0_1695, %c0_1696] : memref<1x4x4x104xf32, #tpu.memory_space<vmem>>, vector<1x1x4x104xf32>
    %1543 = vector.shape_cast %1542 : vector<1x1x4x104xf32> to vector<4x104xf32>
    %1544 = vector.extract_strided_slice %1543 {offsets = [0, 1], sizes = [4, 96], strides = [1, 1]} : vector<4x104xf32> to vector<4x96xf32>
    %c0_1697 = arith.constant 0 : index
    %c0_1698 = arith.constant 0 : index
    %c0_1699 = arith.constant 0 : index
    %c0_1700 = arith.constant 0 : index
    %c0_1701 = arith.constant 0 : index
    %1545 = vector.load %arg3[%c0_1697, %c0_1698, %c0_1699, %c0_1700, %c0_1701] : memref<1x4x9x4x96xf32, #tpu.memory_space<vmem>>, vector<1x1x1x4x96xf32>
    %1546 = vector.shape_cast %1545 : vector<1x1x1x4x96xf32> to vector<4x96xf32>
    %1547 = arith.mulf %1544, %1546 : vector<4x96xf32>
    %1548 = arith.addf %1533, %1547 : vector<4x96xf32>
    %c0_1702 = arith.constant 0 : index
    %c0_1703 = arith.constant 0 : index
    %c1_1704 = arith.constant 1 : index
    %c0_1705 = arith.constant 0 : index
    %c0_1706 = arith.constant 0 : index
    %1549 = vector.load %arg3[%c0_1702, %c0_1703, %c1_1704, %c0_1705, %c0_1706] : memref<1x4x9x4x96xf32, #tpu.memory_space<vmem>>, vector<1x1x1x4x96xf32>
    %1550 = vector.shape_cast %1549 : vector<1x1x1x4x96xf32> to vector<4x96xf32>
    %1551 = arith.mulf %1544, %1550 : vector<4x96xf32>
    %1552 = arith.addf %1534, %1551 : vector<4x96xf32>
    %c0_1707 = arith.constant 0 : index
    %c0_1708 = arith.constant 0 : index
    %c2_1709 = arith.constant 2 : index
    %c0_1710 = arith.constant 0 : index
    %c0_1711 = arith.constant 0 : index
    %1553 = vector.load %arg3[%c0_1707, %c0_1708, %c2_1709, %c0_1710, %c0_1711] : memref<1x4x9x4x96xf32, #tpu.memory_space<vmem>>, vector<1x1x1x4x96xf32>
    %1554 = vector.shape_cast %1553 : vector<1x1x1x4x96xf32> to vector<4x96xf32>
    %1555 = arith.mulf %1544, %1554 : vector<4x96xf32>
    %1556 = arith.addf %1535, %1555 : vector<4x96xf32>
    %c0_1712 = arith.constant 0 : index
    %c0_1713 = arith.constant 0 : index
    %c3_1714 = arith.constant 3 : index
    %c0_1715 = arith.constant 0 : index
    %c0_1716 = arith.constant 0 : index
    %1557 = vector.load %arg3[%c0_1712, %c0_1713, %c3_1714, %c0_1715, %c0_1716] : memref<1x4x9x4x96xf32, #tpu.memory_space<vmem>>, vector<1x1x1x4x96xf32>
    %1558 = vector.shape_cast %1557 : vector<1x1x1x4x96xf32> to vector<4x96xf32>
    %1559 = arith.mulf %1544, %1558 : vector<4x96xf32>
    %1560 = arith.addf %1536, %1559 : vector<4x96xf32>
    %c0_1717 = arith.constant 0 : index
    %c0_1718 = arith.constant 0 : index
    %c4_1719 = arith.constant 4 : index
    %c0_1720 = arith.constant 0 : index
    %c0_1721 = arith.constant 0 : index
    %1561 = vector.load %arg3[%c0_1717, %c0_1718, %c4_1719, %c0_1720, %c0_1721] : memref<1x4x9x4x96xf32, #tpu.memory_space<vmem>>, vector<1x1x1x4x96xf32>
    %1562 = vector.shape_cast %1561 : vector<1x1x1x4x96xf32> to vector<4x96xf32>
    %1563 = arith.mulf %1544, %1562 : vector<4x96xf32>
    %1564 = arith.addf %1537, %1563 : vector<4x96xf32>
    %c0_1722 = arith.constant 0 : index
    %c0_1723 = arith.constant 0 : index
    %c5_1724 = arith.constant 5 : index
    %c0_1725 = arith.constant 0 : index
    %c0_1726 = arith.constant 0 : index
    %1565 = vector.load %arg3[%c0_1722, %c0_1723, %c5_1724, %c0_1725, %c0_1726] : memref<1x4x9x4x96xf32, #tpu.memory_space<vmem>>, vector<1x1x1x4x96xf32>
    %1566 = vector.shape_cast %1565 : vector<1x1x1x4x96xf32> to vector<4x96xf32>
    %1567 = arith.mulf %1544, %1566 : vector<4x96xf32>
    %1568 = arith.addf %1538, %1567 : vector<4x96xf32>
    %c0_1727 = arith.constant 0 : index
    %c0_1728 = arith.constant 0 : index
    %c6_1729 = arith.constant 6 : index
    %c0_1730 = arith.constant 0 : index
    %c0_1731 = arith.constant 0 : index
    %1569 = vector.load %arg3[%c0_1727, %c0_1728, %c6_1729, %c0_1730, %c0_1731] : memref<1x4x9x4x96xf32, #tpu.memory_space<vmem>>, vector<1x1x1x4x96xf32>
    %1570 = vector.shape_cast %1569 : vector<1x1x1x4x96xf32> to vector<4x96xf32>
    %1571 = arith.mulf %1544, %1570 : vector<4x96xf32>
    %1572 = arith.addf %1539, %1571 : vector<4x96xf32>
    %c0_1732 = arith.constant 0 : index
    %c0_1733 = arith.constant 0 : index
    %c7_1734 = arith.constant 7 : index
    %c0_1735 = arith.constant 0 : index
    %c0_1736 = arith.constant 0 : index
    %1573 = vector.load %arg3[%c0_1732, %c0_1733, %c7_1734, %c0_1735, %c0_1736] : memref<1x4x9x4x96xf32, #tpu.memory_space<vmem>>, vector<1x1x1x4x96xf32>
    %1574 = vector.shape_cast %1573 : vector<1x1x1x4x96xf32> to vector<4x96xf32>
    %1575 = arith.mulf %1544, %1574 : vector<4x96xf32>
    %1576 = arith.addf %1540, %1575 : vector<4x96xf32>
    %c0_1737 = arith.constant 0 : index
    %c0_1738 = arith.constant 0 : index
    %c8_1739 = arith.constant 8 : index
    %c0_1740 = arith.constant 0 : index
    %c0_1741 = arith.constant 0 : index
    %1577 = vector.load %arg3[%c0_1737, %c0_1738, %c8_1739, %c0_1740, %c0_1741] : memref<1x4x9x4x96xf32, #tpu.memory_space<vmem>>, vector<1x1x1x4x96xf32>
    %1578 = vector.shape_cast %1577 : vector<1x1x1x4x96xf32> to vector<4x96xf32>
    %1579 = arith.mulf %1544, %1578 : vector<4x96xf32>
    %1580 = arith.addf %1541, %1579 : vector<4x96xf32>
    %c0_1742 = arith.constant 0 : index
    %c1_1743 = arith.constant 1 : index
    %c0_1744 = arith.constant 0 : index
    %c0_1745 = arith.constant 0 : index
    %1581 = vector.load %arg2[%c0_1742, %c1_1743, %c0_1744, %c0_1745] : memref<1x4x4x104xf32, #tpu.memory_space<vmem>>, vector<1x1x4x104xf32>
    %1582 = vector.shape_cast %1581 : vector<1x1x4x104xf32> to vector<4x104xf32>
    %1583 = vector.extract_strided_slice %1582 {offsets = [0, 1], sizes = [4, 96], strides = [1, 1]} : vector<4x104xf32> to vector<4x96xf32>
    %c0_1746 = arith.constant 0 : index
    %c1_1747 = arith.constant 1 : index
    %c0_1748 = arith.constant 0 : index
    %c0_1749 = arith.constant 0 : index
    %c0_1750 = arith.constant 0 : index
    %1584 = vector.load %arg3[%c0_1746, %c1_1747, %c0_1748, %c0_1749, %c0_1750] : memref<1x4x9x4x96xf32, #tpu.memory_space<vmem>>, vector<1x1x1x4x96xf32>
    %1585 = vector.shape_cast %1584 : vector<1x1x1x4x96xf32> to vector<4x96xf32>
    %1586 = arith.mulf %1583, %1585 : vector<4x96xf32>
    %1587 = arith.addf %1548, %1586 : vector<4x96xf32>
    %c0_1751 = arith.constant 0 : index
    %c1_1752 = arith.constant 1 : index
    %c1_1753 = arith.constant 1 : index
    %c0_1754 = arith.constant 0 : index
    %c0_1755 = arith.constant 0 : index
    %1588 = vector.load %arg3[%c0_1751, %c1_1752, %c1_1753, %c0_1754, %c0_1755] : memref<1x4x9x4x96xf32, #tpu.memory_space<vmem>>, vector<1x1x1x4x96xf32>
    %1589 = vector.shape_cast %1588 : vector<1x1x1x4x96xf32> to vector<4x96xf32>
    %1590 = arith.mulf %1583, %1589 : vector<4x96xf32>
    %1591 = arith.addf %1552, %1590 : vector<4x96xf32>
    %c0_1756 = arith.constant 0 : index
    %c1_1757 = arith.constant 1 : index
    %c2_1758 = arith.constant 2 : index
    %c0_1759 = arith.constant 0 : index
    %c0_1760 = arith.constant 0 : index
    %1592 = vector.load %arg3[%c0_1756, %c1_1757, %c2_1758, %c0_1759, %c0_1760] : memref<1x4x9x4x96xf32, #tpu.memory_space<vmem>>, vector<1x1x1x4x96xf32>
    %1593 = vector.shape_cast %1592 : vector<1x1x1x4x96xf32> to vector<4x96xf32>
    %1594 = arith.mulf %1583, %1593 : vector<4x96xf32>
    %1595 = arith.addf %1556, %1594 : vector<4x96xf32>
    %c0_1761 = arith.constant 0 : index
    %c1_1762 = arith.constant 1 : index
    %c3_1763 = arith.constant 3 : index
    %c0_1764 = arith.constant 0 : index
    %c0_1765 = arith.constant 0 : index
    %1596 = vector.load %arg3[%c0_1761, %c1_1762, %c3_1763, %c0_1764, %c0_1765] : memref<1x4x9x4x96xf32, #tpu.memory_space<vmem>>, vector<1x1x1x4x96xf32>
    %1597 = vector.shape_cast %1596 : vector<1x1x1x4x96xf32> to vector<4x96xf32>
    %1598 = arith.mulf %1583, %1597 : vector<4x96xf32>
    %1599 = arith.addf %1560, %1598 : vector<4x96xf32>
    %c0_1766 = arith.constant 0 : index
    %c1_1767 = arith.constant 1 : index
    %c4_1768 = arith.constant 4 : index
    %c0_1769 = arith.constant 0 : index
    %c0_1770 = arith.constant 0 : index
    %1600 = vector.load %arg3[%c0_1766, %c1_1767, %c4_1768, %c0_1769, %c0_1770] : memref<1x4x9x4x96xf32, #tpu.memory_space<vmem>>, vector<1x1x1x4x96xf32>
    %1601 = vector.shape_cast %1600 : vector<1x1x1x4x96xf32> to vector<4x96xf32>
    %1602 = arith.mulf %1583, %1601 : vector<4x96xf32>
    %1603 = arith.addf %1564, %1602 : vector<4x96xf32>
    %c0_1771 = arith.constant 0 : index
    %c1_1772 = arith.constant 1 : index
    %c5_1773 = arith.constant 5 : index
    %c0_1774 = arith.constant 0 : index
    %c0_1775 = arith.constant 0 : index
    %1604 = vector.load %arg3[%c0_1771, %c1_1772, %c5_1773, %c0_1774, %c0_1775] : memref<1x4x9x4x96xf32, #tpu.memory_space<vmem>>, vector<1x1x1x4x96xf32>
    %1605 = vector.shape_cast %1604 : vector<1x1x1x4x96xf32> to vector<4x96xf32>
    %1606 = arith.mulf %1583, %1605 : vector<4x96xf32>
    %1607 = arith.addf %1568, %1606 : vector<4x96xf32>
    %c0_1776 = arith.constant 0 : index
    %c1_1777 = arith.constant 1 : index
    %c6_1778 = arith.constant 6 : index
    %c0_1779 = arith.constant 0 : index
    %c0_1780 = arith.constant 0 : index
    %1608 = vector.load %arg3[%c0_1776, %c1_1777, %c6_1778, %c0_1779, %c0_1780] : memref<1x4x9x4x96xf32, #tpu.memory_space<vmem>>, vector<1x1x1x4x96xf32>
    %1609 = vector.shape_cast %1608 : vector<1x1x1x4x96xf32> to vector<4x96xf32>
    %1610 = arith.mulf %1583, %1609 : vector<4x96xf32>
    %1611 = arith.addf %1572, %1610 : vector<4x96xf32>
    %c0_1781 = arith.constant 0 : index
    %c1_1782 = arith.constant 1 : index
    %c7_1783 = arith.constant 7 : index
    %c0_1784 = arith.constant 0 : index
    %c0_1785 = arith.constant 0 : index
    %1612 = vector.load %arg3[%c0_1781, %c1_1782, %c7_1783, %c0_1784, %c0_1785] : memref<1x4x9x4x96xf32, #tpu.memory_space<vmem>>, vector<1x1x1x4x96xf32>
    %1613 = vector.shape_cast %1612 : vector<1x1x1x4x96xf32> to vector<4x96xf32>
    %1614 = arith.mulf %1583, %1613 : vector<4x96xf32>
    %1615 = arith.addf %1576, %1614 : vector<4x96xf32>
    %c0_1786 = arith.constant 0 : index
    %c1_1787 = arith.constant 1 : index
    %c8_1788 = arith.constant 8 : index
    %c0_1789 = arith.constant 0 : index
    %c0_1790 = arith.constant 0 : index
    %1616 = vector.load %arg3[%c0_1786, %c1_1787, %c8_1788, %c0_1789, %c0_1790] : memref<1x4x9x4x96xf32, #tpu.memory_space<vmem>>, vector<1x1x1x4x96xf32>
    %1617 = vector.shape_cast %1616 : vector<1x1x1x4x96xf32> to vector<4x96xf32>
    %1618 = arith.mulf %1583, %1617 : vector<4x96xf32>
    %1619 = arith.addf %1580, %1618 : vector<4x96xf32>
    %c0_1791 = arith.constant 0 : index
    %c2_1792 = arith.constant 2 : index
    %c0_1793 = arith.constant 0 : index
    %c0_1794 = arith.constant 0 : index
    %1620 = vector.load %arg2[%c0_1791, %c2_1792, %c0_1793, %c0_1794] : memref<1x4x4x104xf32, #tpu.memory_space<vmem>>, vector<1x1x4x104xf32>
    %1621 = vector.shape_cast %1620 : vector<1x1x4x104xf32> to vector<4x104xf32>
    %1622 = vector.extract_strided_slice %1621 {offsets = [0, 1], sizes = [4, 96], strides = [1, 1]} : vector<4x104xf32> to vector<4x96xf32>
    %c0_1795 = arith.constant 0 : index
    %c2_1796 = arith.constant 2 : index
    %c0_1797 = arith.constant 0 : index
    %c0_1798 = arith.constant 0 : index
    %c0_1799 = arith.constant 0 : index
    %1623 = vector.load %arg3[%c0_1795, %c2_1796, %c0_1797, %c0_1798, %c0_1799] : memref<1x4x9x4x96xf32, #tpu.memory_space<vmem>>, vector<1x1x1x4x96xf32>
    %1624 = vector.shape_cast %1623 : vector<1x1x1x4x96xf32> to vector<4x96xf32>
    %1625 = arith.mulf %1622, %1624 : vector<4x96xf32>
    %1626 = arith.addf %1587, %1625 : vector<4x96xf32>
    %c0_1800 = arith.constant 0 : index
    %c2_1801 = arith.constant 2 : index
    %c1_1802 = arith.constant 1 : index
    %c0_1803 = arith.constant 0 : index
    %c0_1804 = arith.constant 0 : index
    %1627 = vector.load %arg3[%c0_1800, %c2_1801, %c1_1802, %c0_1803, %c0_1804] : memref<1x4x9x4x96xf32, #tpu.memory_space<vmem>>, vector<1x1x1x4x96xf32>
    %1628 = vector.shape_cast %1627 : vector<1x1x1x4x96xf32> to vector<4x96xf32>
    %1629 = arith.mulf %1622, %1628 : vector<4x96xf32>
    %1630 = arith.addf %1591, %1629 : vector<4x96xf32>
    %c0_1805 = arith.constant 0 : index
    %c2_1806 = arith.constant 2 : index
    %c2_1807 = arith.constant 2 : index
    %c0_1808 = arith.constant 0 : index
    %c0_1809 = arith.constant 0 : index
    %1631 = vector.load %arg3[%c0_1805, %c2_1806, %c2_1807, %c0_1808, %c0_1809] : memref<1x4x9x4x96xf32, #tpu.memory_space<vmem>>, vector<1x1x1x4x96xf32>
    %1632 = vector.shape_cast %1631 : vector<1x1x1x4x96xf32> to vector<4x96xf32>
    %1633 = arith.mulf %1622, %1632 : vector<4x96xf32>
    %1634 = arith.addf %1595, %1633 : vector<4x96xf32>
    %c0_1810 = arith.constant 0 : index
    %c2_1811 = arith.constant 2 : index
    %c3_1812 = arith.constant 3 : index
    %c0_1813 = arith.constant 0 : index
    %c0_1814 = arith.constant 0 : index
    %1635 = vector.load %arg3[%c0_1810, %c2_1811, %c3_1812, %c0_1813, %c0_1814] : memref<1x4x9x4x96xf32, #tpu.memory_space<vmem>>, vector<1x1x1x4x96xf32>
    %1636 = vector.shape_cast %1635 : vector<1x1x1x4x96xf32> to vector<4x96xf32>
    %1637 = arith.mulf %1622, %1636 : vector<4x96xf32>
    %1638 = arith.addf %1599, %1637 : vector<4x96xf32>
    %c0_1815 = arith.constant 0 : index
    %c2_1816 = arith.constant 2 : index
    %c4_1817 = arith.constant 4 : index
    %c0_1818 = arith.constant 0 : index
    %c0_1819 = arith.constant 0 : index
    %1639 = vector.load %arg3[%c0_1815, %c2_1816, %c4_1817, %c0_1818, %c0_1819] : memref<1x4x9x4x96xf32, #tpu.memory_space<vmem>>, vector<1x1x1x4x96xf32>
    %1640 = vector.shape_cast %1639 : vector<1x1x1x4x96xf32> to vector<4x96xf32>
    %1641 = arith.mulf %1622, %1640 : vector<4x96xf32>
    %1642 = arith.addf %1603, %1641 : vector<4x96xf32>
    %c0_1820 = arith.constant 0 : index
    %c2_1821 = arith.constant 2 : index
    %c5_1822 = arith.constant 5 : index
    %c0_1823 = arith.constant 0 : index
    %c0_1824 = arith.constant 0 : index
    %1643 = vector.load %arg3[%c0_1820, %c2_1821, %c5_1822, %c0_1823, %c0_1824] : memref<1x4x9x4x96xf32, #tpu.memory_space<vmem>>, vector<1x1x1x4x96xf32>
    %1644 = vector.shape_cast %1643 : vector<1x1x1x4x96xf32> to vector<4x96xf32>
    %1645 = arith.mulf %1622, %1644 : vector<4x96xf32>
    %1646 = arith.addf %1607, %1645 : vector<4x96xf32>
    %c0_1825 = arith.constant 0 : index
    %c2_1826 = arith.constant 2 : index
    %c6_1827 = arith.constant 6 : index
    %c0_1828 = arith.constant 0 : index
    %c0_1829 = arith.constant 0 : index
    %1647 = vector.load %arg3[%c0_1825, %c2_1826, %c6_1827, %c0_1828, %c0_1829] : memref<1x4x9x4x96xf32, #tpu.memory_space<vmem>>, vector<1x1x1x4x96xf32>
    %1648 = vector.shape_cast %1647 : vector<1x1x1x4x96xf32> to vector<4x96xf32>
    %1649 = arith.mulf %1622, %1648 : vector<4x96xf32>
    %1650 = arith.addf %1611, %1649 : vector<4x96xf32>
    %c0_1830 = arith.constant 0 : index
    %c2_1831 = arith.constant 2 : index
    %c7_1832 = arith.constant 7 : index
    %c0_1833 = arith.constant 0 : index
    %c0_1834 = arith.constant 0 : index
    %1651 = vector.load %arg3[%c0_1830, %c2_1831, %c7_1832, %c0_1833, %c0_1834] : memref<1x4x9x4x96xf32, #tpu.memory_space<vmem>>, vector<1x1x1x4x96xf32>
    %1652 = vector.shape_cast %1651 : vector<1x1x1x4x96xf32> to vector<4x96xf32>
    %1653 = arith.mulf %1622, %1652 : vector<4x96xf32>
    %1654 = arith.addf %1615, %1653 : vector<4x96xf32>
    %c0_1835 = arith.constant 0 : index
    %c2_1836 = arith.constant 2 : index
    %c8_1837 = arith.constant 8 : index
    %c0_1838 = arith.constant 0 : index
    %c0_1839 = arith.constant 0 : index
    %1655 = vector.load %arg3[%c0_1835, %c2_1836, %c8_1837, %c0_1838, %c0_1839] : memref<1x4x9x4x96xf32, #tpu.memory_space<vmem>>, vector<1x1x1x4x96xf32>
    %1656 = vector.shape_cast %1655 : vector<1x1x1x4x96xf32> to vector<4x96xf32>
    %1657 = arith.mulf %1622, %1656 : vector<4x96xf32>
    %1658 = arith.addf %1619, %1657 : vector<4x96xf32>
    %c0_1840 = arith.constant 0 : index
    %c3_1841 = arith.constant 3 : index
    %c0_1842 = arith.constant 0 : index
    %c0_1843 = arith.constant 0 : index
    %1659 = vector.load %arg2[%c0_1840, %c3_1841, %c0_1842, %c0_1843] : memref<1x4x4x104xf32, #tpu.memory_space<vmem>>, vector<1x1x4x104xf32>
    %1660 = vector.shape_cast %1659 : vector<1x1x4x104xf32> to vector<4x104xf32>
    %1661 = vector.extract_strided_slice %1660 {offsets = [0, 1], sizes = [4, 96], strides = [1, 1]} : vector<4x104xf32> to vector<4x96xf32>
    %c0_1844 = arith.constant 0 : index
    %c3_1845 = arith.constant 3 : index
    %c0_1846 = arith.constant 0 : index
    %c0_1847 = arith.constant 0 : index
    %c0_1848 = arith.constant 0 : index
    %1662 = vector.load %arg3[%c0_1844, %c3_1845, %c0_1846, %c0_1847, %c0_1848] : memref<1x4x9x4x96xf32, #tpu.memory_space<vmem>>, vector<1x1x1x4x96xf32>
    %1663 = vector.shape_cast %1662 : vector<1x1x1x4x96xf32> to vector<4x96xf32>
    %1664 = arith.mulf %1661, %1663 : vector<4x96xf32>
    %1665 = arith.addf %1626, %1664 : vector<4x96xf32>
    %c0_1849 = arith.constant 0 : index
    %c3_1850 = arith.constant 3 : index
    %c1_1851 = arith.constant 1 : index
    %c0_1852 = arith.constant 0 : index
    %c0_1853 = arith.constant 0 : index
    %1666 = vector.load %arg3[%c0_1849, %c3_1850, %c1_1851, %c0_1852, %c0_1853] : memref<1x4x9x4x96xf32, #tpu.memory_space<vmem>>, vector<1x1x1x4x96xf32>
    %1667 = vector.shape_cast %1666 : vector<1x1x1x4x96xf32> to vector<4x96xf32>
    %1668 = arith.mulf %1661, %1667 : vector<4x96xf32>
    %1669 = arith.addf %1630, %1668 : vector<4x96xf32>
    %c0_1854 = arith.constant 0 : index
    %c3_1855 = arith.constant 3 : index
    %c2_1856 = arith.constant 2 : index
    %c0_1857 = arith.constant 0 : index
    %c0_1858 = arith.constant 0 : index
    %1670 = vector.load %arg3[%c0_1854, %c3_1855, %c2_1856, %c0_1857, %c0_1858] : memref<1x4x9x4x96xf32, #tpu.memory_space<vmem>>, vector<1x1x1x4x96xf32>
    %1671 = vector.shape_cast %1670 : vector<1x1x1x4x96xf32> to vector<4x96xf32>
    %1672 = arith.mulf %1661, %1671 : vector<4x96xf32>
    %1673 = arith.addf %1634, %1672 : vector<4x96xf32>
    %c0_1859 = arith.constant 0 : index
    %c3_1860 = arith.constant 3 : index
    %c3_1861 = arith.constant 3 : index
    %c0_1862 = arith.constant 0 : index
    %c0_1863 = arith.constant 0 : index
    %1674 = vector.load %arg3[%c0_1859, %c3_1860, %c3_1861, %c0_1862, %c0_1863] : memref<1x4x9x4x96xf32, #tpu.memory_space<vmem>>, vector<1x1x1x4x96xf32>
    %1675 = vector.shape_cast %1674 : vector<1x1x1x4x96xf32> to vector<4x96xf32>
    %1676 = arith.mulf %1661, %1675 : vector<4x96xf32>
    %1677 = arith.addf %1638, %1676 : vector<4x96xf32>
    %c0_1864 = arith.constant 0 : index
    %c3_1865 = arith.constant 3 : index
    %c4_1866 = arith.constant 4 : index
    %c0_1867 = arith.constant 0 : index
    %c0_1868 = arith.constant 0 : index
    %1678 = vector.load %arg3[%c0_1864, %c3_1865, %c4_1866, %c0_1867, %c0_1868] : memref<1x4x9x4x96xf32, #tpu.memory_space<vmem>>, vector<1x1x1x4x96xf32>
    %1679 = vector.shape_cast %1678 : vector<1x1x1x4x96xf32> to vector<4x96xf32>
    %1680 = arith.mulf %1661, %1679 : vector<4x96xf32>
    %1681 = arith.addf %1642, %1680 : vector<4x96xf32>
    %c0_1869 = arith.constant 0 : index
    %c3_1870 = arith.constant 3 : index
    %c5_1871 = arith.constant 5 : index
    %c0_1872 = arith.constant 0 : index
    %c0_1873 = arith.constant 0 : index
    %1682 = vector.load %arg3[%c0_1869, %c3_1870, %c5_1871, %c0_1872, %c0_1873] : memref<1x4x9x4x96xf32, #tpu.memory_space<vmem>>, vector<1x1x1x4x96xf32>
    %1683 = vector.shape_cast %1682 : vector<1x1x1x4x96xf32> to vector<4x96xf32>
    %1684 = arith.mulf %1661, %1683 : vector<4x96xf32>
    %1685 = arith.addf %1646, %1684 : vector<4x96xf32>
    %c0_1874 = arith.constant 0 : index
    %c3_1875 = arith.constant 3 : index
    %c6_1876 = arith.constant 6 : index
    %c0_1877 = arith.constant 0 : index
    %c0_1878 = arith.constant 0 : index
    %1686 = vector.load %arg3[%c0_1874, %c3_1875, %c6_1876, %c0_1877, %c0_1878] : memref<1x4x9x4x96xf32, #tpu.memory_space<vmem>>, vector<1x1x1x4x96xf32>
    %1687 = vector.shape_cast %1686 : vector<1x1x1x4x96xf32> to vector<4x96xf32>
    %1688 = arith.mulf %1661, %1687 : vector<4x96xf32>
    %1689 = arith.addf %1650, %1688 : vector<4x96xf32>
    %c0_1879 = arith.constant 0 : index
    %c3_1880 = arith.constant 3 : index
    %c7_1881 = arith.constant 7 : index
    %c0_1882 = arith.constant 0 : index
    %c0_1883 = arith.constant 0 : index
    %1690 = vector.load %arg3[%c0_1879, %c3_1880, %c7_1881, %c0_1882, %c0_1883] : memref<1x4x9x4x96xf32, #tpu.memory_space<vmem>>, vector<1x1x1x4x96xf32>
    %1691 = vector.shape_cast %1690 : vector<1x1x1x4x96xf32> to vector<4x96xf32>
    %1692 = arith.mulf %1661, %1691 : vector<4x96xf32>
    %1693 = arith.addf %1654, %1692 : vector<4x96xf32>
    %c0_1884 = arith.constant 0 : index
    %c3_1885 = arith.constant 3 : index
    %c8_1886 = arith.constant 8 : index
    %c0_1887 = arith.constant 0 : index
    %c0_1888 = arith.constant 0 : index
    %1694 = vector.load %arg3[%c0_1884, %c3_1885, %c8_1886, %c0_1887, %c0_1888] : memref<1x4x9x4x96xf32, #tpu.memory_space<vmem>>, vector<1x1x1x4x96xf32>
    %1695 = vector.shape_cast %1694 : vector<1x1x1x4x96xf32> to vector<4x96xf32>
    %1696 = arith.mulf %1661, %1695 : vector<4x96xf32>
    %1697 = arith.addf %1658, %1696 : vector<4x96xf32>
    %1698 = vector.extract_strided_slice %1665 {offsets = [0, 7], sizes = [4, 88], strides = [1, 1]} : vector<4x96xf32> to vector<4x88xf32>
    %cst_1889 = arith.constant 2.500000e-01 : f32
    %1699 = vector.broadcast %cst_1889 : f32 to vector<4x88xf32>
    %1700 = arith.mulf %1698, %1699 : vector<4x88xf32>
    %c0_1890 = arith.constant 0 : index
    %c7_1891 = arith.constant 7 : index
    %c0_1892 = arith.constant 0 : index
    %c0_1893 = arith.constant 0 : index
    %1701 = vector.load %arg4[%c0_1890, %c7_1891, %c0_1892, %c0_1893] : memref<1x81x4x96xf32, #tpu.memory_space<vmem>>, vector<1x1x4x88xf32>
    %1702 = vector.shape_cast %1701 : vector<1x1x4x88xf32> to vector<4x88xf32>
    %1703 = vector.shape_cast %1700 : vector<4x88xf32> to vector<1x1x4x88xf32>
    tpu.vector_store %arg4[%c0_1890, %c7_1891, %c0_1892, %c0_1893], %1703 {strides = array<i32>} : memref<1x81x4x96xf32, #tpu.memory_space<vmem>>, vector<1x1x4x88xf32>,
    %1704 = vector.extract_strided_slice %1669 {offsets = [0, 7], sizes = [4, 88], strides = [1, 1]} : vector<4x96xf32> to vector<4x88xf32>
    %cst_1894 = arith.constant 2.500000e-01 : f32
    %1705 = vector.broadcast %cst_1894 : f32 to vector<4x88xf32>
    %1706 = arith.mulf %1704, %1705 : vector<4x88xf32>
    %c0_1895 = arith.constant 0 : index
    %c16 = arith.constant 16 : index
    %c0_1896 = arith.constant 0 : index
    %c0_1897 = arith.constant 0 : index
    %1707 = vector.load %arg4[%c0_1895, %c16, %c0_1896, %c0_1897] : memref<1x81x4x96xf32, #tpu.memory_space<vmem>>, vector<1x1x4x88xf32>
    %1708 = vector.shape_cast %1707 : vector<1x1x4x88xf32> to vector<4x88xf32>
    %1709 = vector.shape_cast %1706 : vector<4x88xf32> to vector<1x1x4x88xf32>
    tpu.vector_store %arg4[%c0_1895, %c16, %c0_1896, %c0_1897], %1709 {strides = array<i32>} : memref<1x81x4x96xf32, #tpu.memory_space<vmem>>, vector<1x1x4x88xf32>,
    %1710 = vector.extract_strided_slice %1673 {offsets = [0, 7], sizes = [4, 88], strides = [1, 1]} : vector<4x96xf32> to vector<4x88xf32>
    %cst_1898 = arith.constant 2.500000e-01 : f32
    %1711 = vector.broadcast %cst_1898 : f32 to vector<4x88xf32>
    %1712 = arith.mulf %1710, %1711 : vector<4x88xf32>
    %c0_1899 = arith.constant 0 : index
    %c25 = arith.constant 25 : index
    %c0_1900 = arith.constant 0 : index
    %c0_1901 = arith.constant 0 : index
    %1713 = vector.load %arg4[%c0_1899, %c25, %c0_1900, %c0_1901] : memref<1x81x4x96xf32, #tpu.memory_space<vmem>>, vector<1x1x4x88xf32>
    %1714 = vector.shape_cast %1713 : vector<1x1x4x88xf32> to vector<4x88xf32>
    %1715 = vector.shape_cast %1712 : vector<4x88xf32> to vector<1x1x4x88xf32>
    tpu.vector_store %arg4[%c0_1899, %c25, %c0_1900, %c0_1901], %1715 {strides = array<i32>} : memref<1x81x4x96xf32, #tpu.memory_space<vmem>>, vector<1x1x4x88xf32>,
    %1716 = vector.extract_strided_slice %1677 {offsets = [0, 7], sizes = [4, 88], strides = [1, 1]} : vector<4x96xf32> to vector<4x88xf32>
    %cst_1902 = arith.constant 2.500000e-01 : f32
    %1717 = vector.broadcast %cst_1902 : f32 to vector<4x88xf32>
    %1718 = arith.mulf %1716, %1717 : vector<4x88xf32>
    %c0_1903 = arith.constant 0 : index
    %c34 = arith.constant 34 : index
    %c0_1904 = arith.constant 0 : index
    %c0_1905 = arith.constant 0 : index
    %1719 = vector.load %arg4[%c0_1903, %c34, %c0_1904, %c0_1905] : memref<1x81x4x96xf32, #tpu.memory_space<vmem>>, vector<1x1x4x88xf32>
    %1720 = vector.shape_cast %1719 : vector<1x1x4x88xf32> to vector<4x88xf32>
    %1721 = vector.shape_cast %1718 : vector<4x88xf32> to vector<1x1x4x88xf32>
    tpu.vector_store %arg4[%c0_1903, %c34, %c0_1904, %c0_1905], %1721 {strides = array<i32>} : memref<1x81x4x96xf32, #tpu.memory_space<vmem>>, vector<1x1x4x88xf32>,
    %1722 = vector.extract_strided_slice %1681 {offsets = [0, 7], sizes = [4, 88], strides = [1, 1]} : vector<4x96xf32> to vector<4x88xf32>
    %cst_1906 = arith.constant 2.500000e-01 : f32
    %1723 = vector.broadcast %cst_1906 : f32 to vector<4x88xf32>
    %1724 = arith.mulf %1722, %1723 : vector<4x88xf32>
    %c0_1907 = arith.constant 0 : index
    %c43 = arith.constant 43 : index
    %c0_1908 = arith.constant 0 : index
    %c0_1909 = arith.constant 0 : index
    %1725 = vector.load %arg4[%c0_1907, %c43, %c0_1908, %c0_1909] : memref<1x81x4x96xf32, #tpu.memory_space<vmem>>, vector<1x1x4x88xf32>
    %1726 = vector.shape_cast %1725 : vector<1x1x4x88xf32> to vector<4x88xf32>
    %1727 = vector.shape_cast %1724 : vector<4x88xf32> to vector<1x1x4x88xf32>
    tpu.vector_store %arg4[%c0_1907, %c43, %c0_1908, %c0_1909], %1727 {strides = array<i32>} : memref<1x81x4x96xf32, #tpu.memory_space<vmem>>, vector<1x1x4x88xf32>,
    %1728 = vector.extract_strided_slice %1685 {offsets = [0, 7], sizes = [4, 88], strides = [1, 1]} : vector<4x96xf32> to vector<4x88xf32>
    %cst_1910 = arith.constant 2.500000e-01 : f32
    %1729 = vector.broadcast %cst_1910 : f32 to vector<4x88xf32>
    %1730 = arith.mulf %1728, %1729 : vector<4x88xf32>
    %c0_1911 = arith.constant 0 : index
    %c52 = arith.constant 52 : index
    %c0_1912 = arith.constant 0 : index
    %c0_1913 = arith.constant 0 : index
    %1731 = vector.load %arg4[%c0_1911, %c52, %c0_1912, %c0_1913] : memref<1x81x4x96xf32, #tpu.memory_space<vmem>>, vector<1x1x4x88xf32>
    %1732 = vector.shape_cast %1731 : vector<1x1x4x88xf32> to vector<4x88xf32>
    %1733 = vector.shape_cast %1730 : vector<4x88xf32> to vector<1x1x4x88xf32>
    tpu.vector_store %arg4[%c0_1911, %c52, %c0_1912, %c0_1913], %1733 {strides = array<i32>} : memref<1x81x4x96xf32, #tpu.memory_space<vmem>>, vector<1x1x4x88xf32>,
    %1734 = vector.extract_strided_slice %1689 {offsets = [0, 7], sizes = [4, 88], strides = [1, 1]} : vector<4x96xf32> to vector<4x88xf32>
    %cst_1914 = arith.constant 2.500000e-01 : f32
    %1735 = vector.broadcast %cst_1914 : f32 to vector<4x88xf32>
    %1736 = arith.mulf %1734, %1735 : vector<4x88xf32>
    %c0_1915 = arith.constant 0 : index
    %c61 = arith.constant 61 : index
    %c0_1916 = arith.constant 0 : index
    %c0_1917 = arith.constant 0 : index
    %1737 = vector.load %arg4[%c0_1915, %c61, %c0_1916, %c0_1917] : memref<1x81x4x96xf32, #tpu.memory_space<vmem>>, vector<1x1x4x88xf32>
    %1738 = vector.shape_cast %1737 : vector<1x1x4x88xf32> to vector<4x88xf32>
    %1739 = vector.shape_cast %1736 : vector<4x88xf32> to vector<1x1x4x88xf32>
    tpu.vector_store %arg4[%c0_1915, %c61, %c0_1916, %c0_1917], %1739 {strides = array<i32>} : memref<1x81x4x96xf32, #tpu.memory_space<vmem>>, vector<1x1x4x88xf32>,
    %1740 = vector.extract_strided_slice %1693 {offsets = [0, 7], sizes = [4, 88], strides = [1, 1]} : vector<4x96xf32> to vector<4x88xf32>
    %cst_1918 = arith.constant 2.500000e-01 : f32
    %1741 = vector.broadcast %cst_1918 : f32 to vector<4x88xf32>
    %1742 = arith.mulf %1740, %1741 : vector<4x88xf32>
    %c0_1919 = arith.constant 0 : index
    %c70 = arith.constant 70 : index
    %c0_1920 = arith.constant 0 : index
    %c0_1921 = arith.constant 0 : index
    %1743 = vector.load %arg4[%c0_1919, %c70, %c0_1920, %c0_1921] : memref<1x81x4x96xf32, #tpu.memory_space<vmem>>, vector<1x1x4x88xf32>
    %1744 = vector.shape_cast %1743 : vector<1x1x4x88xf32> to vector<4x88xf32>
    %1745 = vector.shape_cast %1742 : vector<4x88xf32> to vector<1x1x4x88xf32>
    tpu.vector_store %arg4[%c0_1919, %c70, %c0_1920, %c0_1921], %1745 {strides = array<i32>} : memref<1x81x4x96xf32, #tpu.memory_space<vmem>>, vector<1x1x4x88xf32>,
    %1746 = vector.extract_strided_slice %1697 {offsets = [0, 7], sizes = [4, 88], strides = [1, 1]} : vector<4x96xf32> to vector<4x88xf32>
    %cst_1922 = arith.constant 2.500000e-01 : f32
    %1747 = vector.broadcast %cst_1922 : f32 to vector<4x88xf32>
    %1748 = arith.mulf %1746, %1747 : vector<4x88xf32>
    %c0_1923 = arith.constant 0 : index
    %c79 = arith.constant 79 : index
    %c0_1924 = arith.constant 0 : index
    %c0_1925 = arith.constant 0 : index
    %1749 = vector.load %arg4[%c0_1923, %c79, %c0_1924, %c0_1925] : memref<1x81x4x96xf32, #tpu.memory_space<vmem>>, vector<1x1x4x88xf32>
    %1750 = vector.shape_cast %1749 : vector<1x1x4x88xf32> to vector<4x88xf32>
    %1751 = vector.shape_cast %1748 : vector<4x88xf32> to vector<1x1x4x88xf32>
    tpu.vector_store %arg4[%c0_1923, %c79, %c0_1924, %c0_1925], %1751 {strides = array<i32>} : memref<1x81x4x96xf32, #tpu.memory_space<vmem>>, vector<1x1x4x88xf32>,
    %cst_1926 = arith.constant 0.000000e+00 : f32
    %1752 = vector.broadcast %cst_1926 : f32 to vector<4x96xf32>
    %cst_1927 = arith.constant 0.000000e+00 : f32
    %1753 = vector.broadcast %cst_1927 : f32 to vector<4x96xf32>
    %cst_1928 = arith.constant 0.000000e+00 : f32
    %1754 = vector.broadcast %cst_1928 : f32 to vector<4x96xf32>
    %cst_1929 = arith.constant 0.000000e+00 : f32
    %1755 = vector.broadcast %cst_1929 : f32 to vector<4x96xf32>
    %cst_1930 = arith.constant 0.000000e+00 : f32
    %1756 = vector.broadcast %cst_1930 : f32 to vector<4x96xf32>
    %cst_1931 = arith.constant 0.000000e+00 : f32
    %1757 = vector.broadcast %cst_1931 : f32 to vector<4x96xf32>
    %cst_1932 = arith.constant 0.000000e+00 : f32
    %1758 = vector.broadcast %cst_1932 : f32 to vector<4x96xf32>
    %cst_1933 = arith.constant 0.000000e+00 : f32
    %1759 = vector.broadcast %cst_1933 : f32 to vector<4x96xf32>
    %cst_1934 = arith.constant 0.000000e+00 : f32
    %1760 = vector.broadcast %cst_1934 : f32 to vector<4x96xf32>
    %c0_1935 = arith.constant 0 : index
    %c0_1936 = arith.constant 0 : index
    %c0_1937 = arith.constant 0 : index
    %c0_1938 = arith.constant 0 : index
    %1761 = vector.load %arg2[%c0_1935, %c0_1936, %c0_1937, %c0_1938] : memref<1x4x4x104xf32, #tpu.memory_space<vmem>>, vector<1x1x4x104xf32>
    %1762 = vector.shape_cast %1761 : vector<1x1x4x104xf32> to vector<4x104xf32>
    %1763 = vector.extract_strided_slice %1762 {offsets = [0, 0], sizes = [4, 96], strides = [1, 1]} : vector<4x104xf32> to vector<4x96xf32>
    %c0_1939 = arith.constant 0 : index
    %c0_1940 = arith.constant 0 : index
    %c0_1941 = arith.constant 0 : index
    %c0_1942 = arith.constant 0 : index
    %c0_1943 = arith.constant 0 : index
    %1764 = vector.load %arg3[%c0_1939, %c0_1940, %c0_1941, %c0_1942, %c0_1943] : memref<1x4x9x4x96xf32, #tpu.memory_space<vmem>>, vector<1x1x1x4x96xf32>
    %1765 = vector.shape_cast %1764 : vector<1x1x1x4x96xf32> to vector<4x96xf32>
    %1766 = arith.mulf %1763, %1765 : vector<4x96xf32>
    %1767 = arith.addf %1752, %1766 : vector<4x96xf32>
    %c0_1944 = arith.constant 0 : index
    %c0_1945 = arith.constant 0 : index
    %c1_1946 = arith.constant 1 : index
    %c0_1947 = arith.constant 0 : index
    %c0_1948 = arith.constant 0 : index
    %1768 = vector.load %arg3[%c0_1944, %c0_1945, %c1_1946, %c0_1947, %c0_1948] : memref<1x4x9x4x96xf32, #tpu.memory_space<vmem>>, vector<1x1x1x4x96xf32>
    %1769 = vector.shape_cast %1768 : vector<1x1x1x4x96xf32> to vector<4x96xf32>
    %1770 = arith.mulf %1763, %1769 : vector<4x96xf32>
    %1771 = arith.addf %1753, %1770 : vector<4x96xf32>
    %c0_1949 = arith.constant 0 : index
    %c0_1950 = arith.constant 0 : index
    %c2_1951 = arith.constant 2 : index
    %c0_1952 = arith.constant 0 : index
    %c0_1953 = arith.constant 0 : index
    %1772 = vector.load %arg3[%c0_1949, %c0_1950, %c2_1951, %c0_1952, %c0_1953] : memref<1x4x9x4x96xf32, #tpu.memory_space<vmem>>, vector<1x1x1x4x96xf32>
    %1773 = vector.shape_cast %1772 : vector<1x1x1x4x96xf32> to vector<4x96xf32>
    %1774 = arith.mulf %1763, %1773 : vector<4x96xf32>
    %1775 = arith.addf %1754, %1774 : vector<4x96xf32>
    %c0_1954 = arith.constant 0 : index
    %c0_1955 = arith.constant 0 : index
    %c3_1956 = arith.constant 3 : index
    %c0_1957 = arith.constant 0 : index
    %c0_1958 = arith.constant 0 : index
    %1776 = vector.load %arg3[%c0_1954, %c0_1955, %c3_1956, %c0_1957, %c0_1958] : memref<1x4x9x4x96xf32, #tpu.memory_space<vmem>>, vector<1x1x1x4x96xf32>
    %1777 = vector.shape_cast %1776 : vector<1x1x1x4x96xf32> to vector<4x96xf32>
    %1778 = arith.mulf %1763, %1777 : vector<4x96xf32>
    %1779 = arith.addf %1755, %1778 : vector<4x96xf32>
    %c0_1959 = arith.constant 0 : index
    %c0_1960 = arith.constant 0 : index
    %c4_1961 = arith.constant 4 : index
    %c0_1962 = arith.constant 0 : index
    %c0_1963 = arith.constant 0 : index
    %1780 = vector.load %arg3[%c0_1959, %c0_1960, %c4_1961, %c0_1962, %c0_1963] : memref<1x4x9x4x96xf32, #tpu.memory_space<vmem>>, vector<1x1x1x4x96xf32>
    %1781 = vector.shape_cast %1780 : vector<1x1x1x4x96xf32> to vector<4x96xf32>
    %1782 = arith.mulf %1763, %1781 : vector<4x96xf32>
    %1783 = arith.addf %1756, %1782 : vector<4x96xf32>
    %c0_1964 = arith.constant 0 : index
    %c0_1965 = arith.constant 0 : index
    %c5_1966 = arith.constant 5 : index
    %c0_1967 = arith.constant 0 : index
    %c0_1968 = arith.constant 0 : index
    %1784 = vector.load %arg3[%c0_1964, %c0_1965, %c5_1966, %c0_1967, %c0_1968] : memref<1x4x9x4x96xf32, #tpu.memory_space<vmem>>, vector<1x1x1x4x96xf32>
    %1785 = vector.shape_cast %1784 : vector<1x1x1x4x96xf32> to vector<4x96xf32>
    %1786 = arith.mulf %1763, %1785 : vector<4x96xf32>
    %1787 = arith.addf %1757, %1786 : vector<4x96xf32>
    %c0_1969 = arith.constant 0 : index
    %c0_1970 = arith.constant 0 : index
    %c6_1971 = arith.constant 6 : index
    %c0_1972 = arith.constant 0 : index
    %c0_1973 = arith.constant 0 : index
    %1788 = vector.load %arg3[%c0_1969, %c0_1970, %c6_1971, %c0_1972, %c0_1973] : memref<1x4x9x4x96xf32, #tpu.memory_space<vmem>>, vector<1x1x1x4x96xf32>
    %1789 = vector.shape_cast %1788 : vector<1x1x1x4x96xf32> to vector<4x96xf32>
    %1790 = arith.mulf %1763, %1789 : vector<4x96xf32>
    %1791 = arith.addf %1758, %1790 : vector<4x96xf32>
    %c0_1974 = arith.constant 0 : index
    %c0_1975 = arith.constant 0 : index
    %c7_1976 = arith.constant 7 : index
    %c0_1977 = arith.constant 0 : index
    %c0_1978 = arith.constant 0 : index
    %1792 = vector.load %arg3[%c0_1974, %c0_1975, %c7_1976, %c0_1977, %c0_1978] : memref<1x4x9x4x96xf32, #tpu.memory_space<vmem>>, vector<1x1x1x4x96xf32>
    %1793 = vector.shape_cast %1792 : vector<1x1x1x4x96xf32> to vector<4x96xf32>
    %1794 = arith.mulf %1763, %1793 : vector<4x96xf32>
    %1795 = arith.addf %1759, %1794 : vector<4x96xf32>
    %c0_1979 = arith.constant 0 : index
    %c0_1980 = arith.constant 0 : index
    %c8_1981 = arith.constant 8 : index
    %c0_1982 = arith.constant 0 : index
    %c0_1983 = arith.constant 0 : index
    %1796 = vector.load %arg3[%c0_1979, %c0_1980, %c8_1981, %c0_1982, %c0_1983] : memref<1x4x9x4x96xf32, #tpu.memory_space<vmem>>, vector<1x1x1x4x96xf32>
    %1797 = vector.shape_cast %1796 : vector<1x1x1x4x96xf32> to vector<4x96xf32>
    %1798 = arith.mulf %1763, %1797 : vector<4x96xf32>
    %1799 = arith.addf %1760, %1798 : vector<4x96xf32>
    %c0_1984 = arith.constant 0 : index
    %c1_1985 = arith.constant 1 : index
    %c0_1986 = arith.constant 0 : index
    %c0_1987 = arith.constant 0 : index
    %1800 = vector.load %arg2[%c0_1984, %c1_1985, %c0_1986, %c0_1987] : memref<1x4x4x104xf32, #tpu.memory_space<vmem>>, vector<1x1x4x104xf32>
    %1801 = vector.shape_cast %1800 : vector<1x1x4x104xf32> to vector<4x104xf32>
    %1802 = vector.extract_strided_slice %1801 {offsets = [0, 0], sizes = [4, 96], strides = [1, 1]} : vector<4x104xf32> to vector<4x96xf32>
    %c0_1988 = arith.constant 0 : index
    %c1_1989 = arith.constant 1 : index
    %c0_1990 = arith.constant 0 : index
    %c0_1991 = arith.constant 0 : index
    %c0_1992 = arith.constant 0 : index
    %1803 = vector.load %arg3[%c0_1988, %c1_1989, %c0_1990, %c0_1991, %c0_1992] : memref<1x4x9x4x96xf32, #tpu.memory_space<vmem>>, vector<1x1x1x4x96xf32>
    %1804 = vector.shape_cast %1803 : vector<1x1x1x4x96xf32> to vector<4x96xf32>
    %1805 = arith.mulf %1802, %1804 : vector<4x96xf32>
    %1806 = arith.addf %1767, %1805 : vector<4x96xf32>
    %c0_1993 = arith.constant 0 : index
    %c1_1994 = arith.constant 1 : index
    %c1_1995 = arith.constant 1 : index
    %c0_1996 = arith.constant 0 : index
    %c0_1997 = arith.constant 0 : index
    %1807 = vector.load %arg3[%c0_1993, %c1_1994, %c1_1995, %c0_1996, %c0_1997] : memref<1x4x9x4x96xf32, #tpu.memory_space<vmem>>, vector<1x1x1x4x96xf32>
    %1808 = vector.shape_cast %1807 : vector<1x1x1x4x96xf32> to vector<4x96xf32>
    %1809 = arith.mulf %1802, %1808 : vector<4x96xf32>
    %1810 = arith.addf %1771, %1809 : vector<4x96xf32>
    %c0_1998 = arith.constant 0 : index
    %c1_1999 = arith.constant 1 : index
    %c2_2000 = arith.constant 2 : index
    %c0_2001 = arith.constant 0 : index
    %c0_2002 = arith.constant 0 : index
    %1811 = vector.load %arg3[%c0_1998, %c1_1999, %c2_2000, %c0_2001, %c0_2002] : memref<1x4x9x4x96xf32, #tpu.memory_space<vmem>>, vector<1x1x1x4x96xf32>
    %1812 = vector.shape_cast %1811 : vector<1x1x1x4x96xf32> to vector<4x96xf32>
    %1813 = arith.mulf %1802, %1812 : vector<4x96xf32>
    %1814 = arith.addf %1775, %1813 : vector<4x96xf32>
    %c0_2003 = arith.constant 0 : index
    %c1_2004 = arith.constant 1 : index
    %c3_2005 = arith.constant 3 : index
    %c0_2006 = arith.constant 0 : index
    %c0_2007 = arith.constant 0 : index
    %1815 = vector.load %arg3[%c0_2003, %c1_2004, %c3_2005, %c0_2006, %c0_2007] : memref<1x4x9x4x96xf32, #tpu.memory_space<vmem>>, vector<1x1x1x4x96xf32>
    %1816 = vector.shape_cast %1815 : vector<1x1x1x4x96xf32> to vector<4x96xf32>
    %1817 = arith.mulf %1802, %1816 : vector<4x96xf32>
    %1818 = arith.addf %1779, %1817 : vector<4x96xf32>
    %c0_2008 = arith.constant 0 : index
    %c1_2009 = arith.constant 1 : index
    %c4_2010 = arith.constant 4 : index
    %c0_2011 = arith.constant 0 : index
    %c0_2012 = arith.constant 0 : index
    %1819 = vector.load %arg3[%c0_2008, %c1_2009, %c4_2010, %c0_2011, %c0_2012] : memref<1x4x9x4x96xf32, #tpu.memory_space<vmem>>, vector<1x1x1x4x96xf32>
    %1820 = vector.shape_cast %1819 : vector<1x1x1x4x96xf32> to vector<4x96xf32>
    %1821 = arith.mulf %1802, %1820 : vector<4x96xf32>
    %1822 = arith.addf %1783, %1821 : vector<4x96xf32>
    %c0_2013 = arith.constant 0 : index
    %c1_2014 = arith.constant 1 : index
    %c5_2015 = arith.constant 5 : index
    %c0_2016 = arith.constant 0 : index
    %c0_2017 = arith.constant 0 : index
    %1823 = vector.load %arg3[%c0_2013, %c1_2014, %c5_2015, %c0_2016, %c0_2017] : memref<1x4x9x4x96xf32, #tpu.memory_space<vmem>>, vector<1x1x1x4x96xf32>
    %1824 = vector.shape_cast %1823 : vector<1x1x1x4x96xf32> to vector<4x96xf32>
    %1825 = arith.mulf %1802, %1824 : vector<4x96xf32>
    %1826 = arith.addf %1787, %1825 : vector<4x96xf32>
    %c0_2018 = arith.constant 0 : index
    %c1_2019 = arith.constant 1 : index
    %c6_2020 = arith.constant 6 : index
    %c0_2021 = arith.constant 0 : index
    %c0_2022 = arith.constant 0 : index
    %1827 = vector.load %arg3[%c0_2018, %c1_2019, %c6_2020, %c0_2021, %c0_2022] : memref<1x4x9x4x96xf32, #tpu.memory_space<vmem>>, vector<1x1x1x4x96xf32>
    %1828 = vector.shape_cast %1827 : vector<1x1x1x4x96xf32> to vector<4x96xf32>
    %1829 = arith.mulf %1802, %1828 : vector<4x96xf32>
    %1830 = arith.addf %1791, %1829 : vector<4x96xf32>
    %c0_2023 = arith.constant 0 : index
    %c1_2024 = arith.constant 1 : index
    %c7_2025 = arith.constant 7 : index
    %c0_2026 = arith.constant 0 : index
    %c0_2027 = arith.constant 0 : index
    %1831 = vector.load %arg3[%c0_2023, %c1_2024, %c7_2025, %c0_2026, %c0_2027] : memref<1x4x9x4x96xf32, #tpu.memory_space<vmem>>, vector<1x1x1x4x96xf32>
    %1832 = vector.shape_cast %1831 : vector<1x1x1x4x96xf32> to vector<4x96xf32>
    %1833 = arith.mulf %1802, %1832 : vector<4x96xf32>
    %1834 = arith.addf %1795, %1833 : vector<4x96xf32>
    %c0_2028 = arith.constant 0 : index
    %c1_2029 = arith.constant 1 : index
    %c8_2030 = arith.constant 8 : index
    %c0_2031 = arith.constant 0 : index
    %c0_2032 = arith.constant 0 : index
    %1835 = vector.load %arg3[%c0_2028, %c1_2029, %c8_2030, %c0_2031, %c0_2032] : memref<1x4x9x4x96xf32, #tpu.memory_space<vmem>>, vector<1x1x1x4x96xf32>
    %1836 = vector.shape_cast %1835 : vector<1x1x1x4x96xf32> to vector<4x96xf32>
    %1837 = arith.mulf %1802, %1836 : vector<4x96xf32>
    %1838 = arith.addf %1799, %1837 : vector<4x96xf32>
    %c0_2033 = arith.constant 0 : index
    %c2_2034 = arith.constant 2 : index
    %c0_2035 = arith.constant 0 : index
    %c0_2036 = arith.constant 0 : index
    %1839 = vector.load %arg2[%c0_2033, %c2_2034, %c0_2035, %c0_2036] : memref<1x4x4x104xf32, #tpu.memory_space<vmem>>, vector<1x1x4x104xf32>
    %1840 = vector.shape_cast %1839 : vector<1x1x4x104xf32> to vector<4x104xf32>
    %1841 = vector.extract_strided_slice %1840 {offsets = [0, 0], sizes = [4, 96], strides = [1, 1]} : vector<4x104xf32> to vector<4x96xf32>
    %c0_2037 = arith.constant 0 : index
    %c2_2038 = arith.constant 2 : index
    %c0_2039 = arith.constant 0 : index
    %c0_2040 = arith.constant 0 : index
    %c0_2041 = arith.constant 0 : index
    %1842 = vector.load %arg3[%c0_2037, %c2_2038, %c0_2039, %c0_2040, %c0_2041] : memref<1x4x9x4x96xf32, #tpu.memory_space<vmem>>, vector<1x1x1x4x96xf32>
    %1843 = vector.shape_cast %1842 : vector<1x1x1x4x96xf32> to vector<4x96xf32>
    %1844 = arith.mulf %1841, %1843 : vector<4x96xf32>
    %1845 = arith.addf %1806, %1844 : vector<4x96xf32>
    %c0_2042 = arith.constant 0 : index
    %c2_2043 = arith.constant 2 : index
    %c1_2044 = arith.constant 1 : index
    %c0_2045 = arith.constant 0 : index
    %c0_2046 = arith.constant 0 : index
    %1846 = vector.load %arg3[%c0_2042, %c2_2043, %c1_2044, %c0_2045, %c0_2046] : memref<1x4x9x4x96xf32, #tpu.memory_space<vmem>>, vector<1x1x1x4x96xf32>
    %1847 = vector.shape_cast %1846 : vector<1x1x1x4x96xf32> to vector<4x96xf32>
    %1848 = arith.mulf %1841, %1847 : vector<4x96xf32>
    %1849 = arith.addf %1810, %1848 : vector<4x96xf32>
    %c0_2047 = arith.constant 0 : index
    %c2_2048 = arith.constant 2 : index
    %c2_2049 = arith.constant 2 : index
    %c0_2050 = arith.constant 0 : index
    %c0_2051 = arith.constant 0 : index
    %1850 = vector.load %arg3[%c0_2047, %c2_2048, %c2_2049, %c0_2050, %c0_2051] : memref<1x4x9x4x96xf32, #tpu.memory_space<vmem>>, vector<1x1x1x4x96xf32>
    %1851 = vector.shape_cast %1850 : vector<1x1x1x4x96xf32> to vector<4x96xf32>
    %1852 = arith.mulf %1841, %1851 : vector<4x96xf32>
    %1853 = arith.addf %1814, %1852 : vector<4x96xf32>
    %c0_2052 = arith.constant 0 : index
    %c2_2053 = arith.constant 2 : index
    %c3_2054 = arith.constant 3 : index
    %c0_2055 = arith.constant 0 : index
    %c0_2056 = arith.constant 0 : index
    %1854 = vector.load %arg3[%c0_2052, %c2_2053, %c3_2054, %c0_2055, %c0_2056] : memref<1x4x9x4x96xf32, #tpu.memory_space<vmem>>, vector<1x1x1x4x96xf32>
    %1855 = vector.shape_cast %1854 : vector<1x1x1x4x96xf32> to vector<4x96xf32>
    %1856 = arith.mulf %1841, %1855 : vector<4x96xf32>
    %1857 = arith.addf %1818, %1856 : vector<4x96xf32>
    %c0_2057 = arith.constant 0 : index
    %c2_2058 = arith.constant 2 : index
    %c4_2059 = arith.constant 4 : index
    %c0_2060 = arith.constant 0 : index
    %c0_2061 = arith.constant 0 : index
    %1858 = vector.load %arg3[%c0_2057, %c2_2058, %c4_2059, %c0_2060, %c0_2061] : memref<1x4x9x4x96xf32, #tpu.memory_space<vmem>>, vector<1x1x1x4x96xf32>
    %1859 = vector.shape_cast %1858 : vector<1x1x1x4x96xf32> to vector<4x96xf32>
    %1860 = arith.mulf %1841, %1859 : vector<4x96xf32>
    %1861 = arith.addf %1822, %1860 : vector<4x96xf32>
    %c0_2062 = arith.constant 0 : index
    %c2_2063 = arith.constant 2 : index
    %c5_2064 = arith.constant 5 : index
    %c0_2065 = arith.constant 0 : index
    %c0_2066 = arith.constant 0 : index
    %1862 = vector.load %arg3[%c0_2062, %c2_2063, %c5_2064, %c0_2065, %c0_2066] : memref<1x4x9x4x96xf32, #tpu.memory_space<vmem>>, vector<1x1x1x4x96xf32>
    %1863 = vector.shape_cast %1862 : vector<1x1x1x4x96xf32> to vector<4x96xf32>
    %1864 = arith.mulf %1841, %1863 : vector<4x96xf32>
    %1865 = arith.addf %1826, %1864 : vector<4x96xf32>
    %c0_2067 = arith.constant 0 : index
    %c2_2068 = arith.constant 2 : index
    %c6_2069 = arith.constant 6 : index
    %c0_2070 = arith.constant 0 : index
    %c0_2071 = arith.constant 0 : index
    %1866 = vector.load %arg3[%c0_2067, %c2_2068, %c6_2069, %c0_2070, %c0_2071] : memref<1x4x9x4x96xf32, #tpu.memory_space<vmem>>, vector<1x1x1x4x96xf32>
    %1867 = vector.shape_cast %1866 : vector<1x1x1x4x96xf32> to vector<4x96xf32>
    %1868 = arith.mulf %1841, %1867 : vector<4x96xf32>
    %1869 = arith.addf %1830, %1868 : vector<4x96xf32>
    %c0_2072 = arith.constant 0 : index
    %c2_2073 = arith.constant 2 : index
    %c7_2074 = arith.constant 7 : index
    %c0_2075 = arith.constant 0 : index
    %c0_2076 = arith.constant 0 : index
    %1870 = vector.load %arg3[%c0_2072, %c2_2073, %c7_2074, %c0_2075, %c0_2076] : memref<1x4x9x4x96xf32, #tpu.memory_space<vmem>>, vector<1x1x1x4x96xf32>
    %1871 = vector.shape_cast %1870 : vector<1x1x1x4x96xf32> to vector<4x96xf32>
    %1872 = arith.mulf %1841, %1871 : vector<4x96xf32>
    %1873 = arith.addf %1834, %1872 : vector<4x96xf32>
    %c0_2077 = arith.constant 0 : index
    %c2_2078 = arith.constant 2 : index
    %c8_2079 = arith.constant 8 : index
    %c0_2080 = arith.constant 0 : index
    %c0_2081 = arith.constant 0 : index
    %1874 = vector.load %arg3[%c0_2077, %c2_2078, %c8_2079, %c0_2080, %c0_2081] : memref<1x4x9x4x96xf32, #tpu.memory_space<vmem>>, vector<1x1x1x4x96xf32>
    %1875 = vector.shape_cast %1874 : vector<1x1x1x4x96xf32> to vector<4x96xf32>
    %1876 = arith.mulf %1841, %1875 : vector<4x96xf32>
    %1877 = arith.addf %1838, %1876 : vector<4x96xf32>
    %c0_2082 = arith.constant 0 : index
    %c3_2083 = arith.constant 3 : index
    %c0_2084 = arith.constant 0 : index
    %c0_2085 = arith.constant 0 : index
    %1878 = vector.load %arg2[%c0_2082, %c3_2083, %c0_2084, %c0_2085] : memref<1x4x4x104xf32, #tpu.memory_space<vmem>>, vector<1x1x4x104xf32>
    %1879 = vector.shape_cast %1878 : vector<1x1x4x104xf32> to vector<4x104xf32>
    %1880 = vector.extract_strided_slice %1879 {offsets = [0, 0], sizes = [4, 96], strides = [1, 1]} : vector<4x104xf32> to vector<4x96xf32>
    %c0_2086 = arith.constant 0 : index
    %c3_2087 = arith.constant 3 : index
    %c0_2088 = arith.constant 0 : index
    %c0_2089 = arith.constant 0 : index
    %c0_2090 = arith.constant 0 : index
    %1881 = vector.load %arg3[%c0_2086, %c3_2087, %c0_2088, %c0_2089, %c0_2090] : memref<1x4x9x4x96xf32, #tpu.memory_space<vmem>>, vector<1x1x1x4x96xf32>
    %1882 = vector.shape_cast %1881 : vector<1x1x1x4x96xf32> to vector<4x96xf32>
    %1883 = arith.mulf %1880, %1882 : vector<4x96xf32>
    %1884 = arith.addf %1845, %1883 : vector<4x96xf32>
    %c0_2091 = arith.constant 0 : index
    %c3_2092 = arith.constant 3 : index
    %c1_2093 = arith.constant 1 : index
    %c0_2094 = arith.constant 0 : index
    %c0_2095 = arith.constant 0 : index
    %1885 = vector.load %arg3[%c0_2091, %c3_2092, %c1_2093, %c0_2094, %c0_2095] : memref<1x4x9x4x96xf32, #tpu.memory_space<vmem>>, vector<1x1x1x4x96xf32>
    %1886 = vector.shape_cast %1885 : vector<1x1x1x4x96xf32> to vector<4x96xf32>
    %1887 = arith.mulf %1880, %1886 : vector<4x96xf32>
    %1888 = arith.addf %1849, %1887 : vector<4x96xf32>
    %c0_2096 = arith.constant 0 : index
    %c3_2097 = arith.constant 3 : index
    %c2_2098 = arith.constant 2 : index
    %c0_2099 = arith.constant 0 : index
    %c0_2100 = arith.constant 0 : index
    %1889 = vector.load %arg3[%c0_2096, %c3_2097, %c2_2098, %c0_2099, %c0_2100] : memref<1x4x9x4x96xf32, #tpu.memory_space<vmem>>, vector<1x1x1x4x96xf32>
    %1890 = vector.shape_cast %1889 : vector<1x1x1x4x96xf32> to vector<4x96xf32>
    %1891 = arith.mulf %1880, %1890 : vector<4x96xf32>
    %1892 = arith.addf %1853, %1891 : vector<4x96xf32>
    %c0_2101 = arith.constant 0 : index
    %c3_2102 = arith.constant 3 : index
    %c3_2103 = arith.constant 3 : index
    %c0_2104 = arith.constant 0 : index
    %c0_2105 = arith.constant 0 : index
    %1893 = vector.load %arg3[%c0_2101, %c3_2102, %c3_2103, %c0_2104, %c0_2105] : memref<1x4x9x4x96xf32, #tpu.memory_space<vmem>>, vector<1x1x1x4x96xf32>
    %1894 = vector.shape_cast %1893 : vector<1x1x1x4x96xf32> to vector<4x96xf32>
    %1895 = arith.mulf %1880, %1894 : vector<4x96xf32>
    %1896 = arith.addf %1857, %1895 : vector<4x96xf32>
    %c0_2106 = arith.constant 0 : index
    %c3_2107 = arith.constant 3 : index
    %c4_2108 = arith.constant 4 : index
    %c0_2109 = arith.constant 0 : index
    %c0_2110 = arith.constant 0 : index
    %1897 = vector.load %arg3[%c0_2106, %c3_2107, %c4_2108, %c0_2109, %c0_2110] : memref<1x4x9x4x96xf32, #tpu.memory_space<vmem>>, vector<1x1x1x4x96xf32>
    %1898 = vector.shape_cast %1897 : vector<1x1x1x4x96xf32> to vector<4x96xf32>
    %1899 = arith.mulf %1880, %1898 : vector<4x96xf32>
    %1900 = arith.addf %1861, %1899 : vector<4x96xf32>
    %c0_2111 = arith.constant 0 : index
    %c3_2112 = arith.constant 3 : index
    %c5_2113 = arith.constant 5 : index
    %c0_2114 = arith.constant 0 : index
    %c0_2115 = arith.constant 0 : index
    %1901 = vector.load %arg3[%c0_2111, %c3_2112, %c5_2113, %c0_2114, %c0_2115] : memref<1x4x9x4x96xf32, #tpu.memory_space<vmem>>, vector<1x1x1x4x96xf32>
    %1902 = vector.shape_cast %1901 : vector<1x1x1x4x96xf32> to vector<4x96xf32>
    %1903 = arith.mulf %1880, %1902 : vector<4x96xf32>
    %1904 = arith.addf %1865, %1903 : vector<4x96xf32>
    %c0_2116 = arith.constant 0 : index
    %c3_2117 = arith.constant 3 : index
    %c6_2118 = arith.constant 6 : index
    %c0_2119 = arith.constant 0 : index
    %c0_2120 = arith.constant 0 : index
    %1905 = vector.load %arg3[%c0_2116, %c3_2117, %c6_2118, %c0_2119, %c0_2120] : memref<1x4x9x4x96xf32, #tpu.memory_space<vmem>>, vector<1x1x1x4x96xf32>
    %1906 = vector.shape_cast %1905 : vector<1x1x1x4x96xf32> to vector<4x96xf32>
    %1907 = arith.mulf %1880, %1906 : vector<4x96xf32>
    %1908 = arith.addf %1869, %1907 : vector<4x96xf32>
    %c0_2121 = arith.constant 0 : index
    %c3_2122 = arith.constant 3 : index
    %c7_2123 = arith.constant 7 : index
    %c0_2124 = arith.constant 0 : index
    %c0_2125 = arith.constant 0 : index
    %1909 = vector.load %arg3[%c0_2121, %c3_2122, %c7_2123, %c0_2124, %c0_2125] : memref<1x4x9x4x96xf32, #tpu.memory_space<vmem>>, vector<1x1x1x4x96xf32>
    %1910 = vector.shape_cast %1909 : vector<1x1x1x4x96xf32> to vector<4x96xf32>
    %1911 = arith.mulf %1880, %1910 : vector<4x96xf32>
    %1912 = arith.addf %1873, %1911 : vector<4x96xf32>
    %c0_2126 = arith.constant 0 : index
    %c3_2127 = arith.constant 3 : index
    %c8_2128 = arith.constant 8 : index
    %c0_2129 = arith.constant 0 : index
    %c0_2130 = arith.constant 0 : index
    %1913 = vector.load %arg3[%c0_2126, %c3_2127, %c8_2128, %c0_2129, %c0_2130] : memref<1x4x9x4x96xf32, #tpu.memory_space<vmem>>, vector<1x1x1x4x96xf32>
    %1914 = vector.shape_cast %1913 : vector<1x1x1x4x96xf32> to vector<4x96xf32>
    %1915 = arith.mulf %1880, %1914 : vector<4x96xf32>
    %1916 = arith.addf %1877, %1915 : vector<4x96xf32>
    %1917 = vector.extract_strided_slice %1884 {offsets = [0, 8], sizes = [4, 88], strides = [1, 1]} : vector<4x96xf32> to vector<4x88xf32>
    %cst_2131 = arith.constant 2.500000e-01 : f32
    %1918 = vector.broadcast %cst_2131 : f32 to vector<4x88xf32>
    %1919 = arith.mulf %1917, %1918 : vector<4x88xf32>
    %c0_2132 = arith.constant 0 : index
    %c8_2133 = arith.constant 8 : index
    %c0_2134 = arith.constant 0 : index
    %c0_2135 = arith.constant 0 : index
    %1920 = vector.load %arg4[%c0_2132, %c8_2133, %c0_2134, %c0_2135] : memref<1x81x4x96xf32, #tpu.memory_space<vmem>>, vector<1x1x4x88xf32>
    %1921 = vector.shape_cast %1920 : vector<1x1x4x88xf32> to vector<4x88xf32>
    %1922 = vector.shape_cast %1919 : vector<4x88xf32> to vector<1x1x4x88xf32>
    tpu.vector_store %arg4[%c0_2132, %c8_2133, %c0_2134, %c0_2135], %1922 {strides = array<i32>} : memref<1x81x4x96xf32, #tpu.memory_space<vmem>>, vector<1x1x4x88xf32>,
    %1923 = vector.extract_strided_slice %1888 {offsets = [0, 8], sizes = [4, 88], strides = [1, 1]} : vector<4x96xf32> to vector<4x88xf32>
    %cst_2136 = arith.constant 2.500000e-01 : f32
    %1924 = vector.broadcast %cst_2136 : f32 to vector<4x88xf32>
    %1925 = arith.mulf %1923, %1924 : vector<4x88xf32>
    %c0_2137 = arith.constant 0 : index
    %c17 = arith.constant 17 : index
    %c0_2138 = arith.constant 0 : index
    %c0_2139 = arith.constant 0 : index
    %1926 = vector.load %arg4[%c0_2137, %c17, %c0_2138, %c0_2139] : memref<1x81x4x96xf32, #tpu.memory_space<vmem>>, vector<1x1x4x88xf32>
    %1927 = vector.shape_cast %1926 : vector<1x1x4x88xf32> to vector<4x88xf32>
    %1928 = vector.shape_cast %1925 : vector<4x88xf32> to vector<1x1x4x88xf32>
    tpu.vector_store %arg4[%c0_2137, %c17, %c0_2138, %c0_2139], %1928 {strides = array<i32>} : memref<1x81x4x96xf32, #tpu.memory_space<vmem>>, vector<1x1x4x88xf32>,
    %1929 = vector.extract_strided_slice %1892 {offsets = [0, 8], sizes = [4, 88], strides = [1, 1]} : vector<4x96xf32> to vector<4x88xf32>
    %cst_2140 = arith.constant 2.500000e-01 : f32
    %1930 = vector.broadcast %cst_2140 : f32 to vector<4x88xf32>
    %1931 = arith.mulf %1929, %1930 : vector<4x88xf32>
    %c0_2141 = arith.constant 0 : index
    %c26 = arith.constant 26 : index
    %c0_2142 = arith.constant 0 : index
    %c0_2143 = arith.constant 0 : index
    %1932 = vector.load %arg4[%c0_2141, %c26, %c0_2142, %c0_2143] : memref<1x81x4x96xf32, #tpu.memory_space<vmem>>, vector<1x1x4x88xf32>
    %1933 = vector.shape_cast %1932 : vector<1x1x4x88xf32> to vector<4x88xf32>
    %1934 = vector.shape_cast %1931 : vector<4x88xf32> to vector<1x1x4x88xf32>
    tpu.vector_store %arg4[%c0_2141, %c26, %c0_2142, %c0_2143], %1934 {strides = array<i32>} : memref<1x81x4x96xf32, #tpu.memory_space<vmem>>, vector<1x1x4x88xf32>,
    %1935 = vector.extract_strided_slice %1896 {offsets = [0, 8], sizes = [4, 88], strides = [1, 1]} : vector<4x96xf32> to vector<4x88xf32>
    %cst_2144 = arith.constant 2.500000e-01 : f32
    %1936 = vector.broadcast %cst_2144 : f32 to vector<4x88xf32>
    %1937 = arith.mulf %1935, %1936 : vector<4x88xf32>
    %c0_2145 = arith.constant 0 : index
    %c35 = arith.constant 35 : index
    %c0_2146 = arith.constant 0 : index
    %c0_2147 = arith.constant 0 : index
    %1938 = vector.load %arg4[%c0_2145, %c35, %c0_2146, %c0_2147] : memref<1x81x4x96xf32, #tpu.memory_space<vmem>>, vector<1x1x4x88xf32>
    %1939 = vector.shape_cast %1938 : vector<1x1x4x88xf32> to vector<4x88xf32>
    %1940 = vector.shape_cast %1937 : vector<4x88xf32> to vector<1x1x4x88xf32>
    tpu.vector_store %arg4[%c0_2145, %c35, %c0_2146, %c0_2147], %1940 {strides = array<i32>} : memref<1x81x4x96xf32, #tpu.memory_space<vmem>>, vector<1x1x4x88xf32>,
    %1941 = vector.extract_strided_slice %1900 {offsets = [0, 8], sizes = [4, 88], strides = [1, 1]} : vector<4x96xf32> to vector<4x88xf32>
    %cst_2148 = arith.constant 2.500000e-01 : f32
    %1942 = vector.broadcast %cst_2148 : f32 to vector<4x88xf32>
    %1943 = arith.mulf %1941, %1942 : vector<4x88xf32>
    %c0_2149 = arith.constant 0 : index
    %c44 = arith.constant 44 : index
    %c0_2150 = arith.constant 0 : index
    %c0_2151 = arith.constant 0 : index
    %1944 = vector.load %arg4[%c0_2149, %c44, %c0_2150, %c0_2151] : memref<1x81x4x96xf32, #tpu.memory_space<vmem>>, vector<1x1x4x88xf32>
    %1945 = vector.shape_cast %1944 : vector<1x1x4x88xf32> to vector<4x88xf32>
    %1946 = vector.shape_cast %1943 : vector<4x88xf32> to vector<1x1x4x88xf32>
    tpu.vector_store %arg4[%c0_2149, %c44, %c0_2150, %c0_2151], %1946 {strides = array<i32>} : memref<1x81x4x96xf32, #tpu.memory_space<vmem>>, vector<1x1x4x88xf32>,
    %1947 = vector.extract_strided_slice %1904 {offsets = [0, 8], sizes = [4, 88], strides = [1, 1]} : vector<4x96xf32> to vector<4x88xf32>
    %cst_2152 = arith.constant 2.500000e-01 : f32
    %1948 = vector.broadcast %cst_2152 : f32 to vector<4x88xf32>
    %1949 = arith.mulf %1947, %1948 : vector<4x88xf32>
    %c0_2153 = arith.constant 0 : index
    %c53 = arith.constant 53 : index
    %c0_2154 = arith.constant 0 : index
    %c0_2155 = arith.constant 0 : index
    %1950 = vector.load %arg4[%c0_2153, %c53, %c0_2154, %c0_2155] : memref<1x81x4x96xf32, #tpu.memory_space<vmem>>, vector<1x1x4x88xf32>
    %1951 = vector.shape_cast %1950 : vector<1x1x4x88xf32> to vector<4x88xf32>
    %1952 = vector.shape_cast %1949 : vector<4x88xf32> to vector<1x1x4x88xf32>
    tpu.vector_store %arg4[%c0_2153, %c53, %c0_2154, %c0_2155], %1952 {strides = array<i32>} : memref<1x81x4x96xf32, #tpu.memory_space<vmem>>, vector<1x1x4x88xf32>,
    %1953 = vector.extract_strided_slice %1908 {offsets = [0, 8], sizes = [4, 88], strides = [1, 1]} : vector<4x96xf32> to vector<4x88xf32>
    %cst_2156 = arith.constant 2.500000e-01 : f32
    %1954 = vector.broadcast %cst_2156 : f32 to vector<4x88xf32>
    %1955 = arith.mulf %1953, %1954 : vector<4x88xf32>
    %c0_2157 = arith.constant 0 : index
    %c62 = arith.constant 62 : index
    %c0_2158 = arith.constant 0 : index
    %c0_2159 = arith.constant 0 : index
    %1956 = vector.load %arg4[%c0_2157, %c62, %c0_2158, %c0_2159] : memref<1x81x4x96xf32, #tpu.memory_space<vmem>>, vector<1x1x4x88xf32>
    %1957 = vector.shape_cast %1956 : vector<1x1x4x88xf32> to vector<4x88xf32>
    %1958 = vector.shape_cast %1955 : vector<4x88xf32> to vector<1x1x4x88xf32>
    tpu.vector_store %arg4[%c0_2157, %c62, %c0_2158, %c0_2159], %1958 {strides = array<i32>} : memref<1x81x4x96xf32, #tpu.memory_space<vmem>>, vector<1x1x4x88xf32>,
    %1959 = vector.extract_strided_slice %1912 {offsets = [0, 8], sizes = [4, 88], strides = [1, 1]} : vector<4x96xf32> to vector<4x88xf32>
    %cst_2160 = arith.constant 2.500000e-01 : f32
    %1960 = vector.broadcast %cst_2160 : f32 to vector<4x88xf32>
    %1961 = arith.mulf %1959, %1960 : vector<4x88xf32>
    %c0_2161 = arith.constant 0 : index
    %c71 = arith.constant 71 : index
    %c0_2162 = arith.constant 0 : index
    %c0_2163 = arith.constant 0 : index
    %1962 = vector.load %arg4[%c0_2161, %c71, %c0_2162, %c0_2163] : memref<1x81x4x96xf32, #tpu.memory_space<vmem>>, vector<1x1x4x88xf32>
    %1963 = vector.shape_cast %1962 : vector<1x1x4x88xf32> to vector<4x88xf32>
    %1964 = vector.shape_cast %1961 : vector<4x88xf32> to vector<1x1x4x88xf32>
    tpu.vector_store %arg4[%c0_2161, %c71, %c0_2162, %c0_2163], %1964 {strides = array<i32>} : memref<1x81x4x96xf32, #tpu.memory_space<vmem>>, vector<1x1x4x88xf32>,
    %1965 = vector.extract_strided_slice %1916 {offsets = [0, 8], sizes = [4, 88], strides = [1, 1]} : vector<4x96xf32> to vector<4x88xf32>
    %cst_2164 = arith.constant 2.500000e-01 : f32
    %1966 = vector.broadcast %cst_2164 : f32 to vector<4x88xf32>
    %1967 = arith.mulf %1965, %1966 : vector<4x88xf32>
    %c0_2165 = arith.constant 0 : index
    %c80 = arith.constant 80 : index
    %c0_2166 = arith.constant 0 : index
    %c0_2167 = arith.constant 0 : index
    %1968 = vector.load %arg4[%c0_2165, %c80, %c0_2166, %c0_2167] : memref<1x81x4x96xf32, #tpu.memory_space<vmem>>, vector<1x1x4x88xf32>
    %1969 = vector.shape_cast %1968 : vector<1x1x4x88xf32> to vector<4x88xf32>
    %1970 = vector.shape_cast %1967 : vector<4x88xf32> to vector<1x1x4x88xf32>
    tpu.vector_store %arg4[%c0_2165, %c80, %c0_2166, %c0_2167], %1970 {strides = array<i32>} : memref<1x81x4x96xf32, #tpu.memory_space<vmem>>, vector<1x1x4x88xf32>,
    return
  }
  func.func @transform_0(%arg0: i32, %arg1: i32) -> (i32, i32, i32, i32) {
    %c0_i32 = arith.constant 0 : i32
    %c0_i32_0 = arith.constant 0 : i32
    %c0_i32_1 = arith.constant 0 : i32
    return %arg0, %c0_i32, %arg1, %c0_i32_0 : i32, i32, i32, i32
  }
  func.func @transform_1(%arg0: i32, %arg1: i32) -> (i32, i32, i32, i32, i32) {
    %c0_i32 = arith.constant 0 : i32
    %c0_i32_0 = arith.constant 0 : i32
    %c0_i32_1 = arith.constant 0 : i32
    %c0_i32_2 = arith.constant 0 : i32
    return %arg0, %c0_i32, %c0_i32_0, %arg1, %c0_i32_1 : i32, i32, i32, i32, i32
  }
  func.func @transform_2(%arg0: i32, %arg1: i32) -> (i32, i32, i32, i32) {
    %c0_i32 = arith.constant 0 : i32
    %c0_i32_0 = arith.constant 0 : i32
    %c0_i32_1 = arith.constant 0 : i32
    return %arg0, %c0_i32, %arg1, %c0_i32_0 : i32, i32, i32, i32
  }
}

</mosaic_0001>

<llo_original>
// kernel: correlation.1
$region0: #{correlation.1}
  #allocation0 [shape = 'u32[]', space=smem, size = 0x4, offset = 0x4, fixed_abs, tag = 'smem constant byte address 0x4 - core index']
  #allocation1 [shape = 'u32[144,128]{1,0:T(1,128)}', space=vmem, size = 0x12000, scoped, tag = 'internal scratch']
  %s0 = inlined_call_operand.vmem [shape: f32[2,4,4,104], index: 0, kind: input, shape index: {}]
  %s1 = inlined_call_operand.vmem [shape: f32[2,4,9,4,96], index: 1, kind: input, shape index: {}]
  %s2 = inlined_call_operand.vmem [shape: f32[2,81,4,96], index: 2, kind: output, shape index: {}]
  %s3 = sld [smem:[#allocation0]]
  $region41: #{correlation.1} parent=0
    _
  %s5 = ssub.s32 1, %s3
  %s6 = scalar_select 0, %s5, %s3
  loop: start=0, step=1, limit=4
  $region2: #{correlation.1} parent=0 // loop_pre_header
    _
  $region3: #{correlation.1} parent=0 // loop_header
    %s8 = sphi 0, %s12
    %p9 = scmp.ge.s32.totalorder %s8, 4
    %s15 = sphi 0, %s27
    %s16 = sphi 0, %s23
    %s17 = sphi 0, %s15
    %s18 = sphi 0, %s16
    %s19 = sphi 0, %s17
    %s20 = sphi 0, %s18
    %s32 = sphi 0, %s34
    %s35 = sphi 0, %s32
    %s36 = sphi 0, %s35
    %s52 = sphi 0, %s36
    %s60 = sphi 0, %s62
    %s63 = sphi 0, %s60
    %s64 = sphi 0, %s63
    %s80 = sphi 0, %s64
    %s88 = sphi 0, %s90
    %s91 = sphi 0, %s88
    %s92 = sphi 0, %s91
    %s108 = sphi 0, %s92
  $region4: #{correlation.1} parent=0 // loop_header_branch
    %11 = sbr.rel (%p9) target = $region8
  $region5: #{correlation.1} parent=0 // loop_body
    %s13 = ssub.s32 %s8, 1
    %s14 = ssub.s32 %s8, 2
    %s21 = sadd.s32 1, %s16
    %p22 = scmp.ge.s32.totalorder %s21, 1
    %s23 = scalar_select %p22, 0, %s21
    %s24 = sadd.s32 1, %s15
    %s25 = scalar_select %p22, %s24, %s15
    %p26 = scmp.ge.s32.totalorder %s25, 2
    %s27 = scalar_select %p26, 0, %s25
    %s28 = ssub.s32 %s15, %s27
    %s29 = ssub.s32 %s16, %s23
    %s30 = sor.u32 %s28, %s29
    %p31 = scmp.eq.s32.totalorder %s30, 0
    %s33 = sadd.s32 %s32, 1
    %s34 = scalar_select %p31, %s32, %s33
    %p37 = pneg %p31
    %p38 = scmp.eq.s32.totalorder %s8, 1
    %p39 = por %p37, %p38
    %p40 = scmp.ne.s32.totalorder %s32, %s35
    %p41 = scmp.eq.s32.totalorder %s8, 0
    %p42 = por %p40, %p41
    %p43 = scmp.ne.s32.totalorder %s32, %s35
    %p44 = scmp.eq.s32.totalorder %s13, 1
    %p45 = por %p43, %p44
    %p46 = scmp.ne.s32.totalorder %s35, %s36
    %p47 = scmp.eq.s32.totalorder %s13, 0
    %p48 = por %p46, %p47
    %p49 = scmp.ne.s32.totalorder %s35, %s36
    %p50 = scmp.eq.s32.totalorder %s14, 1
    %p51 = por %p49, %p50
    %p53 = scmp.ne.s32.totalorder %s36, %s52
    %p54 = scmp.eq.s32.totalorder %s14, 0
    %p55 = por %p53, %p54
    %s56 = ssub.s32 %s15, %s27
    %s57 = ssub.s32 %s16, %s23
    %s58 = sor.u32 %s56, %s57
    %p59 = scmp.eq.s32.totalorder %s58, 0
    %s61 = sadd.s32 %s60, 1
    %s62 = scalar_select %p59, %s60, %s61
    %p65 = pneg %p59
    %p66 = scmp.eq.s32.totalorder %s8, 1
    %p67 = por %p65, %p66
    %p68 = scmp.ne.s32.totalorder %s60, %s63
    %p69 = scmp.eq.s32.totalorder %s8, 0
    %p70 = por %p68, %p69
    %p71 = scmp.ne.s32.totalorder %s60, %s63
    %p72 = scmp.eq.s32.totalorder %s13, 1
    %p73 = por %p71, %p72
    %p74 = scmp.ne.s32.totalorder %s63, %s64
    %p75 = scmp.eq.s32.totalorder %s13, 0
    %p76 = por %p74, %p75
    %p77 = scmp.ne.s32.totalorder %s63, %s64
    %p78 = scmp.eq.s32.totalorder %s14, 1
    %p79 = por %p77, %p78
    %p81 = scmp.ne.s32.totalorder %s64, %s80
    %p82 = scmp.eq.s32.totalorder %s14, 0
    %p83 = por %p81, %p82
    %s84 = ssub.s32 %s15, %s27
    %s85 = ssub.s32 %s16, %s23
    %s86 = sor.u32 %s84, %s85
    %p87 = scmp.eq.s32.totalorder %s86, 0
    %s89 = sadd.s32 %s88, 1
    %s90 = scalar_select %p87, %s88, %s89
    %p93 = pneg %p87
    %p94 = scmp.eq.s32.totalorder %s8, 1
    %p95 = por %p93, %p94
    %p96 = scmp.ne.s32.totalorder %s88, %s91
    %p97 = scmp.eq.s32.totalorder %s8, 0
    %p98 = por %p96, %p97
    %p99 = scmp.ne.s32.totalorder %s88, %s91
    %p100 = scmp.eq.s32.totalorder %s13, 1
    %p101 = por %p99, %p100
    %p102 = scmp.ne.s32.totalorder %s91, %s92
    %p103 = scmp.eq.s32.totalorder %s13, 0
    %p104 = por %p102, %p103
    %p105 = scmp.ne.s32.totalorder %s91, %s92
    %p106 = scmp.eq.s32.totalorder %s14, 1
    %p107 = por %p105, %p106
    %p109 = scmp.ne.s32.totalorder %s92, %s108
    %p110 = scmp.eq.s32.totalorder %s14, 0
    %p111 = por %p109, %p110
    %p112 = scmp.le.s32.totalorder 1, %s8
    %p113 = scmp.lt.s32.totalorder %s8, 3
    %p114 = pnand %p112, %p113
    %p115 = pneg %p114
    // Predicated region
    $region9: #{correlation.1} parent=5 // pred_check
      _
    $region10: #{correlation.1} parent=5 // pred_check_branch
      %117 = sbr.rel (%p114) target = $region12
    $region11: #{correlation.1} parent=5 // pred_region
      %s118 = ssub.s32 %s8, 1
    $region12: #{correlation.1} parent=5 // pred_fallthru
      _
    %p119 = scmp.lt.s32.totalorder %s8, 2
    // Predicated region
    $region13: #{correlation.1} parent=5 // pred_check
      %p120 = pneg %p119
    $region14: #{correlation.1} parent=5 // pred_check_branch
      %122 = sbr.rel (%p120) target = $region16
    $region15: #{correlation.1} parent=5 // pred_region
      // Predicated region
      $region17: #{correlation.1} parent=15 // pred_check
        %p123 = pneg %p42
      $region18: #{correlation.1} parent=15 // pred_check_branch
        %125 = sbr.rel (%p123) target = $region20
      $region19: #{correlation.1} parent=15 // pred_region
        %p126 = scmp.lt.s32.totalorder %s15, 1
        %s127 = scalar_select %p126, %s15, 1
        %p128 = scmp.lt.s32.totalorder %s16, 0
        %s129 = scalar_select %p128, %s16, 0
        %s130 = smul.addr %s127, 4
        %s131 = sadd.s32 %s129, %s130
        %s132 = smul.addr %s131, 4
        %s133 = scalar_lea.vmem %s0, %s132
      $region20: #{correlation.1} parent=15 // pred_fallthru
        _
      // Predicated region
      $region21: #{correlation.1} parent=15 // pred_check
        %p134 = pneg %p70
      $region22: #{correlation.1} parent=15 // pred_check_branch
        %136 = sbr.rel (%p134) target = $region24
      $region23: #{correlation.1} parent=15 // pred_region
        %p137 = scmp.lt.s32.totalorder %s15, 1
        %s138 = scalar_select %p137, %s15, 1
        %p139 = scmp.lt.s32.totalorder %s16, 0
        %s140 = scalar_select %p139, %s16, 0
        %s141 = smul.addr %s138, 36
        %s142 = sadd.s32 %s140, %s141
        %s143 = smul.addr %s142, 4
        %s144 = scalar_lea.vmem %s1, %s143
      $region24: #{correlation.1} parent=15 // pred_fallthru
        _
    $region16: #{correlation.1} parent=5 // pred_fallthru
      _
    %p145 = scmp.le.s32.totalorder 1, %s8
    %p146 = scmp.lt.s32.totalorder %s8, 3
    %p147 = pnand %p145, %p146
    %p148 = pneg %p147
    // Predicated region
    $region25: #{correlation.1} parent=5 // pred_check
      _
    $region26: #{correlation.1} parent=5 // pred_check_branch
      %150 = sbr.rel (%p147) target = $region28
    $region27: #{correlation.1} parent=5 // pred_region
      %s151 = ssub.s32 %s8, 1
      %p152 = scmp.lt.s32.totalorder %s17, 1
      %s153 = scalar_select %p152, %s17, 1
      %p154 = scmp.lt.s32.totalorder %s18, 0
      %s155 = scalar_select %p154, %s18, 0
      %s156 = smul.addr %s153, 4
      %s157 = sadd.s32 %s155, %s156
      %s158 = smul.addr %s157, 4
      %s159 = scalar_lea.vmem %s0, %s158
      %p160 = pneg %p48
      %p161 = pneg %p45
      %p162 = scmp.lt.s32.totalorder %s17, 1
      %s163 = scalar_select %p162, %s17, 1
      %p164 = scmp.lt.s32.totalorder %s18, 0
      %s165 = scalar_select %p164, %s18, 0
      %s166 = smul.addr %s163, 36
      %s167 = sadd.s32 %s165, %s166
      %s168 = smul.addr %s167, 4
      %s169 = scalar_lea.vmem %s1, %s168
      %p170 = pneg %p76
      %p171 = pneg %p73
      %p172 = pneg %p104
      %p173 = pneg %p101
      %p174 = scmp.lt.s32.totalorder %s17, 1
      %s175 = scalar_select %p174, %s17, 1
      %p176 = scmp.lt.s32.totalorder %s18, 0
      %s177 = scalar_select %p176, %s18, 0
      %s178 = smul.addr %s175, 81
      %s179 = sadd.s32 %s177, %s178
      %s180 = smul.addr %s179, 4
      %s181 = scalar_lea.vmem %s2, %s180
      %p182 = scmp.lt.s32.totalorder %s17, 1
      %s183 = scalar_select %p182, %s17, 1
      %p184 = scmp.lt.s32.totalorder %s18, 0
      %s185 = scalar_select %p184, %s18, 0
      %s186 = smul.addr %s183, 4
      %s187 = sadd.s32 %s185, %s186
      %s188 = smul.addr %s187, 4
      %s189 = scalar_lea.vmem %s0, %s188
      %p190 = scmp.lt.s32.totalorder %s17, 1
      %s191 = scalar_select %p190, %s17, 1
      %p192 = scmp.lt.s32.totalorder %s18, 0
      %s193 = scalar_select %p192, %s18, 0
      %s194 = smul.addr %s191, 36
      %s195 = sadd.s32 %s193, %s194
      %s196 = smul.addr %s195, 4
      %s197 = scalar_lea.vmem %s1, %s196
      %p198 = scmp.lt.s32.totalorder %s17, 1
      %s199 = scalar_select %p198, %s17, 1
      %p200 = scmp.lt.s32.totalorder %s18, 0
      %s201 = scalar_select %p200, %s18, 0
      %s202 = smul.addr %s199, 81
      %s203 = sadd.s32 %s201, %s202
      %s204 = smul.addr %s203, 4
      %s205 = scalar_lea.vmem %s2, %s204
      %v206 = vld [vmem:[%s189] sm:$0xf]
      %v207 = vld [vmem:[%s197] sm:$0xf]
      %209 = vrot.lane.b32.xlu0 %v207, 8
      %v210 = vpop.permute.xlu0 %209
      %v212 = vmul.f32 %v206, %v210
      %v213 = vadd.f32 %v212, 0.0
      %s214 = scalar_lea.vmem %s197, 4
      %v215 = vld [vmem:[%s214] sm:$0xf]
      %217 = vrot.lane.b32.xlu0 %v215, 8
      %v218 = vpop.permute.xlu0 %217
      %v220 = vmul.f32 %v206, %v218
      %v221 = vadd.f32 %v220, 0.0
      %s222 = scalar_lea.vmem %s197, 8
      %v223 = vld [vmem:[%s222] sm:$0xf]
      %225 = vrot.lane.b32.xlu0 %v223, 8
      %v226 = vpop.permute.xlu0 %225
      %v228 = vmul.f32 %v206, %v226
      %v229 = vadd.f32 %v228, 0.0
      %s230 = scalar_lea.vmem %s197, 12
      %v231 = vld [vmem:[%s230] sm:$0xf]
      %233 = vrot.lane.b32.xlu0 %v231, 8
      %v234 = vpop.permute.xlu0 %233
      %v236 = vmul.f32 %v206, %v234
      %v237 = vadd.f32 %v236, 0.0
      %s238 = scalar_lea.vmem %s197, 16
      %v239 = vld [vmem:[%s238] sm:$0xf]
      %241 = vrot.lane.b32.xlu0 %v239, 8
      %v242 = vpop.permute.xlu0 %241
      %v244 = vmul.f32 %v206, %v242
      %v245 = vadd.f32 %v244, 0.0
      %s246 = scalar_lea.vmem %s197, 20
      %v247 = vld [vmem:[%s246] sm:$0xf]
      %249 = vrot.lane.b32.xlu0 %v247, 8
      %v250 = vpop.permute.xlu0 %249
      %v252 = vmul.f32 %v206, %v250
      %v253 = vadd.f32 %v252, 0.0
      %s254 = scalar_lea.vmem %s197, 24
      %v255 = vld [vmem:[%s254] sm:$0xf]
      %257 = vrot.lane.b32.xlu0 %v255, 8
      %v258 = vpop.permute.xlu0 %257
      %v260 = vmul.f32 %v206, %v258
      %v261 = vadd.f32 %v260, 0.0
      %s262 = scalar_lea.vmem %s197, 28
      %v263 = vld [vmem:[%s262] sm:$0xf]
      %265 = vrot.lane.b32.xlu0 %v263, 8
      %v266 = vpop.permute.xlu0 %265
      %v268 = vmul.f32 %v206, %v266
      %v269 = vadd.f32 %v268, 0.0
      %s270 = scalar_lea.vmem %s197, 32
      %v271 = vld [vmem:[%s270] sm:$0xf]
      %273 = vrot.lane.b32.xlu0 %v271, 8
      %v274 = vpop.permute.xlu0 %273
      %v276 = vmul.f32 %v206, %v274
      %v277 = vadd.f32 %v276, 0.0
      %s278 = scalar_lea.vmem %s189, 4
      %v279 = vld [vmem:[%s278] sm:$0xf]
      %s280 = scalar_lea.vmem %s197, 36
      %v281 = vld [vmem:[%s280] sm:$0xf]
      %283 = vrot.lane.b32.xlu0 %v281, 8
      %v284 = vpop.permute.xlu0 %283
      %v286 = vmul.f32 %v279, %v284
      %v287 = vadd.f32 %v213, %v286
      %s288 = scalar_lea.vmem %s197, 40
      %v289 = vld [vmem:[%s288] sm:$0xf]
      %291 = vrot.lane.b32.xlu0 %v289, 8
      %v292 = vpop.permute.xlu0 %291
      %v294 = vmul.f32 %v279, %v292
      %v295 = vadd.f32 %v221, %v294
      %s296 = scalar_lea.vmem %s197, 44
      %v297 = vld [vmem:[%s296] sm:$0xf]
      %299 = vrot.lane.b32.xlu0 %v297, 8
      %v300 = vpop.permute.xlu0 %299
      %v302 = vmul.f32 %v279, %v300
      %v303 = vadd.f32 %v229, %v302
      %s304 = scalar_lea.vmem %s197, 48
      %v305 = vld [vmem:[%s304] sm:$0xf]
      %307 = vrot.lane.b32.xlu0 %v305, 8
      %v308 = vpop.permute.xlu0 %307
      %v310 = vmul.f32 %v279, %v308
      %v311 = vadd.f32 %v237, %v310
      %s312 = scalar_lea.vmem %s197, 52
      %v313 = vld [vmem:[%s312] sm:$0xf]
      %315 = vrot.lane.b32.xlu0 %v313, 8
      %v316 = vpop.permute.xlu0 %315
      %v318 = vmul.f32 %v279, %v316
      %v319 = vadd.f32 %v245, %v318
      %s320 = scalar_lea.vmem %s197, 56
      %v321 = vld [vmem:[%s320] sm:$0xf]
      %323 = vrot.lane.b32.xlu0 %v321, 8
      %v324 = vpop.permute.xlu0 %323
      %v326 = vmul.f32 %v279, %v324
      %v327 = vadd.f32 %v253, %v326
      %s328 = scalar_lea.vmem %s197, 60
      %v329 = vld [vmem:[%s328] sm:$0xf]
      %331 = vrot.lane.b32.xlu0 %v329, 8
      %v332 = vpop.permute.xlu0 %331
      %v334 = vmul.f32 %v279, %v332
      %v335 = vadd.f32 %v261, %v334
      %s336 = scalar_lea.vmem %s197, 64
      %v337 = vld [vmem:[%s336] sm:$0xf]
      %339 = vrot.lane.b32.xlu0 %v337, 8
      %v340 = vpop.permute.xlu0 %339
      %v342 = vmul.f32 %v279, %v340
      %v343 = vadd.f32 %v269, %v342
      %s344 = scalar_lea.vmem %s197, 68
      %v345 = vld [vmem:[%s344] sm:$0xf]
      %347 = vrot.lane.b32.xlu0 %v345, 8
      %v348 = vpop.permute.xlu0 %347
      %v350 = vmul.f32 %v279, %v348
      %v351 = vadd.f32 %v277, %v350
      %s352 = scalar_lea.vmem %s189, 8
      %v353 = vld [vmem:[%s352] sm:$0xf]
      %s354 = scalar_lea.vmem %s197, 72
      %v355 = vld [vmem:[%s354] sm:$0xf]
      %357 = vrot.lane.b32.xlu0 %v355, 8
      %v358 = vpop.permute.xlu0 %357
      %v360 = vmul.f32 %v353, %v358
      %v361 = vadd.f32 %v287, %v360
      %s362 = scalar_lea.vmem %s197, 76
      %v363 = vld [vmem:[%s362] sm:$0xf]
      %365 = vrot.lane.b32.xlu0 %v363, 8
      %v366 = vpop.permute.xlu0 %365
      %v368 = vmul.f32 %v353, %v366
      %v369 = vadd.f32 %v295, %v368
      %s370 = scalar_lea.vmem %s197, 80
      %v371 = vld [vmem:[%s370] sm:$0xf]
      %373 = vrot.lane.b32.xlu0 %v371, 8
      %v374 = vpop.permute.xlu0 %373
      %v376 = vmul.f32 %v353, %v374
      %v377 = vadd.f32 %v303, %v376
      %s378 = scalar_lea.vmem %s197, 84
      %v379 = vld [vmem:[%s378] sm:$0xf]
      %381 = vrot.lane.b32.xlu0 %v379, 8
      %v382 = vpop.permute.xlu0 %381
      %v384 = vmul.f32 %v353, %v382
      %v385 = vadd.f32 %v311, %v384
      %s386 = scalar_lea.vmem %s197, 88
      %v387 = vld [vmem:[%s386] sm:$0xf]
      %389 = vrot.lane.b32.xlu0 %v387, 8
      %v390 = vpop.permute.xlu0 %389
      %v392 = vmul.f32 %v353, %v390
      %v393 = vadd.f32 %v319, %v392
      %s394 = scalar_lea.vmem %s197, 92
      %v395 = vld [vmem:[%s394] sm:$0xf]
      %397 = vrot.lane.b32.xlu0 %v395, 8
      %v398 = vpop.permute.xlu0 %397
      %v400 = vmul.f32 %v353, %v398
      %v401 = vadd.f32 %v327, %v400
      %s402 = scalar_lea.vmem %s197, 96
      %v403 = vld [vmem:[%s402] sm:$0xf]
      %405 = vrot.lane.b32.xlu0 %v403, 8
      %v406 = vpop.permute.xlu0 %405
      %v408 = vmul.f32 %v353, %v406
      %v409 = vadd.f32 %v335, %v408
      %s410 = scalar_lea.vmem %s197, 100
      %v411 = vld [vmem:[%s410] sm:$0xf]
      %413 = vrot.lane.b32.xlu0 %v411, 8
      %v414 = vpop.permute.xlu0 %413
      %v416 = vmul.f32 %v353, %v414
      %v417 = vadd.f32 %v343, %v416
      %s418 = scalar_lea.vmem %s197, 104
      %v419 = vld [vmem:[%s418] sm:$0xf]
      %421 = vrot.lane.b32.xlu0 %v419, 8
      %v422 = vpop.permute.xlu0 %421
      %v424 = vmul.f32 %v353, %v422
      %v425 = vadd.f32 %v351, %v424
      %s426 = scalar_lea.vmem %s189, 12
      %v427 = vld [vmem:[%s426] sm:$0xf]
      %s428 = scalar_lea.vmem %s197, 108
      %v429 = vld [vmem:[%s428] sm:$0xf]
      %431 = vrot.lane.b32.xlu0 %v429, 8
      %v432 = vpop.permute.xlu0 %431
      %v434 = vmul.f32 %v427, %v432
      %v435 = vadd.f32 %v361, %v434
      %s436 = scalar_lea.vmem %s197, 112
      %v437 = vld [vmem:[%s436] sm:$0xf]
      %439 = vrot.lane.b32.xlu0 %v437, 8
      %v440 = vpop.permute.xlu0 %439
      %v442 = vmul.f32 %v427, %v440
      %v443 = vadd.f32 %v369, %v442
      %s444 = scalar_lea.vmem %s197, 116
      %v445 = vld [vmem:[%s444] sm:$0xf]
      %447 = vrot.lane.b32.xlu0 %v445, 8
      %v448 = vpop.permute.xlu0 %447
      %v450 = vmul.f32 %v427, %v448
      %v451 = vadd.f32 %v377, %v450
      %s452 = scalar_lea.vmem %s197, 120
      %v453 = vld [vmem:[%s452] sm:$0xf]
      %455 = vrot.lane.b32.xlu0 %v453, 8
      %v456 = vpop.permute.xlu0 %455
      %v458 = vmul.f32 %v427, %v456
      %v459 = vadd.f32 %v385, %v458
      %s460 = scalar_lea.vmem %s197, 124
      %v461 = vld [vmem:[%s460] sm:$0xf]
      %463 = vrot.lane.b32.xlu0 %v461, 8
      %v464 = vpop.permute.xlu0 %463
      %v466 = vmul.f32 %v427, %v464
      %v467 = vadd.f32 %v393, %v466
      %s468 = scalar_lea.vmem %s197, 128
      %v469 = vld [vmem:[%s468] sm:$0xf]
      %471 = vrot.lane.b32.xlu0 %v469, 8
      %v472 = vpop.permute.xlu0 %471
      %v474 = vmul.f32 %v427, %v472
      %v475 = vadd.f32 %v401, %v474
      %s476 = scalar_lea.vmem %s197, 132
      %v477 = vld [vmem:[%s476] sm:$0xf]
      %479 = vrot.lane.b32.xlu0 %v477, 8
      %v480 = vpop.permute.xlu0 %479
      %v482 = vmul.f32 %v427, %v480
      %v483 = vadd.f32 %v409, %v482
      %s484 = scalar_lea.vmem %s197, 136
      %v485 = vld [vmem:[%s484] sm:$0xf]
      %487 = vrot.lane.b32.xlu0 %v485, 8
      %v488 = vpop.permute.xlu0 %487
      %v490 = vmul.f32 %v427, %v488
      %v491 = vadd.f32 %v417, %v490
      %s492 = scalar_lea.vmem %s197, 140
      %v493 = vld [vmem:[%s492] sm:$0xf]
      %495 = vrot.lane.b32.xlu0 %v493, 8
      %v496 = vpop.permute.xlu0 %495
      %v498 = vmul.f32 %v427, %v496
      %v499 = vadd.f32 %v425, %v498
      %v500 = vmul.f32 %v435, 0.25
      %502 = vrot.lane.b32.xlu0 %v500, 120
      %v503 = vpop.permute.xlu0 %502
      %vm505 = vcmask 715776
      %506 = vst.msk [vmem:[%s205] sm:$0xf] %vm505, %v503
      %v507 = vmul.f32 %v443, 0.25
      %509 = vrot.lane.b32.xlu0 %v507, 120
      %v510 = vpop.permute.xlu0 %509
      %s512 = scalar_lea.vmem %s205, 36
      %513 = vst.msk [vmem:[%s512] sm:$0xf] %vm505, %v510
      %v514 = vmul.f32 %v451, 0.25
      %516 = vrot.lane.b32.xlu0 %v514, 120
      %v517 = vpop.permute.xlu0 %516
      %s519 = scalar_lea.vmem %s205, 72
      %520 = vst.msk [vmem:[%s519] sm:$0xf] %vm505, %v517
      %v521 = vmul.f32 %v459, 0.25
      %523 = vrot.lane.b32.xlu0 %v521, 120
      %v524 = vpop.permute.xlu0 %523
      %s526 = scalar_lea.vmem %s205, 108
      %527 = vst.msk [vmem:[%s526] sm:$0xf] %vm505, %v524
      %v528 = vmul.f32 %v467, 0.25
      %530 = vrot.lane.b32.xlu0 %v528, 120
      %v531 = vpop.permute.xlu0 %530
      %s533 = scalar_lea.vmem %s205, 144
      %534 = vst.msk [vmem:[%s533] sm:$0xf] %vm505, %v531
      %v535 = vmul.f32 %v475, 0.25
      %537 = vrot.lane.b32.xlu0 %v535, 120
      %v538 = vpop.permute.xlu0 %537
      %s540 = scalar_lea.vmem %s205, 180
      %541 = vst.msk [vmem:[%s540] sm:$0xf] %vm505, %v538
      %v542 = vmul.f32 %v483, 0.25
      %544 = vrot.lane.b32.xlu0 %v542, 120
      %v545 = vpop.permute.xlu0 %544
      %s547 = scalar_lea.vmem %s205, 216
      %548 = vst.msk [vmem:[%s547] sm:$0xf] %vm505, %v545
      %v549 = vmul.f32 %v491, 0.25
      %551 = vrot.lane.b32.xlu0 %v549, 120
      %v552 = vpop.permute.xlu0 %551
      %s554 = scalar_lea.vmem %s205, 252
      %555 = vst.msk [vmem:[%s554] sm:$0xf] %vm505, %v552
      %v556 = vmul.f32 %v499, 0.25
      %558 = vrot.lane.b32.xlu0 %v556, 120
      %v559 = vpop.permute.xlu0 %558
      %s561 = scalar_lea.vmem %s205, 288
      %562 = vst.msk [vmem:[%s561] sm:$0xf] %vm505, %v559
      %v563 = vld [vmem:[%s189] sm:$0xf]
      %v564 = vld [vmem:[%s197] sm:$0xf]
      %566 = vrot.lane.b32.xlu0 %v564, 7
      %v567 = vpop.permute.xlu0 %566
      %v569 = vmul.f32 %v563, %v567
      %v570 = vadd.f32 %v569, 0.0
      %v571 = vld [vmem:[%s214] sm:$0xf]
      %573 = vrot.lane.b32.xlu0 %v571, 7
      %v574 = vpop.permute.xlu0 %573
      %v576 = vmul.f32 %v563, %v574
      %v577 = vadd.f32 %v576, 0.0
      %v578 = vld [vmem:[%s222] sm:$0xf]
      %580 = vrot.lane.b32.xlu0 %v578, 7
      %v581 = vpop.permute.xlu0 %580
      %v583 = vmul.f32 %v563, %v581
      %v584 = vadd.f32 %v583, 0.0
      %v585 = vld [vmem:[%s230] sm:$0xf]
      %587 = vrot.lane.b32.xlu0 %v585, 7
      %v588 = vpop.permute.xlu0 %587
      %v590 = vmul.f32 %v563, %v588
      %v591 = vadd.f32 %v590, 0.0
      %v592 = vld [vmem:[%s238] sm:$0xf]
      %594 = vrot.lane.b32.xlu0 %v592, 7
      %v595 = vpop.permute.xlu0 %594
      %v597 = vmul.f32 %v563, %v595
      %v598 = vadd.f32 %v597, 0.0
      %v599 = vld [vmem:[%s246] sm:$0xf]
      %601 = vrot.lane.b32.xlu0 %v599, 7
      %v602 = vpop.permute.xlu0 %601
      %v604 = vmul.f32 %v563, %v602
      %v605 = vadd.f32 %v604, 0.0
      %v606 = vld [vmem:[%s254] sm:$0xf]
      %608 = vrot.lane.b32.xlu0 %v606, 7
      %v609 = vpop.permute.xlu0 %608
      %v611 = vmul.f32 %v563, %v609
      %v612 = vadd.f32 %v611, 0.0
      %v613 = vld [vmem:[%s262] sm:$0xf]
      %615 = vrot.lane.b32.xlu0 %v613, 7
      %v616 = vpop.permute.xlu0 %615
      %v618 = vmul.f32 %v563, %v616
      %v619 = vadd.f32 %v618, 0.0
      %v620 = vld [vmem:[%s270] sm:$0xf]
      %622 = vrot.lane.b32.xlu0 %v620, 7
      %v623 = vpop.permute.xlu0 %622
      %v625 = vmul.f32 %v563, %v623
      %v626 = vadd.f32 %v625, 0.0
      %v627 = vld [vmem:[%s278] sm:$0xf]
      %v628 = vld [vmem:[%s280] sm:$0xf]
      %630 = vrot.lane.b32.xlu0 %v628, 7
      %v631 = vpop.permute.xlu0 %630
      %v633 = vmul.f32 %v627, %v631
      %v634 = vadd.f32 %v570, %v633
      %v635 = vld [vmem:[%s288] sm:$0xf]
      %637 = vrot.lane.b32.xlu0 %v635, 7
      %v638 = vpop.permute.xlu0 %637
      %v640 = vmul.f32 %v627, %v638
      %v641 = vadd.f32 %v577, %v640
      %v642 = vld [vmem:[%s296] sm:$0xf]
      %644 = vrot.lane.b32.xlu0 %v642, 7
      %v645 = vpop.permute.xlu0 %644
      %v647 = vmul.f32 %v627, %v645
      %v648 = vadd.f32 %v584, %v647
      %v649 = vld [vmem:[%s304] sm:$0xf]
      %651 = vrot.lane.b32.xlu0 %v649, 7
      %v652 = vpop.permute.xlu0 %651
      %v654 = vmul.f32 %v627, %v652
      %v655 = vadd.f32 %v591, %v654
      %v656 = vld [vmem:[%s312] sm:$0xf]
      %658 = vrot.lane.b32.xlu0 %v656, 7
      %v659 = vpop.permute.xlu0 %658
      %v661 = vmul.f32 %v627, %v659
      %v662 = vadd.f32 %v598, %v661
      %v663 = vld [vmem:[%s320] sm:$0xf]
      %665 = vrot.lane.b32.xlu0 %v663, 7
      %v666 = vpop.permute.xlu0 %665
      %v668 = vmul.f32 %v627, %v666
      %v669 = vadd.f32 %v605, %v668
      %v670 = vld [vmem:[%s328] sm:$0xf]
      %672 = vrot.lane.b32.xlu0 %v670, 7
      %v673 = vpop.permute.xlu0 %672
      %v675 = vmul.f32 %v627, %v673
      %v676 = vadd.f32 %v612, %v675
      %v677 = vld [vmem:[%s336] sm:$0xf]
      %679 = vrot.lane.b32.xlu0 %v677, 7
      %v680 = vpop.permute.xlu0 %679
      %v682 = vmul.f32 %v627, %v680
      %v683 = vadd.f32 %v619, %v682
      %v684 = vld [vmem:[%s344] sm:$0xf]
      %686 = vrot.lane.b32.xlu0 %v684, 7
      %v687 = vpop.permute.xlu0 %686
      %v689 = vmul.f32 %v627, %v687
      %v690 = vadd.f32 %v626, %v689
      %v691 = vld [vmem:[%s352] sm:$0xf]
      %v692 = vld [vmem:[%s354] sm:$0xf]
      %694 = vrot.lane.b32.xlu0 %v692, 7
      %v695 = vpop.permute.xlu0 %694
      %v697 = vmul.f32 %v691, %v695
      %v698 = vadd.f32 %v634, %v697
      %v699 = vld [vmem:[%s362] sm:$0xf]
      %701 = vrot.lane.b32.xlu0 %v699, 7
      %v702 = vpop.permute.xlu0 %701
      %v704 = vmul.f32 %v691, %v702
      %v705 = vadd.f32 %v641, %v704
      %v706 = vld [vmem:[%s370] sm:$0xf]
      %708 = vrot.lane.b32.xlu0 %v706, 7
      %v709 = vpop.permute.xlu0 %708
      %v711 = vmul.f32 %v691, %v709
      %v712 = vadd.f32 %v648, %v711
      %v713 = vld [vmem:[%s378] sm:$0xf]
      %715 = vrot.lane.b32.xlu0 %v713, 7
      %v716 = vpop.permute.xlu0 %715
      %v718 = vmul.f32 %v691, %v716
      %v719 = vadd.f32 %v655, %v718
      %v720 = vld [vmem:[%s386] sm:$0xf]
      %722 = vrot.lane.b32.xlu0 %v720, 7
      %v723 = vpop.permute.xlu0 %722
      %v725 = vmul.f32 %v691, %v723
      %v726 = vadd.f32 %v662, %v725
      %v727 = vld [vmem:[%s394] sm:$0xf]
      %729 = vrot.lane.b32.xlu0 %v727, 7
      %v730 = vpop.permute.xlu0 %729
      %v732 = vmul.f32 %v691, %v730
      %v733 = vadd.f32 %v669, %v732
      %v734 = vld [vmem:[%s402] sm:$0xf]
      %736 = vrot.lane.b32.xlu0 %v734, 7
      %v737 = vpop.permute.xlu0 %736
      %v739 = vmul.f32 %v691, %v737
      %v740 = vadd.f32 %v676, %v739
      %v741 = vld [vmem:[%s410] sm:$0xf]
      %743 = vrot.lane.b32.xlu0 %v741, 7
      %v744 = vpop.permute.xlu0 %743
      %v746 = vmul.f32 %v691, %v744
      %v747 = vadd.f32 %v683, %v746
      %v748 = vld [vmem:[%s418] sm:$0xf]
      %750 = vrot.lane.b32.xlu0 %v748, 7
      %v751 = vpop.permute.xlu0 %750
      %v753 = vmul.f32 %v691, %v751
      %v754 = vadd.f32 %v690, %v753
      %v755 = vld [vmem:[%s426] sm:$0xf]
      %v756 = vld [vmem:[%s428] sm:$0xf]
      %758 = vrot.lane.b32.xlu0 %v756, 7
      %v759 = vpop.permute.xlu0 %758
      %v761 = vmul.f32 %v755, %v759
      %v762 = vadd.f32 %v698, %v761
      %v763 = vld [vmem:[%s436] sm:$0xf]
      %765 = vrot.lane.b32.xlu0 %v763, 7
      %v766 = vpop.permute.xlu0 %765
      %v768 = vmul.f32 %v755, %v766
      %v769 = vadd.f32 %v705, %v768
      %v770 = vld [vmem:[%s444] sm:$0xf]
      %772 = vrot.lane.b32.xlu0 %v770, 7
      %v773 = vpop.permute.xlu0 %772
      %v775 = vmul.f32 %v755, %v773
      %v776 = vadd.f32 %v712, %v775
      %v777 = vld [vmem:[%s452] sm:$0xf]
      %779 = vrot.lane.b32.xlu0 %v777, 7
      %v780 = vpop.permute.xlu0 %779
      %v782 = vmul.f32 %v755, %v780
      %v783 = vadd.f32 %v719, %v782
      %v784 = vld [vmem:[%s460] sm:$0xf]
      %786 = vrot.lane.b32.xlu0 %v784, 7
      %v787 = vpop.permute.xlu0 %786
      %v789 = vmul.f32 %v755, %v787
      %v790 = vadd.f32 %v726, %v789
      %v791 = vld [vmem:[%s468] sm:$0xf]
      %793 = vrot.lane.b32.xlu0 %v791, 7
      %v794 = vpop.permute.xlu0 %793
      %v796 = vmul.f32 %v755, %v794
      %v797 = vadd.f32 %v733, %v796
      %v798 = vld [vmem:[%s476] sm:$0xf]
      %800 = vrot.lane.b32.xlu0 %v798, 7
      %v801 = vpop.permute.xlu0 %800
      %v803 = vmul.f32 %v755, %v801
      %v804 = vadd.f32 %v740, %v803
      %v805 = vld [vmem:[%s484] sm:$0xf]
      %807 = vrot.lane.b32.xlu0 %v805, 7
      %v808 = vpop.permute.xlu0 %807
      %v810 = vmul.f32 %v755, %v808
      %v811 = vadd.f32 %v747, %v810
      %v812 = vld [vmem:[%s492] sm:$0xf]
      %814 = vrot.lane.b32.xlu0 %v812, 7
      %v815 = vpop.permute.xlu0 %814
      %v817 = vmul.f32 %v755, %v815
      %v818 = vadd.f32 %v754, %v817
      %v819 = vmul.f32 %v762, 0.25
      %821 = vrot.lane.b32.xlu0 %v819, 120
      %v822 = vpop.permute.xlu0 %821
      %s824 = scalar_lea.vmem %s205, 4
      %825 = vst.msk [vmem:[%s824] sm:$0xf] %vm505, %v822
      %v826 = vmul.f32 %v769, 0.25
      %828 = vrot.lane.b32.xlu0 %v826, 120
      %v829 = vpop.permute.xlu0 %828
      %s831 = scalar_lea.vmem %s205, 40
      %832 = vst.msk [vmem:[%s831] sm:$0xf] %vm505, %v829
      %v833 = vmul.f32 %v776, 0.25
      %835 = vrot.lane.b32.xlu0 %v833, 120
      %v836 = vpop.permute.xlu0 %835
      %s838 = scalar_lea.vmem %s205, 76
      %839 = vst.msk [vmem:[%s838] sm:$0xf] %vm505, %v836
      %v840 = vmul.f32 %v783, 0.25
      %842 = vrot.lane.b32.xlu0 %v840, 120
      %v843 = vpop.permute.xlu0 %842
      %s845 = scalar_lea.vmem %s205, 112
      %846 = vst.msk [vmem:[%s845] sm:$0xf] %vm505, %v843
      %v847 = vmul.f32 %v790, 0.25
      %849 = vrot.lane.b32.xlu0 %v847, 120
      %v850 = vpop.permute.xlu0 %849
      %s852 = scalar_lea.vmem %s205, 148
      %853 = vst.msk [vmem:[%s852] sm:$0xf] %vm505, %v850
      %v854 = vmul.f32 %v797, 0.25
      %856 = vrot.lane.b32.xlu0 %v854, 120
      %v857 = vpop.permute.xlu0 %856
      %s859 = scalar_lea.vmem %s205, 184
      %860 = vst.msk [vmem:[%s859] sm:$0xf] %vm505, %v857
      %v861 = vmul.f32 %v804, 0.25
      %863 = vrot.lane.b32.xlu0 %v861, 120
      %v864 = vpop.permute.xlu0 %863
      %s866 = scalar_lea.vmem %s205, 220
      %867 = vst.msk [vmem:[%s866] sm:$0xf] %vm505, %v864
      %v868 = vmul.f32 %v811, 0.25
      %870 = vrot.lane.b32.xlu0 %v868, 120
      %v871 = vpop.permute.xlu0 %870
      %s873 = scalar_lea.vmem %s205, 256
      %874 = vst.msk [vmem:[%s873] sm:$0xf] %vm505, %v871
      %v875 = vmul.f32 %v818, 0.25
      %877 = vrot.lane.b32.xlu0 %v875, 120
      %v878 = vpop.permute.xlu0 %877
      %s880 = scalar_lea.vmem %s205, 292
      %881 = vst.msk [vmem:[%s880] sm:$0xf] %vm505, %v878
      %v882 = vld [vmem:[%s189] sm:$0xf]
      %v883 = vld [vmem:[%s197] sm:$0xf]
      %885 = vrot.lane.b32.xlu0 %v883, 6
      %v886 = vpop.permute.xlu0 %885
      %v888 = vmul.f32 %v882, %v886
      %v889 = vadd.f32 %v888, 0.0
      %v890 = vld [vmem:[%s214] sm:$0xf]
      %892 = vrot.lane.b32.xlu0 %v890, 6
      %v893 = vpop.permute.xlu0 %892
      %v895 = vmul.f32 %v882, %v893
      %v896 = vadd.f32 %v895, 0.0
      %v897 = vld [vmem:[%s222] sm:$0xf]
      %899 = vrot.lane.b32.xlu0 %v897, 6
      %v900 = vpop.permute.xlu0 %899
      %v902 = vmul.f32 %v882, %v900
      %v903 = vadd.f32 %v902, 0.0
      %v904 = vld [vmem:[%s230] sm:$0xf]
      %906 = vrot.lane.b32.xlu0 %v904, 6
      %v907 = vpop.permute.xlu0 %906
      %v909 = vmul.f32 %v882, %v907
      %v910 = vadd.f32 %v909, 0.0
      %v911 = vld [vmem:[%s238] sm:$0xf]
      %913 = vrot.lane.b32.xlu0 %v911, 6
      %v914 = vpop.permute.xlu0 %913
      %v916 = vmul.f32 %v882, %v914
      %v917 = vadd.f32 %v916, 0.0
      %v918 = vld [vmem:[%s246] sm:$0xf]
      %920 = vrot.lane.b32.xlu0 %v918, 6
      %v921 = vpop.permute.xlu0 %920
      %v923 = vmul.f32 %v882, %v921
      %v924 = vadd.f32 %v923, 0.0
      %v925 = vld [vmem:[%s254] sm:$0xf]
      %927 = vrot.lane.b32.xlu0 %v925, 6
      %v928 = vpop.permute.xlu0 %927
      %v930 = vmul.f32 %v882, %v928
      %v931 = vadd.f32 %v930, 0.0
      %v932 = vld [vmem:[%s262] sm:$0xf]
      %934 = vrot.lane.b32.xlu0 %v932, 6
      %v935 = vpop.permute.xlu0 %934
      %v937 = vmul.f32 %v882, %v935
      %v938 = vadd.f32 %v937, 0.0
      %v939 = vld [vmem:[%s270] sm:$0xf]
      %941 = vrot.lane.b32.xlu0 %v939, 6
      %v942 = vpop.permute.xlu0 %941
      %v944 = vmul.f32 %v882, %v942
      %v945 = vadd.f32 %v944, 0.0
      %v946 = vld [vmem:[%s278] sm:$0xf]
      %v947 = vld [vmem:[%s280] sm:$0xf]
      %949 = vrot.lane.b32.xlu0 %v947, 6
      %v950 = vpop.permute.xlu0 %949
      %v952 = vmul.f32 %v946, %v950
      %v953 = vadd.f32 %v889, %v952
      %v954 = vld [vmem:[%s288] sm:$0xf]
      %956 = vrot.lane.b32.xlu0 %v954, 6
      %v957 = vpop.permute.xlu0 %956
      %v959 = vmul.f32 %v946, %v957
      %v960 = vadd.f32 %v896, %v959
      %v961 = vld [vmem:[%s296] sm:$0xf]
      %963 = vrot.lane.b32.xlu0 %v961, 6
      %v964 = vpop.permute.xlu0 %963
      %v966 = vmul.f32 %v946, %v964
      %v967 = vadd.f32 %v903, %v966
      %v968 = vld [vmem:[%s304] sm:$0xf]
      %970 = vrot.lane.b32.xlu0 %v968, 6
      %v971 = vpop.permute.xlu0 %970
      %v973 = vmul.f32 %v946, %v971
      %v974 = vadd.f32 %v910, %v973
      %v975 = vld [vmem:[%s312] sm:$0xf]
      %977 = vrot.lane.b32.xlu0 %v975, 6
      %v978 = vpop.permute.xlu0 %977
      %v980 = vmul.f32 %v946, %v978
      %v981 = vadd.f32 %v917, %v980
      %v982 = vld [vmem:[%s320] sm:$0xf]
      %984 = vrot.lane.b32.xlu0 %v982, 6
      %v985 = vpop.permute.xlu0 %984
      %v987 = vmul.f32 %v946, %v985
      %v988 = vadd.f32 %v924, %v987
      %v989 = vld [vmem:[%s328] sm:$0xf]
      %991 = vrot.lane.b32.xlu0 %v989, 6
      %v992 = vpop.permute.xlu0 %991
      %v994 = vmul.f32 %v946, %v992
      %v995 = vadd.f32 %v931, %v994
      %v996 = vld [vmem:[%s336] sm:$0xf]
      %998 = vrot.lane.b32.xlu0 %v996, 6
      %v999 = vpop.permute.xlu0 %998
      %v1001 = vmul.f32 %v946, %v999
      %v1002 = vadd.f32 %v938, %v1001
      %v1003 = vld [vmem:[%s344] sm:$0xf]
      %1005 = vrot.lane.b32.xlu0 %v1003, 6
      %v1006 = vpop.permute.xlu0 %1005
      %v1008 = vmul.f32 %v946, %v1006
      %v1009 = vadd.f32 %v945, %v1008
      %v1010 = vld [vmem:[%s352] sm:$0xf]
      %v1011 = vld [vmem:[%s354] sm:$0xf]
      %1013 = vrot.lane.b32.xlu0 %v1011, 6
      %v1014 = vpop.permute.xlu0 %1013
      %v1016 = vmul.f32 %v1010, %v1014
      %v1017 = vadd.f32 %v953, %v1016
      %v1018 = vld [vmem:[%s362] sm:$0xf]
      %1020 = vrot.lane.b32.xlu0 %v1018, 6
      %v1021 = vpop.permute.xlu0 %1020
      %v1023 = vmul.f32 %v1010, %v1021
      %v1024 = vadd.f32 %v960, %v1023
      %v1025 = vld [vmem:[%s370] sm:$0xf]
      %1027 = vrot.lane.b32.xlu0 %v1025, 6
      %v1028 = vpop.permute.xlu0 %1027
      %v1030 = vmul.f32 %v1010, %v1028
      %v1031 = vadd.f32 %v967, %v1030
      %v1032 = vld [vmem:[%s378] sm:$0xf]
      %1034 = vrot.lane.b32.xlu0 %v1032, 6
      %v1035 = vpop.permute.xlu0 %1034
      %v1037 = vmul.f32 %v1010, %v1035
      %v1038 = vadd.f32 %v974, %v1037
      %v1039 = vld [vmem:[%s386] sm:$0xf]
      %1041 = vrot.lane.b32.xlu0 %v1039, 6
      %v1042 = vpop.permute.xlu0 %1041
      %v1044 = vmul.f32 %v1010, %v1042
      %v1045 = vadd.f32 %v981, %v1044
      %v1046 = vld [vmem:[%s394] sm:$0xf]
      %1048 = vrot.lane.b32.xlu0 %v1046, 6
      %v1049 = vpop.permute.xlu0 %1048
      %v1051 = vmul.f32 %v1010, %v1049
      %v1052 = vadd.f32 %v988, %v1051
      %v1053 = vld [vmem:[%s402] sm:$0xf]
      %1055 = vrot.lane.b32.xlu0 %v1053, 6
      %v1056 = vpop.permute.xlu0 %1055
      %v1058 = vmul.f32 %v1010, %v1056
      %v1059 = vadd.f32 %v995, %v1058
      %v1060 = vld [vmem:[%s410] sm:$0xf]
      %1062 = vrot.lane.b32.xlu0 %v1060, 6
      %v1063 = vpop.permute.xlu0 %1062
      %v1065 = vmul.f32 %v1010, %v1063
      %v1066 = vadd.f32 %v1002, %v1065
      %v1067 = vld [vmem:[%s418] sm:$0xf]
      %1069 = vrot.lane.b32.xlu0 %v1067, 6
      %v1070 = vpop.permute.xlu0 %1069
      %v1072 = vmul.f32 %v1010, %v1070
      %v1073 = vadd.f32 %v1009, %v1072
      %v1074 = vld [vmem:[%s426] sm:$0xf]
      %v1075 = vld [vmem:[%s428] sm:$0xf]
      %1077 = vrot.lane.b32.xlu0 %v1075, 6
      %v1078 = vpop.permute.xlu0 %1077
      %v1080 = vmul.f32 %v1074, %v1078
      %v1081 = vadd.f32 %v1017, %v1080
      %v1082 = vld [vmem:[%s436] sm:$0xf]
      %1084 = vrot.lane.b32.xlu0 %v1082, 6
      %v1085 = vpop.permute.xlu0 %1084
      %v1087 = vmul.f32 %v1074, %v1085
      %v1088 = vadd.f32 %v1024, %v1087
      %v1089 = vld [vmem:[%s444] sm:$0xf]
      %1091 = vrot.lane.b32.xlu0 %v1089, 6
      %v1092 = vpop.permute.xlu0 %1091
      %v1094 = vmul.f32 %v1074, %v1092
      %v1095 = vadd.f32 %v1031, %v1094
      %v1096 = vld [vmem:[%s452] sm:$0xf]
      %1098 = vrot.lane.b32.xlu0 %v1096, 6
      %v1099 = vpop.permute.xlu0 %1098
      %v1101 = vmul.f32 %v1074, %v1099
      %v1102 = vadd.f32 %v1038, %v1101
      %v1103 = vld [vmem:[%s460] sm:$0xf]
      %1105 = vrot.lane.b32.xlu0 %v1103, 6
      %v1106 = vpop.permute.xlu0 %1105
      %v1108 = vmul.f32 %v1074, %v1106
      %v1109 = vadd.f32 %v1045, %v1108
      %v1110 = vld [vmem:[%s468] sm:$0xf]
      %1112 = vrot.lane.b32.xlu0 %v1110, 6
      %v1113 = vpop.permute.xlu0 %1112
      %v1115 = vmul.f32 %v1074, %v1113
      %v1116 = vadd.f32 %v1052, %v1115
      %v1117 = vld [vmem:[%s476] sm:$0xf]
      %1119 = vrot.lane.b32.xlu0 %v1117, 6
      %v1120 = vpop.permute.xlu0 %1119
      %v1122 = vmul.f32 %v1074, %v1120
      %v1123 = vadd.f32 %v1059, %v1122
      %v1124 = vld [vmem:[%s484] sm:$0xf]
      %1126 = vrot.lane.b32.xlu0 %v1124, 6
      %v1127 = vpop.permute.xlu0 %1126
      %v1129 = vmul.f32 %v1074, %v1127
      %v1130 = vadd.f32 %v1066, %v1129
      %v1131 = vld [vmem:[%s492] sm:$0xf]
      %1133 = vrot.lane.b32.xlu0 %v1131, 6
      %v1134 = vpop.permute.xlu0 %1133
      %v1136 = vmul.f32 %v1074, %v1134
      %v1137 = vadd.f32 %v1073, %v1136
      %v1138 = vmul.f32 %v1081, 0.25
      %1140 = vrot.lane.b32.xlu0 %v1138, 120
      %v1141 = vpop.permute.xlu0 %1140
      %s1143 = scalar_lea.vmem %s205, 8
      %1144 = vst.msk [vmem:[%s1143] sm:$0xf] %vm505, %v1141
      %v1145 = vmul.f32 %v1088, 0.25
      %1147 = vrot.lane.b32.xlu0 %v1145, 120
      %v1148 = vpop.permute.xlu0 %1147
      %s1150 = scalar_lea.vmem %s205, 44
      %1151 = vst.msk [vmem:[%s1150] sm:$0xf] %vm505, %v1148
      %v1152 = vmul.f32 %v1095, 0.25
      %1154 = vrot.lane.b32.xlu0 %v1152, 120
      %v1155 = vpop.permute.xlu0 %1154
      %s1157 = scalar_lea.vmem %s205, 80
      %1158 = vst.msk [vmem:[%s1157] sm:$0xf] %vm505, %v1155
      %v1159 = vmul.f32 %v1102, 0.25
      %1161 = vrot.lane.b32.xlu0 %v1159, 120
      %v1162 = vpop.permute.xlu0 %1161
      %s1164 = scalar_lea.vmem %s205, 116
      %1165 = vst.msk [vmem:[%s1164] sm:$0xf] %vm505, %v1162
      %v1166 = vmul.f32 %v1109, 0.25
      %1168 = vrot.lane.b32.xlu0 %v1166, 120
      %v1169 = vpop.permute.xlu0 %1168
      %s1171 = scalar_lea.vmem %s205, 152
      %1172 = vst.msk [vmem:[%s1171] sm:$0xf] %vm505, %v1169
      %v1173 = vmul.f32 %v1116, 0.25
      %1175 = vrot.lane.b32.xlu0 %v1173, 120
      %v1176 = vpop.permute.xlu0 %1175
      %s1178 = scalar_lea.vmem %s205, 188
      %1179 = vst.msk [vmem:[%s1178] sm:$0xf] %vm505, %v1176
      %v1180 = vmul.f32 %v1123, 0.25
      %1182 = vrot.lane.b32.xlu0 %v1180, 120
      %v1183 = vpop.permute.xlu0 %1182
      %s1185 = scalar_lea.vmem %s205, 224
      %1186 = vst.msk [vmem:[%s1185] sm:$0xf] %vm505, %v1183
      %v1187 = vmul.f32 %v1130, 0.25
      %1189 = vrot.lane.b32.xlu0 %v1187, 120
      %v1190 = vpop.permute.xlu0 %1189
      %s1192 = scalar_lea.vmem %s205, 260
      %1193 = vst.msk [vmem:[%s1192] sm:$0xf] %vm505, %v1190
      %v1194 = vmul.f32 %v1137, 0.25
      %1196 = vrot.lane.b32.xlu0 %v1194, 120
      %v1197 = vpop.permute.xlu0 %1196
      %s1199 = scalar_lea.vmem %s205, 296
      %1200 = vst.msk [vmem:[%s1199] sm:$0xf] %vm505, %v1197
      %v1201 = vld [vmem:[%s189] sm:$0xf]
      %v1202 = vld [vmem:[%s197] sm:$0xf]
      %1204 = vrot.lane.b32.xlu0 %v1202, 5
      %v1205 = vpop.permute.xlu0 %1204
      %v1207 = vmul.f32 %v1201, %v1205
      %v1208 = vadd.f32 %v1207, 0.0
      %v1209 = vld [vmem:[%s214] sm:$0xf]
      %1211 = vrot.lane.b32.xlu0 %v1209, 5
      %v1212 = vpop.permute.xlu0 %1211
      %v1214 = vmul.f32 %v1201, %v1212
      %v1215 = vadd.f32 %v1214, 0.0
      %v1216 = vld [vmem:[%s222] sm:$0xf]
      %1218 = vrot.lane.b32.xlu0 %v1216, 5
      %v1219 = vpop.permute.xlu0 %1218
      %v1221 = vmul.f32 %v1201, %v1219
      %v1222 = vadd.f32 %v1221, 0.0
      %v1223 = vld [vmem:[%s230] sm:$0xf]
      %1225 = vrot.lane.b32.xlu0 %v1223, 5
      %v1226 = vpop.permute.xlu0 %1225
      %v1228 = vmul.f32 %v1201, %v1226
      %v1229 = vadd.f32 %v1228, 0.0
      %v1230 = vld [vmem:[%s238] sm:$0xf]
      %1232 = vrot.lane.b32.xlu0 %v1230, 5
      %v1233 = vpop.permute.xlu0 %1232
      %v1235 = vmul.f32 %v1201, %v1233
      %v1236 = vadd.f32 %v1235, 0.0
      %v1237 = vld [vmem:[%s246] sm:$0xf]
      %1239 = vrot.lane.b32.xlu0 %v1237, 5
      %v1240 = vpop.permute.xlu0 %1239
      %v1242 = vmul.f32 %v1201, %v1240
      %v1243 = vadd.f32 %v1242, 0.0
      %v1244 = vld [vmem:[%s254] sm:$0xf]
      %1246 = vrot.lane.b32.xlu0 %v1244, 5
      %v1247 = vpop.permute.xlu0 %1246
      %v1249 = vmul.f32 %v1201, %v1247
      %v1250 = vadd.f32 %v1249, 0.0
      %v1251 = vld [vmem:[%s262] sm:$0xf]
      %1253 = vrot.lane.b32.xlu0 %v1251, 5
      %v1254 = vpop.permute.xlu0 %1253
      %v1256 = vmul.f32 %v1201, %v1254
      %v1257 = vadd.f32 %v1256, 0.0
      %v1258 = vld [vmem:[%s270] sm:$0xf]
      %1260 = vrot.lane.b32.xlu0 %v1258, 5
      %v1261 = vpop.permute.xlu0 %1260
      %v1263 = vmul.f32 %v1201, %v1261
      %v1264 = vadd.f32 %v1263, 0.0
      %v1265 = vld [vmem:[%s278] sm:$0xf]
      %v1266 = vld [vmem:[%s280] sm:$0xf]
      %1268 = vrot.lane.b32.xlu0 %v1266, 5
      %v1269 = vpop.permute.xlu0 %1268
      %v1271 = vmul.f32 %v1265, %v1269
      %v1272 = vadd.f32 %v1208, %v1271
      %v1273 = vld [vmem:[%s288] sm:$0xf]
      %1275 = vrot.lane.b32.xlu0 %v1273, 5
      %v1276 = vpop.permute.xlu0 %1275
      %v1278 = vmul.f32 %v1265, %v1276
      %v1279 = vadd.f32 %v1215, %v1278
      %v1280 = vld [vmem:[%s296] sm:$0xf]
      %1282 = vrot.lane.b32.xlu0 %v1280, 5
      %v1283 = vpop.permute.xlu0 %1282
      %v1285 = vmul.f32 %v1265, %v1283
      %v1286 = vadd.f32 %v1222, %v1285
      %v1287 = vld [vmem:[%s304] sm:$0xf]
      %1289 = vrot.lane.b32.xlu0 %v1287, 5
      %v1290 = vpop.permute.xlu0 %1289
      %v1292 = vmul.f32 %v1265, %v1290
      %v1293 = vadd.f32 %v1229, %v1292
      %v1294 = vld [vmem:[%s312] sm:$0xf]
      %1296 = vrot.lane.b32.xlu0 %v1294, 5
      %v1297 = vpop.permute.xlu0 %1296
      %v1299 = vmul.f32 %v1265, %v1297
      %v1300 = vadd.f32 %v1236, %v1299
      %v1301 = vld [vmem:[%s320] sm:$0xf]
      %1303 = vrot.lane.b32.xlu0 %v1301, 5
      %v1304 = vpop.permute.xlu0 %1303
      %v1306 = vmul.f32 %v1265, %v1304
      %v1307 = vadd.f32 %v1243, %v1306
      %v1308 = vld [vmem:[%s328] sm:$0xf]
      %1310 = vrot.lane.b32.xlu0 %v1308, 5
      %v1311 = vpop.permute.xlu0 %1310
      %v1313 = vmul.f32 %v1265, %v1311
      %v1314 = vadd.f32 %v1250, %v1313
      %v1315 = vld [vmem:[%s336] sm:$0xf]
      %1317 = vrot.lane.b32.xlu0 %v1315, 5
      %v1318 = vpop.permute.xlu0 %1317
      %v1320 = vmul.f32 %v1265, %v1318
      %v1321 = vadd.f32 %v1257, %v1320
      %v1322 = vld [vmem:[%s344] sm:$0xf]
      %1324 = vrot.lane.b32.xlu0 %v1322, 5
      %v1325 = vpop.permute.xlu0 %1324
      %v1327 = vmul.f32 %v1265, %v1325
      %v1328 = vadd.f32 %v1264, %v1327
      %v1329 = vld [vmem:[%s352] sm:$0xf]
      %v1330 = vld [vmem:[%s354] sm:$0xf]
      %1332 = vrot.lane.b32.xlu0 %v1330, 5
      %v1333 = vpop.permute.xlu0 %1332
      %v1335 = vmul.f32 %v1329, %v1333
      %v1336 = vadd.f32 %v1272, %v1335
      %v1337 = vld [vmem:[%s362] sm:$0xf]
      %1339 = vrot.lane.b32.xlu0 %v1337, 5
      %v1340 = vpop.permute.xlu0 %1339
      %v1342 = vmul.f32 %v1329, %v1340
      %v1343 = vadd.f32 %v1279, %v1342
      %v1344 = vld [vmem:[%s370] sm:$0xf]
      %1346 = vrot.lane.b32.xlu0 %v1344, 5
      %v1347 = vpop.permute.xlu0 %1346
      %v1349 = vmul.f32 %v1329, %v1347
      %v1350 = vadd.f32 %v1286, %v1349
      %v1351 = vld [vmem:[%s378] sm:$0xf]
      %1353 = vrot.lane.b32.xlu0 %v1351, 5
      %v1354 = vpop.permute.xlu0 %1353
      %v1356 = vmul.f32 %v1329, %v1354
      %v1357 = vadd.f32 %v1293, %v1356
      %v1358 = vld [vmem:[%s386] sm:$0xf]
      %1360 = vrot.lane.b32.xlu0 %v1358, 5
      %v1361 = vpop.permute.xlu0 %1360
      %v1363 = vmul.f32 %v1329, %v1361
      %v1364 = vadd.f32 %v1300, %v1363
      %v1365 = vld [vmem:[%s394] sm:$0xf]
      %1367 = vrot.lane.b32.xlu0 %v1365, 5
      %v1368 = vpop.permute.xlu0 %1367
      %v1370 = vmul.f32 %v1329, %v1368
      %v1371 = vadd.f32 %v1307, %v1370
      %v1372 = vld [vmem:[%s402] sm:$0xf]
      %1374 = vrot.lane.b32.xlu0 %v1372, 5
      %v1375 = vpop.permute.xlu0 %1374
      %v1377 = vmul.f32 %v1329, %v1375
      %v1378 = vadd.f32 %v1314, %v1377
      %v1379 = vld [vmem:[%s410] sm:$0xf]
      %1381 = vrot.lane.b32.xlu0 %v1379, 5
      %v1382 = vpop.permute.xlu0 %1381
      %v1384 = vmul.f32 %v1329, %v1382
      %v1385 = vadd.f32 %v1321, %v1384
      %v1386 = vld [vmem:[%s418] sm:$0xf]
      %1388 = vrot.lane.b32.xlu0 %v1386, 5
      %v1389 = vpop.permute.xlu0 %1388
      %v1391 = vmul.f32 %v1329, %v1389
      %v1392 = vadd.f32 %v1328, %v1391
      %v1393 = vld [vmem:[%s426] sm:$0xf]
      %v1394 = vld [vmem:[%s428] sm:$0xf]
      %1396 = vrot.lane.b32.xlu0 %v1394, 5
      %v1397 = vpop.permute.xlu0 %1396
      %v1399 = vmul.f32 %v1393, %v1397
      %v1400 = vadd.f32 %v1336, %v1399
      %v1401 = vld [vmem:[%s436] sm:$0xf]
      %1403 = vrot.lane.b32.xlu0 %v1401, 5
      %v1404 = vpop.permute.xlu0 %1403
      %v1406 = vmul.f32 %v1393, %v1404
      %v1407 = vadd.f32 %v1343, %v1406
      %v1408 = vld [vmem:[%s444] sm:$0xf]
      %1410 = vrot.lane.b32.xlu0 %v1408, 5
      %v1411 = vpop.permute.xlu0 %1410
      %v1413 = vmul.f32 %v1393, %v1411
      %v1414 = vadd.f32 %v1350, %v1413
      %v1415 = vld [vmem:[%s452] sm:$0xf]
      %1417 = vrot.lane.b32.xlu0 %v1415, 5
      %v1418 = vpop.permute.xlu0 %1417
      %v1420 = vmul.f32 %v1393, %v1418
      %v1421 = vadd.f32 %v1357, %v1420
      %v1422 = vld [vmem:[%s460] sm:$0xf]
      %1424 = vrot.lane.b32.xlu0 %v1422, 5
      %v1425 = vpop.permute.xlu0 %1424
      %v1427 = vmul.f32 %v1393, %v1425
      %v1428 = vadd.f32 %v1364, %v1427
      %v1429 = vld [vmem:[%s468] sm:$0xf]
      %1431 = vrot.lane.b32.xlu0 %v1429, 5
      %v1432 = vpop.permute.xlu0 %1431
      %v1434 = vmul.f32 %v1393, %v1432
      %v1435 = vadd.f32 %v1371, %v1434
      %v1436 = vld [vmem:[%s476] sm:$0xf]
      %1438 = vrot.lane.b32.xlu0 %v1436, 5
      %v1439 = vpop.permute.xlu0 %1438
      %v1441 = vmul.f32 %v1393, %v1439
      %v1442 = vadd.f32 %v1378, %v1441
      %v1443 = vld [vmem:[%s484] sm:$0xf]
      %1445 = vrot.lane.b32.xlu0 %v1443, 5
      %v1446 = vpop.permute.xlu0 %1445
      %v1448 = vmul.f32 %v1393, %v1446
      %v1449 = vadd.f32 %v1385, %v1448
      %v1450 = vld [vmem:[%s492] sm:$0xf]
      %1452 = vrot.lane.b32.xlu0 %v1450, 5
      %v1453 = vpop.permute.xlu0 %1452
      %v1455 = vmul.f32 %v1393, %v1453
      %v1456 = vadd.f32 %v1392, %v1455
      %v1457 = vmul.f32 %v1400, 0.25
      %1459 = vrot.lane.b32.xlu0 %v1457, 120
      %v1460 = vpop.permute.xlu0 %1459
      %s1462 = scalar_lea.vmem %s205, 12
      %1463 = vst.msk [vmem:[%s1462] sm:$0xf] %vm505, %v1460
      %v1464 = vmul.f32 %v1407, 0.25
      %1466 = vrot.lane.b32.xlu0 %v1464, 120
      %v1467 = vpop.permute.xlu0 %1466
      %s1469 = scalar_lea.vmem %s205, 48
      %1470 = vst.msk [vmem:[%s1469] sm:$0xf] %vm505, %v1467
      %v1471 = vmul.f32 %v1414, 0.25
      %1473 = vrot.lane.b32.xlu0 %v1471, 120
      %v1474 = vpop.permute.xlu0 %1473
      %s1476 = scalar_lea.vmem %s205, 84
      %1477 = vst.msk [vmem:[%s1476] sm:$0xf] %vm505, %v1474
      %v1478 = vmul.f32 %v1421, 0.25
      %1480 = vrot.lane.b32.xlu0 %v1478, 120
      %v1481 = vpop.permute.xlu0 %1480
      %s1483 = scalar_lea.vmem %s205, 120
      %1484 = vst.msk [vmem:[%s1483] sm:$0xf] %vm505, %v1481
      %v1485 = vmul.f32 %v1428, 0.25
      %1487 = vrot.lane.b32.xlu0 %v1485, 120
      %v1488 = vpop.permute.xlu0 %1487
      %s1490 = scalar_lea.vmem %s205, 156
      %1491 = vst.msk [vmem:[%s1490] sm:$0xf] %vm505, %v1488
      %v1492 = vmul.f32 %v1435, 0.25
      %1494 = vrot.lane.b32.xlu0 %v1492, 120
      %v1495 = vpop.permute.xlu0 %1494
      %s1497 = scalar_lea.vmem %s205, 192
      %1498 = vst.msk [vmem:[%s1497] sm:$0xf] %vm505, %v1495
      %v1499 = vmul.f32 %v1442, 0.25
      %1501 = vrot.lane.b32.xlu0 %v1499, 120
      %v1502 = vpop.permute.xlu0 %1501
      %s1504 = scalar_lea.vmem %s205, 228
      %1505 = vst.msk [vmem:[%s1504] sm:$0xf] %vm505, %v1502
      %v1506 = vmul.f32 %v1449, 0.25
      %1508 = vrot.lane.b32.xlu0 %v1506, 120
      %v1509 = vpop.permute.xlu0 %1508
      %s1511 = scalar_lea.vmem %s205, 264
      %1512 = vst.msk [vmem:[%s1511] sm:$0xf] %vm505, %v1509
      %v1513 = vmul.f32 %v1456, 0.25
      %1515 = vrot.lane.b32.xlu0 %v1513, 120
      %v1516 = vpop.permute.xlu0 %1515
      %s1518 = scalar_lea.vmem %s205, 300
      %1519 = vst.msk [vmem:[%s1518] sm:$0xf] %vm505, %v1516
      %v1520 = vld [vmem:[%s189] sm:$0xf]
      %v1521 = vld [vmem:[%s197] sm:$0xf]
      %1523 = vrot.lane.b32.xlu0 %v1521, 4
      %v1524 = vpop.permute.xlu0 %1523
      %v1526 = vmul.f32 %v1520, %v1524
      %v1527 = vadd.f32 %v1526, 0.0
      %v1528 = vld [vmem:[%s214] sm:$0xf]
      %1530 = vrot.lane.b32.xlu0 %v1528, 4
      %v1531 = vpop.permute.xlu0 %1530
      %v1533 = vmul.f32 %v1520, %v1531
      %v1534 = vadd.f32 %v1533, 0.0
      %v1535 = vld [vmem:[%s222] sm:$0xf]
      %1537 = vrot.lane.b32.xlu0 %v1535, 4
      %v1538 = vpop.permute.xlu0 %1537
      %v1540 = vmul.f32 %v1520, %v1538
      %v1541 = vadd.f32 %v1540, 0.0
      %v1542 = vld [vmem:[%s230] sm:$0xf]
      %1544 = vrot.lane.b32.xlu0 %v1542, 4
      %v1545 = vpop.permute.xlu0 %1544
      %v1547 = vmul.f32 %v1520, %v1545
      %v1548 = vadd.f32 %v1547, 0.0
      %v1549 = vld [vmem:[%s238] sm:$0xf]
      %1551 = vrot.lane.b32.xlu0 %v1549, 4
      %v1552 = vpop.permute.xlu0 %1551
      %v1554 = vmul.f32 %v1520, %v1552
      %v1555 = vadd.f32 %v1554, 0.0
      %v1556 = vld [vmem:[%s246] sm:$0xf]
      %1558 = vrot.lane.b32.xlu0 %v1556, 4
      %v1559 = vpop.permute.xlu0 %1558
      %v1561 = vmul.f32 %v1520, %v1559
      %v1562 = vadd.f32 %v1561, 0.0
      %v1563 = vld [vmem:[%s254] sm:$0xf]
      %1565 = vrot.lane.b32.xlu0 %v1563, 4
      %v1566 = vpop.permute.xlu0 %1565
      %v1568 = vmul.f32 %v1520, %v1566
      %v1569 = vadd.f32 %v1568, 0.0
      %v1570 = vld [vmem:[%s262] sm:$0xf]
      %1572 = vrot.lane.b32.xlu0 %v1570, 4
      %v1573 = vpop.permute.xlu0 %1572
      %v1575 = vmul.f32 %v1520, %v1573
      %v1576 = vadd.f32 %v1575, 0.0
      %v1577 = vld [vmem:[%s270] sm:$0xf]
      %1579 = vrot.lane.b32.xlu0 %v1577, 4
      %v1580 = vpop.permute.xlu0 %1579
      %v1582 = vmul.f32 %v1520, %v1580
      %v1583 = vadd.f32 %v1582, 0.0
      %v1584 = vld [vmem:[%s278] sm:$0xf]
      %v1585 = vld [vmem:[%s280] sm:$0xf]
      %1587 = vrot.lane.b32.xlu0 %v1585, 4
      %v1588 = vpop.permute.xlu0 %1587
      %v1590 = vmul.f32 %v1584, %v1588
      %v1591 = vadd.f32 %v1527, %v1590
      %v1592 = vld [vmem:[%s288] sm:$0xf]
      %1594 = vrot.lane.b32.xlu0 %v1592, 4
      %v1595 = vpop.permute.xlu0 %1594
      %v1597 = vmul.f32 %v1584, %v1595
      %v1598 = vadd.f32 %v1534, %v1597
      %v1599 = vld [vmem:[%s296] sm:$0xf]
      %1601 = vrot.lane.b32.xlu0 %v1599, 4
      %v1602 = vpop.permute.xlu0 %1601
      %v1604 = vmul.f32 %v1584, %v1602
      %v1605 = vadd.f32 %v1541, %v1604
      %v1606 = vld [vmem:[%s304] sm:$0xf]
      %1608 = vrot.lane.b32.xlu0 %v1606, 4
      %v1609 = vpop.permute.xlu0 %1608
      %v1611 = vmul.f32 %v1584, %v1609
      %v1612 = vadd.f32 %v1548, %v1611
      %v1613 = vld [vmem:[%s312] sm:$0xf]
      %1615 = vrot.lane.b32.xlu0 %v1613, 4
      %v1616 = vpop.permute.xlu0 %1615
      %v1618 = vmul.f32 %v1584, %v1616
      %v1619 = vadd.f32 %v1555, %v1618
      %v1620 = vld [vmem:[%s320] sm:$0xf]
      %1622 = vrot.lane.b32.xlu0 %v1620, 4
      %v1623 = vpop.permute.xlu0 %1622
      %v1625 = vmul.f32 %v1584, %v1623
      %v1626 = vadd.f32 %v1562, %v1625
      %v1627 = vld [vmem:[%s328] sm:$0xf]
      %1629 = vrot.lane.b32.xlu0 %v1627, 4
      %v1630 = vpop.permute.xlu0 %1629
      %v1632 = vmul.f32 %v1584, %v1630
      %v1633 = vadd.f32 %v1569, %v1632
      %v1634 = vld [vmem:[%s336] sm:$0xf]
      %1636 = vrot.lane.b32.xlu0 %v1634, 4
      %v1637 = vpop.permute.xlu0 %1636
      %v1639 = vmul.f32 %v1584, %v1637
      %v1640 = vadd.f32 %v1576, %v1639
      %v1641 = vld [vmem:[%s344] sm:$0xf]
      %1643 = vrot.lane.b32.xlu0 %v1641, 4
      %v1644 = vpop.permute.xlu0 %1643
      %v1646 = vmul.f32 %v1584, %v1644
      %v1647 = vadd.f32 %v1583, %v1646
      %v1648 = vld [vmem:[%s352] sm:$0xf]
      %v1649 = vld [vmem:[%s354] sm:$0xf]
      %1651 = vrot.lane.b32.xlu0 %v1649, 4
      %v1652 = vpop.permute.xlu0 %1651
      %v1654 = vmul.f32 %v1648, %v1652
      %v1655 = vadd.f32 %v1591, %v1654
      %v1656 = vld [vmem:[%s362] sm:$0xf]
      %1658 = vrot.lane.b32.xlu0 %v1656, 4
      %v1659 = vpop.permute.xlu0 %1658
      %v1661 = vmul.f32 %v1648, %v1659
      %v1662 = vadd.f32 %v1598, %v1661
      %v1663 = vld [vmem:[%s370] sm:$0xf]
      %1665 = vrot.lane.b32.xlu0 %v1663, 4
      %v1666 = vpop.permute.xlu0 %1665
      %v1668 = vmul.f32 %v1648, %v1666
      %v1669 = vadd.f32 %v1605, %v1668
      %v1670 = vld [vmem:[%s378] sm:$0xf]
      %1672 = vrot.lane.b32.xlu0 %v1670, 4
      %v1673 = vpop.permute.xlu0 %1672
      %v1675 = vmul.f32 %v1648, %v1673
      %v1676 = vadd.f32 %v1612, %v1675
      %v1677 = vld [vmem:[%s386] sm:$0xf]
      %1679 = vrot.lane.b32.xlu0 %v1677, 4
      %v1680 = vpop.permute.xlu0 %1679
      %v1682 = vmul.f32 %v1648, %v1680
      %v1683 = vadd.f32 %v1619, %v1682
      %v1684 = vld [vmem:[%s394] sm:$0xf]
      %1686 = vrot.lane.b32.xlu0 %v1684, 4
      %v1687 = vpop.permute.xlu0 %1686
      %v1689 = vmul.f32 %v1648, %v1687
      %v1690 = vadd.f32 %v1626, %v1689
      %v1691 = vld [vmem:[%s402] sm:$0xf]
      %1693 = vrot.lane.b32.xlu0 %v1691, 4
      %v1694 = vpop.permute.xlu0 %1693
      %v1696 = vmul.f32 %v1648, %v1694
      %v1697 = vadd.f32 %v1633, %v1696
      %v1698 = vld [vmem:[%s410] sm:$0xf]
      %1700 = vrot.lane.b32.xlu0 %v1698, 4
      %v1701 = vpop.permute.xlu0 %1700
      %v1703 = vmul.f32 %v1648, %v1701
      %v1704 = vadd.f32 %v1640, %v1703
      %v1705 = vld [vmem:[%s418] sm:$0xf]
      %1707 = vrot.lane.b32.xlu0 %v1705, 4
      %v1708 = vpop.permute.xlu0 %1707
      %v1710 = vmul.f32 %v1648, %v1708
      %v1711 = vadd.f32 %v1647, %v1710
      %v1712 = vld [vmem:[%s426] sm:$0xf]
      %v1713 = vld [vmem:[%s428] sm:$0xf]
      %1715 = vrot.lane.b32.xlu0 %v1713, 4
      %v1716 = vpop.permute.xlu0 %1715
      %v1718 = vmul.f32 %v1712, %v1716
      %v1719 = vadd.f32 %v1655, %v1718
      %v1720 = vld [vmem:[%s436] sm:$0xf]
      %1722 = vrot.lane.b32.xlu0 %v1720, 4
      %v1723 = vpop.permute.xlu0 %1722
      %v1725 = vmul.f32 %v1712, %v1723
      %v1726 = vadd.f32 %v1662, %v1725
      %v1727 = vld [vmem:[%s444] sm:$0xf]
      %1729 = vrot.lane.b32.xlu0 %v1727, 4
      %v1730 = vpop.permute.xlu0 %1729
      %v1732 = vmul.f32 %v1712, %v1730
      %v1733 = vadd.f32 %v1669, %v1732
      %v1734 = vld [vmem:[%s452] sm:$0xf]
      %1736 = vrot.lane.b32.xlu0 %v1734, 4
      %v1737 = vpop.permute.xlu0 %1736
      %v1739 = vmul.f32 %v1712, %v1737
      %v1740 = vadd.f32 %v1676, %v1739
      %v1741 = vld [vmem:[%s460] sm:$0xf]
      %1743 = vrot.lane.b32.xlu0 %v1741, 4
      %v1744 = vpop.permute.xlu0 %1743
      %v1746 = vmul.f32 %v1712, %v1744
      %v1747 = vadd.f32 %v1683, %v1746
      %v1748 = vld [vmem:[%s468] sm:$0xf]
      %1750 = vrot.lane.b32.xlu0 %v1748, 4
      %v1751 = vpop.permute.xlu0 %1750
      %v1753 = vmul.f32 %v1712, %v1751
      %v1754 = vadd.f32 %v1690, %v1753
      %v1755 = vld [vmem:[%s476] sm:$0xf]
      %1757 = vrot.lane.b32.xlu0 %v1755, 4
      %v1758 = vpop.permute.xlu0 %1757
      %v1760 = vmul.f32 %v1712, %v1758
      %v1761 = vadd.f32 %v1697, %v1760
      %v1762 = vld [vmem:[%s484] sm:$0xf]
      %1764 = vrot.lane.b32.xlu0 %v1762, 4
      %v1765 = vpop.permute.xlu0 %1764
      %v1767 = vmul.f32 %v1712, %v1765
      %v1768 = vadd.f32 %v1704, %v1767
      %v1769 = vld [vmem:[%s492] sm:$0xf]
      %1771 = vrot.lane.b32.xlu0 %v1769, 4
      %v1772 = vpop.permute.xlu0 %1771
      %v1774 = vmul.f32 %v1712, %v1772
      %v1775 = vadd.f32 %v1711, %v1774
      %v1776 = vmul.f32 %v1719, 0.25
      %1778 = vrot.lane.b32.xlu0 %v1776, 120
      %v1779 = vpop.permute.xlu0 %1778
      %s1781 = scalar_lea.vmem %s205, 16
      %1782 = vst.msk [vmem:[%s1781] sm:$0xf] %vm505, %v1779
      %v1783 = vmul.f32 %v1726, 0.25
      %1785 = vrot.lane.b32.xlu0 %v1783, 120
      %v1786 = vpop.permute.xlu0 %1785
      %s1788 = scalar_lea.vmem %s205, 52
      %1789 = vst.msk [vmem:[%s1788] sm:$0xf] %vm505, %v1786
      %v1790 = vmul.f32 %v1733, 0.25
      %1792 = vrot.lane.b32.xlu0 %v1790, 120
      %v1793 = vpop.permute.xlu0 %1792
      %s1795 = scalar_lea.vmem %s205, 88
      %1796 = vst.msk [vmem:[%s1795] sm:$0xf] %vm505, %v1793
      %v1797 = vmul.f32 %v1740, 0.25
      %1799 = vrot.lane.b32.xlu0 %v1797, 120
      %v1800 = vpop.permute.xlu0 %1799
      %s1802 = scalar_lea.vmem %s205, 124
      %1803 = vst.msk [vmem:[%s1802] sm:$0xf] %vm505, %v1800
      %v1804 = vmul.f32 %v1747, 0.25
      %1806 = vrot.lane.b32.xlu0 %v1804, 120
      %v1807 = vpop.permute.xlu0 %1806
      %s1809 = scalar_lea.vmem %s205, 160
      %1810 = vst.msk [vmem:[%s1809] sm:$0xf] %vm505, %v1807
      %v1811 = vmul.f32 %v1754, 0.25
      %1813 = vrot.lane.b32.xlu0 %v1811, 120
      %v1814 = vpop.permute.xlu0 %1813
      %s1816 = scalar_lea.vmem %s205, 196
      %1817 = vst.msk [vmem:[%s1816] sm:$0xf] %vm505, %v1814
      %v1818 = vmul.f32 %v1761, 0.25
      %1820 = vrot.lane.b32.xlu0 %v1818, 120
      %v1821 = vpop.permute.xlu0 %1820
      %s1823 = scalar_lea.vmem %s205, 232
      %1824 = vst.msk [vmem:[%s1823] sm:$0xf] %vm505, %v1821
      %v1825 = vmul.f32 %v1768, 0.25
      %1827 = vrot.lane.b32.xlu0 %v1825, 120
      %v1828 = vpop.permute.xlu0 %1827
      %s1830 = scalar_lea.vmem %s205, 268
      %1831 = vst.msk [vmem:[%s1830] sm:$0xf] %vm505, %v1828
      %v1832 = vmul.f32 %v1775, 0.25
      %1834 = vrot.lane.b32.xlu0 %v1832, 120
      %v1835 = vpop.permute.xlu0 %1834
      %s1837 = scalar_lea.vmem %s205, 304
      %1838 = vst.msk [vmem:[%s1837] sm:$0xf] %vm505, %v1835
      %v1839 = vld [vmem:[%s189] sm:$0xf]
      %v1840 = vld [vmem:[%s197] sm:$0xf]
      %1842 = vrot.lane.b32.xlu0 %v1840, 3
      %v1843 = vpop.permute.xlu0 %1842
      %v1845 = vmul.f32 %v1839, %v1843
      %v1846 = vadd.f32 %v1845, 0.0
      %v1847 = vld [vmem:[%s214] sm:$0xf]
      %1849 = vrot.lane.b32.xlu0 %v1847, 3
      %v1850 = vpop.permute.xlu0 %1849
      %v1852 = vmul.f32 %v1839, %v1850
      %v1853 = vadd.f32 %v1852, 0.0
      %v1854 = vld [vmem:[%s222] sm:$0xf]
      %1856 = vrot.lane.b32.xlu0 %v1854, 3
      %v1857 = vpop.permute.xlu0 %1856
      %v1859 = vmul.f32 %v1839, %v1857
      %v1860 = vadd.f32 %v1859, 0.0
      %v1861 = vld [vmem:[%s230] sm:$0xf]
      %1863 = vrot.lane.b32.xlu0 %v1861, 3
      %v1864 = vpop.permute.xlu0 %1863
      %v1866 = vmul.f32 %v1839, %v1864
      %v1867 = vadd.f32 %v1866, 0.0
      %v1868 = vld [vmem:[%s238] sm:$0xf]
      %1870 = vrot.lane.b32.xlu0 %v1868, 3
      %v1871 = vpop.permute.xlu0 %1870
      %v1873 = vmul.f32 %v1839, %v1871
      %v1874 = vadd.f32 %v1873, 0.0
      %v1875 = vld [vmem:[%s246] sm:$0xf]
      %1877 = vrot.lane.b32.xlu0 %v1875, 3
      %v1878 = vpop.permute.xlu0 %1877
      %v1880 = vmul.f32 %v1839, %v1878
      %v1881 = vadd.f32 %v1880, 0.0
      %v1882 = vld [vmem:[%s254] sm:$0xf]
      %1884 = vrot.lane.b32.xlu0 %v1882, 3
      %v1885 = vpop.permute.xlu0 %1884
      %v1887 = vmul.f32 %v1839, %v1885
      %v1888 = vadd.f32 %v1887, 0.0
      %v1889 = vld [vmem:[%s262] sm:$0xf]
      %1891 = vrot.lane.b32.xlu0 %v1889, 3
      %v1892 = vpop.permute.xlu0 %1891
      %v1894 = vmul.f32 %v1839, %v1892
      %v1895 = vadd.f32 %v1894, 0.0
      %v1896 = vld [vmem:[%s270] sm:$0xf]
      %1898 = vrot.lane.b32.xlu0 %v1896, 3
      %v1899 = vpop.permute.xlu0 %1898
      %v1901 = vmul.f32 %v1839, %v1899
      %v1902 = vadd.f32 %v1901, 0.0
      %v1903 = vld [vmem:[%s278] sm:$0xf]
      %v1904 = vld [vmem:[%s280] sm:$0xf]
      %1906 = vrot.lane.b32.xlu0 %v1904, 3
      %v1907 = vpop.permute.xlu0 %1906
      %v1909 = vmul.f32 %v1903, %v1907
      %v1910 = vadd.f32 %v1846, %v1909
      %v1911 = vld [vmem:[%s288] sm:$0xf]
      %1913 = vrot.lane.b32.xlu0 %v1911, 3
      %v1914 = vpop.permute.xlu0 %1913
      %v1916 = vmul.f32 %v1903, %v1914
      %v1917 = vadd.f32 %v1853, %v1916
      %v1918 = vld [vmem:[%s296] sm:$0xf]
      %1920 = vrot.lane.b32.xlu0 %v1918, 3
      %v1921 = vpop.permute.xlu0 %1920
      %v1923 = vmul.f32 %v1903, %v1921
      %v1924 = vadd.f32 %v1860, %v1923
      %v1925 = vld [vmem:[%s304] sm:$0xf]
      %1927 = vrot.lane.b32.xlu0 %v1925, 3
      %v1928 = vpop.permute.xlu0 %1927
      %v1930 = vmul.f32 %v1903, %v1928
      %v1931 = vadd.f32 %v1867, %v1930
      %v1932 = vld [vmem:[%s312] sm:$0xf]
      %1934 = vrot.lane.b32.xlu0 %v1932, 3
      %v1935 = vpop.permute.xlu0 %1934
      %v1937 = vmul.f32 %v1903, %v1935
      %v1938 = vadd.f32 %v1874, %v1937
      %v1939 = vld [vmem:[%s320] sm:$0xf]
      %1941 = vrot.lane.b32.xlu0 %v1939, 3
      %v1942 = vpop.permute.xlu0 %1941
      %v1944 = vmul.f32 %v1903, %v1942
      %v1945 = vadd.f32 %v1881, %v1944
      %v1946 = vld [vmem:[%s328] sm:$0xf]
      %1948 = vrot.lane.b32.xlu0 %v1946, 3
      %v1949 = vpop.permute.xlu0 %1948
      %v1951 = vmul.f32 %v1903, %v1949
      %v1952 = vadd.f32 %v1888, %v1951
      %v1953 = vld [vmem:[%s336] sm:$0xf]
      %1955 = vrot.lane.b32.xlu0 %v1953, 3
      %v1956 = vpop.permute.xlu0 %1955
      %v1958 = vmul.f32 %v1903, %v1956
      %v1959 = vadd.f32 %v1895, %v1958
      %v1960 = vld [vmem:[%s344] sm:$0xf]
      %1962 = vrot.lane.b32.xlu0 %v1960, 3
      %v1963 = vpop.permute.xlu0 %1962
      %v1965 = vmul.f32 %v1903, %v1963
      %v1966 = vadd.f32 %v1902, %v1965
      %v1967 = vld [vmem:[%s352] sm:$0xf]
      %v1968 = vld [vmem:[%s354] sm:$0xf]
      %1970 = vrot.lane.b32.xlu0 %v1968, 3
      %v1971 = vpop.permute.xlu0 %1970
      %v1973 = vmul.f32 %v1967, %v1971
      %v1974 = vadd.f32 %v1910, %v1973
      %v1975 = vld [vmem:[%s362] sm:$0xf]
      %1977 = vrot.lane.b32.xlu0 %v1975, 3
      %v1978 = vpop.permute.xlu0 %1977
      %v1980 = vmul.f32 %v1967, %v1978
      %v1981 = vadd.f32 %v1917, %v1980
      %v1982 = vld [vmem:[%s370] sm:$0xf]
      %1984 = vrot.lane.b32.xlu0 %v1982, 3
      %v1985 = vpop.permute.xlu0 %1984
      %v1987 = vmul.f32 %v1967, %v1985
      %v1988 = vadd.f32 %v1924, %v1987
      %v1989 = vld [vmem:[%s378] sm:$0xf]
      %1991 = vrot.lane.b32.xlu0 %v1989, 3
      %v1992 = vpop.permute.xlu0 %1991
      %v1994 = vmul.f32 %v1967, %v1992
      %v1995 = vadd.f32 %v1931, %v1994
      %v1996 = vld [vmem:[%s386] sm:$0xf]
      %1998 = vrot.lane.b32.xlu0 %v1996, 3
      %v1999 = vpop.permute.xlu0 %1998
      %v2001 = vmul.f32 %v1967, %v1999
      %v2002 = vadd.f32 %v1938, %v2001
      %v2003 = vld [vmem:[%s394] sm:$0xf]
      %2005 = vrot.lane.b32.xlu0 %v2003, 3
      %v2006 = vpop.permute.xlu0 %2005
      %v2008 = vmul.f32 %v1967, %v2006
      %v2009 = vadd.f32 %v1945, %v2008
      %v2010 = vld [vmem:[%s402] sm:$0xf]
      %2012 = vrot.lane.b32.xlu0 %v2010, 3
      %v2013 = vpop.permute.xlu0 %2012
      %v2015 = vmul.f32 %v1967, %v2013
      %v2016 = vadd.f32 %v1952, %v2015
      %v2017 = vld [vmem:[%s410] sm:$0xf]
      %2019 = vrot.lane.b32.xlu0 %v2017, 3
      %v2020 = vpop.permute.xlu0 %2019
      %v2022 = vmul.f32 %v1967, %v2020
      %v2023 = vadd.f32 %v1959, %v2022
      %v2024 = vld [vmem:[%s418] sm:$0xf]
      %2026 = vrot.lane.b32.xlu0 %v2024, 3
      %v2027 = vpop.permute.xlu0 %2026
      %v2029 = vmul.f32 %v1967, %v2027
      %v2030 = vadd.f32 %v1966, %v2029
      %v2031 = vld [vmem:[%s426] sm:$0xf]
      %v2032 = vld [vmem:[%s428] sm:$0xf]
      %2034 = vrot.lane.b32.xlu0 %v2032, 3
      %v2035 = vpop.permute.xlu0 %2034
      %v2037 = vmul.f32 %v2031, %v2035
      %v2038 = vadd.f32 %v1974, %v2037
      %v2039 = vld [vmem:[%s436] sm:$0xf]
      %2041 = vrot.lane.b32.xlu0 %v2039, 3
      %v2042 = vpop.permute.xlu0 %2041
      %v2044 = vmul.f32 %v2031, %v2042
      %v2045 = vadd.f32 %v1981, %v2044
      %v2046 = vld [vmem:[%s444] sm:$0xf]
      %2048 = vrot.lane.b32.xlu0 %v2046, 3
      %v2049 = vpop.permute.xlu0 %2048
      %v2051 = vmul.f32 %v2031, %v2049
      %v2052 = vadd.f32 %v1988, %v2051
      %v2053 = vld [vmem:[%s452] sm:$0xf]
      %2055 = vrot.lane.b32.xlu0 %v2053, 3
      %v2056 = vpop.permute.xlu0 %2055
      %v2058 = vmul.f32 %v2031, %v2056
      %v2059 = vadd.f32 %v1995, %v2058
      %v2060 = vld [vmem:[%s460] sm:$0xf]
      %2062 = vrot.lane.b32.xlu0 %v2060, 3
      %v2063 = vpop.permute.xlu0 %2062
      %v2065 = vmul.f32 %v2031, %v2063
      %v2066 = vadd.f32 %v2002, %v2065
      %v2067 = vld [vmem:[%s468] sm:$0xf]
      %2069 = vrot.lane.b32.xlu0 %v2067, 3
      %v2070 = vpop.permute.xlu0 %2069
      %v2072 = vmul.f32 %v2031, %v2070
      %v2073 = vadd.f32 %v2009, %v2072
      %v2074 = vld [vmem:[%s476] sm:$0xf]
      %2076 = vrot.lane.b32.xlu0 %v2074, 3
      %v2077 = vpop.permute.xlu0 %2076
      %v2079 = vmul.f32 %v2031, %v2077
      %v2080 = vadd.f32 %v2016, %v2079
      %v2081 = vld [vmem:[%s484] sm:$0xf]
      %2083 = vrot.lane.b32.xlu0 %v2081, 3
      %v2084 = vpop.permute.xlu0 %2083
      %v2086 = vmul.f32 %v2031, %v2084
      %v2087 = vadd.f32 %v2023, %v2086
      %v2088 = vld [vmem:[%s492] sm:$0xf]
      %2090 = vrot.lane.b32.xlu0 %v2088, 3
      %v2091 = vpop.permute.xlu0 %2090
      %v2093 = vmul.f32 %v2031, %v2091
      %v2094 = vadd.f32 %v2030, %v2093
      %v2095 = vmul.f32 %v2038, 0.25
      %2097 = vrot.lane.b32.xlu0 %v2095, 120
      %v2098 = vpop.permute.xlu0 %2097
      %s2100 = scalar_lea.vmem %s205, 20
      %2101 = vst.msk [vmem:[%s2100] sm:$0xf] %vm505, %v2098
      %v2102 = vmul.f32 %v2045, 0.25
      %2104 = vrot.lane.b32.xlu0 %v2102, 120
      %v2105 = vpop.permute.xlu0 %2104
      %s2107 = scalar_lea.vmem %s205, 56
      %2108 = vst.msk [vmem:[%s2107] sm:$0xf] %vm505, %v2105
      %v2109 = vmul.f32 %v2052, 0.25
      %2111 = vrot.lane.b32.xlu0 %v2109, 120
      %v2112 = vpop.permute.xlu0 %2111
      %s2114 = scalar_lea.vmem %s205, 92
      %2115 = vst.msk [vmem:[%s2114] sm:$0xf] %vm505, %v2112
      %v2116 = vmul.f32 %v2059, 0.25
      %2118 = vrot.lane.b32.xlu0 %v2116, 120
      %v2119 = vpop.permute.xlu0 %2118
      %s2121 = scalar_lea.vmem %s205, 128
      %2122 = vst.msk [vmem:[%s2121] sm:$0xf] %vm505, %v2119
      %v2123 = vmul.f32 %v2066, 0.25
      %2125 = vrot.lane.b32.xlu0 %v2123, 120
      %v2126 = vpop.permute.xlu0 %2125
      %s2128 = scalar_lea.vmem %s205, 164
      %2129 = vst.msk [vmem:[%s2128] sm:$0xf] %vm505, %v2126
      %v2130 = vmul.f32 %v2073, 0.25
      %2132 = vrot.lane.b32.xlu0 %v2130, 120
      %v2133 = vpop.permute.xlu0 %2132
      %s2135 = scalar_lea.vmem %s205, 200
      %2136 = vst.msk [vmem:[%s2135] sm:$0xf] %vm505, %v2133
      %v2137 = vmul.f32 %v2080, 0.25
      %2139 = vrot.lane.b32.xlu0 %v2137, 120
      %v2140 = vpop.permute.xlu0 %2139
      %s2142 = scalar_lea.vmem %s205, 236
      %2143 = vst.msk [vmem:[%s2142] sm:$0xf] %vm505, %v2140
      %v2144 = vmul.f32 %v2087, 0.25
      %2146 = vrot.lane.b32.xlu0 %v2144, 120
      %v2147 = vpop.permute.xlu0 %2146
      %s2149 = scalar_lea.vmem %s205, 272
      %2150 = vst.msk [vmem:[%s2149] sm:$0xf] %vm505, %v2147
      %v2151 = vmul.f32 %v2094, 0.25
      %2153 = vrot.lane.b32.xlu0 %v2151, 120
      %v2154 = vpop.permute.xlu0 %2153
      %s2156 = scalar_lea.vmem %s205, 308
      %2157 = vst.msk [vmem:[%s2156] sm:$0xf] %vm505, %v2154
      %v2158 = vld [vmem:[%s189] sm:$0xf]
      %v2159 = vld [vmem:[%s197] sm:$0xf]
      %2161 = vrot.lane.b32.xlu0 %v2159, 2
      %v2162 = vpop.permute.xlu0 %2161
      %v2164 = vmul.f32 %v2158, %v2162
      %v2165 = vadd.f32 %v2164, 0.0
      %v2166 = vld [vmem:[%s214] sm:$0xf]
      %2168 = vrot.lane.b32.xlu0 %v2166, 2
      %v2169 = vpop.permute.xlu0 %2168
      %v2171 = vmul.f32 %v2158, %v2169
      %v2172 = vadd.f32 %v2171, 0.0
      %v2173 = vld [vmem:[%s222] sm:$0xf]
      %2175 = vrot.lane.b32.xlu0 %v2173, 2
      %v2176 = vpop.permute.xlu0 %2175
      %v2178 = vmul.f32 %v2158, %v2176
      %v2179 = vadd.f32 %v2178, 0.0
      %v2180 = vld [vmem:[%s230] sm:$0xf]
      %2182 = vrot.lane.b32.xlu0 %v2180, 2
      %v2183 = vpop.permute.xlu0 %2182
      %v2185 = vmul.f32 %v2158, %v2183
      %v2186 = vadd.f32 %v2185, 0.0
      %v2187 = vld [vmem:[%s238] sm:$0xf]
      %2189 = vrot.lane.b32.xlu0 %v2187, 2
      %v2190 = vpop.permute.xlu0 %2189
      %v2192 = vmul.f32 %v2158, %v2190
      %v2193 = vadd.f32 %v2192, 0.0
      %v2194 = vld [vmem:[%s246] sm:$0xf]
      %2196 = vrot.lane.b32.xlu0 %v2194, 2
      %v2197 = vpop.permute.xlu0 %2196
      %v2199 = vmul.f32 %v2158, %v2197
      %v2200 = vadd.f32 %v2199, 0.0
      %v2201 = vld [vmem:[%s254] sm:$0xf]
      %2203 = vrot.lane.b32.xlu0 %v2201, 2
      %v2204 = vpop.permute.xlu0 %2203
      %v2206 = vmul.f32 %v2158, %v2204
      %v2207 = vadd.f32 %v2206, 0.0
      %v2208 = vld [vmem:[%s262] sm:$0xf]
      %2210 = vrot.lane.b32.xlu0 %v2208, 2
      %v2211 = vpop.permute.xlu0 %2210
      %v2213 = vmul.f32 %v2158, %v2211
      %v2214 = vadd.f32 %v2213, 0.0
      %v2215 = vld [vmem:[%s270] sm:$0xf]
      %2217 = vrot.lane.b32.xlu0 %v2215, 2
      %v2218 = vpop.permute.xlu0 %2217
      %v2220 = vmul.f32 %v2158, %v2218
      %v2221 = vadd.f32 %v2220, 0.0
      %v2222 = vld [vmem:[%s278] sm:$0xf]
      %v2223 = vld [vmem:[%s280] sm:$0xf]
      %2225 = vrot.lane.b32.xlu0 %v2223, 2
      %v2226 = vpop.permute.xlu0 %2225
      %v2228 = vmul.f32 %v2222, %v2226
      %v2229 = vadd.f32 %v2165, %v2228
      %v2230 = vld [vmem:[%s288] sm:$0xf]
      %2232 = vrot.lane.b32.xlu0 %v2230, 2
      %v2233 = vpop.permute.xlu0 %2232
      %v2235 = vmul.f32 %v2222, %v2233
      %v2236 = vadd.f32 %v2172, %v2235
      %v2237 = vld [vmem:[%s296] sm:$0xf]
      %2239 = vrot.lane.b32.xlu0 %v2237, 2
      %v2240 = vpop.permute.xlu0 %2239
      %v2242 = vmul.f32 %v2222, %v2240
      %v2243 = vadd.f32 %v2179, %v2242
      %v2244 = vld [vmem:[%s304] sm:$0xf]
      %2246 = vrot.lane.b32.xlu0 %v2244, 2
      %v2247 = vpop.permute.xlu0 %2246
      %v2249 = vmul.f32 %v2222, %v2247
      %v2250 = vadd.f32 %v2186, %v2249
      %v2251 = vld [vmem:[%s312] sm:$0xf]
      %2253 = vrot.lane.b32.xlu0 %v2251, 2
      %v2254 = vpop.permute.xlu0 %2253
      %v2256 = vmul.f32 %v2222, %v2254
      %v2257 = vadd.f32 %v2193, %v2256
      %v2258 = vld [vmem:[%s320] sm:$0xf]
      %2260 = vrot.lane.b32.xlu0 %v2258, 2
      %v2261 = vpop.permute.xlu0 %2260
      %v2263 = vmul.f32 %v2222, %v2261
      %v2264 = vadd.f32 %v2200, %v2263
      %v2265 = vld [vmem:[%s328] sm:$0xf]
      %2267 = vrot.lane.b32.xlu0 %v2265, 2
      %v2268 = vpop.permute.xlu0 %2267
      %v2270 = vmul.f32 %v2222, %v2268
      %v2271 = vadd.f32 %v2207, %v2270
      %v2272 = vld [vmem:[%s336] sm:$0xf]
      %2274 = vrot.lane.b32.xlu0 %v2272, 2
      %v2275 = vpop.permute.xlu0 %2274
      %v2277 = vmul.f32 %v2222, %v2275
      %v2278 = vadd.f32 %v2214, %v2277
      %v2279 = vld [vmem:[%s344] sm:$0xf]
      %2281 = vrot.lane.b32.xlu0 %v2279, 2
      %v2282 = vpop.permute.xlu0 %2281
      %v2284 = vmul.f32 %v2222, %v2282
      %v2285 = vadd.f32 %v2221, %v2284
      %v2286 = vld [vmem:[%s352] sm:$0xf]
      %v2287 = vld [vmem:[%s354] sm:$0xf]
      %2289 = vrot.lane.b32.xlu0 %v2287, 2
      %v2290 = vpop.permute.xlu0 %2289
      %v2292 = vmul.f32 %v2286, %v2290
      %v2293 = vadd.f32 %v2229, %v2292
      %v2294 = vld [vmem:[%s362] sm:$0xf]
      %2296 = vrot.lane.b32.xlu0 %v2294, 2
      %v2297 = vpop.permute.xlu0 %2296
      %v2299 = vmul.f32 %v2286, %v2297
      %v2300 = vadd.f32 %v2236, %v2299
      %v2301 = vld [vmem:[%s370] sm:$0xf]
      %2303 = vrot.lane.b32.xlu0 %v2301, 2
      %v2304 = vpop.permute.xlu0 %2303
      %v2306 = vmul.f32 %v2286, %v2304
      %v2307 = vadd.f32 %v2243, %v2306
      %v2308 = vld [vmem:[%s378] sm:$0xf]
      %2310 = vrot.lane.b32.xlu0 %v2308, 2
      %v2311 = vpop.permute.xlu0 %2310
      %v2313 = vmul.f32 %v2286, %v2311
      %v2314 = vadd.f32 %v2250, %v2313
      %v2315 = vld [vmem:[%s386] sm:$0xf]
      %2317 = vrot.lane.b32.xlu0 %v2315, 2
      %v2318 = vpop.permute.xlu0 %2317
      %v2320 = vmul.f32 %v2286, %v2318
      %v2321 = vadd.f32 %v2257, %v2320
      %v2322 = vld [vmem:[%s394] sm:$0xf]
      %2324 = vrot.lane.b32.xlu0 %v2322, 2
      %v2325 = vpop.permute.xlu0 %2324
      %v2327 = vmul.f32 %v2286, %v2325
      %v2328 = vadd.f32 %v2264, %v2327
      %v2329 = vld [vmem:[%s402] sm:$0xf]
      %2331 = vrot.lane.b32.xlu0 %v2329, 2
      %v2332 = vpop.permute.xlu0 %2331
      %v2334 = vmul.f32 %v2286, %v2332
      %v2335 = vadd.f32 %v2271, %v2334
      %v2336 = vld [vmem:[%s410] sm:$0xf]
      %2338 = vrot.lane.b32.xlu0 %v2336, 2
      %v2339 = vpop.permute.xlu0 %2338
      %v2341 = vmul.f32 %v2286, %v2339
      %v2342 = vadd.f32 %v2278, %v2341
      %v2343 = vld [vmem:[%s418] sm:$0xf]
      %2345 = vrot.lane.b32.xlu0 %v2343, 2
      %v2346 = vpop.permute.xlu0 %2345
      %v2348 = vmul.f32 %v2286, %v2346
      %v2349 = vadd.f32 %v2285, %v2348
      %v2350 = vld [vmem:[%s426] sm:$0xf]
      %v2351 = vld [vmem:[%s428] sm:$0xf]
      %2353 = vrot.lane.b32.xlu0 %v2351, 2
      %v2354 = vpop.permute.xlu0 %2353
      %v2356 = vmul.f32 %v2350, %v2354
      %v2357 = vadd.f32 %v2293, %v2356
      %v2358 = vld [vmem:[%s436] sm:$0xf]
      %2360 = vrot.lane.b32.xlu0 %v2358, 2
      %v2361 = vpop.permute.xlu0 %2360
      %v2363 = vmul.f32 %v2350, %v2361
      %v2364 = vadd.f32 %v2300, %v2363
      %v2365 = vld [vmem:[%s444] sm:$0xf]
      %2367 = vrot.lane.b32.xlu0 %v2365, 2
      %v2368 = vpop.permute.xlu0 %2367
      %v2370 = vmul.f32 %v2350, %v2368
      %v2371 = vadd.f32 %v2307, %v2370
      %v2372 = vld [vmem:[%s452] sm:$0xf]
      %2374 = vrot.lane.b32.xlu0 %v2372, 2
      %v2375 = vpop.permute.xlu0 %2374
      %v2377 = vmul.f32 %v2350, %v2375
      %v2378 = vadd.f32 %v2314, %v2377
      %v2379 = vld [vmem:[%s460] sm:$0xf]
      %2381 = vrot.lane.b32.xlu0 %v2379, 2
      %v2382 = vpop.permute.xlu0 %2381
      %v2384 = vmul.f32 %v2350, %v2382
      %v2385 = vadd.f32 %v2321, %v2384
      %v2386 = vld [vmem:[%s468] sm:$0xf]
      %2388 = vrot.lane.b32.xlu0 %v2386, 2
      %v2389 = vpop.permute.xlu0 %2388
      %v2391 = vmul.f32 %v2350, %v2389
      %v2392 = vadd.f32 %v2328, %v2391
      %v2393 = vld [vmem:[%s476] sm:$0xf]
      %2395 = vrot.lane.b32.xlu0 %v2393, 2
      %v2396 = vpop.permute.xlu0 %2395
      %v2398 = vmul.f32 %v2350, %v2396
      %v2399 = vadd.f32 %v2335, %v2398
      %v2400 = vld [vmem:[%s484] sm:$0xf]
      %2402 = vrot.lane.b32.xlu0 %v2400, 2
      %v2403 = vpop.permute.xlu0 %2402
      %v2405 = vmul.f32 %v2350, %v2403
      %v2406 = vadd.f32 %v2342, %v2405
      %v2407 = vld [vmem:[%s492] sm:$0xf]
      %2409 = vrot.lane.b32.xlu0 %v2407, 2
      %v2410 = vpop.permute.xlu0 %2409
      %v2412 = vmul.f32 %v2350, %v2410
      %v2413 = vadd.f32 %v2349, %v2412
      %v2414 = vmul.f32 %v2357, 0.25
      %2416 = vrot.lane.b32.xlu0 %v2414, 120
      %v2417 = vpop.permute.xlu0 %2416
      %s2419 = scalar_lea.vmem %s205, 24
      %2420 = vst.msk [vmem:[%s2419] sm:$0xf] %vm505, %v2417
      %v2421 = vmul.f32 %v2364, 0.25
      %2423 = vrot.lane.b32.xlu0 %v2421, 120
      %v2424 = vpop.permute.xlu0 %2423
      %s2426 = scalar_lea.vmem %s205, 60
      %2427 = vst.msk [vmem:[%s2426] sm:$0xf] %vm505, %v2424
      %v2428 = vmul.f32 %v2371, 0.25
      %2430 = vrot.lane.b32.xlu0 %v2428, 120
      %v2431 = vpop.permute.xlu0 %2430
      %s2433 = scalar_lea.vmem %s205, 96
      %2434 = vst.msk [vmem:[%s2433] sm:$0xf] %vm505, %v2431
      %v2435 = vmul.f32 %v2378, 0.25
      %2437 = vrot.lane.b32.xlu0 %v2435, 120
      %v2438 = vpop.permute.xlu0 %2437
      %s2440 = scalar_lea.vmem %s205, 132
      %2441 = vst.msk [vmem:[%s2440] sm:$0xf] %vm505, %v2438
      %v2442 = vmul.f32 %v2385, 0.25
      %2444 = vrot.lane.b32.xlu0 %v2442, 120
      %v2445 = vpop.permute.xlu0 %2444
      %s2447 = scalar_lea.vmem %s205, 168
      %2448 = vst.msk [vmem:[%s2447] sm:$0xf] %vm505, %v2445
      %v2449 = vmul.f32 %v2392, 0.25
      %2451 = vrot.lane.b32.xlu0 %v2449, 120
      %v2452 = vpop.permute.xlu0 %2451
      %s2454 = scalar_lea.vmem %s205, 204
      %2455 = vst.msk [vmem:[%s2454] sm:$0xf] %vm505, %v2452
      %v2456 = vmul.f32 %v2399, 0.25
      %2458 = vrot.lane.b32.xlu0 %v2456, 120
      %v2459 = vpop.permute.xlu0 %2458
      %s2461 = scalar_lea.vmem %s205, 240
      %2462 = vst.msk [vmem:[%s2461] sm:$0xf] %vm505, %v2459
      %v2463 = vmul.f32 %v2406, 0.25
      %2465 = vrot.lane.b32.xlu0 %v2463, 120
      %v2466 = vpop.permute.xlu0 %2465
      %s2468 = scalar_lea.vmem %s205, 276
      %2469 = vst.msk [vmem:[%s2468] sm:$0xf] %vm505, %v2466
      %v2470 = vmul.f32 %v2413, 0.25
      %2472 = vrot.lane.b32.xlu0 %v2470, 120
      %v2473 = vpop.permute.xlu0 %2472
      %s2475 = scalar_lea.vmem %s205, 312
      %2476 = vst.msk [vmem:[%s2475] sm:$0xf] %vm505, %v2473
      %v2477 = vld [vmem:[%s189] sm:$0xf]
      %v2478 = vld [vmem:[%s197] sm:$0xf]
      %2480 = vrot.lane.b32.xlu0 %v2478, 1
      %v2481 = vpop.permute.xlu0 %2480
      %v2483 = vmul.f32 %v2477, %v2481
      %v2484 = vadd.f32 %v2483, 0.0
      %v2485 = vld [vmem:[%s214] sm:$0xf]
      %2487 = vrot.lane.b32.xlu0 %v2485, 1
      %v2488 = vpop.permute.xlu0 %2487
      %v2490 = vmul.f32 %v2477, %v2488
      %v2491 = vadd.f32 %v2490, 0.0
      %v2492 = vld [vmem:[%s222] sm:$0xf]
      %2494 = vrot.lane.b32.xlu0 %v2492, 1
      %v2495 = vpop.permute.xlu0 %2494
      %v2497 = vmul.f32 %v2477, %v2495
      %v2498 = vadd.f32 %v2497, 0.0
      %v2499 = vld [vmem:[%s230] sm:$0xf]
      %2501 = vrot.lane.b32.xlu0 %v2499, 1
      %v2502 = vpop.permute.xlu0 %2501
      %v2504 = vmul.f32 %v2477, %v2502
      %v2505 = vadd.f32 %v2504, 0.0
      %v2506 = vld [vmem:[%s238] sm:$0xf]
      %2508 = vrot.lane.b32.xlu0 %v2506, 1
      %v2509 = vpop.permute.xlu0 %2508
      %v2511 = vmul.f32 %v2477, %v2509
      %v2512 = vadd.f32 %v2511, 0.0
      %v2513 = vld [vmem:[%s246] sm:$0xf]
      %2515 = vrot.lane.b32.xlu0 %v2513, 1
      %v2516 = vpop.permute.xlu0 %2515
      %v2518 = vmul.f32 %v2477, %v2516
      %v2519 = vadd.f32 %v2518, 0.0
      %v2520 = vld [vmem:[%s254] sm:$0xf]
      %2522 = vrot.lane.b32.xlu0 %v2520, 1
      %v2523 = vpop.permute.xlu0 %2522
      %v2525 = vmul.f32 %v2477, %v2523
      %v2526 = vadd.f32 %v2525, 0.0
      %v2527 = vld [vmem:[%s262] sm:$0xf]
      %2529 = vrot.lane.b32.xlu0 %v2527, 1
      %v2530 = vpop.permute.xlu0 %2529
      %v2532 = vmul.f32 %v2477, %v2530
      %v2533 = vadd.f32 %v2532, 0.0
      %v2534 = vld [vmem:[%s270] sm:$0xf]
      %2536 = vrot.lane.b32.xlu0 %v2534, 1
      %v2537 = vpop.permute.xlu0 %2536
      %v2539 = vmul.f32 %v2477, %v2537
      %v2540 = vadd.f32 %v2539, 0.0
      %v2541 = vld [vmem:[%s278] sm:$0xf]
      %v2542 = vld [vmem:[%s280] sm:$0xf]
      %2544 = vrot.lane.b32.xlu0 %v2542, 1
      %v2545 = vpop.permute.xlu0 %2544
      %v2547 = vmul.f32 %v2541, %v2545
      %v2548 = vadd.f32 %v2484, %v2547
      %v2549 = vld [vmem:[%s288] sm:$0xf]
      %2551 = vrot.lane.b32.xlu0 %v2549, 1
      %v2552 = vpop.permute.xlu0 %2551
      %v2554 = vmul.f32 %v2541, %v2552
      %v2555 = vadd.f32 %v2491, %v2554
      %v2556 = vld [vmem:[%s296] sm:$0xf]
      %2558 = vrot.lane.b32.xlu0 %v2556, 1
      %v2559 = vpop.permute.xlu0 %2558
      %v2561 = vmul.f32 %v2541, %v2559
      %v2562 = vadd.f32 %v2498, %v2561
      %v2563 = vld [vmem:[%s304] sm:$0xf]
      %2565 = vrot.lane.b32.xlu0 %v2563, 1
      %v2566 = vpop.permute.xlu0 %2565
      %v2568 = vmul.f32 %v2541, %v2566
      %v2569 = vadd.f32 %v2505, %v2568
      %v2570 = vld [vmem:[%s312] sm:$0xf]
      %2572 = vrot.lane.b32.xlu0 %v2570, 1
      %v2573 = vpop.permute.xlu0 %2572
      %v2575 = vmul.f32 %v2541, %v2573
      %v2576 = vadd.f32 %v2512, %v2575
      %v2577 = vld [vmem:[%s320] sm:$0xf]
      %2579 = vrot.lane.b32.xlu0 %v2577, 1
      %v2580 = vpop.permute.xlu0 %2579
      %v2582 = vmul.f32 %v2541, %v2580
      %v2583 = vadd.f32 %v2519, %v2582
      %v2584 = vld [vmem:[%s328] sm:$0xf]
      %2586 = vrot.lane.b32.xlu0 %v2584, 1
      %v2587 = vpop.permute.xlu0 %2586
      %v2589 = vmul.f32 %v2541, %v2587
      %v2590 = vadd.f32 %v2526, %v2589
      %v2591 = vld [vmem:[%s336] sm:$0xf]
      %2593 = vrot.lane.b32.xlu0 %v2591, 1
      %v2594 = vpop.permute.xlu0 %2593
      %v2596 = vmul.f32 %v2541, %v2594
      %v2597 = vadd.f32 %v2533, %v2596
      %v2598 = vld [vmem:[%s344] sm:$0xf]
      %2600 = vrot.lane.b32.xlu0 %v2598, 1
      %v2601 = vpop.permute.xlu0 %2600
      %v2603 = vmul.f32 %v2541, %v2601
      %v2604 = vadd.f32 %v2540, %v2603
      %v2605 = vld [vmem:[%s352] sm:$0xf]
      %v2606 = vld [vmem:[%s354] sm:$0xf]
      %2608 = vrot.lane.b32.xlu0 %v2606, 1
      %v2609 = vpop.permute.xlu0 %2608
      %v2611 = vmul.f32 %v2605, %v2609
      %v2612 = vadd.f32 %v2548, %v2611
      %v2613 = vld [vmem:[%s362] sm:$0xf]
      %2615 = vrot.lane.b32.xlu0 %v2613, 1
      %v2616 = vpop.permute.xlu0 %2615
      %v2618 = vmul.f32 %v2605, %v2616
      %v2619 = vadd.f32 %v2555, %v2618
      %v2620 = vld [vmem:[%s370] sm:$0xf]
      %2622 = vrot.lane.b32.xlu0 %v2620, 1
      %v2623 = vpop.permute.xlu0 %2622
      %v2625 = vmul.f32 %v2605, %v2623
      %v2626 = vadd.f32 %v2562, %v2625
      %v2627 = vld [vmem:[%s378] sm:$0xf]
      %2629 = vrot.lane.b32.xlu0 %v2627, 1
      %v2630 = vpop.permute.xlu0 %2629
      %v2632 = vmul.f32 %v2605, %v2630
      %v2633 = vadd.f32 %v2569, %v2632
      %v2634 = vld [vmem:[%s386] sm:$0xf]
      %2636 = vrot.lane.b32.xlu0 %v2634, 1
      %v2637 = vpop.permute.xlu0 %2636
      %v2639 = vmul.f32 %v2605, %v2637
      %v2640 = vadd.f32 %v2576, %v2639
      %v2641 = vld [vmem:[%s394] sm:$0xf]
      %2643 = vrot.lane.b32.xlu0 %v2641, 1
      %v2644 = vpop.permute.xlu0 %2643
      %v2646 = vmul.f32 %v2605, %v2644
      %v2647 = vadd.f32 %v2583, %v2646
      %v2648 = vld [vmem:[%s402] sm:$0xf]
      %2650 = vrot.lane.b32.xlu0 %v2648, 1
      %v2651 = vpop.permute.xlu0 %2650
      %v2653 = vmul.f32 %v2605, %v2651
      %v2654 = vadd.f32 %v2590, %v2653
      %v2655 = vld [vmem:[%s410] sm:$0xf]
      %2657 = vrot.lane.b32.xlu0 %v2655, 1
      %v2658 = vpop.permute.xlu0 %2657
      %v2660 = vmul.f32 %v2605, %v2658
      %v2661 = vadd.f32 %v2597, %v2660
      %v2662 = vld [vmem:[%s418] sm:$0xf]
      %2664 = vrot.lane.b32.xlu0 %v2662, 1
      %v2665 = vpop.permute.xlu0 %2664
      %v2667 = vmul.f32 %v2605, %v2665
      %v2668 = vadd.f32 %v2604, %v2667
      %v2669 = vld [vmem:[%s426] sm:$0xf]
      %v2670 = vld [vmem:[%s428] sm:$0xf]
      %2672 = vrot.lane.b32.xlu0 %v2670, 1
      %v2673 = vpop.permute.xlu0 %2672
      %v2675 = vmul.f32 %v2669, %v2673
      %v2676 = vadd.f32 %v2612, %v2675
      %v2677 = vld [vmem:[%s436] sm:$0xf]
      %2679 = vrot.lane.b32.xlu0 %v2677, 1
      %v2680 = vpop.permute.xlu0 %2679
      %v2682 = vmul.f32 %v2669, %v2680
      %v2683 = vadd.f32 %v2619, %v2682
      %v2684 = vld [vmem:[%s444] sm:$0xf]
      %2686 = vrot.lane.b32.xlu0 %v2684, 1
      %v2687 = vpop.permute.xlu0 %2686
      %v2689 = vmul.f32 %v2669, %v2687
      %v2690 = vadd.f32 %v2626, %v2689
      %v2691 = vld [vmem:[%s452] sm:$0xf]
      %2693 = vrot.lane.b32.xlu0 %v2691, 1
      %v2694 = vpop.permute.xlu0 %2693
      %v2696 = vmul.f32 %v2669, %v2694
      %v2697 = vadd.f32 %v2633, %v2696
      %v2698 = vld [vmem:[%s460] sm:$0xf]
      %2700 = vrot.lane.b32.xlu0 %v2698, 1
      %v2701 = vpop.permute.xlu0 %2700
      %v2703 = vmul.f32 %v2669, %v2701
      %v2704 = vadd.f32 %v2640, %v2703
      %v2705 = vld [vmem:[%s468] sm:$0xf]
      %2707 = vrot.lane.b32.xlu0 %v2705, 1
      %v2708 = vpop.permute.xlu0 %2707
      %v2710 = vmul.f32 %v2669, %v2708
      %v2711 = vadd.f32 %v2647, %v2710
      %v2712 = vld [vmem:[%s476] sm:$0xf]
      %2714 = vrot.lane.b32.xlu0 %v2712, 1
      %v2715 = vpop.permute.xlu0 %2714
      %v2717 = vmul.f32 %v2669, %v2715
      %v2718 = vadd.f32 %v2654, %v2717
      %v2719 = vld [vmem:[%s484] sm:$0xf]
      %2721 = vrot.lane.b32.xlu0 %v2719, 1
      %v2722 = vpop.permute.xlu0 %2721
      %v2724 = vmul.f32 %v2669, %v2722
      %v2725 = vadd.f32 %v2661, %v2724
      %v2726 = vld [vmem:[%s492] sm:$0xf]
      %2728 = vrot.lane.b32.xlu0 %v2726, 1
      %v2729 = vpop.permute.xlu0 %2728
      %v2731 = vmul.f32 %v2669, %v2729
      %v2732 = vadd.f32 %v2668, %v2731
      %v2733 = vmul.f32 %v2676, 0.25
      %2735 = vrot.lane.b32.xlu0 %v2733, 120
      %v2736 = vpop.permute.xlu0 %2735
      %s2738 = scalar_lea.vmem %s205, 28
      %2739 = vst.msk [vmem:[%s2738] sm:$0xf] %vm505, %v2736
      %v2740 = vmul.f32 %v2683, 0.25
      %2742 = vrot.lane.b32.xlu0 %v2740, 120
      %v2743 = vpop.permute.xlu0 %2742
      %s2745 = scalar_lea.vmem %s205, 64
      %2746 = vst.msk [vmem:[%s2745] sm:$0xf] %vm505, %v2743
      %v2747 = vmul.f32 %v2690, 0.25
      %2749 = vrot.lane.b32.xlu0 %v2747, 120
      %v2750 = vpop.permute.xlu0 %2749
      %s2752 = scalar_lea.vmem %s205, 100
      %2753 = vst.msk [vmem:[%s2752] sm:$0xf] %vm505, %v2750
      %v2754 = vmul.f32 %v2697, 0.25
      %2756 = vrot.lane.b32.xlu0 %v2754, 120
      %v2757 = vpop.permute.xlu0 %2756
      %s2759 = scalar_lea.vmem %s205, 136
      %2760 = vst.msk [vmem:[%s2759] sm:$0xf] %vm505, %v2757
      %v2761 = vmul.f32 %v2704, 0.25
      %2763 = vrot.lane.b32.xlu0 %v2761, 120
      %v2764 = vpop.permute.xlu0 %2763
      %s2766 = scalar_lea.vmem %s205, 172
      %2767 = vst.msk [vmem:[%s2766] sm:$0xf] %vm505, %v2764
      %v2768 = vmul.f32 %v2711, 0.25
      %2770 = vrot.lane.b32.xlu0 %v2768, 120
      %v2771 = vpop.permute.xlu0 %2770
      %s2773 = scalar_lea.vmem %s205, 208
      %2774 = vst.msk [vmem:[%s2773] sm:$0xf] %vm505, %v2771
      %v2775 = vmul.f32 %v2718, 0.25
      %2777 = vrot.lane.b32.xlu0 %v2775, 120
      %v2778 = vpop.permute.xlu0 %2777
      %s2780 = scalar_lea.vmem %s205, 244
      %2781 = vst.msk [vmem:[%s2780] sm:$0xf] %vm505, %v2778
      %v2782 = vmul.f32 %v2725, 0.25
      %2784 = vrot.lane.b32.xlu0 %v2782, 120
      %v2785 = vpop.permute.xlu0 %2784
      %s2787 = scalar_lea.vmem %s205, 280
      %2788 = vst.msk [vmem:[%s2787] sm:$0xf] %vm505, %v2785
      %v2789 = vmul.f32 %v2732, 0.25
      %2791 = vrot.lane.b32.xlu0 %v2789, 120
      %v2792 = vpop.permute.xlu0 %2791
      %s2794 = scalar_lea.vmem %s205, 316
      %2795 = vst.msk [vmem:[%s2794] sm:$0xf] %vm505, %v2792
      %v2796 = vld [vmem:[%s189] sm:$0xf]
      %v2797 = vld [vmem:[%s197] sm:$0xf]
      %v2798 = vmul.f32 %v2796, %v2797
      %v2799 = vadd.f32 %v2798, 0.0
      %v2800 = vld [vmem:[%s214] sm:$0xf]
      %v2801 = vmul.f32 %v2796, %v2800
      %v2802 = vadd.f32 %v2801, 0.0
      %v2803 = vld [vmem:[%s222] sm:$0xf]
      %v2804 = vmul.f32 %v2796, %v2803
      %v2805 = vadd.f32 %v2804, 0.0
      %v2806 = vld [vmem:[%s230] sm:$0xf]
      %v2807 = vmul.f32 %v2796, %v2806
      %v2808 = vadd.f32 %v2807, 0.0
      %v2809 = vld [vmem:[%s238] sm:$0xf]
      %v2810 = vmul.f32 %v2796, %v2809
      %v2811 = vadd.f32 %v2810, 0.0
      %v2812 = vld [vmem:[%s246] sm:$0xf]
      %v2813 = vmul.f32 %v2796, %v2812
      %v2814 = vadd.f32 %v2813, 0.0
      %v2815 = vld [vmem:[%s254] sm:$0xf]
      %v2816 = vmul.f32 %v2796, %v2815
      %v2817 = vadd.f32 %v2816, 0.0
      %v2818 = vld [vmem:[%s262] sm:$0xf]
      %v2819 = vmul.f32 %v2796, %v2818
      %v2820 = vadd.f32 %v2819, 0.0
      %v2821 = vld [vmem:[%s270] sm:$0xf]
      %v2822 = vmul.f32 %v2796, %v2821
      %v2823 = vadd.f32 %v2822, 0.0
      %v2824 = vld [vmem:[%s278] sm:$0xf]
      %v2825 = vld [vmem:[%s280] sm:$0xf]
      %v2826 = vmul.f32 %v2824, %v2825
      %v2827 = vadd.f32 %v2799, %v2826
      %v2828 = vld [vmem:[%s288] sm:$0xf]
      %v2829 = vmul.f32 %v2824, %v2828
      %v2830 = vadd.f32 %v2802, %v2829
      %v2831 = vld [vmem:[%s296] sm:$0xf]
      %v2832 = vmul.f32 %v2824, %v2831
      %v2833 = vadd.f32 %v2805, %v2832
      %v2834 = vld [vmem:[%s304] sm:$0xf]
      %v2835 = vmul.f32 %v2824, %v2834
      %v2836 = vadd.f32 %v2808, %v2835
      %v2837 = vld [vmem:[%s312] sm:$0xf]
      %v2838 = vmul.f32 %v2824, %v2837
      %v2839 = vadd.f32 %v2811, %v2838
      %v2840 = vld [vmem:[%s320] sm:$0xf]
      %v2841 = vmul.f32 %v2824, %v2840
      %v2842 = vadd.f32 %v2814, %v2841
      %v2843 = vld [vmem:[%s328] sm:$0xf]
      %v2844 = vmul.f32 %v2824, %v2843
      %v2845 = vadd.f32 %v2817, %v2844
      %v2846 = vld [vmem:[%s336] sm:$0xf]
      %v2847 = vmul.f32 %v2824, %v2846
      %v2848 = vadd.f32 %v2820, %v2847
      %v2849 = vld [vmem:[%s344] sm:$0xf]
      %v2850 = vmul.f32 %v2824, %v2849
      %v2851 = vadd.f32 %v2823, %v2850
      %v2852 = vld [vmem:[%s352] sm:$0xf]
      %v2853 = vld [vmem:[%s354] sm:$0xf]
      %v2854 = vmul.f32 %v2852, %v2853
      %v2855 = vadd.f32 %v2827, %v2854
      %v2856 = vld [vmem:[%s362] sm:$0xf]
      %v2857 = vmul.f32 %v2852, %v2856
      %v2858 = vadd.f32 %v2830, %v2857
      %v2859 = vld [vmem:[%s370] sm:$0xf]
      %v2860 = vmul.f32 %v2852, %v2859
      %v2861 = vadd.f32 %v2833, %v2860
      %v2862 = vld [vmem:[%s378] sm:$0xf]
      %v2863 = vmul.f32 %v2852, %v2862
      %v2864 = vadd.f32 %v2836, %v2863
      %v2865 = vld [vmem:[%s386] sm:$0xf]
      %v2866 = vmul.f32 %v2852, %v2865
      %v2867 = vadd.f32 %v2839, %v2866
      %v2868 = vld [vmem:[%s394] sm:$0xf]
      %v2869 = vmul.f32 %v2852, %v2868
      %v2870 = vadd.f32 %v2842, %v2869
      %v2871 = vld [vmem:[%s402] sm:$0xf]
      %v2872 = vmul.f32 %v2852, %v2871
      %v2873 = vadd.f32 %v2845, %v2872
      %v2874 = vld [vmem:[%s410] sm:$0xf]
      %v2875 = vmul.f32 %v2852, %v2874
      %v2876 = vadd.f32 %v2848, %v2875
      %v2877 = vld [vmem:[%s418] sm:$0xf]
      %v2878 = vmul.f32 %v2852, %v2877
      %v2879 = vadd.f32 %v2851, %v2878
      %v2880 = vld [vmem:[%s426] sm:$0xf]
      %v2881 = vld [vmem:[%s428] sm:$0xf]
      %v2882 = vmul.f32 %v2880, %v2881
      %v2883 = vadd.f32 %v2855, %v2882
      %v2884 = vld [vmem:[%s436] sm:$0xf]
      %v2885 = vmul.f32 %v2880, %v2884
      %v2886 = vadd.f32 %v2858, %v2885
      %v2887 = vld [vmem:[%s444] sm:$0xf]
      %v2888 = vmul.f32 %v2880, %v2887
      %v2889 = vadd.f32 %v2861, %v2888
      %v2890 = vld [vmem:[%s452] sm:$0xf]
      %v2891 = vmul.f32 %v2880, %v2890
      %v2892 = vadd.f32 %v2864, %v2891
      %v2893 = vld [vmem:[%s460] sm:$0xf]
      %v2894 = vmul.f32 %v2880, %v2893
      %v2895 = vadd.f32 %v2867, %v2894
      %v2896 = vld [vmem:[%s468] sm:$0xf]
      %v2897 = vmul.f32 %v2880, %v2896
      %v2898 = vadd.f32 %v2870, %v2897
      %v2899 = vld [vmem:[%s476] sm:$0xf]
      %v2900 = vmul.f32 %v2880, %v2899
      %v2901 = vadd.f32 %v2873, %v2900
      %v2902 = vld [vmem:[%s484] sm:$0xf]
      %v2903 = vmul.f32 %v2880, %v2902
      %v2904 = vadd.f32 %v2876, %v2903
      %v2905 = vld [vmem:[%s492] sm:$0xf]
      %v2906 = vmul.f32 %v2880, %v2905
      %v2907 = vadd.f32 %v2879, %v2906
      %v2908 = vmul.f32 %v2883, 0.25
      %2910 = vrot.lane.b32.xlu0 %v2908, 120
      %v2911 = vpop.permute.xlu0 %2910
      %s2913 = scalar_lea.vmem %s205, 32
      %2914 = vst.msk [vmem:[%s2913] sm:$0xf] %vm505, %v2911
      %v2915 = vmul.f32 %v2886, 0.25
      %2917 = vrot.lane.b32.xlu0 %v2915, 120
      %v2918 = vpop.permute.xlu0 %2917
      %s2920 = scalar_lea.vmem %s205, 68
      %2921 = vst.msk [vmem:[%s2920] sm:$0xf] %vm505, %v2918
      %v2922 = vmul.f32 %v2889, 0.25
      %2924 = vrot.lane.b32.xlu0 %v2922, 120
      %v2925 = vpop.permute.xlu0 %2924
      %s2927 = scalar_lea.vmem %s205, 104
      %2928 = vst.msk [vmem:[%s2927] sm:$0xf] %vm505, %v2925
      %v2929 = vmul.f32 %v2892, 0.25
      %2931 = vrot.lane.b32.xlu0 %v2929, 120
      %v2932 = vpop.permute.xlu0 %2931
      %s2934 = scalar_lea.vmem %s205, 140
      %2935 = vst.msk [vmem:[%s2934] sm:$0xf] %vm505, %v2932
      %v2936 = vmul.f32 %v2895, 0.25
      %2938 = vrot.lane.b32.xlu0 %v2936, 120
      %v2939 = vpop.permute.xlu0 %2938
      %s2941 = scalar_lea.vmem %s205, 176
      %2942 = vst.msk [vmem:[%s2941] sm:$0xf] %vm505, %v2939
      %v2943 = vmul.f32 %v2898, 0.25
      %2945 = vrot.lane.b32.xlu0 %v2943, 120
      %v2946 = vpop.permute.xlu0 %2945
      %s2948 = scalar_lea.vmem %s205, 212
      %2949 = vst.msk [vmem:[%s2948] sm:$0xf] %vm505, %v2946
      %v2950 = vmul.f32 %v2901, 0.25
      %2952 = vrot.lane.b32.xlu0 %v2950, 120
      %v2953 = vpop.permute.xlu0 %2952
      %s2955 = scalar_lea.vmem %s205, 248
      %2956 = vst.msk [vmem:[%s2955] sm:$0xf] %vm505, %v2953
      %v2957 = vmul.f32 %v2904, 0.25
      %2959 = vrot.lane.b32.xlu0 %v2957, 120
      %v2960 = vpop.permute.xlu0 %2959
      %s2962 = scalar_lea.vmem %s205, 284
      %2963 = vst.msk [vmem:[%s2962] sm:$0xf] %vm505, %v2960
      %v2964 = vmul.f32 %v2907, 0.25
      %2966 = vrot.lane.b32.xlu0 %v2964, 120
      %v2967 = vpop.permute.xlu0 %2966
      %s2969 = scalar_lea.vmem %s205, 320
      %2970 = vst.msk [vmem:[%s2969] sm:$0xf] %vm505, %v2967
      %p2971 = scmp.lt.s32.totalorder %s17, 1
      %s2972 = scalar_select %p2971, %s17, 1
      %p2973 = scmp.lt.s32.totalorder %s18, 0
      %s2974 = scalar_select %p2973, %s18, 0
      %s2975 = smul.addr %s2972, 81
      %s2976 = sadd.s32 %s2974, %s2975
      %s2977 = smul.addr %s2976, 4
      %s2978 = scalar_lea.vmem %s2, %s2977
      // Predicated region
      $region29: #{correlation.1} parent=27 // pred_check
        %p2979 = pneg %p101
      $region30: #{correlation.1} parent=27 // pred_check_branch
        %2981 = sbr.rel (%p2979) target = $region32
      $region31: #{correlation.1} parent=27 // pred_region
        _
      $region32: #{correlation.1} parent=27 // pred_fallthru
        _
    $region28: #{correlation.1} parent=5 // pred_fallthru
      _
    %p2982 = scmp.le.s32.totalorder 2, %s8
    // Predicated region
    $region33: #{correlation.1} parent=5 // pred_check
      %p2983 = pneg %p2982
    $region34: #{correlation.1} parent=5 // pred_check_branch
      %2985 = sbr.rel (%p2983) target = $region36
    $region35: #{correlation.1} parent=5 // pred_region
      %s2986 = ssub.s32 %s8, 2
      // Predicated region
      $region37: #{correlation.1} parent=35 // pred_check
        %p2987 = pneg %p107
      $region38: #{correlation.1} parent=35 // pred_check_branch
        %2989 = sbr.rel (%p2987) target = $region40
      $region39: #{correlation.1} parent=35 // pred_region
        %p2990 = scmp.lt.s32.totalorder %s19, 1
        %s2991 = scalar_select %p2990, %s19, 1
        %p2992 = scmp.lt.s32.totalorder %s20, 0
        %s2993 = scalar_select %p2992, %s20, 0
        %s2994 = smul.addr %s2991, 81
        %s2995 = sadd.s32 %s2993, %s2994
        %s2996 = smul.addr %s2995, 4
        %s2997 = scalar_lea.vmem %s2, %s2996
      $region40: #{correlation.1} parent=35 // pred_fallthru
        _
    $region36: #{correlation.1} parent=5 // pred_fallthru
      _
  $region6: #{correlation.1} parent=0 // loop_footer
    %s12 = sadd.s32 1, %s8
  $region7: #{correlation.1} parent=0 // loop_footer_branch
    %7 = sbr.rel target = $region3
  $region8: #{correlation.1} parent=0 // loop_exit
    _

</llo_original>
